<compile_context>
chip_gen: v7x
topology: tpu7x:2x2x1
jax: 0.10.0
libtpu: 0.0.40
codegen_flags: <defaults>
</compile_context>

<pallas_src>
import functools

import jax
import jax.numpy as jnp
from jax import lax
from jax.experimental import pallas as pl
from jax.experimental.pallas import tpu as pltpu


def _pick_vmem_limit():
    """Per-generation scoped-VMEM limit with headroom for Mosaic scratch."""
    cap = None
    try:
        info = pltpu.get_tpu_info()
        for name in ("vmem_capacity_bytes", "vmem_bytes", "vmem_size_bytes"):
            v = getattr(info, name, None)
            if v:
                cap = int(v)
                break
    except Exception:
        cap = None
    if not cap:
        cap = 128 * 1024 * 1024          # v5e/v6e physical
    return int(max(min(64 * 1024 * 1024, cap - 16 * 1024 * 1024),
                   16 * 1024 * 1024))


VMEM_LIMIT = _pick_vmem_limit()


# ----------------------------------------------------------------------------
# small helpers
# ----------------------------------------------------------------------------
def _elu(y):
    return jnp.where(y > 0, y, jnp.exp(jnp.minimum(y, 0.0)) - 1.0)


def _softmax_cols(s):
    """Softmax over axis 0 of an (N, 1) column of scores (in-kernel)."""
    m = jnp.max(s, axis=0, keepdims=True)
    e = jnp.exp(s - m)
    return e * pl.reciprocal(jnp.sum(e, axis=0, keepdims=True), approx=True)


def _tile(dim, cap, align):
    """Largest multiple of `align` that divides `dim`, capped at `cap`;
    falls back to the full dim (exact block) when no such divisor exists."""
    t = (min(cap, dim) // align) * align
    while t >= align:
        if dim % t == 0:
            return t
        t -= align
    return dim


def _pick_tb(b):
    """Batch tile for the fused MAC kernel (multiple of 8, or the full batch)."""
    for t in (16, 8):
        if b % t == 0:
            return t
    return b


# ----------------------------------------------------------------------------
# Tiled linear kernel: y = x @ w_t + b (+activation), f32 accumulator in VMEM.
# grid = (M tiles, N tiles, K tiles); M/N 'parallel' (megacore), K 'arbitrary'.
# ----------------------------------------------------------------------------
def _linear_kernel(x_ref, w_ref, b_ref, o_ref, acc_ref, *, act, nk):
    @pl.when(pl.program_id(2) == 0)
    def _init():
        acc_ref[...] = jnp.zeros_like(acc_ref)

    acc_ref[...] += jnp.dot(x_ref[...], w_ref[...],
                            preferred_element_type=jnp.float32)

    @pl.when(pl.program_id(2) == nk - 1)
    def _finalize():
        y = acc_ref[...] + b_ref[...]
        if act == "elu":
            y = _elu(y)
        elif act == "tanh":
            y = jnp.tanh(y)
        o_ref[...] = y.astype(o_ref.dtype)


def pallas_linear(x, w_t, b, act="none", *, tm_cap=512, tk_cap=512, tn_cap=512):
    """x:(M,K) @ w_t:(K,N) + b:(N,). Weights are pre-transposed in the wrapper."""
    M, K = x.shape
    N = w_t.shape[1]
    tm = _tile(M, tm_cap, 8)
    tk = _tile(K, tk_cap, 128)
    tn = _tile(N, tn_cap, 128)
    gm, gn, gk = M // tm, N // tn, K // tk
    return pl.pallas_call(
        functools.partial(_linear_kernel, act=act, nk=gk),
        out_shape=jax.ShapeDtypeStruct((M, N), jnp.float32),
        grid=(gm, gn, gk),
        in_specs=[pl.BlockSpec((tm, tk), lambda i, j, k: (i, k)),
                  pl.BlockSpec((tk, tn), lambda i, j, k: (k, j)),
                  pl.BlockSpec((1, tn), lambda i, j, k: (0, j))],
        out_specs=pl.BlockSpec((tm, tn), lambda i, j, k: (i, j)),
        scratch_shapes=[pltpu.VMEM((tm, tn), jnp.float32)],
        compiler_params=pltpu.CompilerParams(
            dimension_semantics=("parallel", "parallel", "arbitrary"),
            vmem_limit_bytes=VMEM_LIMIT),
    )(x, w_t, b.reshape(1, N))


# ----------------------------------------------------------------------------
# Fused 3x3 conv (padding=1) + bias + ELU.
# Wrapper does a width-only im2col (3 kw-shifted column views stacked on the
# channel axis); kernel grids over (image, kh-tap) and accumulates the 3 row
# taps into a VMEM scratch.  Output block is exactly (H*W, O): no padded
# columns to drop, no extra HBM feature-map copy between conv1 -> conv2.
# ----------------------------------------------------------------------------
def _conv3x3_kernel(x_ref, w_ref, b_ref, o_ref, acc_ref, *, W, M):
    t = pl.program_id(1)

    @pl.when(t == 0)
    def _init():
        acc_ref[...] = jnp.zeros_like(acc_ref)

    start = t * W
    if W % 8 == 0:
        start = pl.multiple_of(start, 8)          # aligned tap offsets
    patch = x_ref[pl.ds(start, M), :]             # (M, 3*Cin)
    acc_ref[...] += jnp.dot(patch, w_ref[...],
                            preferred_element_type=jnp.float32)

    @pl.when(t == pl.num_programs(1) - 1)
    def _finalize():
        o_ref[...] = _elu(acc_ref[...] + b_ref[...]).astype(o_ref.dtype)


def conv2d_3x3_fused(x_nhwc, w, b):
    """x:(B,H,W,Cin) NHWC, w:(O,Cin,3,3) torch layout, b:(O,). Returns NHWC."""
    B, H, W, Cin = x_nhwc.shape
    O = w.shape[0]
    xp = jnp.pad(x_nhwc, ((0, 0), (1, 1), (1, 1), (0, 0)))      # (B, H+2, W+2, Cin)
    # width-only im2col: concat the 3 kw-shifted column views on the channel axis
    xcat = jnp.concatenate([xp[:, :, 0:W, :],
                            xp[:, :, 1:W + 1, :],
                            xp[:, :, 2:W + 2, :]], axis=-1)      # (B, H+2, W, 3Cin)
    R3 = (H + 2) * W
    M = H * W
    xflat = xcat.reshape(B, R3, 3 * Cin)
    # weight per kh tap: (3*Cin, O), kw-major channel stacking to match xcat
    w3 = jnp.transpose(w, (2, 3, 1, 0)).reshape(3, 3 * Cin, O)

    y = pl.pallas_call(
        functools.partial(_conv3x3_kernel, W=W, M=M),
        out_shape=jax.ShapeDtypeStruct((B, M, O), jnp.float32),
        grid=(B, 3),
        in_specs=[pl.BlockSpec((None, R3, 3 * Cin), lambda bb, t: (bb, 0, 0)),
                  pl.BlockSpec((None, 3 * Cin, O), lambda bb, t: (t, 0, 0)),
                  pl.BlockSpec((1, O), lambda bb, t: (0, 0))],
        out_specs=pl.BlockSpec((None, M, O), lambda bb, t: (bb, 0, 0)),
        scratch_shapes=[pltpu.VMEM((M, O), jnp.float32)],
        compiler_params=pltpu.CompilerParams(
            dimension_semantics=("parallel", "arbitrary"),
            vmem_limit_bytes=VMEM_LIMIT),
    )(xflat, w3, b.reshape(1, O))

    return y.reshape(B, H, W, O)


# ----------------------------------------------------------------------------
# Fused MAC recurrence: ONE pallas_call, grid = (batch_tiles, max_step).
# memory persists in a VMEM scratch across the step axis; per-step control
# weights are indexed by the step grid index; everything else stays resident.
# ----------------------------------------------------------------------------
def _mac_fused_kernel(qs_ref, cvec_ref, cmask_ref, kp_ref, kb1_ref, mem0_ref,
                      wd_ref, bd_ref,
                      wca_ref, wpm_ref, bpm_ref, w1a_ref, w2_ref, b2_ref,
                      wra_ref, wwm_ref, wwi_ref, bw_ref,
                      memout_ref, mem_sc, *, tb):
    f32 = jnp.float32
    s = pl.program_id(1)

    @pl.when(s == 0)
    def _init():
        mem_sc[...] = jnp.broadcast_to(mem0_ref[...], mem_sc.shape)

    mem = mem_sc[...]                                                  # (TB, D)

    # Batched projections (the previously M=1 GEMMs), now (TB,D)@(D,D):
    q = jnp.dot(qs_ref[...], wd_ref[...], preferred_element_type=f32) + bd_ref[...]
    qw = q * wca_ref[...]                                              # (TB, D)
    mp = jnp.dot(mem, wpm_ref[...], preferred_element_type=f32) + bpm_ref[...]

    info_rows = []
    for j in range(tb):
        # ---- ControlUnit attention (mul + XLU reduce, no M=1 MXU pushes) ----
        cvec_j = cvec_ref[j]                                           # (T, D)
        cs_j = jnp.sum(qw[j:j + 1, :] * cvec_j, axis=-1, keepdims=True)
        cs_j = cs_j + cmask_ref[j]                                     # (T, 1)
        # scalar attn bias omitted: constant across the softmax axis (cancels)
        ca_j = _softmax_cols(cs_j)
        control_j = jnp.sum(ca_j * cvec_j, axis=0, keepdims=True)      # (1, D)

        # ---- ReadUnit ----
        kp_j = kp_ref[j]                                               # (HW, D)
        out_j = mp[j:j + 1, :] * kp_j                                  # (HW, D)
        inter_j = jnp.dot(out_j, w1a_ref[...],
                          preferred_element_type=f32) + kb1_ref[j]
        inter_j = _elu(inter_j)
        inter_j = jnp.dot(inter_j, w2_ref[...],
                          preferred_element_type=f32) + b2_ref[...]
        inter_j = _elu(inter_j * control_j)
        rs_j = jnp.sum(inter_j * wra_ref[...], axis=-1, keepdims=True)  # (HW, 1)
        # knowledge mask is identically zero on the clevr path -> omitted
        ra_j = _softmax_cols(rs_j)
        info_rows.append(jnp.sum(ra_j * kp_j, axis=0, keepdims=True))   # (1, D)

    info = jnp.concatenate(info_rows, axis=0)                           # (TB, D)

    # ---- WriteUnit (batched) ----
    new_mem = (jnp.dot(mem, wwm_ref[...], preferred_element_type=f32)
               + jnp.dot(info, wwi_ref[...], preferred_element_type=f32)
               + bw_ref[...])
    mem_sc[...] = new_mem

    @pl.when(s == pl.num_programs(1) - 1)
    def _done():
        memout_ref[...] = new_mem.astype(memout_ref.dtype)


def mac_recurrence(qs, cvec, cmask, kp, kb1, mem0, wd_stack, bd_stack, wts):
    B, T, D = cvec.shape
    HW = kp.shape[1]
    S = wd_stack.shape[0]
    tb = _pick_tb(B)
    nb = B // tb

    const_ws = [wts["wca"], wts["wpm"], wts["bpm"], wts["w1a"], wts["w2"],
                wts["b2"], wts["wra"], wts["wwm"], wts["wwi"], wts["bw"]]

    in_specs = [
        pl.BlockSpec((tb, D), lambda bi, s: (bi, 0)),            # q_shared
        pl.BlockSpec((tb, T, D), lambda bi, s: (bi, 0, 0)),      # cvec
        pl.BlockSpec((tb, T, 1), lambda bi, s: (bi, 0, 0)),      # cmask
        pl.BlockSpec((tb, HW, D), lambda bi, s: (bi, 0, 0)),     # kp
        pl.BlockSpec((tb, HW, D), lambda bi, s: (bi, 0, 0)),     # kb1
        pl.BlockSpec((1, D), lambda bi, s: (0, 0)),              # mem_0
        pl.BlockSpec((None, D, D), lambda bi, s: (s, 0, 0)),     # per-step W_d
        pl.BlockSpec((None, 1, D), lambda bi, s: (s, 0, 0)),     # per-step b_d
    ] + [pl.BlockSpec(w.shape, lambda bi, s: (0, 0)) for w in const_ws]

    return pl.pallas_call(
        functools.partial(_mac_fused_kernel, tb=tb),
        out_shape=jax.ShapeDtypeStruct((B, D), jnp.float32),
        grid=(nb, S),
        in_specs=in_specs,
        out_specs=pl.BlockSpec((tb, D), lambda bi, s: (bi, 0)),
        scratch_shapes=[pltpu.VMEM((tb, D), jnp.float32)],
        compiler_params=pltpu.CompilerParams(
            dimension_semantics=("parallel", "arbitrary"),
            vmem_limit_bytes=VMEM_LIMIT),
    )(qs, cvec, cmask, kp, kb1, mem0, wd_stack, bd_stack, *const_ws)


# ----------------------------------------------------------------------------
# Bidirectional LSTM (pack_padded semantics). Input GEMMs run in the Pallas
# linear kernel; the recurrence is inherently sequential and stays in lax.scan.
# TODO(synk): the per-timestep hidden-state recurrence has no useful Pallas
#             formulation (tiny sequential matmuls), kept as lax.scan.
# ----------------------------------------------------------------------------
def lstm_bidir(embed, lengths, params, H):
    B, T, E = embed.shape
    x2 = embed.reshape(B * T, E)
    ih_f = pallas_linear(x2, params["w_ih_f"].T, params["b_ih_f"]).reshape(B, T, 4 * H)
    ih_r = pallas_linear(x2, params["w_ih_r"].T, params["b_ih_r"]).reshape(B, T, 4 * H)

    valid = (jnp.arange(T)[None, :] < lengths[:, None])   # (B, T)

    def make_cell(w_hh_t, b_hh):
        def cell(carry, inputs):
            h, c = carry
            ih_t, v = inputs
            gates = ih_t + jnp.dot(h, w_hh_t) + b_hh
            i, f, g, o = jnp.split(gates, 4, axis=-1)
            i = jax.nn.sigmoid(i)
            f = jax.nn.sigmoid(f)
            g = jnp.tanh(g)
            o = jax.nn.sigmoid(o)
            c_new = f * c + i * g
            h_new = o * jnp.tanh(c_new)
            vm = v[:, None]
            h = jnp.where(vm, h_new, h)
            c = jnp.where(vm, c_new, c)
            out = jnp.where(vm, h_new, 0.0)
            return (h, c), out
        return cell

    h0 = jnp.zeros((B, H), jnp.float32)
    c0 = jnp.zeros((B, H), jnp.float32)

    (hf, _), out_f = lax.scan(make_cell(params["w_hh_f"].T, params["b_hh_f"]),
                              (h0, c0), (ih_f.transpose(1, 0, 2), valid.T))
    out_f = out_f.transpose(1, 0, 2)

    (hb, _), out_b_rev = lax.scan(make_cell(params["w_hh_r"].T, params["b_hh_r"]),
                                  (h0, c0),
                                  (ih_r.transpose(1, 0, 2)[::-1], valid.T[::-1]))
    out_b = out_b_rev[::-1].transpose(1, 0, 2)

    lstm_out = jnp.concatenate([out_f, out_b], axis=-1)    # (B, T, 2H)
    qvec = jnp.concatenate([hf, hb], axis=-1)              # (B, 2H)
    return lstm_out, qvec


# ----------------------------------------------------------------------------
# MAC forward pass (eval mode, clevr dataset, use_daft=False)
# TODO(synk): DAFT / odeint control path (use_daft=True) and the gqa branch are
#             not implemented; the module's default (non-DAFT, clevr) path is.
# ----------------------------------------------------------------------------
def mac_forward(params, image, question, question_len, *, dim, max_step):
    p = params
    B = image.shape[0]
    D = dim

    # --- image encoder: Dropout, Conv3x3, ELU, Dropout, Conv3x3, ELU (eval) ---
    x = jnp.transpose(image, (0, 2, 3, 1))                  # NCHW -> NHWC (one-time)
    x = conv2d_3x3_fused(x, p["conv1_w"], p["conv1_b"])
    x = conv2d_3x3_fused(x, p["conv2_w"], p["conv2_b"])
    _, Hi, Wi, _ = x.shape
    HW = Hi * Wi
    know_hw = x.reshape(B, HW, D)                           # b hw c

    # --- question encoder ---
    embed = p["embed"][question]                            # (B, T, E)
    lstm_out, qvec = lstm_bidir(embed, question_len, p, D // 2)
    cvec = lstm_out                                         # (B, T, D)
    T = cvec.shape[1]

    cmask = jnp.where(jnp.arange(T)[None, :] < question_len[:, None],
                      0.0, -1e30).astype(jnp.float32)[:, :, None]   # (B, T, 1)
    # knowledge mask: know_len == HW on the clevr path -> identically zero,
    # so it is omitted from the fused kernel (it would cancel in the softmax).

    # --- one-time weight layout plumbing (pre-transpose / pre-split) ---
    # scalar attention biases (ctrl_attn_b / read_att_b) are constant across
    # the softmax axis (and zero-initialized) -> cancel, omitted from kernel.
    wts = dict(
        wca=p["ctrl_attn_w"],                                # (1, D)
        wpm=p["read_pm_w"].T, bpm=p["read_pm_b"].reshape(1, D),
        w1a=p["read_w1"][:, :D].T,
        w2=p["read_w2"].T, b2=p["read_b2"].reshape(1, D),
        wra=p["read_att_w"],                                 # (1, D)
        wwm=p["write_w"][:, :D].T, wwi=p["write_w"][:, D:].T,
        bw=p["write_b"].reshape(1, D),
    )
    wd_stack = jnp.swapaxes(p["ctrl_diff_w"], 1, 2)[:max_step]       # (S, D, D)
    bd_stack = p["ctrl_diff_b"][:max_step].reshape(max_step, 1, D)   # (S, 1, D)

    # --- hoisted step-invariant computations ---
    q_shared = pallas_linear(qvec, p["ctrl_shared_w"].T, p["ctrl_shared_b"],
                             act="tanh")                              # (B, D)
    kp = pallas_linear(know_hw.reshape(B * HW, D),
                       p["read_pk_w"].T, p["read_pk_b"]).reshape(B, HW, D)
    # know-half of readMemProj's first linear (+ bias) is also step-invariant:
    kb1 = pallas_linear(kp.reshape(B * HW, D),
                        p["read_w1"][:, D:].T, p["read_b1"]).reshape(B, HW, D)

    # --- MACUnit recurrence: single fused pallas_call over (batch, steps) ---
    memory = mac_recurrence(q_shared, cvec, cmask, kp, kb1, p["mem_0"],
                            wd_stack, bd_stack, wts)                  # (B, D)

    # --- classifier head ---
    qprep = pallas_linear(qvec, p["qprep_w"].T, p["qprep_b"])
    out = jnp.concatenate([memory, qprep], axis=1)
    out = pallas_linear(out, p["cls1_w"].T, p["cls1_b"], act="elu")
    out = pallas_linear(out, p["cls2_w"].T, p["cls2_b"])
    return out


# ----------------------------------------------------------------------------
# Deterministic parameter init (synthetic; mirrors module shapes, torch layout)
# ----------------------------------------------------------------------------
def init_params(key, n_vocab, dim, embed_hidden, max_step, classes):
    H = dim // 2
    keys = iter(jax.random.split(key, 64))

    def xavier(shape, fan_in, fan_out):
        a = (6.0 / (fan_in + fan_out)) ** 0.5
        return jax.random.uniform(next(keys), shape, jnp.float32, -a, a)

    z = lambda *s: jnp.zeros(s, jnp.float32)
    p = {}
    p["conv1_w"] = xavier((dim, 2 * dim, 3, 3), 2 * dim * 9, dim * 9)
    p["conv1_b"] = z(dim)
    p["conv2_w"] = xavier((dim, dim, 3, 3), dim * 9, dim * 9)
    p["conv2_b"] = z(dim)
    p["embed"] = jax.random.uniform(next(keys), (n_vocab, embed_hidden),
                                    jnp.float32, -1.0, 1.0)
    for sfx in ("f", "r"):
        p[f"w_ih_{sfx}"] = xavier((4 * H, embed_hidden), embed_hidden, 4 * H)
        p[f"w_hh_{sfx}"] = xavier((4 * H, H), H, 4 * H)
        p[f"b_ih_{sfx}"] = z(4 * H)
        p[f"b_hh_{sfx}"] = z(4 * H)
    p["ctrl_shared_w"] = xavier((dim, dim), dim, dim); p["ctrl_shared_b"] = z(dim)
    p["ctrl_diff_w"] = jnp.stack([xavier((dim, dim), dim, dim) for _ in range(max_step)])
    p["ctrl_diff_b"] = z(max_step, dim)
    p["ctrl_attn_w"] = xavier((1, dim), dim, 1); p["ctrl_attn_b"] = z(1)
    p["read_pk_w"] = xavier((dim, dim), dim, dim); p["read_pk_b"] = z(dim)
    p["read_pm_w"] = xavier((dim, dim), dim, dim); p["read_pm_b"] = z(dim)
    p["read_w1"] = xavier((dim, 2 * dim), 2 * dim, dim); p["read_b1"] = z(dim)
    p["read_w2"] = xavier((dim, dim), dim, dim); p["read_b2"] = z(dim)
    p["read_att_w"] = xavier((1, dim), dim, 1); p["read_att_b"] = z(1)
    p["write_w"] = xavier((dim, 2 * dim), 2 * dim, dim); p["write_b"] = z(dim)
    p["mem_0"] = jax.random.normal(next(keys), (1, dim), jnp.float32)
    p["qprep_w"] = xavier((dim, dim), dim, dim); p["qprep_b"] = z(dim)
    p["cls1_w"] = xavier((dim, 2 * dim), 2 * dim, dim); p["cls1_b"] = z(dim)
    p["cls2_w"] = xavier((classes, dim), dim, classes); p["cls2_b"] = z(classes)
    return p


if __name__ == "__main__":
    DIM, N_VOCAB, EMBED_HIDDEN, MAX_STEP, CLASSES = 32, 50, 48, 3, 8
    B, Himg, Wimg, T = 2, 8, 8, 8

    key = jax.random.PRNGKey(0)
    k_param, k_img, k_q = jax.random.split(key, 3)

    params = init_params(k_param, N_VOCAB, DIM, EMBED_HIDDEN, MAX_STEP, CLASSES)
    image = jax.random.normal(k_img, (B, 2 * DIM, Himg, Wimg), jnp.float32)
    question = jax.random.randint(k_q, (B, T), 0, N_VOCAB, dtype=jnp.int32)
    question_len = jnp.array([T, T - 2], jnp.int32)  # sorted (pack_padded style)

    fwd = jax.jit(functools.partial(mac_forward, dim=DIM, max_step=MAX_STEP))
    out = fwd(params, image, question, question_len)
    jax.block_until_ready(out)
    assert out.shape == (B, CLASSES)
    print("KERNEL_OK")
</pallas_src>

<mosaic_0001>
module attributes {stable_mosaic.version = 11 : i64} {
  func.func @_conv3x3_kernel(%arg0: i32, %arg1: i32, %arg2: memref<1x80x192xf32, #tpu.memory_space<vmem>>, %arg3: memref<1x192x32xf32, #tpu.memory_space<vmem>>, %arg4: memref<1x32xf32, #tpu.memory_space<vmem>>, %arg5: memref<1x64x32xf32, #tpu.memory_space<vmem>>, %arg6: memref<64x32xf32, #tpu.memory_space<vmem>>) attributes {dimension_semantics = [#tpu.dimension_semantics<parallel>, #tpu.dimension_semantics<arbitrary>], iteration_bounds = array<i64: 2, 3>, scalar_prefetch = 0 : i64, scratch_operands = 1 : i64, tpu.core_type = #tpu.core_type<tc>, window_params = [{transform_indices = @transform_0, window_bounds = array<i64: 1, 80, 192>}, {transform_indices = @transform_1, window_bounds = array<i64: 1, 192, 32>}, {pipeline_mode = #tpu.pipeline_mode<synchronous>, transform_indices = @transform_2, window_bounds = array<i64: 1, 32>}, {transform_indices = @transform_3, window_bounds = array<i64: 1, 64, 32>}]} {
    %c0_i32 = arith.constant 0 : i32
    %0 = arith.cmpi eq, %arg1, %c0_i32 : i32
    %1 = arith.extui %0 : i1 to i32
    %c0_i32_0 = arith.constant 0 : i32
    %2 = arith.cmpi ne, %1, %c0_i32_0 : i32
    scf.if %2 {
      %cst_10 = arith.constant 0.000000e+00 : f32
      %17 = vector.broadcast %cst_10 : f32 to vector<64x32xf32>
      %c0_11 = arith.constant 0 : index
      %c0_12 = arith.constant 0 : index
      %18 = vector.load %arg6[%c0_11, %c0_12] : memref<64x32xf32, #tpu.memory_space<vmem>>, vector<64x32xf32>
      tpu.vector_store %arg6[%c0_11, %c0_12], %17 {strides = array<i32>} : memref<64x32xf32, #tpu.memory_space<vmem>>, vector<64x32xf32>,
    } else {
    }
    %c8_i32 = arith.constant 8 : i32
    %3 = arith.muli %arg1, %c8_i32 : i32
    %4 = tpu.assume_multiple %3, 8 : i32
    %c0 = arith.constant 0 : index
    %5 = arith.index_cast %4 : i32 to index
    %c0_1 = arith.constant 0 : index
    %6 = vector.load %arg2[%c0, %5, %c0_1] : memref<1x80x192xf32, #tpu.memory_space<vmem>>, vector<1x64x192xf32>
    %7 = vector.shape_cast %6 : vector<1x64x192xf32> to vector<64x192xf32>
    %c0_2 = arith.constant 0 : index
    %c0_3 = arith.constant 0 : index
    %8 = vector.load %arg6[%c0_2, %c0_3] : memref<64x32xf32, #tpu.memory_space<vmem>>, vector<64x32xf32>
    %c0_4 = arith.constant 0 : index
    %c0_5 = arith.constant 0 : index
    %c0_6 = arith.constant 0 : index
    %9 = vector.load %arg3[%c0_4, %c0_5, %c0_6] : memref<1x192x32xf32, #tpu.memory_space<vmem>>, vector<1x192x32xf32>
    %10 = vector.shape_cast %9 : vector<1x192x32xf32> to vector<192x32xf32>
    %cst = arith.constant dense<0.000000e+00> : vector<64x32xf32>
    %11 = tpu.matmul %7, %10, %cst {dimension_numbers = #tpu.dot_dimension_numbers<[1], [0], [0], [1], [0, 0, 1, 1], [], []>} : vector<64x192xf32>, vector<192x32xf32>, vector<64x32xf32> -> vector<64x32xf32>
    %12 = arith.addf %8, %11 : vector<64x32xf32>
    %c0_7 = arith.constant 0 : index
    %c0_8 = arith.constant 0 : index
    %13 = vector.load %arg6[%c0_7, %c0_8] : memref<64x32xf32, #tpu.memory_space<vmem>>, vector<64x32xf32>
    tpu.vector_store %arg6[%c0_7, %c0_8], %12 {strides = array<i32>} : memref<64x32xf32, #tpu.memory_space<vmem>>, vector<64x32xf32>,
    %c2_i32 = arith.constant 2 : i32
    %14 = arith.cmpi eq, %arg1, %c2_i32 : i32
    %15 = arith.extui %14 : i1 to i32
    %c0_i32_9 = arith.constant 0 : i32
    %16 = arith.cmpi ne, %15, %c0_i32_9 : i32
    scf.if %16 {
      %c0_10 = arith.constant 0 : index
      %c0_11 = arith.constant 0 : index
      %17 = vector.load %arg6[%c0_10, %c0_11] : memref<64x32xf32, #tpu.memory_space<vmem>>, vector<64x32xf32>
      %c0_12 = arith.constant 0 : index
      %c0_13 = arith.constant 0 : index
      %18 = vector.load %arg4[%c0_12, %c0_13] : memref<1x32xf32, #tpu.memory_space<vmem>>, vector<1x32xf32>
      %19 = vector.broadcast %18 : vector<1x32xf32> to vector<64x32xf32>
      %20 = arith.addf %17, %19 : vector<64x32xf32>
      %cst_14 = arith.constant 0.000000e+00 : f32
      %21 = vector.broadcast %cst_14 : f32 to vector<64x32xf32>
      %22 = arith.cmpf ogt, %20, %21 : vector<64x32xf32>
      %cst_15 = arith.constant 0.000000e+00 : f32
      %23 = vector.broadcast %cst_15 : f32 to vector<64x32xf32>
      %24 = arith.minimumf %20, %23 : vector<64x32xf32>
      %25 = math.exp %24 : vector<64x32xf32>
      %cst_16 = arith.constant 1.000000e+00 : f32
      %26 = vector.broadcast %cst_16 : f32 to vector<64x32xf32>
      %27 = arith.subf %25, %26 : vector<64x32xf32>
      %28 = arith.select %22, %20, %27 : vector<64x32xi1>, vector<64x32xf32>
      %c0_17 = arith.constant 0 : index
      %c0_18 = arith.constant 0 : index
      %c0_19 = arith.constant 0 : index
      %29 = vector.load %arg5[%c0_17, %c0_18, %c0_19] : memref<1x64x32xf32, #tpu.memory_space<vmem>>, vector<1x64x32xf32>
      %30 = vector.shape_cast %29 : vector<1x64x32xf32> to vector<64x32xf32>
      %31 = vector.shape_cast %28 : vector<64x32xf32> to vector<1x64x32xf32>
      tpu.vector_store %arg5[%c0_17, %c0_18, %c0_19], %31 {strides = array<i32>} : memref<1x64x32xf32, #tpu.memory_space<vmem>>, vector<1x64x32xf32>,
    } else {
    }
    return
  }
  func.func @transform_0(%arg0: i32, %arg1: i32) -> (i32, i32, i32) {
    %c0_i32 = arith.constant 0 : i32
    %c0_i32_0 = arith.constant 0 : i32
    %c0_i32_1 = arith.constant 0 : i32
    return %arg0, %c0_i32, %c0_i32_0 : i32, i32, i32
  }
  func.func @transform_1(%arg0: i32, %arg1: i32) -> (i32, i32, i32) {
    %c0_i32 = arith.constant 0 : i32
    %c0_i32_0 = arith.constant 0 : i32
    %c0_i32_1 = arith.constant 0 : i32
    return %arg1, %c0_i32, %c0_i32_0 : i32, i32, i32
  }
  func.func @transform_2(%arg0: i32, %arg1: i32) -> (i32, i32) {
    %c0_i32 = arith.constant 0 : i32
    %c0_i32_0 = arith.constant 0 : i32
    %c0_i32_1 = arith.constant 0 : i32
    return %c0_i32, %c0_i32_0 : i32, i32
  }
  func.func @transform_3(%arg0: i32, %arg1: i32) -> (i32, i32, i32) {
    %c0_i32 = arith.constant 0 : i32
    %c0_i32_0 = arith.constant 0 : i32
    %c0_i32_1 = arith.constant 0 : i32
    return %arg0, %c0_i32, %c0_i32_0 : i32, i32, i32
  }
}

module attributes {stable_mosaic.version = 11 : i64} {
  func.func @_conv3x3_kernel(%arg0: i32, %arg1: i32, %arg2: memref<1x80x96xf32, #tpu.memory_space<vmem>>, %arg3: memref<1x96x32xf32, #tpu.memory_space<vmem>>, %arg4: memref<1x32xf32, #tpu.memory_space<vmem>>, %arg5: memref<1x64x32xf32, #tpu.memory_space<vmem>>, %arg6: memref<64x32xf32, #tpu.memory_space<vmem>>) attributes {dimension_semantics = [#tpu.dimension_semantics<parallel>, #tpu.dimension_semantics<arbitrary>], iteration_bounds = array<i64: 2, 3>, scalar_prefetch = 0 : i64, scratch_operands = 1 : i64, tpu.core_type = #tpu.core_type<tc>, window_params = [{transform_indices = @transform_0, window_bounds = array<i64: 1, 80, 96>}, {transform_indices = @transform_1, window_bounds = array<i64: 1, 96, 32>}, {pipeline_mode = #tpu.pipeline_mode<synchronous>, transform_indices = @transform_2, window_bounds = array<i64: 1, 32>}, {transform_indices = @transform_3, window_bounds = array<i64: 1, 64, 32>}]} {
    %c0_i32 = arith.constant 0 : i32
    %0 = arith.cmpi eq, %arg1, %c0_i32 : i32
    %1 = arith.extui %0 : i1 to i32
    %c0_i32_0 = arith.constant 0 : i32
    %2 = arith.cmpi ne, %1, %c0_i32_0 : i32
    scf.if %2 {
      %cst_10 = arith.constant 0.000000e+00 : f32
      %17 = vector.broadcast %cst_10 : f32 to vector<64x32xf32>
      %c0_11 = arith.constant 0 : index
      %c0_12 = arith.constant 0 : index
      %18 = vector.load %arg6[%c0_11, %c0_12] : memref<64x32xf32, #tpu.memory_space<vmem>>, vector<64x32xf32>
      tpu.vector_store %arg6[%c0_11, %c0_12], %17 {strides = array<i32>} : memref<64x32xf32, #tpu.memory_space<vmem>>, vector<64x32xf32>,
    } else {
    }
    %c8_i32 = arith.constant 8 : i32
    %3 = arith.muli %arg1, %c8_i32 : i32
    %4 = tpu.assume_multiple %3, 8 : i32
    %c0 = arith.constant 0 : index
    %5 = arith.index_cast %4 : i32 to index
    %c0_1 = arith.constant 0 : index
    %6 = vector.load %arg2[%c0, %5, %c0_1] : memref<1x80x96xf32, #tpu.memory_space<vmem>>, vector<1x64x96xf32>
    %7 = vector.shape_cast %6 : vector<1x64x96xf32> to vector<64x96xf32>
    %c0_2 = arith.constant 0 : index
    %c0_3 = arith.constant 0 : index
    %8 = vector.load %arg6[%c0_2, %c0_3] : memref<64x32xf32, #tpu.memory_space<vmem>>, vector<64x32xf32>
    %c0_4 = arith.constant 0 : index
    %c0_5 = arith.constant 0 : index
    %c0_6 = arith.constant 0 : index
    %9 = vector.load %arg3[%c0_4, %c0_5, %c0_6] : memref<1x96x32xf32, #tpu.memory_space<vmem>>, vector<1x96x32xf32>
    %10 = vector.shape_cast %9 : vector<1x96x32xf32> to vector<96x32xf32>
    %cst = arith.constant dense<0.000000e+00> : vector<64x32xf32>
    %11 = tpu.matmul %7, %10, %cst {dimension_numbers = #tpu.dot_dimension_numbers<[1], [0], [0], [1], [0, 0, 1, 1], [], []>} : vector<64x96xf32>, vector<96x32xf32>, vector<64x32xf32> -> vector<64x32xf32>
    %12 = arith.addf %8, %11 : vector<64x32xf32>
    %c0_7 = arith.constant 0 : index
    %c0_8 = arith.constant 0 : index
    %13 = vector.load %arg6[%c0_7, %c0_8] : memref<64x32xf32, #tpu.memory_space<vmem>>, vector<64x32xf32>
    tpu.vector_store %arg6[%c0_7, %c0_8], %12 {strides = array<i32>} : memref<64x32xf32, #tpu.memory_space<vmem>>, vector<64x32xf32>,
    %c2_i32 = arith.constant 2 : i32
    %14 = arith.cmpi eq, %arg1, %c2_i32 : i32
    %15 = arith.extui %14 : i1 to i32
    %c0_i32_9 = arith.constant 0 : i32
    %16 = arith.cmpi ne, %15, %c0_i32_9 : i32
    scf.if %16 {
      %c0_10 = arith.constant 0 : index
      %c0_11 = arith.constant 0 : index
      %17 = vector.load %arg6[%c0_10, %c0_11] : memref<64x32xf32, #tpu.memory_space<vmem>>, vector<64x32xf32>
      %c0_12 = arith.constant 0 : index
      %c0_13 = arith.constant 0 : index
      %18 = vector.load %arg4[%c0_12, %c0_13] : memref<1x32xf32, #tpu.memory_space<vmem>>, vector<1x32xf32>
      %19 = vector.broadcast %18 : vector<1x32xf32> to vector<64x32xf32>
      %20 = arith.addf %17, %19 : vector<64x32xf32>
      %cst_14 = arith.constant 0.000000e+00 : f32
      %21 = vector.broadcast %cst_14 : f32 to vector<64x32xf32>
      %22 = arith.cmpf ogt, %20, %21 : vector<64x32xf32>
      %cst_15 = arith.constant 0.000000e+00 : f32
      %23 = vector.broadcast %cst_15 : f32 to vector<64x32xf32>
      %24 = arith.minimumf %20, %23 : vector<64x32xf32>
      %25 = math.exp %24 : vector<64x32xf32>
      %cst_16 = arith.constant 1.000000e+00 : f32
      %26 = vector.broadcast %cst_16 : f32 to vector<64x32xf32>
      %27 = arith.subf %25, %26 : vector<64x32xf32>
      %28 = arith.select %22, %20, %27 : vector<64x32xi1>, vector<64x32xf32>
      %c0_17 = arith.constant 0 : index
      %c0_18 = arith.constant 0 : index
      %c0_19 = arith.constant 0 : index
      %29 = vector.load %arg5[%c0_17, %c0_18, %c0_19] : memref<1x64x32xf32, #tpu.memory_space<vmem>>, vector<1x64x32xf32>
      %30 = vector.shape_cast %29 : vector<1x64x32xf32> to vector<64x32xf32>
      %31 = vector.shape_cast %28 : vector<64x32xf32> to vector<1x64x32xf32>
      tpu.vector_store %arg5[%c0_17, %c0_18, %c0_19], %31 {strides = array<i32>} : memref<1x64x32xf32, #tpu.memory_space<vmem>>, vector<1x64x32xf32>,
    } else {
    }
    return
  }
  func.func @transform_0(%arg0: i32, %arg1: i32) -> (i32, i32, i32) {
    %c0_i32 = arith.constant 0 : i32
    %c0_i32_0 = arith.constant 0 : i32
    %c0_i32_1 = arith.constant 0 : i32
    return %arg0, %c0_i32, %c0_i32_0 : i32, i32, i32
  }
  func.func @transform_1(%arg0: i32, %arg1: i32) -> (i32, i32, i32) {
    %c0_i32 = arith.constant 0 : i32
    %c0_i32_0 = arith.constant 0 : i32
    %c0_i32_1 = arith.constant 0 : i32
    return %arg1, %c0_i32, %c0_i32_0 : i32, i32, i32
  }
  func.func @transform_2(%arg0: i32, %arg1: i32) -> (i32, i32) {
    %c0_i32 = arith.constant 0 : i32
    %c0_i32_0 = arith.constant 0 : i32
    %c0_i32_1 = arith.constant 0 : i32
    return %c0_i32, %c0_i32_0 : i32, i32
  }
  func.func @transform_3(%arg0: i32, %arg1: i32) -> (i32, i32, i32) {
    %c0_i32 = arith.constant 0 : i32
    %c0_i32_0 = arith.constant 0 : i32
    %c0_i32_1 = arith.constant 0 : i32
    return %arg0, %c0_i32, %c0_i32_0 : i32, i32, i32
  }
}

module attributes {stable_mosaic.version = 11 : i64} {
  func.func @_linear_kernel(%arg0: i32, %arg1: i32, %arg2: i32, %arg3: memref<128x32xf32, #tpu.memory_space<vmem>>, %arg4: memref<32x32xf32, #tpu.memory_space<vmem>>, %arg5: memref<1x32xf32, #tpu.memory_space<vmem>>, %arg6: memref<128x32xf32, #tpu.memory_space<vmem>>, %arg7: memref<128x32xf32, #tpu.memory_space<vmem>>) attributes {dimension_semantics = [#tpu.dimension_semantics<parallel>, #tpu.dimension_semantics<parallel>, #tpu.dimension_semantics<arbitrary>], iteration_bounds = array<i64: 1, 1, 1>, scalar_prefetch = 0 : i64, scratch_operands = 1 : i64, tpu.core_type = #tpu.core_type<tc>, window_params = [{transform_indices = @transform_0, window_bounds = array<i64: 128, 32>}, {transform_indices = @transform_1, window_bounds = array<i64: 32, 32>}, {transform_indices = @transform_2, window_bounds = array<i64: 1, 32>}, {transform_indices = @transform_3, window_bounds = array<i64: 128, 32>}]} {
    %c0_i32 = arith.constant 0 : i32
    %0 = arith.cmpi eq, %arg2, %c0_i32 : i32
    %1 = arith.extui %0 : i1 to i32
    %c0_i32_0 = arith.constant 0 : i32
    %2 = arith.cmpi ne, %1, %c0_i32_0 : i32
    scf.if %2 {
      %cst_10 = arith.constant 0.000000e+00 : f32
      %12 = vector.broadcast %cst_10 : f32 to vector<128x32xf32>
      %c0_11 = arith.constant 0 : index
      %c0_12 = arith.constant 0 : index
      %13 = vector.load %arg7[%c0_11, %c0_12] : memref<128x32xf32, #tpu.memory_space<vmem>>, vector<128x32xf32>
      tpu.vector_store %arg7[%c0_11, %c0_12], %12 {strides = array<i32>} : memref<128x32xf32, #tpu.memory_space<vmem>>, vector<128x32xf32>,
    } else {
    }
    %c0 = arith.constant 0 : index
    %c0_1 = arith.constant 0 : index
    %3 = vector.load %arg7[%c0, %c0_1] : memref<128x32xf32, #tpu.memory_space<vmem>>, vector<128x32xf32>
    %c0_2 = arith.constant 0 : index
    %c0_3 = arith.constant 0 : index
    %4 = vector.load %arg3[%c0_2, %c0_3] : memref<128x32xf32, #tpu.memory_space<vmem>>, vector<128x32xf32>
    %c0_4 = arith.constant 0 : index
    %c0_5 = arith.constant 0 : index
    %5 = vector.load %arg4[%c0_4, %c0_5] : memref<32x32xf32, #tpu.memory_space<vmem>>, vector<32x32xf32>
    %cst = arith.constant dense<0.000000e+00> : vector<128x32xf32>
    %6 = tpu.matmul %4, %5, %cst {dimension_numbers = #tpu.dot_dimension_numbers<[1], [0], [0], [1], [0, 0, 1, 1], [], []>} : vector<128x32xf32>, vector<32x32xf32>, vector<128x32xf32> -> vector<128x32xf32>
    %7 = arith.addf %3, %6 : vector<128x32xf32>
    %c0_6 = arith.constant 0 : index
    %c0_7 = arith.constant 0 : index
    %8 = vector.load %arg7[%c0_6, %c0_7] : memref<128x32xf32, #tpu.memory_space<vmem>>, vector<128x32xf32>
    tpu.vector_store %arg7[%c0_6, %c0_7], %7 {strides = array<i32>} : memref<128x32xf32, #tpu.memory_space<vmem>>, vector<128x32xf32>,
    %c0_i32_8 = arith.constant 0 : i32
    %9 = arith.cmpi eq, %arg2, %c0_i32_8 : i32
    %10 = arith.extui %9 : i1 to i32
    %c0_i32_9 = arith.constant 0 : i32
    %11 = arith.cmpi ne, %10, %c0_i32_9 : i32
    scf.if %11 {
      %c0_10 = arith.constant 0 : index
      %c0_11 = arith.constant 0 : index
      %12 = vector.load %arg7[%c0_10, %c0_11] : memref<128x32xf32, #tpu.memory_space<vmem>>, vector<128x32xf32>
      %c0_12 = arith.constant 0 : index
      %c0_13 = arith.constant 0 : index
      %13 = vector.load %arg5[%c0_12, %c0_13] : memref<1x32xf32, #tpu.memory_space<vmem>>, vector<1x32xf32>
      %14 = vector.broadcast %13 : vector<1x32xf32> to vector<128x32xf32>
      %15 = arith.addf %12, %14 : vector<128x32xf32>
      %c0_14 = arith.constant 0 : index
      %c0_15 = arith.constant 0 : index
      %16 = vector.load %arg6[%c0_14, %c0_15] : memref<128x32xf32, #tpu.memory_space<vmem>>, vector<128x32xf32>
      tpu.vector_store %arg6[%c0_14, %c0_15], %15 {strides = array<i32>} : memref<128x32xf32, #tpu.memory_space<vmem>>, vector<128x32xf32>,
    } else {
    }
    return
  }
  func.func @transform_0(%arg0: i32, %arg1: i32, %arg2: i32) -> (i32, i32) {
    %c0_i32 = arith.constant 0 : i32
    return %arg0, %arg2 : i32, i32
  }
  func.func @transform_1(%arg0: i32, %arg1: i32, %arg2: i32) -> (i32, i32) {
    %c0_i32 = arith.constant 0 : i32
    return %arg2, %arg1 : i32, i32
  }
  func.func @transform_2(%arg0: i32, %arg1: i32, %arg2: i32) -> (i32, i32) {
    %c0_i32 = arith.constant 0 : i32
    %c0_i32_0 = arith.constant 0 : i32
    return %c0_i32, %arg1 : i32, i32
  }
  func.func @transform_3(%arg0: i32, %arg1: i32, %arg2: i32) -> (i32, i32) {
    %c0_i32 = arith.constant 0 : i32
    return %arg0, %arg1 : i32, i32
  }
}

module attributes {stable_mosaic.version = 11 : i64} {
  func.func @_linear_kernel(%arg0: i32, %arg1: i32, %arg2: i32, %arg3: memref<16x48xf32, #tpu.memory_space<vmem>>, %arg4: memref<48x64xf32, #tpu.memory_space<vmem>>, %arg5: memref<1x64xf32, #tpu.memory_space<vmem>>, %arg6: memref<16x64xf32, #tpu.memory_space<vmem>>, %arg7: memref<16x64xf32, #tpu.memory_space<vmem>>) attributes {dimension_semantics = [#tpu.dimension_semantics<parallel>, #tpu.dimension_semantics<parallel>, #tpu.dimension_semantics<arbitrary>], iteration_bounds = array<i64: 1, 1, 1>, scalar_prefetch = 0 : i64, scratch_operands = 1 : i64, tpu.core_type = #tpu.core_type<tc>, window_params = [{transform_indices = @transform_0, window_bounds = array<i64: 16, 48>}, {transform_indices = @transform_1, window_bounds = array<i64: 48, 64>}, {transform_indices = @transform_2, window_bounds = array<i64: 1, 64>}, {transform_indices = @transform_3, window_bounds = array<i64: 16, 64>}]} {
    %c0_i32 = arith.constant 0 : i32
    %0 = arith.cmpi eq, %arg2, %c0_i32 : i32
    %1 = arith.extui %0 : i1 to i32
    %c0_i32_0 = arith.constant 0 : i32
    %2 = arith.cmpi ne, %1, %c0_i32_0 : i32
    scf.if %2 {
      %cst_10 = arith.constant 0.000000e+00 : f32
      %12 = vector.broadcast %cst_10 : f32 to vector<16x64xf32>
      %c0_11 = arith.constant 0 : index
      %c0_12 = arith.constant 0 : index
      %13 = vector.load %arg7[%c0_11, %c0_12] : memref<16x64xf32, #tpu.memory_space<vmem>>, vector<16x64xf32>
      tpu.vector_store %arg7[%c0_11, %c0_12], %12 {strides = array<i32>} : memref<16x64xf32, #tpu.memory_space<vmem>>, vector<16x64xf32>,
    } else {
    }
    %c0 = arith.constant 0 : index
    %c0_1 = arith.constant 0 : index
    %3 = vector.load %arg7[%c0, %c0_1] : memref<16x64xf32, #tpu.memory_space<vmem>>, vector<16x64xf32>
    %c0_2 = arith.constant 0 : index
    %c0_3 = arith.constant 0 : index
    %4 = vector.load %arg3[%c0_2, %c0_3] : memref<16x48xf32, #tpu.memory_space<vmem>>, vector<16x48xf32>
    %c0_4 = arith.constant 0 : index
    %c0_5 = arith.constant 0 : index
    %5 = vector.load %arg4[%c0_4, %c0_5] : memref<48x64xf32, #tpu.memory_space<vmem>>, vector<48x64xf32>
    %cst = arith.constant dense<0.000000e+00> : vector<16x64xf32>
    %6 = tpu.matmul %4, %5, %cst {dimension_numbers = #tpu.dot_dimension_numbers<[1], [0], [0], [1], [0, 0, 1, 1], [], []>} : vector<16x48xf32>, vector<48x64xf32>, vector<16x64xf32> -> vector<16x64xf32>
    %7 = arith.addf %3, %6 : vector<16x64xf32>
    %c0_6 = arith.constant 0 : index
    %c0_7 = arith.constant 0 : index
    %8 = vector.load %arg7[%c0_6, %c0_7] : memref<16x64xf32, #tpu.memory_space<vmem>>, vector<16x64xf32>
    tpu.vector_store %arg7[%c0_6, %c0_7], %7 {strides = array<i32>} : memref<16x64xf32, #tpu.memory_space<vmem>>, vector<16x64xf32>,
    %c0_i32_8 = arith.constant 0 : i32
    %9 = arith.cmpi eq, %arg2, %c0_i32_8 : i32
    %10 = arith.extui %9 : i1 to i32
    %c0_i32_9 = arith.constant 0 : i32
    %11 = arith.cmpi ne, %10, %c0_i32_9 : i32
    scf.if %11 {
      %c0_10 = arith.constant 0 : index
      %c0_11 = arith.constant 0 : index
      %12 = vector.load %arg7[%c0_10, %c0_11] : memref<16x64xf32, #tpu.memory_space<vmem>>, vector<16x64xf32>
      %c0_12 = arith.constant 0 : index
      %c0_13 = arith.constant 0 : index
      %13 = vector.load %arg5[%c0_12, %c0_13] : memref<1x64xf32, #tpu.memory_space<vmem>>, vector<1x64xf32>
      %14 = vector.broadcast %13 : vector<1x64xf32> to vector<16x64xf32>
      %15 = arith.addf %12, %14 : vector<16x64xf32>
      %c0_14 = arith.constant 0 : index
      %c0_15 = arith.constant 0 : index
      %16 = vector.load %arg6[%c0_14, %c0_15] : memref<16x64xf32, #tpu.memory_space<vmem>>, vector<16x64xf32>
      tpu.vector_store %arg6[%c0_14, %c0_15], %15 {strides = array<i32>} : memref<16x64xf32, #tpu.memory_space<vmem>>, vector<16x64xf32>,
    } else {
    }
    return
  }
  func.func @transform_0(%arg0: i32, %arg1: i32, %arg2: i32) -> (i32, i32) {
    %c0_i32 = arith.constant 0 : i32
    return %arg0, %arg2 : i32, i32
  }
  func.func @transform_1(%arg0: i32, %arg1: i32, %arg2: i32) -> (i32, i32) {
    %c0_i32 = arith.constant 0 : i32
    return %arg2, %arg1 : i32, i32
  }
  func.func @transform_2(%arg0: i32, %arg1: i32, %arg2: i32) -> (i32, i32) {
    %c0_i32 = arith.constant 0 : i32
    %c0_i32_0 = arith.constant 0 : i32
    return %c0_i32, %arg1 : i32, i32
  }
  func.func @transform_3(%arg0: i32, %arg1: i32, %arg2: i32) -> (i32, i32) {
    %c0_i32 = arith.constant 0 : i32
    return %arg0, %arg1 : i32, i32
  }
}

module attributes {stable_mosaic.version = 11 : i64} {
  func.func @_linear_kernel(%arg0: i32, %arg1: i32, %arg2: i32, %arg3: memref<2x32xf32, #tpu.memory_space<vmem>>, %arg4: memref<32x32xf32, #tpu.memory_space<vmem>>, %arg5: memref<1x32xf32, #tpu.memory_space<vmem>>, %arg6: memref<2x32xf32, #tpu.memory_space<vmem>>, %arg7: memref<2x32xf32, #tpu.memory_space<vmem>>) attributes {dimension_semantics = [#tpu.dimension_semantics<parallel>, #tpu.dimension_semantics<parallel>, #tpu.dimension_semantics<arbitrary>], iteration_bounds = array<i64: 1, 1, 1>, scalar_prefetch = 0 : i64, scratch_operands = 1 : i64, tpu.core_type = #tpu.core_type<tc>, window_params = [{transform_indices = @transform_0, window_bounds = array<i64: 2, 32>}, {transform_indices = @transform_1, window_bounds = array<i64: 32, 32>}, {transform_indices = @transform_2, window_bounds = array<i64: 1, 32>}, {transform_indices = @transform_3, window_bounds = array<i64: 2, 32>}]} {
    %c0_i32 = arith.constant 0 : i32
    %0 = arith.cmpi eq, %arg2, %c0_i32 : i32
    %1 = arith.extui %0 : i1 to i32
    %c0_i32_0 = arith.constant 0 : i32
    %2 = arith.cmpi ne, %1, %c0_i32_0 : i32
    scf.if %2 {
      %cst_10 = arith.constant 0.000000e+00 : f32
      %12 = vector.broadcast %cst_10 : f32 to vector<2x32xf32>
      %c0_11 = arith.constant 0 : index
      %c0_12 = arith.constant 0 : index
      %13 = vector.load %arg7[%c0_11, %c0_12] : memref<2x32xf32, #tpu.memory_space<vmem>>, vector<2x32xf32>
      tpu.vector_store %arg7[%c0_11, %c0_12], %12 {strides = array<i32>} : memref<2x32xf32, #tpu.memory_space<vmem>>, vector<2x32xf32>,
    } else {
    }
    %c0 = arith.constant 0 : index
    %c0_1 = arith.constant 0 : index
    %3 = vector.load %arg7[%c0, %c0_1] : memref<2x32xf32, #tpu.memory_space<vmem>>, vector<2x32xf32>
    %c0_2 = arith.constant 0 : index
    %c0_3 = arith.constant 0 : index
    %4 = vector.load %arg3[%c0_2, %c0_3] : memref<2x32xf32, #tpu.memory_space<vmem>>, vector<2x32xf32>
    %c0_4 = arith.constant 0 : index
    %c0_5 = arith.constant 0 : index
    %5 = vector.load %arg4[%c0_4, %c0_5] : memref<32x32xf32, #tpu.memory_space<vmem>>, vector<32x32xf32>
    %cst = arith.constant dense<0.000000e+00> : vector<2x32xf32>
    %6 = tpu.matmul %4, %5, %cst {dimension_numbers = #tpu.dot_dimension_numbers<[1], [0], [0], [1], [0, 0, 1, 1], [], []>} : vector<2x32xf32>, vector<32x32xf32>, vector<2x32xf32> -> vector<2x32xf32>
    %7 = arith.addf %3, %6 : vector<2x32xf32>
    %c0_6 = arith.constant 0 : index
    %c0_7 = arith.constant 0 : index
    %8 = vector.load %arg7[%c0_6, %c0_7] : memref<2x32xf32, #tpu.memory_space<vmem>>, vector<2x32xf32>
    tpu.vector_store %arg7[%c0_6, %c0_7], %7 {strides = array<i32>} : memref<2x32xf32, #tpu.memory_space<vmem>>, vector<2x32xf32>,
    %c0_i32_8 = arith.constant 0 : i32
    %9 = arith.cmpi eq, %arg2, %c0_i32_8 : i32
    %10 = arith.extui %9 : i1 to i32
    %c0_i32_9 = arith.constant 0 : i32
    %11 = arith.cmpi ne, %10, %c0_i32_9 : i32
    scf.if %11 {
      %c0_10 = arith.constant 0 : index
      %c0_11 = arith.constant 0 : index
      %12 = vector.load %arg7[%c0_10, %c0_11] : memref<2x32xf32, #tpu.memory_space<vmem>>, vector<2x32xf32>
      %c0_12 = arith.constant 0 : index
      %c0_13 = arith.constant 0 : index
      %13 = vector.load %arg5[%c0_12, %c0_13] : memref<1x32xf32, #tpu.memory_space<vmem>>, vector<1x32xf32>
      %14 = vector.broadcast %13 : vector<1x32xf32> to vector<2x32xf32>
      %15 = arith.addf %12, %14 : vector<2x32xf32>
      %16 = math.tanh %15 : vector<2x32xf32>
      %c0_14 = arith.constant 0 : index
      %c0_15 = arith.constant 0 : index
      %17 = vector.load %arg6[%c0_14, %c0_15] : memref<2x32xf32, #tpu.memory_space<vmem>>, vector<2x32xf32>
      tpu.vector_store %arg6[%c0_14, %c0_15], %16 {strides = array<i32>} : memref<2x32xf32, #tpu.memory_space<vmem>>, vector<2x32xf32>,
    } else {
    }
    return
  }
  func.func @transform_0(%arg0: i32, %arg1: i32, %arg2: i32) -> (i32, i32) {
    %c0_i32 = arith.constant 0 : i32
    return %arg0, %arg2 : i32, i32
  }
  func.func @transform_1(%arg0: i32, %arg1: i32, %arg2: i32) -> (i32, i32) {
    %c0_i32 = arith.constant 0 : i32
    return %arg2, %arg1 : i32, i32
  }
  func.func @transform_2(%arg0: i32, %arg1: i32, %arg2: i32) -> (i32, i32) {
    %c0_i32 = arith.constant 0 : i32
    %c0_i32_0 = arith.constant 0 : i32
    return %c0_i32, %arg1 : i32, i32
  }
  func.func @transform_3(%arg0: i32, %arg1: i32, %arg2: i32) -> (i32, i32) {
    %c0_i32 = arith.constant 0 : i32
    return %arg0, %arg1 : i32, i32
  }
}

module attributes {stable_mosaic.version = 11 : i64} {
  func.func @_linear_kernel(%arg0: i32, %arg1: i32, %arg2: i32, %arg3: memref<2x32xf32, #tpu.memory_space<vmem>>, %arg4: memref<32x32xf32, #tpu.memory_space<vmem>>, %arg5: memref<1x32xf32, #tpu.memory_space<vmem>>, %arg6: memref<2x32xf32, #tpu.memory_space<vmem>>, %arg7: memref<2x32xf32, #tpu.memory_space<vmem>>) attributes {dimension_semantics = [#tpu.dimension_semantics<parallel>, #tpu.dimension_semantics<parallel>, #tpu.dimension_semantics<arbitrary>], iteration_bounds = array<i64: 1, 1, 1>, scalar_prefetch = 0 : i64, scratch_operands = 1 : i64, tpu.core_type = #tpu.core_type<tc>, window_params = [{transform_indices = @transform_0, window_bounds = array<i64: 2, 32>}, {transform_indices = @transform_1, window_bounds = array<i64: 32, 32>}, {transform_indices = @transform_2, window_bounds = array<i64: 1, 32>}, {transform_indices = @transform_3, window_bounds = array<i64: 2, 32>}]} {
    %c0_i32 = arith.constant 0 : i32
    %0 = arith.cmpi eq, %arg2, %c0_i32 : i32
    %1 = arith.extui %0 : i1 to i32
    %c0_i32_0 = arith.constant 0 : i32
    %2 = arith.cmpi ne, %1, %c0_i32_0 : i32
    scf.if %2 {
      %cst_10 = arith.constant 0.000000e+00 : f32
      %12 = vector.broadcast %cst_10 : f32 to vector<2x32xf32>
      %c0_11 = arith.constant 0 : index
      %c0_12 = arith.constant 0 : index
      %13 = vector.load %arg7[%c0_11, %c0_12] : memref<2x32xf32, #tpu.memory_space<vmem>>, vector<2x32xf32>
      tpu.vector_store %arg7[%c0_11, %c0_12], %12 {strides = array<i32>} : memref<2x32xf32, #tpu.memory_space<vmem>>, vector<2x32xf32>,
    } else {
    }
    %c0 = arith.constant 0 : index
    %c0_1 = arith.constant 0 : index
    %3 = vector.load %arg7[%c0, %c0_1] : memref<2x32xf32, #tpu.memory_space<vmem>>, vector<2x32xf32>
    %c0_2 = arith.constant 0 : index
    %c0_3 = arith.constant 0 : index
    %4 = vector.load %arg3[%c0_2, %c0_3] : memref<2x32xf32, #tpu.memory_space<vmem>>, vector<2x32xf32>
    %c0_4 = arith.constant 0 : index
    %c0_5 = arith.constant 0 : index
    %5 = vector.load %arg4[%c0_4, %c0_5] : memref<32x32xf32, #tpu.memory_space<vmem>>, vector<32x32xf32>
    %cst = arith.constant dense<0.000000e+00> : vector<2x32xf32>
    %6 = tpu.matmul %4, %5, %cst {dimension_numbers = #tpu.dot_dimension_numbers<[1], [0], [0], [1], [0, 0, 1, 1], [], []>} : vector<2x32xf32>, vector<32x32xf32>, vector<2x32xf32> -> vector<2x32xf32>
    %7 = arith.addf %3, %6 : vector<2x32xf32>
    %c0_6 = arith.constant 0 : index
    %c0_7 = arith.constant 0 : index
    %8 = vector.load %arg7[%c0_6, %c0_7] : memref<2x32xf32, #tpu.memory_space<vmem>>, vector<2x32xf32>
    tpu.vector_store %arg7[%c0_6, %c0_7], %7 {strides = array<i32>} : memref<2x32xf32, #tpu.memory_space<vmem>>, vector<2x32xf32>,
    %c0_i32_8 = arith.constant 0 : i32
    %9 = arith.cmpi eq, %arg2, %c0_i32_8 : i32
    %10 = arith.extui %9 : i1 to i32
    %c0_i32_9 = arith.constant 0 : i32
    %11 = arith.cmpi ne, %10, %c0_i32_9 : i32
    scf.if %11 {
      %c0_10 = arith.constant 0 : index
      %c0_11 = arith.constant 0 : index
      %12 = vector.load %arg7[%c0_10, %c0_11] : memref<2x32xf32, #tpu.memory_space<vmem>>, vector<2x32xf32>
      %c0_12 = arith.constant 0 : index
      %c0_13 = arith.constant 0 : index
      %13 = vector.load %arg5[%c0_12, %c0_13] : memref<1x32xf32, #tpu.memory_space<vmem>>, vector<1x32xf32>
      %14 = vector.broadcast %13 : vector<1x32xf32> to vector<2x32xf32>
      %15 = arith.addf %12, %14 : vector<2x32xf32>
      %c0_14 = arith.constant 0 : index
      %c0_15 = arith.constant 0 : index
      %16 = vector.load %arg6[%c0_14, %c0_15] : memref<2x32xf32, #tpu.memory_space<vmem>>, vector<2x32xf32>
      tpu.vector_store %arg6[%c0_14, %c0_15], %15 {strides = array<i32>} : memref<2x32xf32, #tpu.memory_space<vmem>>, vector<2x32xf32>,
    } else {
    }
    return
  }
  func.func @transform_0(%arg0: i32, %arg1: i32, %arg2: i32) -> (i32, i32) {
    %c0_i32 = arith.constant 0 : i32
    return %arg0, %arg2 : i32, i32
  }
  func.func @transform_1(%arg0: i32, %arg1: i32, %arg2: i32) -> (i32, i32) {
    %c0_i32 = arith.constant 0 : i32
    return %arg2, %arg1 : i32, i32
  }
  func.func @transform_2(%arg0: i32, %arg1: i32, %arg2: i32) -> (i32, i32) {
    %c0_i32 = arith.constant 0 : i32
    %c0_i32_0 = arith.constant 0 : i32
    return %c0_i32, %arg1 : i32, i32
  }
  func.func @transform_3(%arg0: i32, %arg1: i32, %arg2: i32) -> (i32, i32) {
    %c0_i32 = arith.constant 0 : i32
    return %arg0, %arg1 : i32, i32
  }
}

module attributes {stable_mosaic.version = 11 : i64} {
  func.func @_mac_fused_kernel(%arg0: i32, %arg1: i32, %arg2: memref<2x32xf32, #tpu.memory_space<vmem>>, %arg3: memref<2x8x32xf32, #tpu.memory_space<vmem>>, %arg4: memref<2x8x1xf32, #tpu.memory_space<vmem>>, %arg5: memref<2x64x32xf32, #tpu.memory_space<vmem>>, %arg6: memref<2x64x32xf32, #tpu.memory_space<vmem>>, %arg7: memref<1x32xf32, #tpu.memory_space<vmem>>, %arg8: memref<1x32x32xf32, #tpu.memory_space<vmem>>, %arg9: memref<1x1x32xf32, #tpu.memory_space<vmem>>, %arg10: memref<1x32xf32, #tpu.memory_space<vmem>>, %arg11: memref<32x32xf32, #tpu.memory_space<vmem>>, %arg12: memref<1x32xf32, #tpu.memory_space<vmem>>, %arg13: memref<32x32xf32, #tpu.memory_space<vmem>>, %arg14: memref<32x32xf32, #tpu.memory_space<vmem>>, %arg15: memref<1x32xf32, #tpu.memory_space<vmem>>, %arg16: memref<1x32xf32, #tpu.memory_space<vmem>>, %arg17: memref<32x32xf32, #tpu.memory_space<vmem>>, %arg18: memref<32x32xf32, #tpu.memory_space<vmem>>, %arg19: memref<1x32xf32, #tpu.memory_space<vmem>>, %arg20: memref<2x32xf32, #tpu.memory_space<vmem>>, %arg21: memref<2x32xf32, #tpu.memory_space<vmem>>) attributes {dimension_semantics = [#tpu.dimension_semantics<parallel>, #tpu.dimension_semantics<arbitrary>], iteration_bounds = array<i64: 1, 3>, scalar_prefetch = 0 : i64, scratch_operands = 1 : i64, tpu.core_type = #tpu.core_type<tc>, window_params = [{transform_indices = @transform_0, window_bounds = array<i64: 2, 32>}, {transform_indices = @transform_1, window_bounds = array<i64: 2, 8, 32>}, {transform_indices = @transform_2, window_bounds = array<i64: 2, 8, 1>}, {transform_indices = @transform_3, window_bounds = array<i64: 2, 64, 32>}, {transform_indices = @transform_4, window_bounds = array<i64: 2, 64, 32>}, {pipeline_mode = #tpu.pipeline_mode<synchronous>, transform_indices = @transform_5, window_bounds = array<i64: 1, 32>}, {transform_indices = @transform_6, window_bounds = array<i64: 1, 32, 32>}, {transform_indices = @transform_7, window_bounds = array<i64: 1, 1, 32>}, {pipeline_mode = #tpu.pipeline_mode<synchronous>, transform_indices = @transform_8, window_bounds = array<i64: 1, 32>}, {pipeline_mode = #tpu.pipeline_mode<synchronous>, transform_indices = @transform_9, window_bounds = array<i64: 32, 32>}, {pipeline_mode = #tpu.pipeline_mode<synchronous>, transform_indices = @transform_10, window_bounds = array<i64: 1, 32>}, {pipeline_mode = #tpu.pipeline_mode<synchronous>, transform_indices = @transform_11, window_bounds = array<i64: 32, 32>}, {pipeline_mode = #tpu.pipeline_mode<synchronous>, transform_indices = @transform_12, window_bounds = array<i64: 32, 32>}, {pipeline_mode = #tpu.pipeline_mode<synchronous>, transform_indices = @transform_13, window_bounds = array<i64: 1, 32>}, {pipeline_mode = #tpu.pipeline_mode<synchronous>, transform_indices = @transform_14, window_bounds = array<i64: 1, 32>}, {pipeline_mode = #tpu.pipeline_mode<synchronous>, transform_indices = @transform_15, window_bounds = array<i64: 32, 32>}, {pipeline_mode = #tpu.pipeline_mode<synchronous>, transform_indices = @transform_16, window_bounds = array<i64: 32, 32>}, {pipeline_mode = #tpu.pipeline_mode<synchronous>, transform_indices = @transform_17, window_bounds = array<i64: 1, 32>}, {transform_indices = @transform_18, window_bounds = array<i64: 2, 32>}]} {
    %c0_i32 = arith.constant 0 : i32
    %0 = arith.cmpi eq, %arg1, %c0_i32 : i32
    %1 = arith.extui %0 : i1 to i32
    %c0_i32_0 = arith.constant 0 : i32
    %2 = arith.cmpi ne, %1, %c0_i32_0 : i32
    scf.if %2 {
      %c0_99 = arith.constant 0 : index
      %c0_100 = arith.constant 0 : index
      %185 = vector.load %arg7[%c0_99, %c0_100] : memref<1x32xf32, #tpu.memory_space<vmem>>, vector<1x32xf32>
      %186 = vector.shape_cast %185 : vector<1x32xf32> to vector<1x32xf32>
      %187 = vector.broadcast %186 : vector<1x32xf32> to vector<2x32xf32>
      %c0_101 = arith.constant 0 : index
      %c0_102 = arith.constant 0 : index
      %188 = vector.load %arg21[%c0_101, %c0_102] : memref<2x32xf32, #tpu.memory_space<vmem>>, vector<2x32xf32>
      tpu.vector_store %arg21[%c0_101, %c0_102], %187 {strides = array<i32>} : memref<2x32xf32, #tpu.memory_space<vmem>>, vector<2x32xf32>,
    } else {
    }
    %c0 = arith.constant 0 : index
    %c0_1 = arith.constant 0 : index
    %3 = vector.load %arg21[%c0, %c0_1] : memref<2x32xf32, #tpu.memory_space<vmem>>, vector<2x32xf32>
    %c0_2 = arith.constant 0 : index
    %c0_3 = arith.constant 0 : index
    %4 = vector.load %arg2[%c0_2, %c0_3] : memref<2x32xf32, #tpu.memory_space<vmem>>, vector<2x32xf32>
    %c0_4 = arith.constant 0 : index
    %c0_5 = arith.constant 0 : index
    %c0_6 = arith.constant 0 : index
    %5 = vector.load %arg8[%c0_4, %c0_5, %c0_6] : memref<1x32x32xf32, #tpu.memory_space<vmem>>, vector<1x32x32xf32>
    %6 = vector.shape_cast %5 : vector<1x32x32xf32> to vector<32x32xf32>
    %cst = arith.constant dense<0.000000e+00> : vector<2x32xf32>
    %7 = tpu.matmul %4, %6, %cst {dimension_numbers = #tpu.dot_dimension_numbers<[1], [0], [0], [1], [0, 0, 1, 1], [], []>} : vector<2x32xf32>, vector<32x32xf32>, vector<2x32xf32> -> vector<2x32xf32>
    %c0_7 = arith.constant 0 : index
    %c0_8 = arith.constant 0 : index
    %c0_9 = arith.constant 0 : index
    %8 = vector.load %arg9[%c0_7, %c0_8, %c0_9] : memref<1x1x32xf32, #tpu.memory_space<vmem>>, vector<1x1x32xf32>
    %9 = vector.shape_cast %8 : vector<1x1x32xf32> to vector<1x32xf32>
    %10 = vector.broadcast %9 : vector<1x32xf32> to vector<2x32xf32>
    %11 = arith.addf %7, %10 : vector<2x32xf32>
    %c0_10 = arith.constant 0 : index
    %c0_11 = arith.constant 0 : index
    %12 = vector.load %arg10[%c0_10, %c0_11] : memref<1x32xf32, #tpu.memory_space<vmem>>, vector<1x32xf32>
    %13 = vector.broadcast %12 : vector<1x32xf32> to vector<2x32xf32>
    %14 = arith.mulf %11, %13 : vector<2x32xf32>
    %c0_12 = arith.constant 0 : index
    %c0_13 = arith.constant 0 : index
    %15 = vector.load %arg11[%c0_12, %c0_13] : memref<32x32xf32, #tpu.memory_space<vmem>>, vector<32x32xf32>
    %cst_14 = arith.constant dense<0.000000e+00> : vector<2x32xf32>
    %16 = tpu.matmul %3, %15, %cst_14 {dimension_numbers = #tpu.dot_dimension_numbers<[1], [0], [0], [1], [0, 0, 1, 1], [], []>} : vector<2x32xf32>, vector<32x32xf32>, vector<2x32xf32> -> vector<2x32xf32>
    %c0_15 = arith.constant 0 : index
    %c0_16 = arith.constant 0 : index
    %17 = vector.load %arg12[%c0_15, %c0_16] : memref<1x32xf32, #tpu.memory_space<vmem>>, vector<1x32xf32>
    %18 = vector.broadcast %17 : vector<1x32xf32> to vector<2x32xf32>
    %19 = arith.addf %16, %18 : vector<2x32xf32>
    %c0_17 = arith.constant 0 : index
    %c0_18 = arith.constant 0 : index
    %c0_19 = arith.constant 0 : index
    %20 = vector.load %arg3[%c0_17, %c0_18, %c0_19] : memref<2x8x32xf32, #tpu.memory_space<vmem>>, vector<1x8x32xf32>
    %21 = vector.shape_cast %20 : vector<1x8x32xf32> to vector<8x32xf32>
    %22 = vector.extract_strided_slice %14 {offsets = [0, 0], sizes = [1, 32], strides = [1, 1]} : vector<2x32xf32> to vector<1x32xf32>
    %23 = vector.broadcast %22 : vector<1x32xf32> to vector<8x32xf32>
    %24 = arith.mulf %23, %21 : vector<8x32xf32>
    %cst_20 = arith.constant dense<0.000000e+00> : vector<8xf32>
    %25 = vector.multi_reduction <add>, %24, %cst_20 [1] : vector<8x32xf32> to vector<8xf32>
    %26 = vector.shape_cast %25 : vector<8xf32> to vector<8x1xf32>
    %c0_21 = arith.constant 0 : index
    %c0_22 = arith.constant 0 : index
    %c0_23 = arith.constant 0 : index
    %27 = vector.load %arg4[%c0_21, %c0_22, %c0_23] : memref<2x8x1xf32, #tpu.memory_space<vmem>>, vector<1x8x1xf32>
    %28 = vector.shape_cast %27 : vector<1x8x1xf32> to vector<8x1xf32>
    %29 = arith.addf %26, %28 : vector<8x1xf32>
    %cst_24 = arith.constant dense<0xFF800000> : vector<1xf32>
    %30 = vector.multi_reduction <maximumf>, %29, %cst_24 [0] : vector<8x1xf32> to vector<1xf32>
    %31 = vector.shape_cast %30 : vector<1xf32> to vector<1x1xf32>
    %32 = vector.broadcast %31 : vector<1x1xf32> to vector<8x1xf32>
    %33 = arith.subf %29, %32 : vector<8x1xf32>
    %34 = math.exp %33 : vector<8x1xf32>
    %cst_25 = arith.constant dense<0.000000e+00> : vector<1xf32>
    %35 = vector.multi_reduction <add>, %34, %cst_25 [0] : vector<8x1xf32> to vector<1xf32>
    %36 = vector.shape_cast %35 : vector<1xf32> to vector<1x1xf32>
    %37 = tpu.reciprocal %36 {approx = true} : vector<1x1xf32> -> vector<1x1xf32>
    %38 = vector.broadcast %37 : vector<1x1xf32> to vector<8x1xf32>
    %39 = arith.mulf %34, %38 : vector<8x1xf32>
    %40 = vector.broadcast %39 : vector<8x1xf32> to vector<8x32xf32>
    %41 = arith.mulf %40, %21 : vector<8x32xf32>
    %cst_26 = arith.constant dense<0.000000e+00> : vector<32xf32>
    %42 = vector.multi_reduction <add>, %41, %cst_26 [0] : vector<8x32xf32> to vector<32xf32>
    %43 = vector.shape_cast %42 : vector<32xf32> to vector<1x32xf32>
    %c0_27 = arith.constant 0 : index
    %c0_28 = arith.constant 0 : index
    %c0_29 = arith.constant 0 : index
    %44 = vector.load %arg5[%c0_27, %c0_28, %c0_29] : memref<2x64x32xf32, #tpu.memory_space<vmem>>, vector<1x64x32xf32>
    %45 = vector.shape_cast %44 : vector<1x64x32xf32> to vector<64x32xf32>
    %46 = vector.extract_strided_slice %19 {offsets = [0, 0], sizes = [1, 32], strides = [1, 1]} : vector<2x32xf32> to vector<1x32xf32>
    %47 = vector.broadcast %46 : vector<1x32xf32> to vector<64x32xf32>
    %48 = arith.mulf %47, %45 : vector<64x32xf32>
    %c0_30 = arith.constant 0 : index
    %c0_31 = arith.constant 0 : index
    %49 = vector.load %arg13[%c0_30, %c0_31] : memref<32x32xf32, #tpu.memory_space<vmem>>, vector<32x32xf32>
    %cst_32 = arith.constant dense<0.000000e+00> : vector<64x32xf32>
    %50 = tpu.matmul %48, %49, %cst_32 {dimension_numbers = #tpu.dot_dimension_numbers<[1], [0], [0], [1], [0, 0, 1, 1], [], []>} : vector<64x32xf32>, vector<32x32xf32>, vector<64x32xf32> -> vector<64x32xf32>
    %c0_33 = arith.constant 0 : index
    %c0_34 = arith.constant 0 : index
    %c0_35 = arith.constant 0 : index
    %51 = vector.load %arg6[%c0_33, %c0_34, %c0_35] : memref<2x64x32xf32, #tpu.memory_space<vmem>>, vector<1x64x32xf32>
    %52 = vector.shape_cast %51 : vector<1x64x32xf32> to vector<64x32xf32>
    %53 = arith.addf %50, %52 : vector<64x32xf32>
    %cst_36 = arith.constant 0.000000e+00 : f32
    %54 = vector.broadcast %cst_36 : f32 to vector<64x32xf32>
    %55 = arith.cmpf ogt, %53, %54 : vector<64x32xf32>
    %cst_37 = arith.constant 0.000000e+00 : f32
    %56 = vector.broadcast %cst_37 : f32 to vector<64x32xf32>
    %57 = arith.minimumf %53, %56 : vector<64x32xf32>
    %58 = math.exp %57 : vector<64x32xf32>
    %cst_38 = arith.constant 1.000000e+00 : f32
    %59 = vector.broadcast %cst_38 : f32 to vector<64x32xf32>
    %60 = arith.subf %58, %59 : vector<64x32xf32>
    %61 = arith.select %55, %53, %60 : vector<64x32xi1>, vector<64x32xf32>
    %c0_39 = arith.constant 0 : index
    %c0_40 = arith.constant 0 : index
    %62 = vector.load %arg14[%c0_39, %c0_40] : memref<32x32xf32, #tpu.memory_space<vmem>>, vector<32x32xf32>
    %cst_41 = arith.constant dense<0.000000e+00> : vector<64x32xf32>
    %63 = tpu.matmul %61, %62, %cst_41 {dimension_numbers = #tpu.dot_dimension_numbers<[1], [0], [0], [1], [0, 0, 1, 1], [], []>} : vector<64x32xf32>, vector<32x32xf32>, vector<64x32xf32> -> vector<64x32xf32>
    %c0_42 = arith.constant 0 : index
    %c0_43 = arith.constant 0 : index
    %64 = vector.load %arg15[%c0_42, %c0_43] : memref<1x32xf32, #tpu.memory_space<vmem>>, vector<1x32xf32>
    %65 = vector.broadcast %64 : vector<1x32xf32> to vector<64x32xf32>
    %66 = arith.addf %63, %65 : vector<64x32xf32>
    %67 = vector.broadcast %43 : vector<1x32xf32> to vector<64x32xf32>
    %68 = arith.mulf %66, %67 : vector<64x32xf32>
    %cst_44 = arith.constant 0.000000e+00 : f32
    %69 = vector.broadcast %cst_44 : f32 to vector<64x32xf32>
    %70 = arith.cmpf ogt, %68, %69 : vector<64x32xf32>
    %cst_45 = arith.constant 0.000000e+00 : f32
    %71 = vector.broadcast %cst_45 : f32 to vector<64x32xf32>
    %72 = arith.minimumf %68, %71 : vector<64x32xf32>
    %73 = math.exp %72 : vector<64x32xf32>
    %cst_46 = arith.constant 1.000000e+00 : f32
    %74 = vector.broadcast %cst_46 : f32 to vector<64x32xf32>
    %75 = arith.subf %73, %74 : vector<64x32xf32>
    %76 = arith.select %70, %68, %75 : vector<64x32xi1>, vector<64x32xf32>
    %c0_47 = arith.constant 0 : index
    %c0_48 = arith.constant 0 : index
    %77 = vector.load %arg16[%c0_47, %c0_48] : memref<1x32xf32, #tpu.memory_space<vmem>>, vector<1x32xf32>
    %78 = vector.broadcast %77 : vector<1x32xf32> to vector<64x32xf32>
    %79 = arith.mulf %76, %78 : vector<64x32xf32>
    %cst_49 = arith.constant dense<0.000000e+00> : vector<64xf32>
    %80 = vector.multi_reduction <add>, %79, %cst_49 [1] : vector<64x32xf32> to vector<64xf32>
    %81 = vector.shape_cast %80 : vector<64xf32> to vector<64x1xf32>
    %cst_50 = arith.constant dense<0xFF800000> : vector<1xf32>
    %82 = vector.multi_reduction <maximumf>, %81, %cst_50 [0] : vector<64x1xf32> to vector<1xf32>
    %83 = vector.shape_cast %82 : vector<1xf32> to vector<1x1xf32>
    %84 = vector.broadcast %83 : vector<1x1xf32> to vector<64x1xf32>
    %85 = arith.subf %81, %84 : vector<64x1xf32>
    %86 = math.exp %85 : vector<64x1xf32>
    %cst_51 = arith.constant dense<0.000000e+00> : vector<1xf32>
    %87 = vector.multi_reduction <add>, %86, %cst_51 [0] : vector<64x1xf32> to vector<1xf32>
    %88 = vector.shape_cast %87 : vector<1xf32> to vector<1x1xf32>
    %89 = tpu.reciprocal %88 {approx = true} : vector<1x1xf32> -> vector<1x1xf32>
    %90 = vector.broadcast %89 : vector<1x1xf32> to vector<64x1xf32>
    %91 = arith.mulf %86, %90 : vector<64x1xf32>
    %92 = vector.broadcast %91 : vector<64x1xf32> to vector<64x32xf32>
    %93 = arith.mulf %92, %45 : vector<64x32xf32>
    %cst_52 = arith.constant dense<0.000000e+00> : vector<32xf32>
    %94 = vector.multi_reduction <add>, %93, %cst_52 [0] : vector<64x32xf32> to vector<32xf32>
    %95 = vector.shape_cast %94 : vector<32xf32> to vector<1x32xf32>
    %c1 = arith.constant 1 : index
    %c0_53 = arith.constant 0 : index
    %c0_54 = arith.constant 0 : index
    %96 = vector.load %arg3[%c1, %c0_53, %c0_54] : memref<2x8x32xf32, #tpu.memory_space<vmem>>, vector<1x8x32xf32>
    %97 = vector.shape_cast %96 : vector<1x8x32xf32> to vector<8x32xf32>
    %98 = vector.extract_strided_slice %14 {offsets = [1, 0], sizes = [1, 32], strides = [1, 1]} : vector<2x32xf32> to vector<1x32xf32>
    %99 = vector.broadcast %98 : vector<1x32xf32> to vector<8x32xf32>
    %100 = arith.mulf %99, %97 : vector<8x32xf32>
    %cst_55 = arith.constant dense<0.000000e+00> : vector<8xf32>
    %101 = vector.multi_reduction <add>, %100, %cst_55 [1] : vector<8x32xf32> to vector<8xf32>
    %102 = vector.shape_cast %101 : vector<8xf32> to vector<8x1xf32>
    %c1_56 = arith.constant 1 : index
    %c0_57 = arith.constant 0 : index
    %c0_58 = arith.constant 0 : index
    %103 = vector.load %arg4[%c1_56, %c0_57, %c0_58] : memref<2x8x1xf32, #tpu.memory_space<vmem>>, vector<1x8x1xf32>
    %104 = vector.shape_cast %103 : vector<1x8x1xf32> to vector<8x1xf32>
    %105 = arith.addf %102, %104 : vector<8x1xf32>
    %cst_59 = arith.constant dense<0xFF800000> : vector<1xf32>
    %106 = vector.multi_reduction <maximumf>, %105, %cst_59 [0] : vector<8x1xf32> to vector<1xf32>
    %107 = vector.shape_cast %106 : vector<1xf32> to vector<1x1xf32>
    %108 = vector.broadcast %107 : vector<1x1xf32> to vector<8x1xf32>
    %109 = arith.subf %105, %108 : vector<8x1xf32>
    %110 = math.exp %109 : vector<8x1xf32>
    %cst_60 = arith.constant dense<0.000000e+00> : vector<1xf32>
    %111 = vector.multi_reduction <add>, %110, %cst_60 [0] : vector<8x1xf32> to vector<1xf32>
    %112 = vector.shape_cast %111 : vector<1xf32> to vector<1x1xf32>
    %113 = tpu.reciprocal %112 {approx = true} : vector<1x1xf32> -> vector<1x1xf32>
    %114 = vector.broadcast %113 : vector<1x1xf32> to vector<8x1xf32>
    %115 = arith.mulf %110, %114 : vector<8x1xf32>
    %116 = vector.broadcast %115 : vector<8x1xf32> to vector<8x32xf32>
    %117 = arith.mulf %116, %97 : vector<8x32xf32>
    %cst_61 = arith.constant dense<0.000000e+00> : vector<32xf32>
    %118 = vector.multi_reduction <add>, %117, %cst_61 [0] : vector<8x32xf32> to vector<32xf32>
    %119 = vector.shape_cast %118 : vector<32xf32> to vector<1x32xf32>
    %c1_62 = arith.constant 1 : index
    %c0_63 = arith.constant 0 : index
    %c0_64 = arith.constant 0 : index
    %120 = vector.load %arg5[%c1_62, %c0_63, %c0_64] : memref<2x64x32xf32, #tpu.memory_space<vmem>>, vector<1x64x32xf32>
    %121 = vector.shape_cast %120 : vector<1x64x32xf32> to vector<64x32xf32>
    %122 = vector.extract_strided_slice %19 {offsets = [1, 0], sizes = [1, 32], strides = [1, 1]} : vector<2x32xf32> to vector<1x32xf32>
    %123 = vector.broadcast %122 : vector<1x32xf32> to vector<64x32xf32>
    %124 = arith.mulf %123, %121 : vector<64x32xf32>
    %c0_65 = arith.constant 0 : index
    %c0_66 = arith.constant 0 : index
    %125 = vector.load %arg13[%c0_65, %c0_66] : memref<32x32xf32, #tpu.memory_space<vmem>>, vector<32x32xf32>
    %cst_67 = arith.constant dense<0.000000e+00> : vector<64x32xf32>
    %126 = tpu.matmul %124, %125, %cst_67 {dimension_numbers = #tpu.dot_dimension_numbers<[1], [0], [0], [1], [0, 0, 1, 1], [], []>} : vector<64x32xf32>, vector<32x32xf32>, vector<64x32xf32> -> vector<64x32xf32>
    %c1_68 = arith.constant 1 : index
    %c0_69 = arith.constant 0 : index
    %c0_70 = arith.constant 0 : index
    %127 = vector.load %arg6[%c1_68, %c0_69, %c0_70] : memref<2x64x32xf32, #tpu.memory_space<vmem>>, vector<1x64x32xf32>
    %128 = vector.shape_cast %127 : vector<1x64x32xf32> to vector<64x32xf32>
    %129 = arith.addf %126, %128 : vector<64x32xf32>
    %cst_71 = arith.constant 0.000000e+00 : f32
    %130 = vector.broadcast %cst_71 : f32 to vector<64x32xf32>
    %131 = arith.cmpf ogt, %129, %130 : vector<64x32xf32>
    %cst_72 = arith.constant 0.000000e+00 : f32
    %132 = vector.broadcast %cst_72 : f32 to vector<64x32xf32>
    %133 = arith.minimumf %129, %132 : vector<64x32xf32>
    %134 = math.exp %133 : vector<64x32xf32>
    %cst_73 = arith.constant 1.000000e+00 : f32
    %135 = vector.broadcast %cst_73 : f32 to vector<64x32xf32>
    %136 = arith.subf %134, %135 : vector<64x32xf32>
    %137 = arith.select %131, %129, %136 : vector<64x32xi1>, vector<64x32xf32>
    %c0_74 = arith.constant 0 : index
    %c0_75 = arith.constant 0 : index
    %138 = vector.load %arg14[%c0_74, %c0_75] : memref<32x32xf32, #tpu.memory_space<vmem>>, vector<32x32xf32>
    %cst_76 = arith.constant dense<0.000000e+00> : vector<64x32xf32>
    %139 = tpu.matmul %137, %138, %cst_76 {dimension_numbers = #tpu.dot_dimension_numbers<[1], [0], [0], [1], [0, 0, 1, 1], [], []>} : vector<64x32xf32>, vector<32x32xf32>, vector<64x32xf32> -> vector<64x32xf32>
    %c0_77 = arith.constant 0 : index
    %c0_78 = arith.constant 0 : index
    %140 = vector.load %arg15[%c0_77, %c0_78] : memref<1x32xf32, #tpu.memory_space<vmem>>, vector<1x32xf32>
    %141 = vector.broadcast %140 : vector<1x32xf32> to vector<64x32xf32>
    %142 = arith.addf %139, %141 : vector<64x32xf32>
    %143 = vector.broadcast %119 : vector<1x32xf32> to vector<64x32xf32>
    %144 = arith.mulf %142, %143 : vector<64x32xf32>
    %cst_79 = arith.constant 0.000000e+00 : f32
    %145 = vector.broadcast %cst_79 : f32 to vector<64x32xf32>
    %146 = arith.cmpf ogt, %144, %145 : vector<64x32xf32>
    %cst_80 = arith.constant 0.000000e+00 : f32
    %147 = vector.broadcast %cst_80 : f32 to vector<64x32xf32>
    %148 = arith.minimumf %144, %147 : vector<64x32xf32>
    %149 = math.exp %148 : vector<64x32xf32>
    %cst_81 = arith.constant 1.000000e+00 : f32
    %150 = vector.broadcast %cst_81 : f32 to vector<64x32xf32>
    %151 = arith.subf %149, %150 : vector<64x32xf32>
    %152 = arith.select %146, %144, %151 : vector<64x32xi1>, vector<64x32xf32>
    %c0_82 = arith.constant 0 : index
    %c0_83 = arith.constant 0 : index
    %153 = vector.load %arg16[%c0_82, %c0_83] : memref<1x32xf32, #tpu.memory_space<vmem>>, vector<1x32xf32>
    %154 = vector.broadcast %153 : vector<1x32xf32> to vector<64x32xf32>
    %155 = arith.mulf %152, %154 : vector<64x32xf32>
    %cst_84 = arith.constant dense<0.000000e+00> : vector<64xf32>
    %156 = vector.multi_reduction <add>, %155, %cst_84 [1] : vector<64x32xf32> to vector<64xf32>
    %157 = vector.shape_cast %156 : vector<64xf32> to vector<64x1xf32>
    %cst_85 = arith.constant dense<0xFF800000> : vector<1xf32>
    %158 = vector.multi_reduction <maximumf>, %157, %cst_85 [0] : vector<64x1xf32> to vector<1xf32>
    %159 = vector.shape_cast %158 : vector<1xf32> to vector<1x1xf32>
    %160 = vector.broadcast %159 : vector<1x1xf32> to vector<64x1xf32>
    %161 = arith.subf %157, %160 : vector<64x1xf32>
    %162 = math.exp %161 : vector<64x1xf32>
    %cst_86 = arith.constant dense<0.000000e+00> : vector<1xf32>
    %163 = vector.multi_reduction <add>, %162, %cst_86 [0] : vector<64x1xf32> to vector<1xf32>
    %164 = vector.shape_cast %163 : vector<1xf32> to vector<1x1xf32>
    %165 = tpu.reciprocal %164 {approx = true} : vector<1x1xf32> -> vector<1x1xf32>
    %166 = vector.broadcast %165 : vector<1x1xf32> to vector<64x1xf32>
    %167 = arith.mulf %162, %166 : vector<64x1xf32>
    %168 = vector.broadcast %167 : vector<64x1xf32> to vector<64x32xf32>
    %169 = arith.mulf %168, %121 : vector<64x32xf32>
    %cst_87 = arith.constant dense<0.000000e+00> : vector<32xf32>
    %170 = vector.multi_reduction <add>, %169, %cst_87 [0] : vector<64x32xf32> to vector<32xf32>
    %171 = vector.shape_cast %170 : vector<32xf32> to vector<1x32xf32>
    %172 = tpu.concatenate %95, %171 in 0 : vector<1x32xf32>, vector<1x32xf32> -> vector<2x32xf32>
    %c0_88 = arith.constant 0 : index
    %c0_89 = arith.constant 0 : index
    %173 = vector.load %arg17[%c0_88, %c0_89] : memref<32x32xf32, #tpu.memory_space<vmem>>, vector<32x32xf32>
    %cst_90 = arith.constant dense<0.000000e+00> : vector<2x32xf32>
    %174 = tpu.matmul %3, %173, %cst_90 {dimension_numbers = #tpu.dot_dimension_numbers<[1], [0], [0], [1], [0, 0, 1, 1], [], []>} : vector<2x32xf32>, vector<32x32xf32>, vector<2x32xf32> -> vector<2x32xf32>
    %c0_91 = arith.constant 0 : index
    %c0_92 = arith.constant 0 : index
    %175 = vector.load %arg18[%c0_91, %c0_92] : memref<32x32xf32, #tpu.memory_space<vmem>>, vector<32x32xf32>
    %cst_93 = arith.constant dense<0.000000e+00> : vector<2x32xf32>
    %176 = tpu.matmul %172, %175, %cst_93 {dimension_numbers = #tpu.dot_dimension_numbers<[1], [0], [0], [1], [0, 0, 1, 1], [], []>} : vector<2x32xf32>, vector<32x32xf32>, vector<2x32xf32> -> vector<2x32xf32>
    %177 = arith.addf %174, %176 : vector<2x32xf32>
    %c0_94 = arith.constant 0 : index
    %c0_95 = arith.constant 0 : index
    %178 = vector.load %arg19[%c0_94, %c0_95] : memref<1x32xf32, #tpu.memory_space<vmem>>, vector<1x32xf32>
    %179 = vector.broadcast %178 : vector<1x32xf32> to vector<2x32xf32>
    %180 = arith.addf %177, %179 : vector<2x32xf32>
    %c0_96 = arith.constant 0 : index
    %c0_97 = arith.constant 0 : index
    %181 = vector.load %arg21[%c0_96, %c0_97] : memref<2x32xf32, #tpu.memory_space<vmem>>, vector<2x32xf32>
    tpu.vector_store %arg21[%c0_96, %c0_97], %180 {strides = array<i32>} : memref<2x32xf32, #tpu.memory_space<vmem>>, vector<2x32xf32>,
    %c2_i32 = arith.constant 2 : i32
    %182 = arith.cmpi eq, %arg1, %c2_i32 : i32
    %183 = arith.extui %182 : i1 to i32
    %c0_i32_98 = arith.constant 0 : i32
    %184 = arith.cmpi ne, %183, %c0_i32_98 : i32
    scf.if %184 {
      %c0_99 = arith.constant 0 : index
      %c0_100 = arith.constant 0 : index
      %185 = vector.load %arg20[%c0_99, %c0_100] : memref<2x32xf32, #tpu.memory_space<vmem>>, vector<2x32xf32>
      tpu.vector_store %arg20[%c0_99, %c0_100], %180 {strides = array<i32>} : memref<2x32xf32, #tpu.memory_space<vmem>>, vector<2x32xf32>,
    } else {
    }
    return
  }
  func.func @transform_0(%arg0: i32, %arg1: i32) -> (i32, i32) {
    %c0_i32 = arith.constant 0 : i32
    %c0_i32_0 = arith.constant 0 : i32
    return %arg0, %c0_i32 : i32, i32
  }
  func.func @transform_1(%arg0: i32, %arg1: i32) -> (i32, i32, i32) {
    %c0_i32 = arith.constant 0 : i32
    %c0_i32_0 = arith.constant 0 : i32
    %c0_i32_1 = arith.constant 0 : i32
    return %arg0, %c0_i32, %c0_i32_0 : i32, i32, i32
  }
  func.func @transform_2(%arg0: i32, %arg1: i32) -> (i32, i32, i32) {
    %c0_i32 = arith.constant 0 : i32
    %c0_i32_0 = arith.constant 0 : i32
    %c0_i32_1 = arith.constant 0 : i32
    return %arg0, %c0_i32, %c0_i32_0 : i32, i32, i32
  }
  func.func @transform_3(%arg0: i32, %arg1: i32) -> (i32, i32, i32) {
    %c0_i32 = arith.constant 0 : i32
    %c0_i32_0 = arith.constant 0 : i32
    %c0_i32_1 = arith.constant 0 : i32
    return %arg0, %c0_i32, %c0_i32_0 : i32, i32, i32
  }
  func.func @transform_4(%arg0: i32, %arg1: i32) -> (i32, i32, i32) {
    %c0_i32 = arith.constant 0 : i32
    %c0_i32_0 = arith.constant 0 : i32
    %c0_i32_1 = arith.constant 0 : i32
    return %arg0, %c0_i32, %c0_i32_0 : i32, i32, i32
  }
  func.func @transform_5(%arg0: i32, %arg1: i32) -> (i32, i32) {
    %c0_i32 = arith.constant 0 : i32
    %c0_i32_0 = arith.constant 0 : i32
    %c0_i32_1 = arith.constant 0 : i32
    return %c0_i32, %c0_i32_0 : i32, i32
  }
  func.func @transform_6(%arg0: i32, %arg1: i32) -> (i32, i32, i32) {
    %c0_i32 = arith.constant 0 : i32
    %c0_i32_0 = arith.constant 0 : i32
    %c0_i32_1 = arith.constant 0 : i32
    return %arg1, %c0_i32, %c0_i32_0 : i32, i32, i32
  }
  func.func @transform_7(%arg0: i32, %arg1: i32) -> (i32, i32, i32) {
    %c0_i32 = arith.constant 0 : i32
    %c0_i32_0 = arith.constant 0 : i32
    %c0_i32_1 = arith.constant 0 : i32
    return %arg1, %c0_i32, %c0_i32_0 : i32, i32, i32
  }
  func.func @transform_8(%arg0: i32, %arg1: i32) -> (i32, i32) {
    %c0_i32 = arith.constant 0 : i32
    %c0_i32_0 = arith.constant 0 : i32
    %c0_i32_1 = arith.constant 0 : i32
    return %c0_i32, %c0_i32_0 : i32, i32
  }
  func.func @transform_9(%arg0: i32, %arg1: i32) -> (i32, i32) {
    %c0_i32 = arith.constant 0 : i32
    %c0_i32_0 = arith.constant 0 : i32
    %c0_i32_1 = arith.constant 0 : i32
    return %c0_i32, %c0_i32_0 : i32, i32
  }
  func.func @transform_10(%arg0: i32, %arg1: i32) -> (i32, i32) {
    %c0_i32 = arith.constant 0 : i32
    %c0_i32_0 = arith.constant 0 : i32
    %c0_i32_1 = arith.constant 0 : i32
    return %c0_i32, %c0_i32_0 : i32, i32
  }
  func.func @transform_11(%arg0: i32, %arg1: i32) -> (i32, i32) {
    %c0_i32 = arith.constant 0 : i32
    %c0_i32_0 = arith.constant 0 : i32
    %c0_i32_1 = arith.constant 0 : i32
    return %c0_i32, %c0_i32_0 : i32, i32
  }
  func.func @transform_12(%arg0: i32, %arg1: i32) -> (i32, i32) {
    %c0_i32 = arith.constant 0 : i32
    %c0_i32_0 = arith.constant 0 : i32
    %c0_i32_1 = arith.constant 0 : i32
    return %c0_i32, %c0_i32_0 : i32, i32
  }
  func.func @transform_13(%arg0: i32, %arg1: i32) -> (i32, i32) {
    %c0_i32 = arith.constant 0 : i32
    %c0_i32_0 = arith.constant 0 : i32
    %c0_i32_1 = arith.constant 0 : i32
    return %c0_i32, %c0_i32_0 : i32, i32
  }
  func.func @transform_14(%arg0: i32, %arg1: i32) -> (i32, i32) {
    %c0_i32 = arith.constant 0 : i32
    %c0_i32_0 = arith.constant 0 : i32
    %c0_i32_1 = arith.constant 0 : i32
    return %c0_i32, %c0_i32_0 : i32, i32
  }
  func.func @transform_15(%arg0: i32, %arg1: i32) -> (i32, i32) {
    %c0_i32 = arith.constant 0 : i32
    %c0_i32_0 = arith.constant 0 : i32
    %c0_i32_1 = arith.constant 0 : i32
    return %c0_i32, %c0_i32_0 : i32, i32
  }
  func.func @transform_16(%arg0: i32, %arg1: i32) -> (i32, i32) {
    %c0_i32 = arith.constant 0 : i32
    %c0_i32_0 = arith.constant 0 : i32
    %c0_i32_1 = arith.constant 0 : i32
    return %c0_i32, %c0_i32_0 : i32, i32
  }
  func.func @transform_17(%arg0: i32, %arg1: i32) -> (i32, i32) {
    %c0_i32 = arith.constant 0 : i32
    %c0_i32_0 = arith.constant 0 : i32
    %c0_i32_1 = arith.constant 0 : i32
    return %c0_i32, %c0_i32_0 : i32, i32
  }
  func.func @transform_18(%arg0: i32, %arg1: i32) -> (i32, i32) {
    %c0_i32 = arith.constant 0 : i32
    %c0_i32_0 = arith.constant 0 : i32
    return %arg0, %c0_i32 : i32, i32
  }
}

module attributes {stable_mosaic.version = 11 : i64} {
  func.func @_linear_kernel(%arg0: i32, %arg1: i32, %arg2: i32, %arg3: memref<2x64xf32, #tpu.memory_space<vmem>>, %arg4: memref<64x32xf32, #tpu.memory_space<vmem>>, %arg5: memref<1x32xf32, #tpu.memory_space<vmem>>, %arg6: memref<2x32xf32, #tpu.memory_space<vmem>>, %arg7: memref<2x32xf32, #tpu.memory_space<vmem>>) attributes {dimension_semantics = [#tpu.dimension_semantics<parallel>, #tpu.dimension_semantics<parallel>, #tpu.dimension_semantics<arbitrary>], iteration_bounds = array<i64: 1, 1, 1>, scalar_prefetch = 0 : i64, scratch_operands = 1 : i64, tpu.core_type = #tpu.core_type<tc>, window_params = [{transform_indices = @transform_0, window_bounds = array<i64: 2, 64>}, {transform_indices = @transform_1, window_bounds = array<i64: 64, 32>}, {transform_indices = @transform_2, window_bounds = array<i64: 1, 32>}, {transform_indices = @transform_3, window_bounds = array<i64: 2, 32>}]} {
    %c0_i32 = arith.constant 0 : i32
    %0 = arith.cmpi eq, %arg2, %c0_i32 : i32
    %1 = arith.extui %0 : i1 to i32
    %c0_i32_0 = arith.constant 0 : i32
    %2 = arith.cmpi ne, %1, %c0_i32_0 : i32
    scf.if %2 {
      %cst_10 = arith.constant 0.000000e+00 : f32
      %12 = vector.broadcast %cst_10 : f32 to vector<2x32xf32>
      %c0_11 = arith.constant 0 : index
      %c0_12 = arith.constant 0 : index
      %13 = vector.load %arg7[%c0_11, %c0_12] : memref<2x32xf32, #tpu.memory_space<vmem>>, vector<2x32xf32>
      tpu.vector_store %arg7[%c0_11, %c0_12], %12 {strides = array<i32>} : memref<2x32xf32, #tpu.memory_space<vmem>>, vector<2x32xf32>,
    } else {
    }
    %c0 = arith.constant 0 : index
    %c0_1 = arith.constant 0 : index
    %3 = vector.load %arg7[%c0, %c0_1] : memref<2x32xf32, #tpu.memory_space<vmem>>, vector<2x32xf32>
    %c0_2 = arith.constant 0 : index
    %c0_3 = arith.constant 0 : index
    %4 = vector.load %arg3[%c0_2, %c0_3] : memref<2x64xf32, #tpu.memory_space<vmem>>, vector<2x64xf32>
    %c0_4 = arith.constant 0 : index
    %c0_5 = arith.constant 0 : index
    %5 = vector.load %arg4[%c0_4, %c0_5] : memref<64x32xf32, #tpu.memory_space<vmem>>, vector<64x32xf32>
    %cst = arith.constant dense<0.000000e+00> : vector<2x32xf32>
    %6 = tpu.matmul %4, %5, %cst {dimension_numbers = #tpu.dot_dimension_numbers<[1], [0], [0], [1], [0, 0, 1, 1], [], []>} : vector<2x64xf32>, vector<64x32xf32>, vector<2x32xf32> -> vector<2x32xf32>
    %7 = arith.addf %3, %6 : vector<2x32xf32>
    %c0_6 = arith.constant 0 : index
    %c0_7 = arith.constant 0 : index
    %8 = vector.load %arg7[%c0_6, %c0_7] : memref<2x32xf32, #tpu.memory_space<vmem>>, vector<2x32xf32>
    tpu.vector_store %arg7[%c0_6, %c0_7], %7 {strides = array<i32>} : memref<2x32xf32, #tpu.memory_space<vmem>>, vector<2x32xf32>,
    %c0_i32_8 = arith.constant 0 : i32
    %9 = arith.cmpi eq, %arg2, %c0_i32_8 : i32
    %10 = arith.extui %9 : i1 to i32
    %c0_i32_9 = arith.constant 0 : i32
    %11 = arith.cmpi ne, %10, %c0_i32_9 : i32
    scf.if %11 {
      %c0_10 = arith.constant 0 : index
      %c0_11 = arith.constant 0 : index
      %12 = vector.load %arg7[%c0_10, %c0_11] : memref<2x32xf32, #tpu.memory_space<vmem>>, vector<2x32xf32>
      %c0_12 = arith.constant 0 : index
      %c0_13 = arith.constant 0 : index
      %13 = vector.load %arg5[%c0_12, %c0_13] : memref<1x32xf32, #tpu.memory_space<vmem>>, vector<1x32xf32>
      %14 = vector.broadcast %13 : vector<1x32xf32> to vector<2x32xf32>
      %15 = arith.addf %12, %14 : vector<2x32xf32>
      %cst_14 = arith.constant 0.000000e+00 : f32
      %16 = vector.broadcast %cst_14 : f32 to vector<2x32xf32>
      %17 = arith.cmpf ogt, %15, %16 : vector<2x32xf32>
      %cst_15 = arith.constant 0.000000e+00 : f32
      %18 = vector.broadcast %cst_15 : f32 to vector<2x32xf32>
      %19 = arith.minimumf %15, %18 : vector<2x32xf32>
      %20 = math.exp %19 : vector<2x32xf32>
      %cst_16 = arith.constant 1.000000e+00 : f32
      %21 = vector.broadcast %cst_16 : f32 to vector<2x32xf32>
      %22 = arith.subf %20, %21 : vector<2x32xf32>
      %23 = arith.select %17, %15, %22 : vector<2x32xi1>, vector<2x32xf32>
      %c0_17 = arith.constant 0 : index
      %c0_18 = arith.constant 0 : index
      %24 = vector.load %arg6[%c0_17, %c0_18] : memref<2x32xf32, #tpu.memory_space<vmem>>, vector<2x32xf32>
      tpu.vector_store %arg6[%c0_17, %c0_18], %23 {strides = array<i32>} : memref<2x32xf32, #tpu.memory_space<vmem>>, vector<2x32xf32>,
    } else {
    }
    return
  }
  func.func @transform_0(%arg0: i32, %arg1: i32, %arg2: i32) -> (i32, i32) {
    %c0_i32 = arith.constant 0 : i32
    return %arg0, %arg2 : i32, i32
  }
  func.func @transform_1(%arg0: i32, %arg1: i32, %arg2: i32) -> (i32, i32) {
    %c0_i32 = arith.constant 0 : i32
    return %arg2, %arg1 : i32, i32
  }
  func.func @transform_2(%arg0: i32, %arg1: i32, %arg2: i32) -> (i32, i32) {
    %c0_i32 = arith.constant 0 : i32
    %c0_i32_0 = arith.constant 0 : i32
    return %c0_i32, %arg1 : i32, i32
  }
  func.func @transform_3(%arg0: i32, %arg1: i32, %arg2: i32) -> (i32, i32) {
    %c0_i32 = arith.constant 0 : i32
    return %arg0, %arg1 : i32, i32
  }
}

module attributes {stable_mosaic.version = 11 : i64} {
  func.func @_linear_kernel(%arg0: i32, %arg1: i32, %arg2: i32, %arg3: memref<2x32xf32, #tpu.memory_space<vmem>>, %arg4: memref<32x8xf32, #tpu.memory_space<vmem>>, %arg5: memref<1x8xf32, #tpu.memory_space<vmem>>, %arg6: memref<2x8xf32, #tpu.memory_space<vmem>>, %arg7: memref<2x8xf32, #tpu.memory_space<vmem>>) attributes {dimension_semantics = [#tpu.dimension_semantics<parallel>, #tpu.dimension_semantics<parallel>, #tpu.dimension_semantics<arbitrary>], iteration_bounds = array<i64: 1, 1, 1>, scalar_prefetch = 0 : i64, scratch_operands = 1 : i64, tpu.core_type = #tpu.core_type<tc>, window_params = [{transform_indices = @transform_0, window_bounds = array<i64: 2, 32>}, {transform_indices = @transform_1, window_bounds = array<i64: 32, 8>}, {transform_indices = @transform_2, window_bounds = array<i64: 1, 8>}, {transform_indices = @transform_3, window_bounds = array<i64: 2, 8>}]} {
    %c0_i32 = arith.constant 0 : i32
    %0 = arith.cmpi eq, %arg2, %c0_i32 : i32
    %1 = arith.extui %0 : i1 to i32
    %c0_i32_0 = arith.constant 0 : i32
    %2 = arith.cmpi ne, %1, %c0_i32_0 : i32
    scf.if %2 {
      %cst_10 = arith.constant 0.000000e+00 : f32
      %12 = vector.broadcast %cst_10 : f32 to vector<2x8xf32>
      %c0_11 = arith.constant 0 : index
      %c0_12 = arith.constant 0 : index
      %13 = vector.load %arg7[%c0_11, %c0_12] : memref<2x8xf32, #tpu.memory_space<vmem>>, vector<2x8xf32>
      tpu.vector_store %arg7[%c0_11, %c0_12], %12 {strides = array<i32>} : memref<2x8xf32, #tpu.memory_space<vmem>>, vector<2x8xf32>,
    } else {
    }
    %c0 = arith.constant 0 : index
    %c0_1 = arith.constant 0 : index
    %3 = vector.load %arg7[%c0, %c0_1] : memref<2x8xf32, #tpu.memory_space<vmem>>, vector<2x8xf32>
    %c0_2 = arith.constant 0 : index
    %c0_3 = arith.constant 0 : index
    %4 = vector.load %arg3[%c0_2, %c0_3] : memref<2x32xf32, #tpu.memory_space<vmem>>, vector<2x32xf32>
    %c0_4 = arith.constant 0 : index
    %c0_5 = arith.constant 0 : index
    %5 = vector.load %arg4[%c0_4, %c0_5] : memref<32x8xf32, #tpu.memory_space<vmem>>, vector<32x8xf32>
    %cst = arith.constant dense<0.000000e+00> : vector<2x8xf32>
    %6 = tpu.matmul %4, %5, %cst {dimension_numbers = #tpu.dot_dimension_numbers<[1], [0], [0], [1], [0, 0, 1, 1], [], []>} : vector<2x32xf32>, vector<32x8xf32>, vector<2x8xf32> -> vector<2x8xf32>
    %7 = arith.addf %3, %6 : vector<2x8xf32>
    %c0_6 = arith.constant 0 : index
    %c0_7 = arith.constant 0 : index
    %8 = vector.load %arg7[%c0_6, %c0_7] : memref<2x8xf32, #tpu.memory_space<vmem>>, vector<2x8xf32>
    tpu.vector_store %arg7[%c0_6, %c0_7], %7 {strides = array<i32>} : memref<2x8xf32, #tpu.memory_space<vmem>>, vector<2x8xf32>,
    %c0_i32_8 = arith.constant 0 : i32
    %9 = arith.cmpi eq, %arg2, %c0_i32_8 : i32
    %10 = arith.extui %9 : i1 to i32
    %c0_i32_9 = arith.constant 0 : i32
    %11 = arith.cmpi ne, %10, %c0_i32_9 : i32
    scf.if %11 {
      %c0_10 = arith.constant 0 : index
      %c0_11 = arith.constant 0 : index
      %12 = vector.load %arg7[%c0_10, %c0_11] : memref<2x8xf32, #tpu.memory_space<vmem>>, vector<2x8xf32>
      %c0_12 = arith.constant 0 : index
      %c0_13 = arith.constant 0 : index
      %13 = vector.load %arg5[%c0_12, %c0_13] : memref<1x8xf32, #tpu.memory_space<vmem>>, vector<1x8xf32>
      %14 = vector.broadcast %13 : vector<1x8xf32> to vector<2x8xf32>
      %15 = arith.addf %12, %14 : vector<2x8xf32>
      %c0_14 = arith.constant 0 : index
      %c0_15 = arith.constant 0 : index
      %16 = vector.load %arg6[%c0_14, %c0_15] : memref<2x8xf32, #tpu.memory_space<vmem>>, vector<2x8xf32>
      tpu.vector_store %arg6[%c0_14, %c0_15], %15 {strides = array<i32>} : memref<2x8xf32, #tpu.memory_space<vmem>>, vector<2x8xf32>,
    } else {
    }
    return
  }
  func.func @transform_0(%arg0: i32, %arg1: i32, %arg2: i32) -> (i32, i32) {
    %c0_i32 = arith.constant 0 : i32
    return %arg0, %arg2 : i32, i32
  }
  func.func @transform_1(%arg0: i32, %arg1: i32, %arg2: i32) -> (i32, i32) {
    %c0_i32 = arith.constant 0 : i32
    return %arg2, %arg1 : i32, i32
  }
  func.func @transform_2(%arg0: i32, %arg1: i32, %arg2: i32) -> (i32, i32) {
    %c0_i32 = arith.constant 0 : i32
    %c0_i32_0 = arith.constant 0 : i32
    return %c0_i32, %arg1 : i32, i32
  }
  func.func @transform_3(%arg0: i32, %arg1: i32, %arg2: i32) -> (i32, i32) {
    %c0_i32 = arith.constant 0 : i32
    return %arg0, %arg1 : i32, i32
  }
}

</mosaic_0001>

<llo_original>
// kernel: mac_forward.11
$region0: #{mac_forward.11}
  #allocation0 [shape = 'u32[]', space=smem, size = 0x4, offset = 0x4, fixed_abs, tag = 'smem constant byte address 0x4 - core index']
  #allocation1 [shape = 'u32[144,128]{1,0:T(1,128)}', space=vmem, size = 0x12000, scoped, tag = 'internal scratch']
  #allocation2 [shape = 'f32[64,32]{1,0:T(8,128)}', space=vmem, size = 0x8000, scoped, tag = 'scratch operand']
  %s0 = inlined_call_operand.hbm [shape: f32[2,80,192], index: 0, kind: input, shape index: {}]
  %s1 = inlined_call_operand.hbm [shape: f32[3,192,32], index: 1, kind: input, shape index: {}]
  %s2 = inlined_call_operand.hbm [shape: f32[1,32], index: 2, kind: input, shape index: {}]
  %s3 = inlined_call_operand.hbm [shape: f32[2,64,32], index: 3, kind: output, shape index: {}]
  %s4 = sld [smem:[#allocation0]]
  $region65: #{mac_forward.11} parent=0
    _
  %s6 = ssub.s32 1, %s4
  %s7 = scalar_select 0, %s6, %s4
  $region1: #{mac_forward.11} parent=0
    #allocation3 [shape = 'u8[163840]{0}', space=vmem, size = 0x28000, scoped, tag = 'input window, operand 0']
    #allocation4 [shape = 's32[2]{0}', space=sflag, size = 0x8, scoped, tag = 'scoped memory for mac_forward.11']
    #allocation5 [shape = 's32[2]{0}', space=sflag, size = 0x8, scoped, tag = 'scoped memory for mac_forward.11']
    #allocation6 [shape = 'u8[196608]{0}', space=vmem, size = 0x30000, scoped, tag = 'input window, operand 1']
    #allocation7 [shape = 's32[2]{0}', space=sflag, size = 0x8, scoped, tag = 'scoped memory for mac_forward.11']
    #allocation8 [shape = 'u8[512]{0}', space=vmem, size = 0x400, scoped, tag = 'input window, operand 2, single buffered']
    #allocation9 [shape = 'u8[65536]{0}', space=vmem, size = 0x10000, scoped, tag = 'output window, operand 0']
    %8 = vsyncpa [#allocation4], 0
    %s9 = scalar_lea.sflag [#allocation4], 1
    %10 = vsyncpa %s9, 0
    %11 = vsyncpa [#allocation7], 0
    %s12 = scalar_lea.sflag [#allocation7], 1
    %13 = vsyncpa %s12, 0
    %14 = vsyncpa [#allocation5], 0
    %s15 = scalar_lea.sflag [#allocation5], 1
    %16 = vsyncpa %s15, 0
    loop: start=0, step=1, limit=8
    $region2: #{mac_forward.11} parent=1 // loop_pre_header
      _
    $region3: #{mac_forward.11} parent=1 // loop_header
      %s18 = sphi 0, %s22
      %p19 = scmp.ge.s32.totalorder %s18, 8
      %s25 = sphi 0, %s37
      %s26 = sphi 0, %s33
      %s27 = sphi 0, %s25
      %s28 = sphi 0, %s26
      %s29 = sphi 0, %s27
      %s30 = sphi 0, %s28
      %s40 = sphi 0, %s42
      %s43 = sphi 0, %s40
      %s44 = sphi 0, %s43
      %s60 = sphi 0, %s44
      %s66 = sphi 0, %s68
      %s69 = sphi 0, %s66
      %s70 = sphi 0, %s69
      %s86 = sphi 0, %s70
      %s90 = sphi 0, %s90
      %s92 = sphi 0, %s90
      %s93 = sphi 0, %s92
      %s107 = sphi 0, %s93
      %s113 = sphi 0, %s115
      %s116 = sphi 0, %s113
      %s117 = sphi 0, %s116
      %s133 = sphi 0, %s117
    $region4: #{mac_forward.11} parent=1 // loop_header_branch
      %21 = sbr.rel (%p19) target = $region8
    $region5: #{mac_forward.11} parent=1 // loop_body
      %s23 = ssub.s32 %s18, 1
      %s24 = ssub.s32 %s18, 2
      %s31 = sadd.s32 1, %s26
      %p32 = scmp.ge.s32.totalorder %s31, 3
      %s33 = scalar_select %p32, 0, %s31
      %s34 = sadd.s32 1, %s25
      %s35 = scalar_select %p32, %s34, %s25
      %p36 = scmp.ge.s32.totalorder %s35, 2
      %s37 = scalar_select %p36, 0, %s35
      %s38 = ssub.s32 %s25, %s37
      %p39 = scmp.eq.s32.totalorder %s38, 0
      %s41 = sadd.s32 %s40, 1
      %s42 = scalar_select %p39, %s40, %s41
      %p45 = pneg %p39
      %p46 = scmp.eq.s32.totalorder %s18, 5
      %p47 = por %p45, %p46
      %p48 = scmp.ne.s32.totalorder %s40, %s43
      %p49 = scmp.eq.s32.totalorder %s18, 0
      %p50 = por %p48, %p49
      %p51 = scmp.ne.s32.totalorder %s40, %s43
      %p52 = scmp.eq.s32.totalorder %s23, 5
      %p53 = por %p51, %p52
      %p54 = scmp.ne.s32.totalorder %s43, %s44
      %p55 = scmp.eq.s32.totalorder %s23, 0
      %p56 = por %p54, %p55
      %p57 = scmp.ne.s32.totalorder %s43, %s44
      %p58 = scmp.eq.s32.totalorder %s24, 5
      %p59 = por %p57, %p58
      %p61 = scmp.ne.s32.totalorder %s44, %s60
      %p62 = scmp.eq.s32.totalorder %s24, 0
      %p63 = por %p61, %p62
      %s64 = ssub.s32 %s26, %s33
      %p65 = scmp.eq.s32.totalorder %s64, 0
      %s67 = sadd.s32 %s66, 1
      %s68 = scalar_select %p65, %s66, %s67
      %p71 = pneg %p65
      %p72 = scmp.eq.s32.totalorder %s18, 5
      %p73 = por %p71, %p72
      %p74 = scmp.ne.s32.totalorder %s66, %s69
      %p75 = scmp.eq.s32.totalorder %s18, 0
      %p76 = por %p74, %p75
      %p77 = scmp.ne.s32.totalorder %s66, %s69
      %p78 = scmp.eq.s32.totalorder %s23, 5
      %p79 = por %p77, %p78
      %p80 = scmp.ne.s32.totalorder %s69, %s70
      %p81 = scmp.eq.s32.totalorder %s23, 0
      %p82 = por %p80, %p81
      %p83 = scmp.ne.s32.totalorder %s69, %s70
      %p84 = scmp.eq.s32.totalorder %s24, 5
      %p85 = por %p83, %p84
      %p87 = scmp.ne.s32.totalorder %s70, %s86
      %p88 = scmp.eq.s32.totalorder %s24, 0
      %p89 = por %p87, %p88
      %s91 = sadd.s32 %s90, 1
      %p94 = scmp.eq.s32.totalorder %s18, 5
      %p95 = scmp.ne.s32.totalorder %s90, %s92
      %p96 = scmp.eq.s32.totalorder %s18, 0
      %p97 = por %p95, %p96
      %p98 = scmp.ne.s32.totalorder %s90, %s92
      %p99 = scmp.eq.s32.totalorder %s23, 5
      %p100 = por %p98, %p99
      %p101 = scmp.ne.s32.totalorder %s92, %s93
      %p102 = scmp.eq.s32.totalorder %s23, 0
      %p103 = por %p101, %p102
      %p104 = scmp.ne.s32.totalorder %s92, %s93
      %p105 = scmp.eq.s32.totalorder %s24, 5
      %p106 = por %p104, %p105
      %p108 = scmp.ne.s32.totalorder %s93, %s107
      %p109 = scmp.eq.s32.totalorder %s24, 0
      %p110 = por %p108, %p109
      %s111 = ssub.s32 %s25, %s37
      %p112 = scmp.eq.s32.totalorder %s111, 0
      %s114 = sadd.s32 %s113, 1
      %s115 = scalar_select %p112, %s113, %s114
      %p118 = pneg %p112
      %p119 = scmp.eq.s32.totalorder %s18, 5
      %p120 = por %p118, %p119
      %p121 = scmp.ne.s32.totalorder %s113, %s116
      %p122 = scmp.eq.s32.totalorder %s18, 0
      %p123 = por %p121, %p122
      %p124 = scmp.ne.s32.totalorder %s113, %s116
      %p125 = scmp.eq.s32.totalorder %s23, 5
      %p126 = por %p124, %p125
      %p127 = scmp.ne.s32.totalorder %s116, %s117
      %p128 = scmp.eq.s32.totalorder %s23, 0
      %p129 = por %p127, %p128
      %p130 = scmp.ne.s32.totalorder %s116, %s117
      %p131 = scmp.eq.s32.totalorder %s24, 5
      %p132 = por %p130, %p131
      %p134 = scmp.ne.s32.totalorder %s117, %s133
      %p135 = scmp.eq.s32.totalorder %s24, 0
      %p136 = por %p134, %p135
      %p137 = scmp.le.s32.totalorder 1, %s18
      %p138 = scmp.lt.s32.totalorder %s18, 7
      %p139 = pnand %p137, %p138
      %p140 = pneg %p139
      // Predicated region
      $region9: #{mac_forward.11} parent=5 // pred_check
        _
      $region10: #{mac_forward.11} parent=5 // pred_check_branch
        %142 = sbr.rel (%p139) target = $region12
      $region11: #{mac_forward.11} parent=5 // pred_region
        %s143 = ssub.s32 %s18, 1
        // Predicated region
        $region13: #{mac_forward.11} parent=11 // pred_check
          %p144 = pneg %p103
        $region14: #{mac_forward.11} parent=11 // pred_check_branch
          %146 = sbr.rel (%p144) target = $region16
        $region15: #{mac_forward.11} parent=11 // pred_region
          %s148 = ssub.s32 16, 16
          %149 = vsyncadd [#allocation7], %s148
          %s151 = sshll.u32 [#allocation8], 4
          %s152 = int_to_ptr.vmem [resolvable:$true] %s151
          %154 = dma.hbm_to_vmem [thread:$0]  %s2, 16, %s152, [#allocation7]
        $region16: #{mac_forward.11} parent=11 // pred_fallthru
          _
      $region12: #{mac_forward.11} parent=5 // pred_fallthru
        _
      %p155 = scmp.lt.s32.totalorder %s18, 6
      // Predicated region
      $region17: #{mac_forward.11} parent=5 // pred_check
        %p156 = pneg %p155
      $region18: #{mac_forward.11} parent=5 // pred_check_branch
        %158 = sbr.rel (%p156) target = $region20
      $region19: #{mac_forward.11} parent=5 // pred_region
        // Predicated region
        $region21: #{mac_forward.11} parent=19 // pred_check
          %p159 = pneg %p50
        $region22: #{mac_forward.11} parent=19 // pred_check_branch
          %161 = sbr.rel (%p159) target = $region24
        $region23: #{mac_forward.11} parent=19 // pred_region
          %s162 = sand.u32 %s40, 1
          %s163 = scalar_lea.sflag [#allocation4], %s162
          %s164 = sand.u32 %s40, 1
          %s165 = smul.addr %s164, 160
          %s166 = scalar_lea.vmem [#allocation3], %s165
          %s168 = ssub.s32 2560, 2560
          %169 = vsyncadd %s163, %s168
          %s170 = smul.addr %s25, 20
          %s171 = smul.addr %s170, 128
          %s172 = scalar_lea.hbm %s0, %s171
          %s173 = sshll.u32 %s166, 4
          %s174 = int_to_ptr.vmem [resolvable:$true] %s173
          %179 = dma.hbm_to_vmem [thread:$0]  %s172, 2560, %s174, %s163, 256, 256, 16
        $region24: #{mac_forward.11} parent=19 // pred_fallthru
          _
        // Predicated region
        $region25: #{mac_forward.11} parent=19 // pred_check
          %p180 = pneg %p76
        $region26: #{mac_forward.11} parent=19 // pred_check_branch
          %182 = sbr.rel (%p180) target = $region28
        $region27: #{mac_forward.11} parent=19 // pred_region
          %s183 = sand.u32 %s18, 1
          %s184 = scalar_lea.sflag [#allocation7], %s183
          %s185 = sand.u32 %s66, 1
          %s186 = smul.addr %s185, 192
          %s187 = scalar_lea.vmem [#allocation6], %s186
          %s189 = ssub.s32 3072, 3072
          %190 = vsyncadd %s184, %s189
          %s191 = smul.addr %s26, 24
          %s192 = smul.addr %s191, 128
          %s193 = scalar_lea.hbm %s1, %s192
          %s194 = sshll.u32 %s187, 4
          %s195 = int_to_ptr.vmem [resolvable:$true] %s194
          %200 = dma.hbm_to_vmem [thread:$0]  %s193, 3072, %s195, %s184, 128, 128, 8
        $region28: #{mac_forward.11} parent=19 // pred_fallthru
          _
      $region20: #{mac_forward.11} parent=5 // pred_fallthru
        _
      %p201 = scmp.le.s32.totalorder 1, %s18
      %p202 = scmp.lt.s32.totalorder %s18, 7
      %p203 = pnand %p201, %p202
      %p204 = pneg %p203
      // Predicated region
      $region29: #{mac_forward.11} parent=5 // pred_check
        _
      $region30: #{mac_forward.11} parent=5 // pred_check_branch
        %206 = sbr.rel (%p203) target = $region32
      $region31: #{mac_forward.11} parent=5 // pred_region
        %s207 = ssub.s32 %s18, 1
        %s208 = sand.u32 %s43, 1
        %s209 = scalar_lea.sflag [#allocation4], %s208
        %s210 = sand.u32 %s43, 1
        %s211 = smul.addr %s210, 160
        %s212 = scalar_lea.vmem [#allocation3], %s211
        // Predicated region
        $region33: #{mac_forward.11} parent=31 // pred_check
          %p213 = pneg %p56
        $region34: #{mac_forward.11} parent=31 // pred_check_branch
          %215 = sbr.rel (%p213) target = $region36
        $region35: #{mac_forward.11} parent=31 // pred_region
          %216 = dma.done %s209, 2560
        $region36: #{mac_forward.11} parent=31 // pred_fallthru
          _
        %s217 = sand.u32 %s23, 1
        %s218 = scalar_lea.sflag [#allocation7], %s217
        %s219 = sand.u32 %s69, 1
        %s220 = smul.addr %s219, 192
        %s221 = scalar_lea.vmem [#allocation6], %s220
        // Predicated region
        $region37: #{mac_forward.11} parent=31 // pred_check
          %p222 = pneg %p82
        $region38: #{mac_forward.11} parent=31 // pred_check_branch
          %224 = sbr.rel (%p222) target = $region40
        $region39: #{mac_forward.11} parent=31 // pred_region
          %225 = dma.done %s218, 3072
        $region40: #{mac_forward.11} parent=31 // pred_fallthru
          _
        // Predicated region
        $region41: #{mac_forward.11} parent=31 // pred_check
          %p226 = pneg %p103
        $region42: #{mac_forward.11} parent=31 // pred_check_branch
          %228 = sbr.rel (%p226) target = $region44
        $region43: #{mac_forward.11} parent=31 // pred_region
          %229 = dma.done [#allocation7], 16
        $region44: #{mac_forward.11} parent=31 // pred_fallthru
          _
        %s230 = sand.u32 %s43, 1
        %s231 = scalar_lea.sflag [#allocation4], %s230
        %s232 = sand.u32 %s43, 1
        %s233 = smul.addr %s232, 160
        %s234 = scalar_lea.vmem [#allocation3], %s233
        %p235 = pneg %p56
        %p236 = pneg %p53
        %s237 = sand.u32 %s23, 1
        %s238 = scalar_lea.sflag [#allocation7], %s237
        %s239 = sand.u32 %s69, 1
        %s240 = smul.addr %s239, 192
        %s241 = scalar_lea.vmem [#allocation6], %s240
        %p242 = pneg %p82
        %p243 = pneg %p79
        %p244 = pneg %p103
        %p245 = pneg %p100
        %p246 = pneg %p129
        %p247 = pneg %p126
        %s248 = sand.u32 %s116, 1
        %s249 = scalar_lea.sflag [#allocation5], %s248
        %s250 = sand.u32 %s116, 1
        %s251 = smul.addr %s250, 64
        %s252 = scalar_lea.vmem [#allocation9], %s251
        %p253 = scmp.eq.s32.totalorder %s28, 0
        // Predicated region
        $region45: #{mac_forward.11} parent=31 // pred_check
          %p254 = pneg %p253
        $region46: #{mac_forward.11} parent=31 // pred_check_branch
          %256 = sbr.rel (%p254) target = $region48
        $region47: #{mac_forward.11} parent=31 // pred_region
          %vm257 = vcmask 261120
          %258 = vst.msk [vmem:[#allocation2] sm:$0xff] %vm257, 0.0
          %259 = vst.msk [vmem:[#allocation2 + $0x8] sm:$0xff] %vm257, 0.0
          %260 = vst.msk [vmem:[#allocation2 + $0x10] sm:$0xff] %vm257, 0.0
          %261 = vst.msk [vmem:[#allocation2 + $0x18] sm:$0xff] %vm257, 0.0
          %262 = vst.msk [vmem:[#allocation2 + $0x20] sm:$0xff] %vm257, 0.0
          %263 = vst.msk [vmem:[#allocation2 + $0x28] sm:$0xff] %vm257, 0.0
          %264 = vst.msk [vmem:[#allocation2 + $0x30] sm:$0xff] %vm257, 0.0
          %265 = vst.msk [vmem:[#allocation2 + $0x38] sm:$0xff] %vm257, 0.0
        $region48: #{mac_forward.11} parent=31 // pred_fallthru
          _
        %s266 = smul.u32 %s28, 8
        %s267 = sshra.s32 %s266, 3
        %s268 = sand.u32 %s266, 7
        %s269 = smul.u32 %s267, 2
        %s270 = smul.addr %s269, 8
        %s271 = scalar_lea.vmem %s212, %s270 [#allocation3]
        %v272 = vld [vmem:[%s271] sm:$0xff]
        %v273 = vld [vmem:[%s271 + $0x8] sm:$0xff]
        %v274 = vld [vmem:[%s271 + $0x10] sm:$0xff]
        %v275 = vld [vmem:[%s271 + $0x18] sm:$0xff]
        %v276 = vld [vmem:[%s271 + $0x20] sm:$0xff]
        %v277 = vld [vmem:[%s271 + $0x28] sm:$0xff]
        %v278 = vld [vmem:[%s271 + $0x30] sm:$0xff]
        %v279 = vld [vmem:[%s271 + $0x38] sm:$0xff]
        %v280 = vld [vmem:[%s271 + $0x40] sm:$0xff]
        %v281 = vld [vmem:[%s271 + $0x48] sm:$0xff]
        %v282 = vld [vmem:[%s271 + $0x50] sm:$0xff]
        %v283 = vld [vmem:[%s271 + $0x58] sm:$0xff]
        %v284 = vld [vmem:[%s271 + $0x60] sm:$0xff]
        %v285 = vld [vmem:[%s271 + $0x68] sm:$0xff]
        %v286 = vld [vmem:[%s271 + $0x70] sm:$0xff]
        %v287 = vld [vmem:[%s271 + $0x78] sm:$0xff]
        %v288 = vld [vmem:[#allocation2] sm:$0xff]
        %v289 = vld [vmem:[#allocation2 + $0x8] sm:$0xff]
        %v290 = vld [vmem:[#allocation2 + $0x10] sm:$0xff]
        %v291 = vld [vmem:[#allocation2 + $0x18] sm:$0xff]
        %v292 = vld [vmem:[#allocation2 + $0x20] sm:$0xff]
        %v293 = vld [vmem:[#allocation2 + $0x28] sm:$0xff]
        %v294 = vld [vmem:[#allocation2 + $0x30] sm:$0xff]
        %v295 = vld [vmem:[#allocation2 + $0x38] sm:$0xff]
        %v296 = vld [vmem:[%s221] sm:$0xff]
        %v297 = vld [vmem:[%s221 + $0x8] sm:$0xff]
        %v298 = vld [vmem:[%s221 + $0x10] sm:$0xff]
        %v299 = vld [vmem:[%s221 + $0x18] sm:$0xff]
        %v300 = vld [vmem:[%s221 + $0x20] sm:$0xff]
        %v301 = vld [vmem:[%s221 + $0x28] sm:$0xff]
        %v302 = vld [vmem:[%s221 + $0x30] sm:$0xff]
        %v303 = vld [vmem:[%s221 + $0x38] sm:$0xff]
        %v304 = vld [vmem:[%s221 + $0x40] sm:$0xff]
        %v305 = vld [vmem:[%s221 + $0x48] sm:$0xff]
        %v306 = vld [vmem:[%s221 + $0x50] sm:$0xff]
        %v307 = vld [vmem:[%s221 + $0x58] sm:$0xff]
        %v308 = vld [vmem:[%s221 + $0x60] sm:$0xff]
        %v309 = vld [vmem:[%s221 + $0x68] sm:$0xff]
        %v310 = vld [vmem:[%s221 + $0x70] sm:$0xff]
        %v311 = vld [vmem:[%s221 + $0x78] sm:$0xff]
        %v312 = vld [vmem:[%s221 + $0x80] sm:$0xff]
        %v313 = vld [vmem:[%s221 + $0x88] sm:$0xff]
        %v314 = vld [vmem:[%s221 + $0x90] sm:$0xff]
        %v315 = vld [vmem:[%s221 + $0x98] sm:$0xff]
        %v316 = vld [vmem:[%s221 + $0xa0] sm:$0xff]
        %v317 = vld [vmem:[%s221 + $0xa8] sm:$0xff]
        %v318 = vld [vmem:[%s221 + $0xb0] sm:$0xff]
        %v319 = vld [vmem:[%s221 + $0xb8] sm:$0xff]
        %vm320 = vcmask 523264
        %v322 = vsel %vm320, %v273, 0
        %v325 = vsel %vm320, %v275, 0
        %v328 = vsel %vm320, %v277, 0
        %v331 = vsel %vm320, %v279, 0
        %v334 = vsel %vm320, %v281, 0
        %v337 = vsel %vm320, %v283, 0
        %v340 = vsel %vm320, %v285, 0
        %v343 = vsel %vm320, %v287, 0
        %345 = vmatprep.subr.mxu0 0.0
        %346 = vmatpush1.msra.mxu0 %v296
        %347 = vmatprep.subr.mxu0 0.0
        %348 = vmatpush1.msra.mxu0 %v297
        %349 = vmatprep.subr.mxu0 0.0
        %350 = vmatpush1.msra.mxu0 %v298
        %351 = vmatprep.subr.mxu0 0.0
        %352 = vmatpush1.msra.mxu0 %v299
        %353 = vmatprep.subr.mxu0 0.0
        %354 = vmatpush1.msra.mxu0 %v300
        %355 = vmatprep.subr.mxu0 0.0
        %356 = vmatpush1.msra.mxu0 %v301
        %357 = vmatprep.subr.mxu0 0.0
        %358 = vmatpush1.msra.mxu0 %v302
        %359 = vmatprep.subr.mxu0 0.0
        %360 = vmatpush1.msra.mxu0 %v303
        %361 = vmatprep.subr.mxu0 0.0
        %362 = vmatpush1.msra.mxu0 %v304
        %363 = vmatprep.subr.mxu0 0.0
        %364 = vmatpush1.msra.mxu0 %v305
        %365 = vmatprep.subr.mxu0 0.0
        %366 = vmatpush1.msra.mxu0 %v306
        %367 = vmatprep.subr.mxu0 0.0
        %368 = vmatpush1.msra.mxu0 %v307
        %369 = vmatprep.subr.mxu0 0.0
        %370 = vmatpush1.msra.mxu0 %v308
        %371 = vmatprep.subr.mxu0 0.0
        %372 = vmatpush1.msra.mxu0 %v309
        %373 = vmatprep.subr.mxu0 0.0
        %374 = vmatpush1.msra.mxu0 %v310
        %375 = vmatprep.subr.mxu0 0.0
        %376 = vmatpush1.msra.mxu0 %v311
        %377 = vmatprep.subr.mxu0 0.0
        %378 = vmatpush1.msra.mxu0 %v312
        %379 = vmatprep.subr.mxu0 0.0
        %380 = vmatpush1.msra.mxu0 %v313
        %381 = vmatprep.subr.mxu0 0.0
        %382 = vmatpush1.msra.mxu0 %v314
        %383 = vmatprep.subr.mxu0 0.0
        %384 = vmatpush1.msra.mxu0 %v315
        %385 = vmatprep.subr.mxu0 0.0
        %386 = vmatpush1.msra.mxu0 %v316
        %387 = vmatprep.subr.mxu0 0.0
        %388 = vmatpush1.msra.mxu0 %v317
        %389 = vmatprep.subr.mxu0 0.0
        %390 = vmatpush1.msra.mxu0 %v318
        %391 = vmatprep.subr.mxu0 0.0
        %392 = vmatpush1.msra.mxu0 %v319
        %393 = vmatprep.subr.mxu0 0.0
        %394 = vmatpush1.msra.mxu0 0.0
        %395 = vmatprep.subr.mxu0 0.0
        %396 = vmatpush1.msra.mxu0 0.0
        %397 = vmatprep.subr.mxu0 0.0
        %398 = vmatpush1.msra.mxu0 0.0
        %399 = vmatprep.subr.mxu0 0.0
        %400 = vmatpush1.msra.mxu0 0.0
        %401 = vmatprep.subr.mxu0 0.0
        %402 = vmatpush1.msra.mxu0 0.0
        %403 = vmatprep.subr.mxu0 0.0
        %404 = vmatpush1.msra.mxu0 0.0
        %405 = vmatprep.subr.mxu0 0.0
        %406 = vmatpush1.msra.mxu0 0.0
        %407 = vmatprep.subr.mxu0 0.0
        %408 = vmatpush1.msra.mxu0 0.0
        %409 = vmatprep.mubr.f32.mxu0 %v322
        %410 = vmatmul.mubr.f32.gmra.mrb[0].mxu0 %v272
        %v411 = vpop.f32.mrb[0].mxu0
        %v412 = vadd.f32 0.0, %v411
        %v413 = vpop.f32.mrb[0].mxu0
        %414 = vmatprep.mubr.f32.mxu0 %v325
        %415 = vmatmul.mubr.f32.gmra.mrb[0].mxu0 %v274
        %v416 = vpop.f32.mrb[0].mxu0
        %v417 = vadd.f32 0.0, %v416
        %v418 = vpop.f32.mrb[0].mxu0
        %419 = vmatprep.mubr.f32.mxu0 %v328
        %420 = vmatmul.mubr.f32.gmra.mrb[0].mxu0 %v276
        %v421 = vpop.f32.mrb[0].mxu0
        %v422 = vadd.f32 0.0, %v421
        %v423 = vpop.f32.mrb[0].mxu0
        %424 = vmatprep.mubr.f32.mxu0 %v331
        %425 = vmatmul.mubr.f32.gmra.mrb[0].mxu0 %v278
        %v426 = vpop.f32.mrb[0].mxu0
        %v427 = vadd.f32 0.0, %v426
        %v428 = vpop.f32.mrb[0].mxu0
        %429 = vmatprep.mubr.f32.mxu0 %v334
        %430 = vmatmul.mubr.f32.gmra.mrb[0].mxu0 %v280
        %v431 = vpop.f32.mrb[0].mxu0
        %v432 = vadd.f32 0.0, %v431
        %v433 = vpop.f32.mrb[0].mxu0
        %434 = vmatprep.mubr.f32.mxu0 %v337
        %435 = vmatmul.mubr.f32.gmra.mrb[0].mxu0 %v282
        %v436 = vpop.f32.mrb[0].mxu0
        %v437 = vadd.f32 0.0, %v436
        %v438 = vpop.f32.mrb[0].mxu0
        %439 = vmatprep.mubr.f32.mxu0 %v340
        %440 = vmatmul.mubr.f32.gmra.mrb[0].mxu0 %v284
        %v441 = vpop.f32.mrb[0].mxu0
        %v442 = vadd.f32 0.0, %v441
        %v443 = vpop.f32.mrb[0].mxu0
        %444 = vmatprep.mubr.f32.mxu0 %v343
        %445 = vmatmul.mubr.f32.gmra.mrb[0].mxu0 %v286
        %v446 = vpop.f32.mrb[0].mxu0
        %v447 = vadd.f32 0.0, %v446
        %v448 = vpop.f32.mrb[0].mxu0
        %449 = vdwg.mxu0
        %v450 = vadd.f32 %v288, %v412
        %v451 = vadd.f32 %v289, %v417
        %v452 = vadd.f32 %v290, %v422
        %v453 = vadd.f32 %v291, %v427
        %v454 = vadd.f32 %v292, %v432
        %v455 = vadd.f32 %v293, %v437
        %v456 = vadd.f32 %v294, %v442
        %v457 = vadd.f32 %v295, %v447
        %vm458 = vcmask 261120
        %459 = vst.msk [vmem:[#allocation2] sm:$0xff] %vm458, %v450
        %460 = vst.msk [vmem:[#allocation2 + $0x8] sm:$0xff] %vm458, %v451
        %461 = vst.msk [vmem:[#allocation2 + $0x10] sm:$0xff] %vm458, %v452
        %462 = vst.msk [vmem:[#allocation2 + $0x18] sm:$0xff] %vm458, %v453
        %463 = vst.msk [vmem:[#allocation2 + $0x20] sm:$0xff] %vm458, %v454
        %464 = vst.msk [vmem:[#allocation2 + $0x28] sm:$0xff] %vm458, %v455
        %465 = vst.msk [vmem:[#allocation2 + $0x30] sm:$0xff] %vm458, %v456
        %466 = vst.msk [vmem:[#allocation2 + $0x38] sm:$0xff] %vm458, %v457
        %p467 = scmp.eq.s32.totalorder %s28, 2
        // Predicated region
        $region49: #{mac_forward.11} parent=31 // pred_check
          %p468 = pneg %p467
        $region50: #{mac_forward.11} parent=31 // pred_check_branch
          %470 = sbr.rel (%p468) target = $region52
        $region51: #{mac_forward.11} parent=31 // pred_region
          %v471 = vld [vmem:[#allocation2] sm:$0xff]
          %v472 = vld [vmem:[#allocation2 + $0x8] sm:$0xff]
          %v473 = vld [vmem:[#allocation2 + $0x10] sm:$0xff]
          %v474 = vld [vmem:[#allocation2 + $0x18] sm:$0xff]
          %v475 = vld [vmem:[#allocation2 + $0x20] sm:$0xff]
          %v476 = vld [vmem:[#allocation2 + $0x28] sm:$0xff]
          %v477 = vld [vmem:[#allocation2 + $0x30] sm:$0xff]
          %v478 = vld [vmem:[#allocation2 + $0x38] sm:$0xff]
          %v479 = vld [vmem:[#allocation8] sm:$0x1]
          %v481 = vlaneseq
          %v482 = vshrl.u32 %v481, 7
          %v483 = vsub.s32 0, %v482
          %v484 = vrot.slane %v479, %v483
          %v486 = vadd.f32 %v471, %v484
          %v487 = vadd.f32 %v472, %v484
          %v488 = vadd.f32 %v473, %v484
          %v489 = vadd.f32 %v474, %v484
          %v490 = vadd.f32 %v475, %v484
          %v491 = vadd.f32 %v476, %v484
          %v492 = vadd.f32 %v477, %v484
          %v493 = vadd.f32 %v478, %v484
          %vm494 = vcmp.gt.f32.partialorder %v486, 0.0
          %vm495 = vcmp.gt.f32.partialorder %v487, 0.0
          %vm496 = vcmp.gt.f32.partialorder %v488, 0.0
          %vm497 = vcmp.gt.f32.partialorder %v489, 0.0
          %vm498 = vcmp.gt.f32.partialorder %v490, 0.0
          %vm499 = vcmp.gt.f32.partialorder %v491, 0.0
          %vm500 = vcmp.gt.f32.partialorder %v492, 0.0
          %vm501 = vcmp.gt.f32.partialorder %v493, 0.0
          %v502 = vmin.f32 %v486, 0.0
          %v503 = vmin.f32 %v487, 0.0
          %v504 = vmin.f32 %v488, 0.0
          %v505 = vmin.f32 %v489, 0.0
          %v506 = vmin.f32 %v490, 0.0
          %v507 = vmin.f32 %v491, 0.0
          %v508 = vmin.f32 %v492, 0.0
          %v509 = vmin.f32 %v493, 0.0
          %v510 = vmul.f32 %v502, 1.442695
          %v511 = vpow.pop %v510
          %v512 = vmul.f32 %v503, 1.442695
          %v513 = vpow.pop %v512
          %v514 = vmul.f32 %v504, 1.442695
          %v515 = vpow.pop %v514
          %v516 = vmul.f32 %v505, 1.442695
          %v517 = vpow.pop %v516
          %v518 = vmul.f32 %v506, 1.442695
          %v519 = vpow.pop %v518
          %v520 = vmul.f32 %v507, 1.442695
          %v521 = vpow.pop %v520
          %v522 = vmul.f32 %v508, 1.442695
          %v523 = vpow.pop %v522
          %v524 = vmul.f32 %v509, 1.442695
          %v525 = vpow.pop %v524
          %v526 = vsub.f32 %v511, 1.0
          %v527 = vsub.f32 %v513, 1.0
          %v528 = vsub.f32 %v515, 1.0
          %v529 = vsub.f32 %v517, 1.0
          %v530 = vsub.f32 %v519, 1.0
          %v531 = vsub.f32 %v521, 1.0
          %v532 = vsub.f32 %v523, 1.0
          %v533 = vsub.f32 %v525, 1.0
          %v534 = vsel %vm494, %v486, %v526
          %v535 = vsel %vm495, %v487, %v527
          %v536 = vsel %vm496, %v488, %v528
          %v537 = vsel %vm497, %v489, %v529
          %v538 = vsel %vm498, %v490, %v530
          %v539 = vsel %vm499, %v491, %v531
          %v540 = vsel %vm500, %v492, %v532
          %v541 = vsel %vm501, %v493, %v533
          %542 = vst.msk [vmem:[%s252] sm:$0xff] %vm458, %v534
          %543 = vst.msk [vmem:[%s252 + $0x8] sm:$0xff] %vm458, %v535
          %544 = vst.msk [vmem:[%s252 + $0x10] sm:$0xff] %vm458, %v536
          %545 = vst.msk [vmem:[%s252 + $0x18] sm:$0xff] %vm458, %v537
          %546 = vst.msk [vmem:[%s252 + $0x20] sm:$0xff] %vm458, %v538
          %547 = vst.msk [vmem:[%s252 + $0x28] sm:$0xff] %vm458, %v539
          %548 = vst.msk [vmem:[%s252 + $0x30] sm:$0xff] %vm458, %v540
          %549 = vst.msk [vmem:[%s252 + $0x38] sm:$0xff] %vm458, %v541
        $region52: #{mac_forward.11} parent=31 // pred_fallthru
          _
        %s550 = sand.u32 %s116, 1
        %s551 = scalar_lea.sflag [#allocation5], %s550
        %s552 = sand.u32 %s116, 1
        %s553 = smul.addr %s552, 64
        %s554 = scalar_lea.vmem [#allocation9], %s553
        // Predicated region
        $region53: #{mac_forward.11} parent=31 // pred_check
          %p555 = pneg %p126
        $region54: #{mac_forward.11} parent=31 // pred_check_branch
          %557 = sbr.rel (%p555) target = $region56
        $region55: #{mac_forward.11} parent=31 // pred_region
          %s559 = ssub.s32 1024, 1024
          %560 = vsyncadd %s551, %s559
          %s561 = smul.addr %s27, 8
          %s562 = smul.addr %s561, 128
          %s563 = scalar_lea.hbm %s3, %s562
          %s564 = sshll.u32 %s554, 4
          %s565 = int_to_ptr.vmem [resolvable:$true] %s564
          %570 = dma.vmem_to_hbm [thread:$0]  %s565, 1024, %s563, %s551, 128, 128, 8
        $region56: #{mac_forward.11} parent=31 // pred_fallthru
          _
      $region32: #{mac_forward.11} parent=5 // pred_fallthru
        _
      %p571 = scmp.le.s32.totalorder 2, %s18
      // Predicated region
      $region57: #{mac_forward.11} parent=5 // pred_check
        %p572 = pneg %p571
      $region58: #{mac_forward.11} parent=5 // pred_check_branch
        %574 = sbr.rel (%p572) target = $region60
      $region59: #{mac_forward.11} parent=5 // pred_region
        %s575 = ssub.s32 %s18, 2
        // Predicated region
        $region61: #{mac_forward.11} parent=59 // pred_check
          %p576 = pneg %p132
        $region62: #{mac_forward.11} parent=59 // pred_check_branch
          %578 = sbr.rel (%p576) target = $region64
        $region63: #{mac_forward.11} parent=59 // pred_region
          %s579 = sand.u32 %s117, 1
          %s580 = scalar_lea.sflag [#allocation5], %s579
          %s581 = sand.u32 %s117, 1
          %s582 = smul.addr %s581, 64
          %s583 = scalar_lea.vmem [#allocation9], %s582
          %584 = dma.done %s580, 1024
        $region64: #{mac_forward.11} parent=59 // pred_fallthru
          _
      $region60: #{mac_forward.11} parent=5 // pred_fallthru
        _
    $region6: #{mac_forward.11} parent=1 // loop_footer
      %s22 = sadd.s32 1, %s18
    $region7: #{mac_forward.11} parent=1 // loop_footer_branch
      %17 = sbr.rel target = $region3
    $region8: #{mac_forward.11} parent=1 // loop_exit
      _
    %585 = vsyncpa [#allocation4], 1
    %s586 = scalar_lea.sflag [#allocation4], 1
    %587 = vsyncpa %s586, 1
    %588 = vsyncpa [#allocation7], 1
    %s589 = scalar_lea.sflag [#allocation7], 1
    %590 = vsyncpa %s589, 1
    %591 = vsyncpa [#allocation5], 1
    %s592 = scalar_lea.sflag [#allocation5], 1
    %593 = vsyncpa %s592, 1

// kernel: mac_forward.12
$region0: #{mac_forward.12}
  #allocation0 [shape = 'u32[]', space=smem, size = 0x4, offset = 0x4, fixed_abs, tag = 'smem constant byte address 0x4 - core index']
  #allocation1 [shape = 'u32[144,128]{1,0:T(1,128)}', space=vmem, size = 0x12000, scoped, tag = 'internal scratch']
  #allocation2 [shape = 'f32[64,32]{1,0:T(8,128)}', space=vmem, size = 0x8000, scoped, tag = 'scratch operand']
  %s0 = inlined_call_operand.hbm [shape: f32[2,80,96], index: 0, kind: input, shape index: {}]
  %s1 = inlined_call_operand.hbm [shape: f32[3,96,32], index: 1, kind: input, shape index: {}]
  %s2 = inlined_call_operand.hbm [shape: f32[1,32], index: 2, kind: input, shape index: {}]
  %s3 = inlined_call_operand.hbm [shape: f32[2,64,32], index: 3, kind: output, shape index: {}]
  %s4 = sld [smem:[#allocation0]]
  $region65: #{mac_forward.12} parent=0
    _
  %s6 = ssub.s32 1, %s4
  %s7 = scalar_select 0, %s6, %s4
  $region1: #{mac_forward.12} parent=0
    #allocation3 [shape = 'u8[81920]{0}', space=vmem, size = 0x14000, scoped, tag = 'input window, operand 0']
    #allocation4 [shape = 's32[2]{0}', space=sflag, size = 0x8, scoped, tag = 'scoped memory for mac_forward.12']
    #allocation5 [shape = 's32[2]{0}', space=sflag, size = 0x8, scoped, tag = 'scoped memory for mac_forward.12']
    #allocation6 [shape = 'u8[98304]{0}', space=vmem, size = 0x18000, scoped, tag = 'input window, operand 1']
    #allocation7 [shape = 's32[2]{0}', space=sflag, size = 0x8, scoped, tag = 'scoped memory for mac_forward.12']
    #allocation8 [shape = 'u8[512]{0}', space=vmem, size = 0x400, scoped, tag = 'input window, operand 2, single buffered']
    #allocation9 [shape = 'u8[65536]{0}', space=vmem, size = 0x10000, scoped, tag = 'output window, operand 0']
    %8 = vsyncpa [#allocation4], 0
    %s9 = scalar_lea.sflag [#allocation4], 1
    %10 = vsyncpa %s9, 0
    %11 = vsyncpa [#allocation7], 0
    %s12 = scalar_lea.sflag [#allocation7], 1
    %13 = vsyncpa %s12, 0
    %14 = vsyncpa [#allocation5], 0
    %s15 = scalar_lea.sflag [#allocation5], 1
    %16 = vsyncpa %s15, 0
    loop: start=0, step=1, limit=8
    $region2: #{mac_forward.12} parent=1 // loop_pre_header
      _
    $region3: #{mac_forward.12} parent=1 // loop_header
      %s18 = sphi 0, %s22
      %p19 = scmp.ge.s32.totalorder %s18, 8
      %s25 = sphi 0, %s37
      %s26 = sphi 0, %s33
      %s27 = sphi 0, %s25
      %s28 = sphi 0, %s26
      %s29 = sphi 0, %s27
      %s30 = sphi 0, %s28
      %s40 = sphi 0, %s42
      %s43 = sphi 0, %s40
      %s44 = sphi 0, %s43
      %s60 = sphi 0, %s44
      %s66 = sphi 0, %s68
      %s69 = sphi 0, %s66
      %s70 = sphi 0, %s69
      %s86 = sphi 0, %s70
      %s90 = sphi 0, %s90
      %s92 = sphi 0, %s90
      %s93 = sphi 0, %s92
      %s107 = sphi 0, %s93
      %s113 = sphi 0, %s115
      %s116 = sphi 0, %s113
      %s117 = sphi 0, %s116
      %s133 = sphi 0, %s117
    $region4: #{mac_forward.12} parent=1 // loop_header_branch
      %21 = sbr.rel (%p19) target = $region8
    $region5: #{mac_forward.12} parent=1 // loop_body
      %s23 = ssub.s32 %s18, 1
      %s24 = ssub.s32 %s18, 2
      %s31 = sadd.s32 1, %s26
      %p32 = scmp.ge.s32.totalorder %s31, 3
      %s33 = scalar_select %p32, 0, %s31
      %s34 = sadd.s32 1, %s25
      %s35 = scalar_select %p32, %s34, %s25
      %p36 = scmp.ge.s32.totalorder %s35, 2
      %s37 = scalar_select %p36, 0, %s35
      %s38 = ssub.s32 %s25, %s37
      %p39 = scmp.eq.s32.totalorder %s38, 0
      %s41 = sadd.s32 %s40, 1
      %s42 = scalar_select %p39, %s40, %s41
      %p45 = pneg %p39
      %p46 = scmp.eq.s32.totalorder %s18, 5
      %p47 = por %p45, %p46
      %p48 = scmp.ne.s32.totalorder %s40, %s43
      %p49 = scmp.eq.s32.totalorder %s18, 0
      %p50 = por %p48, %p49
      %p51 = scmp.ne.s32.totalorder %s40, %s43
      %p52 = scmp.eq.s32.totalorder %s23, 5
      %p53 = por %p51, %p52
      %p54 = scmp.ne.s32.totalorder %s43, %s44
      %p55 = scmp.eq.s32.totalorder %s23, 0
      %p56 = por %p54, %p55
      %p57 = scmp.ne.s32.totalorder %s43, %s44
      %p58 = scmp.eq.s32.totalorder %s24, 5
      %p59 = por %p57, %p58
      %p61 = scmp.ne.s32.totalorder %s44, %s60
      %p62 = scmp.eq.s32.totalorder %s24, 0
      %p63 = por %p61, %p62
      %s64 = ssub.s32 %s26, %s33
      %p65 = scmp.eq.s32.totalorder %s64, 0
      %s67 = sadd.s32 %s66, 1
      %s68 = scalar_select %p65, %s66, %s67
      %p71 = pneg %p65
      %p72 = scmp.eq.s32.totalorder %s18, 5
      %p73 = por %p71, %p72
      %p74 = scmp.ne.s32.totalorder %s66, %s69
      %p75 = scmp.eq.s32.totalorder %s18, 0
      %p76 = por %p74, %p75
      %p77 = scmp.ne.s32.totalorder %s66, %s69
      %p78 = scmp.eq.s32.totalorder %s23, 5
      %p79 = por %p77, %p78
      %p80 = scmp.ne.s32.totalorder %s69, %s70
      %p81 = scmp.eq.s32.totalorder %s23, 0
      %p82 = por %p80, %p81
      %p83 = scmp.ne.s32.totalorder %s69, %s70
      %p84 = scmp.eq.s32.totalorder %s24, 5
      %p85 = por %p83, %p84
      %p87 = scmp.ne.s32.totalorder %s70, %s86
      %p88 = scmp.eq.s32.totalorder %s24, 0
      %p89 = por %p87, %p88
      %s91 = sadd.s32 %s90, 1
      %p94 = scmp.eq.s32.totalorder %s18, 5
      %p95 = scmp.ne.s32.totalorder %s90, %s92
      %p96 = scmp.eq.s32.totalorder %s18, 0
      %p97 = por %p95, %p96
      %p98 = scmp.ne.s32.totalorder %s90, %s92
      %p99 = scmp.eq.s32.totalorder %s23, 5
      %p100 = por %p98, %p99
      %p101 = scmp.ne.s32.totalorder %s92, %s93
      %p102 = scmp.eq.s32.totalorder %s23, 0
      %p103 = por %p101, %p102
      %p104 = scmp.ne.s32.totalorder %s92, %s93
      %p105 = scmp.eq.s32.totalorder %s24, 5
      %p106 = por %p104, %p105
      %p108 = scmp.ne.s32.totalorder %s93, %s107
      %p109 = scmp.eq.s32.totalorder %s24, 0
      %p110 = por %p108, %p109
      %s111 = ssub.s32 %s25, %s37
      %p112 = scmp.eq.s32.totalorder %s111, 0
      %s114 = sadd.s32 %s113, 1
      %s115 = scalar_select %p112, %s113, %s114
      %p118 = pneg %p112
      %p119 = scmp.eq.s32.totalorder %s18, 5
      %p120 = por %p118, %p119
      %p121 = scmp.ne.s32.totalorder %s113, %s116
      %p122 = scmp.eq.s32.totalorder %s18, 0
      %p123 = por %p121, %p122
      %p124 = scmp.ne.s32.totalorder %s113, %s116
      %p125 = scmp.eq.s32.totalorder %s23, 5
      %p126 = por %p124, %p125
      %p127 = scmp.ne.s32.totalorder %s116, %s117
      %p128 = scmp.eq.s32.totalorder %s23, 0
      %p129 = por %p127, %p128
      %p130 = scmp.ne.s32.totalorder %s116, %s117
      %p131 = scmp.eq.s32.totalorder %s24, 5
      %p132 = por %p130, %p131
      %p134 = scmp.ne.s32.totalorder %s117, %s133
      %p135 = scmp.eq.s32.totalorder %s24, 0
      %p136 = por %p134, %p135
      %p137 = scmp.le.s32.totalorder 1, %s18
      %p138 = scmp.lt.s32.totalorder %s18, 7
      %p139 = pnand %p137, %p138
      %p140 = pneg %p139
      // Predicated region
      $region9: #{mac_forward.12} parent=5 // pred_check
        _
      $region10: #{mac_forward.12} parent=5 // pred_check_branch
        %142 = sbr.rel (%p139) target = $region12
      $region11: #{mac_forward.12} parent=5 // pred_region
        %s143 = ssub.s32 %s18, 1
        // Predicated region
        $region13: #{mac_forward.12} parent=11 // pred_check
          %p144 = pneg %p103
        $region14: #{mac_forward.12} parent=11 // pred_check_branch
          %146 = sbr.rel (%p144) target = $region16
        $region15: #{mac_forward.12} parent=11 // pred_region
          %s148 = ssub.s32 16, 16
          %149 = vsyncadd [#allocation7], %s148
          %s151 = sshll.u32 [#allocation8], 4
          %s152 = int_to_ptr.vmem [resolvable:$true] %s151
          %154 = dma.hbm_to_vmem [thread:$0]  %s2, 16, %s152, [#allocation7]
        $region16: #{mac_forward.12} parent=11 // pred_fallthru
          _
      $region12: #{mac_forward.12} parent=5 // pred_fallthru
        _
      %p155 = scmp.lt.s32.totalorder %s18, 6
      // Predicated region
      $region17: #{mac_forward.12} parent=5 // pred_check
        %p156 = pneg %p155
      $region18: #{mac_forward.12} parent=5 // pred_check_branch
        %158 = sbr.rel (%p156) target = $region20
      $region19: #{mac_forward.12} parent=5 // pred_region
        // Predicated region
        $region21: #{mac_forward.12} parent=19 // pred_check
          %p159 = pneg %p50
        $region22: #{mac_forward.12} parent=19 // pred_check_branch
          %161 = sbr.rel (%p159) target = $region24
        $region23: #{mac_forward.12} parent=19 // pred_region
          %s162 = sand.u32 %s40, 1
          %s163 = scalar_lea.sflag [#allocation4], %s162
          %s164 = sand.u32 %s40, 1
          %s165 = smul.addr %s164, 80
          %s166 = scalar_lea.vmem [#allocation3], %s165
          %s168 = ssub.s32 1280, 1280
          %169 = vsyncadd %s163, %s168
          %s170 = smul.addr %s25, 10
          %s171 = smul.addr %s170, 128
          %s172 = scalar_lea.hbm %s0, %s171
          %s173 = sshll.u32 %s166, 4
          %s174 = int_to_ptr.vmem [resolvable:$true] %s173
          %179 = dma.hbm_to_vmem [thread:$0]  %s172, 1280, %s174, %s163, 128, 128, 8
        $region24: #{mac_forward.12} parent=19 // pred_fallthru
          _
        // Predicated region
        $region25: #{mac_forward.12} parent=19 // pred_check
          %p180 = pneg %p76
        $region26: #{mac_forward.12} parent=19 // pred_check_branch
          %182 = sbr.rel (%p180) target = $region28
        $region27: #{mac_forward.12} parent=19 // pred_region
          %s183 = sand.u32 %s18, 1
          %s184 = scalar_lea.sflag [#allocation7], %s183
          %s185 = sand.u32 %s66, 1
          %s186 = smul.addr %s185, 96
          %s187 = scalar_lea.vmem [#allocation6], %s186
          %s189 = ssub.s32 1536, 1536
          %190 = vsyncadd %s184, %s189
          %s191 = smul.addr %s26, 12
          %s192 = smul.addr %s191, 128
          %s193 = scalar_lea.hbm %s1, %s192
          %s194 = sshll.u32 %s187, 4
          %s195 = int_to_ptr.vmem [resolvable:$true] %s194
          %200 = dma.hbm_to_vmem [thread:$0]  %s193, 1536, %s195, %s184, 128, 128, 8
        $region28: #{mac_forward.12} parent=19 // pred_fallthru
          _
      $region20: #{mac_forward.12} parent=5 // pred_fallthru
        _
      %p201 = scmp.le.s32.totalorder 1, %s18
      %p202 = scmp.lt.s32.totalorder %s18, 7
      %p203 = pnand %p201, %p202
      %p204 = pneg %p203
      // Predicated region
      $region29: #{mac_forward.12} parent=5 // pred_check
        _
      $region30: #{mac_forward.12} parent=5 // pred_check_branch
        %206 = sbr.rel (%p203) target = $region32
      $region31: #{mac_forward.12} parent=5 // pred_region
        %s207 = ssub.s32 %s18, 1
        %s208 = sand.u32 %s43, 1
        %s209 = scalar_lea.sflag [#allocation4], %s208
        %s210 = sand.u32 %s43, 1
        %s211 = smul.addr %s210, 80
        %s212 = scalar_lea.vmem [#allocation3], %s211
        // Predicated region
        $region33: #{mac_forward.12} parent=31 // pred_check
          %p213 = pneg %p56
        $region34: #{mac_forward.12} parent=31 // pred_check_branch
          %215 = sbr.rel (%p213) target = $region36
        $region35: #{mac_forward.12} parent=31 // pred_region
          %216 = dma.done %s209, 1280
        $region36: #{mac_forward.12} parent=31 // pred_fallthru
          _
        %s217 = sand.u32 %s23, 1
        %s218 = scalar_lea.sflag [#allocation7], %s217
        %s219 = sand.u32 %s69, 1
        %s220 = smul.addr %s219, 96
        %s221 = scalar_lea.vmem [#allocation6], %s220
        // Predicated region
        $region37: #{mac_forward.12} parent=31 // pred_check
          %p222 = pneg %p82
        $region38: #{mac_forward.12} parent=31 // pred_check_branch
          %224 = sbr.rel (%p222) target = $region40
        $region39: #{mac_forward.12} parent=31 // pred_region
          %225 = dma.done %s218, 1536
        $region40: #{mac_forward.12} parent=31 // pred_fallthru
          _
        // Predicated region
        $region41: #{mac_forward.12} parent=31 // pred_check
          %p226 = pneg %p103
        $region42: #{mac_forward.12} parent=31 // pred_check_branch
          %228 = sbr.rel (%p226) target = $region44
        $region43: #{mac_forward.12} parent=31 // pred_region
          %229 = dma.done [#allocation7], 16
        $region44: #{mac_forward.12} parent=31 // pred_fallthru
          _
        %s230 = sand.u32 %s43, 1
        %s231 = scalar_lea.sflag [#allocation4], %s230
        %s232 = sand.u32 %s43, 1
        %s233 = smul.addr %s232, 80
        %s234 = scalar_lea.vmem [#allocation3], %s233
        %p235 = pneg %p56
        %p236 = pneg %p53
        %s237 = sand.u32 %s23, 1
        %s238 = scalar_lea.sflag [#allocation7], %s237
        %s239 = sand.u32 %s69, 1
        %s240 = smul.addr %s239, 96
        %s241 = scalar_lea.vmem [#allocation6], %s240
        %p242 = pneg %p82
        %p243 = pneg %p79
        %p244 = pneg %p103
        %p245 = pneg %p100
        %p246 = pneg %p129
        %p247 = pneg %p126
        %s248 = sand.u32 %s116, 1
        %s249 = scalar_lea.sflag [#allocation5], %s248
        %s250 = sand.u32 %s116, 1
        %s251 = smul.addr %s250, 64
        %s252 = scalar_lea.vmem [#allocation9], %s251
        %p253 = scmp.eq.s32.totalorder %s28, 0
        // Predicated region
        $region45: #{mac_forward.12} parent=31 // pred_check
          %p254 = pneg %p253
        $region46: #{mac_forward.12} parent=31 // pred_check_branch
          %256 = sbr.rel (%p254) target = $region48
        $region47: #{mac_forward.12} parent=31 // pred_region
          %vm257 = vcmask 261120
          %258 = vst.msk [vmem:[#allocation2] sm:$0xff] %vm257, 0.0
          %259 = vst.msk [vmem:[#allocation2 + $0x8] sm:$0xff] %vm257, 0.0
          %260 = vst.msk [vmem:[#allocation2 + $0x10] sm:$0xff] %vm257, 0.0
          %261 = vst.msk [vmem:[#allocation2 + $0x18] sm:$0xff] %vm257, 0.0
          %262 = vst.msk [vmem:[#allocation2 + $0x20] sm:$0xff] %vm257, 0.0
          %263 = vst.msk [vmem:[#allocation2 + $0x28] sm:$0xff] %vm257, 0.0
          %264 = vst.msk [vmem:[#allocation2 + $0x30] sm:$0xff] %vm257, 0.0
          %265 = vst.msk [vmem:[#allocation2 + $0x38] sm:$0xff] %vm257, 0.0
        $region48: #{mac_forward.12} parent=31 // pred_fallthru
          _
        %s266 = smul.u32 %s28, 8
        %s267 = scalar_lea.vmem %s212, %s266 [#allocation3]
        %v268 = vld [vmem:[%s267] sm:$0xff]
        %v269 = vld [vmem:[%s267 + $0x8] sm:$0xff]
        %v270 = vld [vmem:[%s267 + $0x10] sm:$0xff]
        %v271 = vld [vmem:[%s267 + $0x18] sm:$0xff]
        %v272 = vld [vmem:[%s267 + $0x20] sm:$0xff]
        %v273 = vld [vmem:[%s267 + $0x28] sm:$0xff]
        %v274 = vld [vmem:[%s267 + $0x30] sm:$0xff]
        %v275 = vld [vmem:[%s267 + $0x38] sm:$0xff]
        %v276 = vld [vmem:[#allocation2] sm:$0xff]
        %v277 = vld [vmem:[#allocation2 + $0x8] sm:$0xff]
        %v278 = vld [vmem:[#allocation2 + $0x10] sm:$0xff]
        %v279 = vld [vmem:[#allocation2 + $0x18] sm:$0xff]
        %v280 = vld [vmem:[#allocation2 + $0x20] sm:$0xff]
        %v281 = vld [vmem:[#allocation2 + $0x28] sm:$0xff]
        %v282 = vld [vmem:[#allocation2 + $0x30] sm:$0xff]
        %v283 = vld [vmem:[#allocation2 + $0x38] sm:$0xff]
        %v284 = vld [vmem:[%s221] sm:$0xff]
        %v285 = vld [vmem:[%s221 + $0x8] sm:$0xff]
        %v286 = vld [vmem:[%s221 + $0x10] sm:$0xff]
        %v287 = vld [vmem:[%s221 + $0x18] sm:$0xff]
        %v288 = vld [vmem:[%s221 + $0x20] sm:$0xff]
        %v289 = vld [vmem:[%s221 + $0x28] sm:$0xff]
        %v290 = vld [vmem:[%s221 + $0x30] sm:$0xff]
        %v291 = vld [vmem:[%s221 + $0x38] sm:$0xff]
        %v292 = vld [vmem:[%s221 + $0x40] sm:$0xff]
        %v293 = vld [vmem:[%s221 + $0x48] sm:$0xff]
        %v294 = vld [vmem:[%s221 + $0x50] sm:$0xff]
        %v295 = vld [vmem:[%s221 + $0x58] sm:$0xff]
        %vm296 = vcmask 785408
        %v298 = vsel %vm296, %v268, 0
        %v301 = vsel %vm296, %v269, 0
        %v304 = vsel %vm296, %v270, 0
        %v307 = vsel %vm296, %v271, 0
        %v310 = vsel %vm296, %v272, 0
        %v313 = vsel %vm296, %v273, 0
        %v316 = vsel %vm296, %v274, 0
        %v319 = vsel %vm296, %v275, 0
        %321 = vmatprep.subr.mxu0 0.0
        %322 = vmatpush1.msra.mxu0 %v284
        %323 = vmatprep.subr.mxu0 0.0
        %324 = vmatpush1.msra.mxu0 %v285
        %325 = vmatprep.subr.mxu0 0.0
        %326 = vmatpush1.msra.mxu0 %v286
        %327 = vmatprep.subr.mxu0 0.0
        %328 = vmatpush1.msra.mxu0 %v287
        %329 = vmatprep.subr.mxu0 0.0
        %330 = vmatpush1.msra.mxu0 %v288
        %331 = vmatprep.subr.mxu0 0.0
        %332 = vmatpush1.msra.mxu0 %v289
        %333 = vmatprep.subr.mxu0 0.0
        %334 = vmatpush1.msra.mxu0 %v290
        %335 = vmatprep.subr.mxu0 0.0
        %336 = vmatpush1.msra.mxu0 %v291
        %337 = vmatprep.subr.mxu0 0.0
        %338 = vmatpush1.msra.mxu0 %v292
        %339 = vmatprep.subr.mxu0 0.0
        %340 = vmatpush1.msra.mxu0 %v293
        %341 = vmatprep.subr.mxu0 0.0
        %342 = vmatpush1.msra.mxu0 %v294
        %343 = vmatprep.subr.mxu0 0.0
        %344 = vmatpush1.msra.mxu0 %v295
        %345 = vmatprep.subr.mxu0 0.0
        %346 = vmatpush1.msra.mxu0 0.0
        %347 = vmatprep.subr.mxu0 0.0
        %348 = vmatpush1.msra.mxu0 0.0
        %349 = vmatprep.subr.mxu0 0.0
        %350 = vmatpush1.msra.mxu0 0.0
        %351 = vmatprep.subr.mxu0 0.0
        %352 = vmatpush1.msra.mxu0 0.0
        %353 = vmatprep.subr.mxu0 0.0
        %354 = vmatpush1.msra.mxu0 0.0
        %355 = vmatprep.subr.mxu0 0.0
        %356 = vmatpush1.msra.mxu0 0.0
        %357 = vmatprep.subr.mxu0 0.0
        %358 = vmatpush1.msra.mxu0 0.0
        %359 = vmatprep.subr.mxu0 0.0
        %360 = vmatpush1.msra.mxu0 0.0
        %361 = vmatprep.subr.mxu0 0.0
        %362 = vmatpush1.msra.mxu0 0.0
        %363 = vmatprep.subr.mxu0 0.0
        %364 = vmatpush1.msra.mxu0 0.0
        %365 = vmatprep.subr.mxu0 0.0
        %366 = vmatpush1.msra.mxu0 0.0
        %367 = vmatprep.subr.mxu0 0.0
        %368 = vmatpush1.msra.mxu0 0.0
        %369 = vmatprep.subr.mxu0 0.0
        %370 = vmatpush1.msra.mxu0 0.0
        %371 = vmatprep.subr.mxu0 0.0
        %372 = vmatpush1.msra.mxu0 0.0
        %373 = vmatprep.subr.mxu0 0.0
        %374 = vmatpush1.msra.mxu0 0.0
        %375 = vmatprep.subr.mxu0 0.0
        %376 = vmatpush1.msra.mxu0 0.0
        %377 = vmatprep.subr.mxu0 0.0
        %378 = vmatpush1.msra.mxu0 0.0
        %379 = vmatprep.subr.mxu0 0.0
        %380 = vmatpush1.msra.mxu0 0.0
        %381 = vmatprep.subr.mxu0 0.0
        %382 = vmatpush1.msra.mxu0 0.0
        %383 = vmatprep.subr.mxu0 0.0
        %384 = vmatpush1.msra.mxu0 0.0
        %385 = vmatprep.mubr.f32.mxu0 0.0
        %386 = vmatmul.mubr.f32.gmra.mrb[0].mxu0 %v298
        %v387 = vpop.f32.mrb[0].mxu0
        %v388 = vadd.f32 0.0, %v387
        %v389 = vpop.f32.mrb[0].mxu0
        %390 = vmatprep.mubr.f32.mxu0 0.0
        %391 = vmatmul.mubr.f32.gmra.mrb[0].mxu0 %v301
        %v392 = vpop.f32.mrb[0].mxu0
        %v393 = vadd.f32 0.0, %v392
        %v394 = vpop.f32.mrb[0].mxu0
        %395 = vmatprep.mubr.f32.mxu0 0.0
        %396 = vmatmul.mubr.f32.gmra.mrb[0].mxu0 %v304
        %v397 = vpop.f32.mrb[0].mxu0
        %v398 = vadd.f32 0.0, %v397
        %v399 = vpop.f32.mrb[0].mxu0
        %400 = vmatprep.mubr.f32.mxu0 0.0
        %401 = vmatmul.mubr.f32.gmra.mrb[0].mxu0 %v307
        %v402 = vpop.f32.mrb[0].mxu0
        %v403 = vadd.f32 0.0, %v402
        %v404 = vpop.f32.mrb[0].mxu0
        %405 = vmatprep.mubr.f32.mxu0 0.0
        %406 = vmatmul.mubr.f32.gmra.mrb[0].mxu0 %v310
        %v407 = vpop.f32.mrb[0].mxu0
        %v408 = vadd.f32 0.0, %v407
        %v409 = vpop.f32.mrb[0].mxu0
        %410 = vmatprep.mubr.f32.mxu0 0.0
        %411 = vmatmul.mubr.f32.gmra.mrb[0].mxu0 %v313
        %v412 = vpop.f32.mrb[0].mxu0
        %v413 = vadd.f32 0.0, %v412
        %v414 = vpop.f32.mrb[0].mxu0
        %415 = vmatprep.mubr.f32.mxu0 0.0
        %416 = vmatmul.mubr.f32.gmra.mrb[0].mxu0 %v316
        %v417 = vpop.f32.mrb[0].mxu0
        %v418 = vadd.f32 0.0, %v417
        %v419 = vpop.f32.mrb[0].mxu0
        %420 = vmatprep.mubr.f32.mxu0 0.0
        %421 = vmatmul.mubr.f32.gmra.mrb[0].mxu0 %v319
        %v422 = vpop.f32.mrb[0].mxu0
        %v423 = vadd.f32 0.0, %v422
        %v424 = vpop.f32.mrb[0].mxu0
        %425 = vdwg.mxu0
        %v426 = vadd.f32 %v276, %v388
        %v427 = vadd.f32 %v277, %v393
        %v428 = vadd.f32 %v278, %v398
        %v429 = vadd.f32 %v279, %v403
        %v430 = vadd.f32 %v280, %v408
        %v431 = vadd.f32 %v281, %v413
        %v432 = vadd.f32 %v282, %v418
        %v433 = vadd.f32 %v283, %v423
        %vm434 = vcmask 261120
        %435 = vst.msk [vmem:[#allocation2] sm:$0xff] %vm434, %v426
        %436 = vst.msk [vmem:[#allocation2 + $0x8] sm:$0xff] %vm434, %v427
        %437 = vst.msk [vmem:[#allocation2 + $0x10] sm:$0xff] %vm434, %v428
        %438 = vst.msk [vmem:[#allocation2 + $0x18] sm:$0xff] %vm434, %v429
        %439 = vst.msk [vmem:[#allocation2 + $0x20] sm:$0xff] %vm434, %v430
        %440 = vst.msk [vmem:[#allocation2 + $0x28] sm:$0xff] %vm434, %v431
        %441 = vst.msk [vmem:[#allocation2 + $0x30] sm:$0xff] %vm434, %v432
        %442 = vst.msk [vmem:[#allocation2 + $0x38] sm:$0xff] %vm434, %v433
        %p443 = scmp.eq.s32.totalorder %s28, 2
        // Predicated region
        $region49: #{mac_forward.12} parent=31 // pred_check
          %p444 = pneg %p443
        $region50: #{mac_forward.12} parent=31 // pred_check_branch
          %446 = sbr.rel (%p444) target = $region52
        $region51: #{mac_forward.12} parent=31 // pred_region
          %v447 = vld [vmem:[#allocation2] sm:$0xff]
          %v448 = vld [vmem:[#allocation2 + $0x8] sm:$0xff]
          %v449 = vld [vmem:[#allocation2 + $0x10] sm:$0xff]
          %v450 = vld [vmem:[#allocation2 + $0x18] sm:$0xff]
          %v451 = vld [vmem:[#allocation2 + $0x20] sm:$0xff]
          %v452 = vld [vmem:[#allocation2 + $0x28] sm:$0xff]
          %v453 = vld [vmem:[#allocation2 + $0x30] sm:$0xff]
          %v454 = vld [vmem:[#allocation2 + $0x38] sm:$0xff]
          %v455 = vld [vmem:[#allocation8] sm:$0x1]
          %v457 = vlaneseq
          %v458 = vshrl.u32 %v457, 7
          %v459 = vsub.s32 0, %v458
          %v460 = vrot.slane %v455, %v459
          %v462 = vadd.f32 %v447, %v460
          %v463 = vadd.f32 %v448, %v460
          %v464 = vadd.f32 %v449, %v460
          %v465 = vadd.f32 %v450, %v460
          %v466 = vadd.f32 %v451, %v460
          %v467 = vadd.f32 %v452, %v460
          %v468 = vadd.f32 %v453, %v460
          %v469 = vadd.f32 %v454, %v460
          %vm470 = vcmp.gt.f32.partialorder %v462, 0.0
          %vm471 = vcmp.gt.f32.partialorder %v463, 0.0
          %vm472 = vcmp.gt.f32.partialorder %v464, 0.0
          %vm473 = vcmp.gt.f32.partialorder %v465, 0.0
          %vm474 = vcmp.gt.f32.partialorder %v466, 0.0
          %vm475 = vcmp.gt.f32.partialorder %v467, 0.0
          %vm476 = vcmp.gt.f32.partialorder %v468, 0.0
          %vm477 = vcmp.gt.f32.partialorder %v469, 0.0
          %v478 = vmin.f32 %v462, 0.0
          %v479 = vmin.f32 %v463, 0.0
          %v480 = vmin.f32 %v464, 0.0
          %v481 = vmin.f32 %v465, 0.0
          %v482 = vmin.f32 %v466, 0.0
          %v483 = vmin.f32 %v467, 0.0
          %v484 = vmin.f32 %v468, 0.0
          %v485 = vmin.f32 %v469, 0.0
          %v486 = vmul.f32 %v478, 1.442695
          %v487 = vpow.pop %v486
          %v488 = vmul.f32 %v479, 1.442695
          %v489 = vpow.pop %v488
          %v490 = vmul.f32 %v480, 1.442695
          %v491 = vpow.pop %v490
          %v492 = vmul.f32 %v481, 1.442695
          %v493 = vpow.pop %v492
          %v494 = vmul.f32 %v482, 1.442695
          %v495 = vpow.pop %v494
          %v496 = vmul.f32 %v483, 1.442695
          %v497 = vpow.pop %v496
          %v498 = vmul.f32 %v484, 1.442695
          %v499 = vpow.pop %v498
          %v500 = vmul.f32 %v485, 1.442695
          %v501 = vpow.pop %v500
          %v502 = vsub.f32 %v487, 1.0
          %v503 = vsub.f32 %v489, 1.0
          %v504 = vsub.f32 %v491, 1.0
          %v505 = vsub.f32 %v493, 1.0
          %v506 = vsub.f32 %v495, 1.0
          %v507 = vsub.f32 %v497, 1.0
          %v508 = vsub.f32 %v499, 1.0
          %v509 = vsub.f32 %v501, 1.0
          %v510 = vsel %vm470, %v462, %v502
          %v511 = vsel %vm471, %v463, %v503
          %v512 = vsel %vm472, %v464, %v504
          %v513 = vsel %vm473, %v465, %v505
          %v514 = vsel %vm474, %v466, %v506
          %v515 = vsel %vm475, %v467, %v507
          %v516 = vsel %vm476, %v468, %v508
          %v517 = vsel %vm477, %v469, %v509
          %518 = vst.msk [vmem:[%s252] sm:$0xff] %vm434, %v510
          %519 = vst.msk [vmem:[%s252 + $0x8] sm:$0xff] %vm434, %v511
          %520 = vst.msk [vmem:[%s252 + $0x10] sm:$0xff] %vm434, %v512
          %521 = vst.msk [vmem:[%s252 + $0x18] sm:$0xff] %vm434, %v513
          %522 = vst.msk [vmem:[%s252 + $0x20] sm:$0xff] %vm434, %v514
          %523 = vst.msk [vmem:[%s252 + $0x28] sm:$0xff] %vm434, %v515
          %524 = vst.msk [vmem:[%s252 + $0x30] sm:$0xff] %vm434, %v516
          %525 = vst.msk [vmem:[%s252 + $0x38] sm:$0xff] %vm434, %v517
        $region52: #{mac_forward.12} parent=31 // pred_fallthru
          _
        %s526 = sand.u32 %s116, 1
        %s527 = scalar_lea.sflag [#allocation5], %s526
        %s528 = sand.u32 %s116, 1
        %s529 = smul.addr %s528, 64
        %s530 = scalar_lea.vmem [#allocation9], %s529
        // Predicated region
        $region53: #{mac_forward.12} parent=31 // pred_check
          %p531 = pneg %p126
        $region54: #{mac_forward.12} parent=31 // pred_check_branch
          %533 = sbr.rel (%p531) target = $region56
        $region55: #{mac_forward.12} parent=31 // pred_region
          %s535 = ssub.s32 1024, 1024
          %536 = vsyncadd %s527, %s535
          %s537 = smul.addr %s27, 8
          %s538 = smul.addr %s537, 128
          %s539 = scalar_lea.hbm %s3, %s538
          %s540 = sshll.u32 %s530, 4
          %s541 = int_to_ptr.vmem [resolvable:$true] %s540
          %546 = dma.vmem_to_hbm [thread:$0]  %s541, 1024, %s539, %s527, 128, 128, 8
        $region56: #{mac_forward.12} parent=31 // pred_fallthru
          _
      $region32: #{mac_forward.12} parent=5 // pred_fallthru
        _
      %p547 = scmp.le.s32.totalorder 2, %s18
      // Predicated region
      $region57: #{mac_forward.12} parent=5 // pred_check
        %p548 = pneg %p547
      $region58: #{mac_forward.12} parent=5 // pred_check_branch
        %550 = sbr.rel (%p548) target = $region60
      $region59: #{mac_forward.12} parent=5 // pred_region
        %s551 = ssub.s32 %s18, 2
        // Predicated region
        $region61: #{mac_forward.12} parent=59 // pred_check
          %p552 = pneg %p132
        $region62: #{mac_forward.12} parent=59 // pred_check_branch
          %554 = sbr.rel (%p552) target = $region64
        $region63: #{mac_forward.12} parent=59 // pred_region
          %s555 = sand.u32 %s117, 1
          %s556 = scalar_lea.sflag [#allocation5], %s555
          %s557 = sand.u32 %s117, 1
          %s558 = smul.addr %s557, 64
          %s559 = scalar_lea.vmem [#allocation9], %s558
          %560 = dma.done %s556, 1024
        $region64: #{mac_forward.12} parent=59 // pred_fallthru
          _
      $region60: #{mac_forward.12} parent=5 // pred_fallthru
        _
    $region6: #{mac_forward.12} parent=1 // loop_footer
      %s22 = sadd.s32 1, %s18
    $region7: #{mac_forward.12} parent=1 // loop_footer_branch
      %17 = sbr.rel target = $region3
    $region8: #{mac_forward.12} parent=1 // loop_exit
      _
    %561 = vsyncpa [#allocation4], 1
    %s562 = scalar_lea.sflag [#allocation4], 1
    %563 = vsyncpa %s562, 1
    %564 = vsyncpa [#allocation7], 1
    %s565 = scalar_lea.sflag [#allocation7], 1
    %566 = vsyncpa %s565, 1
    %567 = vsyncpa [#allocation5], 1
    %s568 = scalar_lea.sflag [#allocation5], 1
    %569 = vsyncpa %s568, 1

// kernel: custom-call.2
$region0: #{custom-call.2}
  %s0 = inlined_call_operand.vmem [shape: f32[2,16], index: 0, kind: output, shape index: {}]

// kernel: mac_forward.16
$region0: #{mac_forward.16}
  #allocation0 [shape = 'u32[]', space=smem, size = 0x4, offset = 0x4, fixed_abs, tag = 'smem constant byte address 0x4 - core index']
  #allocation1 [shape = 'u32[144,128]{1,0:T(1,128)}', space=vmem, size = 0x12000, scoped, tag = 'internal scratch']
  #allocation2 [shape = 'f32[128,32]{1,0:T(8,128)}', space=vmem, size = 0x10000, scoped, tag = 'scratch operand']
  %s0 = inlined_call_operand.hbm [shape: f32[128,32], index: 0, kind: input, shape index: {}]
  %s1 = inlined_call_operand.hbm [shape: f32[32,32], index: 1, kind: input, shape index: {}]
  %s2 = inlined_call_operand.hbm [shape: f32[1,32], index: 2, kind: input, shape index: {}]
  %s3 = inlined_call_operand.hbm [shape: f32[128,32], index: 3, kind: output, shape index: {}]
  %s4 = sld [smem:[#allocation0]]
  $region42: #{mac_forward.16} parent=0
    _
  %s6 = ssub.s32 1, %s4
  %s7 = scalar_select 0, %s6, %s4
  $region1: #{mac_forward.16} parent=0
    #allocation3 [shape = 'u8[65536]{0}', space=vmem, size = 0x10000, scoped, tag = 'input window, operand 0, single buffered']
    #allocation4 [shape = 's32[1]{0}', space=sflag, size = 0x4, scoped, tag = 'scoped memory for mac_forward.16']
    #allocation5 [shape = 's32[1]{0}', space=sflag, size = 0x4, scoped, tag = 'scoped memory for mac_forward.16']
    #allocation6 [shape = 'u8[16384]{0}', space=vmem, size = 0x4000, scoped, tag = 'input window, operand 1, single buffered']
    #allocation7 [shape = 's32[1]{0}', space=sflag, size = 0x4, scoped, tag = 'scoped memory for mac_forward.16']
    #allocation8 [shape = 'u8[512]{0}', space=vmem, size = 0x400, scoped, tag = 'input window, operand 2, single buffered']
    #allocation9 [shape = 'u8[65536]{0}', space=vmem, size = 0x10000, scoped, tag = 'output window, operand 0, single buffered']
    %8 = vsyncpa [#allocation4], 0
    %9 = vsyncpa [#allocation7], 0
    %10 = vsyncpa [#allocation5], 0
    // Predicated region
    $region2: #{mac_forward.16} parent=1 // pred_check
      _
    $region3: #{mac_forward.16} parent=1 // pred_check_branch
      %12 = sbr.rel (0) target = $region5
    $region4: #{mac_forward.16} parent=1 // pred_region
      %s14 = ssub.s32 2048, 2048
      %15 = vsyncadd [#allocation4], %s14
      %s16 = sshll.u32 [#allocation3], 4
      %s17 = int_to_ptr.vmem [resolvable:$true] %s16
      %22 = dma.hbm_to_vmem [thread:$0]  %s0, 2048, %s17, [#allocation4], 128, 128, 8
    $region5: #{mac_forward.16} parent=1 // pred_fallthru
      _
    // Predicated region
    $region6: #{mac_forward.16} parent=1 // pred_check
      _
    $region7: #{mac_forward.16} parent=1 // pred_check_branch
      %24 = sbr.rel (0) target = $region9
    $region8: #{mac_forward.16} parent=1 // pred_region
      %s26 = ssub.s32 512, 512
      %27 = vsyncadd [#allocation7], %s26
      %s28 = sshll.u32 [#allocation6], 4
      %s29 = int_to_ptr.vmem [resolvable:$true] %s28
      %34 = dma.hbm_to_vmem [thread:$0]  %s1, 512, %s29, [#allocation7], 128, 128, 8
    $region9: #{mac_forward.16} parent=1 // pred_fallthru
      _
    // Predicated region
    $region10: #{mac_forward.16} parent=1 // pred_check
      _
    $region11: #{mac_forward.16} parent=1 // pred_check_branch
      %36 = sbr.rel (0) target = $region13
    $region12: #{mac_forward.16} parent=1 // pred_region
      %s38 = ssub.s32 16, 16
      %39 = vsyncadd [#allocation7], %s38
      %s41 = sshll.u32 [#allocation8], 4
      %s42 = int_to_ptr.vmem [resolvable:$true] %s41
      %44 = dma.hbm_to_vmem [thread:$0]  %s2, 16, %s42, [#allocation7]
    $region13: #{mac_forward.16} parent=1 // pred_fallthru
      _
    // Predicated region
    $region14: #{mac_forward.16} parent=1 // pred_check
      _
    $region15: #{mac_forward.16} parent=1 // pred_check_branch
      %46 = sbr.rel (0) target = $region17
    $region16: #{mac_forward.16} parent=1 // pred_region
      %47 = dma.done [#allocation4], 2048
    $region17: #{mac_forward.16} parent=1 // pred_fallthru
      _
    // Predicated region
    $region18: #{mac_forward.16} parent=1 // pred_check
      _
    $region19: #{mac_forward.16} parent=1 // pred_check_branch
      %49 = sbr.rel (0) target = $region21
    $region20: #{mac_forward.16} parent=1 // pred_region
      %50 = dma.done [#allocation7], 512
    $region21: #{mac_forward.16} parent=1 // pred_fallthru
      _
    // Predicated region
    $region22: #{mac_forward.16} parent=1 // pred_check
      _
    $region23: #{mac_forward.16} parent=1 // pred_check_branch
      %52 = sbr.rel (0) target = $region25
    $region24: #{mac_forward.16} parent=1 // pred_region
      %53 = dma.done [#allocation7], 16
    $region25: #{mac_forward.16} parent=1 // pred_fallthru
      _
    %p54 = scmp.eq.s32.totalorder 0, 0
    // Predicated region
    $region26: #{mac_forward.16} parent=1 // pred_check
      %p55 = pneg %p54
    $region27: #{mac_forward.16} parent=1 // pred_check_branch
      %57 = sbr.rel (%p55) target = $region29
    $region28: #{mac_forward.16} parent=1 // pred_region
      %vm58 = vcmask 261120
      %59 = vst.msk [vmem:[#allocation2] sm:$0xff] %vm58, 0.0
      %60 = vst.msk [vmem:[#allocation2 + $0x8] sm:$0xff] %vm58, 0.0
      %61 = vst.msk [vmem:[#allocation2 + $0x10] sm:$0xff] %vm58, 0.0
      %62 = vst.msk [vmem:[#allocation2 + $0x18] sm:$0xff] %vm58, 0.0
      %63 = vst.msk [vmem:[#allocation2 + $0x20] sm:$0xff] %vm58, 0.0
      %64 = vst.msk [vmem:[#allocation2 + $0x28] sm:$0xff] %vm58, 0.0
      %65 = vst.msk [vmem:[#allocation2 + $0x30] sm:$0xff] %vm58, 0.0
      %66 = vst.msk [vmem:[#allocation2 + $0x38] sm:$0xff] %vm58, 0.0
      %67 = vst.msk [vmem:[#allocation2 + $0x40] sm:$0xff] %vm58, 0.0
      %68 = vst.msk [vmem:[#allocation2 + $0x48] sm:$0xff] %vm58, 0.0
      %69 = vst.msk [vmem:[#allocation2 + $0x50] sm:$0xff] %vm58, 0.0
      %70 = vst.msk [vmem:[#allocation2 + $0x58] sm:$0xff] %vm58, 0.0
      %71 = vst.msk [vmem:[#allocation2 + $0x60] sm:$0xff] %vm58, 0.0
      %72 = vst.msk [vmem:[#allocation2 + $0x68] sm:$0xff] %vm58, 0.0
      %73 = vst.msk [vmem:[#allocation2 + $0x70] sm:$0xff] %vm58, 0.0
      %74 = vst.msk [vmem:[#allocation2 + $0x78] sm:$0xff] %vm58, 0.0
    $region29: #{mac_forward.16} parent=1 // pred_fallthru
      _
    %v75 = vld [vmem:[#allocation2] sm:$0xff]
    %v76 = vld [vmem:[#allocation2 + $0x8] sm:$0xff]
    %v77 = vld [vmem:[#allocation2 + $0x10] sm:$0xff]
    %v78 = vld [vmem:[#allocation2 + $0x18] sm:$0xff]
    %v79 = vld [vmem:[#allocation2 + $0x20] sm:$0xff]
    %v80 = vld [vmem:[#allocation2 + $0x28] sm:$0xff]
    %v81 = vld [vmem:[#allocation2 + $0x30] sm:$0xff]
    %v82 = vld [vmem:[#allocation2 + $0x38] sm:$0xff]
    %v83 = vld [vmem:[#allocation2 + $0x40] sm:$0xff]
    %v84 = vld [vmem:[#allocation2 + $0x48] sm:$0xff]
    %v85 = vld [vmem:[#allocation2 + $0x50] sm:$0xff]
    %v86 = vld [vmem:[#allocation2 + $0x58] sm:$0xff]
    %v87 = vld [vmem:[#allocation2 + $0x60] sm:$0xff]
    %v88 = vld [vmem:[#allocation2 + $0x68] sm:$0xff]
    %v89 = vld [vmem:[#allocation2 + $0x70] sm:$0xff]
    %v90 = vld [vmem:[#allocation2 + $0x78] sm:$0xff]
    %v91 = vld [vmem:[#allocation3] sm:$0xff]
    %v92 = vld [vmem:[#allocation3 + $0x8] sm:$0xff]
    %v93 = vld [vmem:[#allocation3 + $0x10] sm:$0xff]
    %v94 = vld [vmem:[#allocation3 + $0x18] sm:$0xff]
    %v95 = vld [vmem:[#allocation3 + $0x20] sm:$0xff]
    %v96 = vld [vmem:[#allocation3 + $0x28] sm:$0xff]
    %v97 = vld [vmem:[#allocation3 + $0x30] sm:$0xff]
    %v98 = vld [vmem:[#allocation3 + $0x38] sm:$0xff]
    %v99 = vld [vmem:[#allocation3 + $0x40] sm:$0xff]
    %v100 = vld [vmem:[#allocation3 + $0x48] sm:$0xff]
    %v101 = vld [vmem:[#allocation3 + $0x50] sm:$0xff]
    %v102 = vld [vmem:[#allocation3 + $0x58] sm:$0xff]
    %v103 = vld [vmem:[#allocation3 + $0x60] sm:$0xff]
    %v104 = vld [vmem:[#allocation3 + $0x68] sm:$0xff]
    %v105 = vld [vmem:[#allocation3 + $0x70] sm:$0xff]
    %v106 = vld [vmem:[#allocation3 + $0x78] sm:$0xff]
    %v107 = vld [vmem:[#allocation6] sm:$0xff]
    %v108 = vld [vmem:[#allocation6 + $0x8] sm:$0xff]
    %v109 = vld [vmem:[#allocation6 + $0x10] sm:$0xff]
    %v110 = vld [vmem:[#allocation6 + $0x18] sm:$0xff]
    %vm111 = vcmask 261120
    %v113 = vsel %vm111, %v91, 0
    %v116 = vsel %vm111, %v92, 0
    %v119 = vsel %vm111, %v93, 0
    %v122 = vsel %vm111, %v94, 0
    %v125 = vsel %vm111, %v95, 0
    %v128 = vsel %vm111, %v96, 0
    %v131 = vsel %vm111, %v97, 0
    %v134 = vsel %vm111, %v98, 0
    %v137 = vsel %vm111, %v99, 0
    %v140 = vsel %vm111, %v100, 0
    %v143 = vsel %vm111, %v101, 0
    %v146 = vsel %vm111, %v102, 0
    %v149 = vsel %vm111, %v103, 0
    %v152 = vsel %vm111, %v104, 0
    %v155 = vsel %vm111, %v105, 0
    %v158 = vsel %vm111, %v106, 0
    %160 = vmatprep.subr.mxu0 0.0
    %161 = vmatpush1.msra.mxu0 %v107
    %162 = vmatprep.subr.mxu0 0.0
    %163 = vmatpush1.msra.mxu0 %v108
    %164 = vmatprep.subr.mxu0 0.0
    %165 = vmatpush1.msra.mxu0 %v109
    %166 = vmatprep.subr.mxu0 0.0
    %167 = vmatpush1.msra.mxu0 %v110
    %168 = vmatprep.subr.mxu0 0.0
    %169 = vmatpush1.msra.mxu0 0.0
    %170 = vmatprep.subr.mxu0 0.0
    %171 = vmatpush1.msra.mxu0 0.0
    %172 = vmatprep.subr.mxu0 0.0
    %173 = vmatpush1.msra.mxu0 0.0
    %174 = vmatprep.subr.mxu0 0.0
    %175 = vmatpush1.msra.mxu0 0.0
    %176 = vmatprep.subr.mxu0 0.0
    %177 = vmatpush1.msra.mxu0 0.0
    %178 = vmatprep.subr.mxu0 0.0
    %179 = vmatpush1.msra.mxu0 0.0
    %180 = vmatprep.subr.mxu0 0.0
    %181 = vmatpush1.msra.mxu0 0.0
    %182 = vmatprep.subr.mxu0 0.0
    %183 = vmatpush1.msra.mxu0 0.0
    %184 = vmatprep.subr.mxu0 0.0
    %185 = vmatpush1.msra.mxu0 0.0
    %186 = vmatprep.subr.mxu0 0.0
    %187 = vmatpush1.msra.mxu0 0.0
    %188 = vmatprep.subr.mxu0 0.0
    %189 = vmatpush1.msra.mxu0 0.0
    %190 = vmatprep.subr.mxu0 0.0
    %191 = vmatpush1.msra.mxu0 0.0
    %192 = vmatprep.subr.mxu0 0.0
    %193 = vmatpush1.msra.mxu0 0.0
    %194 = vmatprep.subr.mxu0 0.0
    %195 = vmatpush1.msra.mxu0 0.0
    %196 = vmatprep.subr.mxu0 0.0
    %197 = vmatpush1.msra.mxu0 0.0
    %198 = vmatprep.subr.mxu0 0.0
    %199 = vmatpush1.msra.mxu0 0.0
    %200 = vmatprep.subr.mxu0 0.0
    %201 = vmatpush1.msra.mxu0 0.0
    %202 = vmatprep.subr.mxu0 0.0
    %203 = vmatpush1.msra.mxu0 0.0
    %204 = vmatprep.subr.mxu0 0.0
    %205 = vmatpush1.msra.mxu0 0.0
    %206 = vmatprep.subr.mxu0 0.0
    %207 = vmatpush1.msra.mxu0 0.0
    %208 = vmatprep.subr.mxu0 0.0
    %209 = vmatpush1.msra.mxu0 0.0
    %210 = vmatprep.subr.mxu0 0.0
    %211 = vmatpush1.msra.mxu0 0.0
    %212 = vmatprep.subr.mxu0 0.0
    %213 = vmatpush1.msra.mxu0 0.0
    %214 = vmatprep.subr.mxu0 0.0
    %215 = vmatpush1.msra.mxu0 0.0
    %216 = vmatprep.subr.mxu0 0.0
    %217 = vmatpush1.msra.mxu0 0.0
    %218 = vmatprep.subr.mxu0 0.0
    %219 = vmatpush1.msra.mxu0 0.0
    %220 = vmatprep.subr.mxu0 0.0
    %221 = vmatpush1.msra.mxu0 0.0
    %222 = vmatprep.subr.mxu0 0.0
    %223 = vmatpush1.msra.mxu0 0.0
    %224 = vmatprep.mubr.f32.mxu0 0.0
    %225 = vmatmul.mubr.f32.gmra.mrb[0].mxu0 %v113
    %v226 = vpop.f32.mrb[0].mxu0
    %v227 = vadd.f32 0.0, %v226
    %v228 = vpop.f32.mrb[0].mxu0
    %229 = vmatprep.mubr.f32.mxu0 0.0
    %230 = vmatmul.mubr.f32.gmra.mrb[0].mxu0 %v116
    %v231 = vpop.f32.mrb[0].mxu0
    %v232 = vadd.f32 0.0, %v231
    %v233 = vpop.f32.mrb[0].mxu0
    %234 = vmatprep.mubr.f32.mxu0 0.0
    %235 = vmatmul.mubr.f32.gmra.mrb[0].mxu0 %v119
    %v236 = vpop.f32.mrb[0].mxu0
    %v237 = vadd.f32 0.0, %v236
    %v238 = vpop.f32.mrb[0].mxu0
    %239 = vmatprep.mubr.f32.mxu0 0.0
    %240 = vmatmul.mubr.f32.gmra.mrb[0].mxu0 %v122
    %v241 = vpop.f32.mrb[0].mxu0
    %v242 = vadd.f32 0.0, %v241
    %v243 = vpop.f32.mrb[0].mxu0
    %244 = vmatprep.mubr.f32.mxu0 0.0
    %245 = vmatmul.mubr.f32.gmra.mrb[0].mxu0 %v125
    %v246 = vpop.f32.mrb[0].mxu0
    %v247 = vadd.f32 0.0, %v246
    %v248 = vpop.f32.mrb[0].mxu0
    %249 = vmatprep.mubr.f32.mxu0 0.0
    %250 = vmatmul.mubr.f32.gmra.mrb[0].mxu0 %v128
    %v251 = vpop.f32.mrb[0].mxu0
    %v252 = vadd.f32 0.0, %v251
    %v253 = vpop.f32.mrb[0].mxu0
    %254 = vmatprep.mubr.f32.mxu0 0.0
    %255 = vmatmul.mubr.f32.gmra.mrb[0].mxu0 %v131
    %v256 = vpop.f32.mrb[0].mxu0
    %v257 = vadd.f32 0.0, %v256
    %v258 = vpop.f32.mrb[0].mxu0
    %259 = vmatprep.mubr.f32.mxu0 0.0
    %260 = vmatmul.mubr.f32.gmra.mrb[0].mxu0 %v134
    %v261 = vpop.f32.mrb[0].mxu0
    %v262 = vadd.f32 0.0, %v261
    %v263 = vpop.f32.mrb[0].mxu0
    %264 = vmatprep.mubr.f32.mxu0 0.0
    %265 = vmatmul.mubr.f32.gmra.mrb[0].mxu0 %v137
    %v266 = vpop.f32.mrb[0].mxu0
    %v267 = vadd.f32 0.0, %v266
    %v268 = vpop.f32.mrb[0].mxu0
    %269 = vmatprep.mubr.f32.mxu0 0.0
    %270 = vmatmul.mubr.f32.gmra.mrb[0].mxu0 %v140
    %v271 = vpop.f32.mrb[0].mxu0
    %v272 = vadd.f32 0.0, %v271
    %v273 = vpop.f32.mrb[0].mxu0
    %274 = vmatprep.mubr.f32.mxu0 0.0
    %275 = vmatmul.mubr.f32.gmra.mrb[0].mxu0 %v143
    %v276 = vpop.f32.mrb[0].mxu0
    %v277 = vadd.f32 0.0, %v276
    %v278 = vpop.f32.mrb[0].mxu0
    %279 = vmatprep.mubr.f32.mxu0 0.0
    %280 = vmatmul.mubr.f32.gmra.mrb[0].mxu0 %v146
    %v281 = vpop.f32.mrb[0].mxu0
    %v282 = vadd.f32 0.0, %v281
    %v283 = vpop.f32.mrb[0].mxu0
    %284 = vmatprep.mubr.f32.mxu0 0.0
    %285 = vmatmul.mubr.f32.gmra.mrb[0].mxu0 %v149
    %v286 = vpop.f32.mrb[0].mxu0
    %v287 = vadd.f32 0.0, %v286
    %v288 = vpop.f32.mrb[0].mxu0
    %289 = vmatprep.mubr.f32.mxu0 0.0
    %290 = vmatmul.mubr.f32.gmra.mrb[0].mxu0 %v152
    %v291 = vpop.f32.mrb[0].mxu0
    %v292 = vadd.f32 0.0, %v291
    %v293 = vpop.f32.mrb[0].mxu0
    %294 = vmatprep.mubr.f32.mxu0 0.0
    %295 = vmatmul.mubr.f32.gmra.mrb[0].mxu0 %v155
    %v296 = vpop.f32.mrb[0].mxu0
    %v297 = vadd.f32 0.0, %v296
    %v298 = vpop.f32.mrb[0].mxu0
    %299 = vmatprep.mubr.f32.mxu0 0.0
    %300 = vmatmul.mubr.f32.gmra.mrb[0].mxu0 %v158
    %v301 = vpop.f32.mrb[0].mxu0
    %v302 = vadd.f32 0.0, %v301
    %v303 = vpop.f32.mrb[0].mxu0
    %304 = vdwg.mxu0
    %v305 = vadd.f32 %v75, %v227
    %v306 = vadd.f32 %v76, %v232
    %v307 = vadd.f32 %v77, %v237
    %v308 = vadd.f32 %v78, %v242
    %v309 = vadd.f32 %v79, %v247
    %v310 = vadd.f32 %v80, %v252
    %v311 = vadd.f32 %v81, %v257
    %v312 = vadd.f32 %v82, %v262
    %v313 = vadd.f32 %v83, %v267
    %v314 = vadd.f32 %v84, %v272
    %v315 = vadd.f32 %v85, %v277
    %v316 = vadd.f32 %v86, %v282
    %v317 = vadd.f32 %v87, %v287
    %v318 = vadd.f32 %v88, %v292
    %v319 = vadd.f32 %v89, %v297
    %v320 = vadd.f32 %v90, %v302
    %321 = vst.msk [vmem:[#allocation2] sm:$0xff] %vm111, %v305
    %322 = vst.msk [vmem:[#allocation2 + $0x8] sm:$0xff] %vm111, %v306
    %323 = vst.msk [vmem:[#allocation2 + $0x10] sm:$0xff] %vm111, %v307
    %324 = vst.msk [vmem:[#allocation2 + $0x18] sm:$0xff] %vm111, %v308
    %325 = vst.msk [vmem:[#allocation2 + $0x20] sm:$0xff] %vm111, %v309
    %326 = vst.msk [vmem:[#allocation2 + $0x28] sm:$0xff] %vm111, %v310
    %327 = vst.msk [vmem:[#allocation2 + $0x30] sm:$0xff] %vm111, %v311
    %328 = vst.msk [vmem:[#allocation2 + $0x38] sm:$0xff] %vm111, %v312
    %329 = vst.msk [vmem:[#allocation2 + $0x40] sm:$0xff] %vm111, %v313
    %330 = vst.msk [vmem:[#allocation2 + $0x48] sm:$0xff] %vm111, %v314
    %331 = vst.msk [vmem:[#allocation2 + $0x50] sm:$0xff] %vm111, %v315
    %332 = vst.msk [vmem:[#allocation2 + $0x58] sm:$0xff] %vm111, %v316
    %333 = vst.msk [vmem:[#allocation2 + $0x60] sm:$0xff] %vm111, %v317
    %334 = vst.msk [vmem:[#allocation2 + $0x68] sm:$0xff] %vm111, %v318
    %335 = vst.msk [vmem:[#allocation2 + $0x70] sm:$0xff] %vm111, %v319
    %336 = vst.msk [vmem:[#allocation2 + $0x78] sm:$0xff] %vm111, %v320
    // Predicated region
    $region30: #{mac_forward.16} parent=1 // pred_check
      %p337 = pneg %p54
    $region31: #{mac_forward.16} parent=1 // pred_check_branch
      %339 = sbr.rel (%p337) target = $region33
    $region32: #{mac_forward.16} parent=1 // pred_region
      %v340 = vld [vmem:[#allocation2] sm:$0xff]
      %v341 = vld [vmem:[#allocation2 + $0x8] sm:$0xff]
      %v342 = vld [vmem:[#allocation2 + $0x10] sm:$0xff]
      %v343 = vld [vmem:[#allocation2 + $0x18] sm:$0xff]
      %v344 = vld [vmem:[#allocation2 + $0x20] sm:$0xff]
      %v345 = vld [vmem:[#allocation2 + $0x28] sm:$0xff]
      %v346 = vld [vmem:[#allocation2 + $0x30] sm:$0xff]
      %v347 = vld [vmem:[#allocation2 + $0x38] sm:$0xff]
      %v348 = vld [vmem:[#allocation2 + $0x40] sm:$0xff]
      %v349 = vld [vmem:[#allocation2 + $0x48] sm:$0xff]
      %v350 = vld [vmem:[#allocation2 + $0x50] sm:$0xff]
      %v351 = vld [vmem:[#allocation2 + $0x58] sm:$0xff]
      %v352 = vld [vmem:[#allocation2 + $0x60] sm:$0xff]
      %v353 = vld [vmem:[#allocation2 + $0x68] sm:$0xff]
      %v354 = vld [vmem:[#allocation2 + $0x70] sm:$0xff]
      %v355 = vld [vmem:[#allocation2 + $0x78] sm:$0xff]
      %v356 = vld [vmem:[#allocation8] sm:$0x1]
      %v358 = vlaneseq
      %v359 = vshrl.u32 %v358, 7
      %v360 = vsub.s32 0, %v359
      %v361 = vrot.slane %v356, %v360
      %v363 = vadd.f32 %v340, %v361
      %v364 = vadd.f32 %v341, %v361
      %v365 = vadd.f32 %v342, %v361
      %v366 = vadd.f32 %v343, %v361
      %v367 = vadd.f32 %v344, %v361
      %v368 = vadd.f32 %v345, %v361
      %v369 = vadd.f32 %v346, %v361
      %v370 = vadd.f32 %v347, %v361
      %v371 = vadd.f32 %v348, %v361
      %v372 = vadd.f32 %v349, %v361
      %v373 = vadd.f32 %v350, %v361
      %v374 = vadd.f32 %v351, %v361
      %v375 = vadd.f32 %v352, %v361
      %v376 = vadd.f32 %v353, %v361
      %v377 = vadd.f32 %v354, %v361
      %v378 = vadd.f32 %v355, %v361
      %379 = vst.msk [vmem:[#allocation9] sm:$0xff] %vm111, %v363
      %380 = vst.msk [vmem:[#allocation9 + $0x8] sm:$0xff] %vm111, %v364
      %381 = vst.msk [vmem:[#allocation9 + $0x10] sm:$0xff] %vm111, %v365
      %382 = vst.msk [vmem:[#allocation9 + $0x18] sm:$0xff] %vm111, %v366
      %383 = vst.msk [vmem:[#allocation9 + $0x20] sm:$0xff] %vm111, %v367
      %384 = vst.msk [vmem:[#allocation9 + $0x28] sm:$0xff] %vm111, %v368
      %385 = vst.msk [vmem:[#allocation9 + $0x30] sm:$0xff] %vm111, %v369
      %386 = vst.msk [vmem:[#allocation9 + $0x38] sm:$0xff] %vm111, %v370
      %387 = vst.msk [vmem:[#allocation9 + $0x40] sm:$0xff] %vm111, %v371
      %388 = vst.msk [vmem:[#allocation9 + $0x48] sm:$0xff] %vm111, %v372
      %389 = vst.msk [vmem:[#allocation9 + $0x50] sm:$0xff] %vm111, %v373
      %390 = vst.msk [vmem:[#allocation9 + $0x58] sm:$0xff] %vm111, %v374
      %391 = vst.msk [vmem:[#allocation9 + $0x60] sm:$0xff] %vm111, %v375
      %392 = vst.msk [vmem:[#allocation9 + $0x68] sm:$0xff] %vm111, %v376
      %393 = vst.msk [vmem:[#allocation9 + $0x70] sm:$0xff] %vm111, %v377
      %394 = vst.msk [vmem:[#allocation9 + $0x78] sm:$0xff] %vm111, %v378
    $region33: #{mac_forward.16} parent=1 // pred_fallthru
      _
    // Predicated region
    $region34: #{mac_forward.16} parent=1 // pred_check
      _
    $region35: #{mac_forward.16} parent=1 // pred_check_branch
      %396 = sbr.rel (0) target = $region37
    $region36: #{mac_forward.16} parent=1 // pred_region
      %s398 = ssub.s32 2048, 2048
      %399 = vsyncadd [#allocation5], %s398
      %s400 = sshll.u32 [#allocation9], 4
      %s401 = int_to_ptr.vmem [resolvable:$true] %s400
      %406 = dma.vmem_to_hbm [thread:$0]  %s401, 2048, %s3, [#allocation5], 128, 128, 8
    $region37: #{mac_forward.16} parent=1 // pred_fallthru
      _
    // Predicated region
    $region38: #{mac_forward.16} parent=1 // pred_check
      _
    $region39: #{mac_forward.16} parent=1 // pred_check_branch
      %408 = sbr.rel (0) target = $region41
    $region40: #{mac_forward.16} parent=1 // pred_region
      %409 = dma.done [#allocation5], 2048
    $region41: #{mac_forward.16} parent=1 // pred_fallthru
      _
    %410 = vsyncpa [#allocation4], 1
    %411 = vsyncpa [#allocation7], 1
    %412 = vsyncpa [#allocation5], 1

// kernel: mac_forward.14
$region0: #{mac_forward.14}
  #allocation0 [shape = 'u32[]', space=smem, size = 0x4, offset = 0x4, fixed_abs, tag = 'smem constant byte address 0x4 - core index']
  #allocation1 [shape = 'u32[144,128]{1,0:T(1,128)}', space=vmem, size = 0x12000, scoped, tag = 'internal scratch']
  #allocation2 [shape = 'f32[16,64]{1,0:T(8,128)}', space=vmem, size = 0x2000, scoped, tag = 'scratch operand']
  %s0 = inlined_call_operand.hbm [shape: f32[16,48], index: 0, kind: input, shape index: {}]
  %s1 = inlined_call_operand.hbm [shape: f32[48,64], index: 1, kind: input, shape index: {}]
  %s2 = inlined_call_operand.hbm [shape: f32[1,64], index: 2, kind: input, shape index: {}]
  %s3 = inlined_call_operand.hbm [shape: f32[16,64], index: 3, kind: output, shape index: {}]
  %s4 = sld [smem:[#allocation0]]
  $region42: #{mac_forward.14} parent=0
    _
  %s6 = ssub.s32 1, %s4
  %s7 = scalar_select 0, %s6, %s4
  $region1: #{mac_forward.14} parent=0
    #allocation3 [shape = 'u8[8192]{0}', space=vmem, size = 0x2000, scoped, tag = 'input window, operand 0, single buffered']
    #allocation4 [shape = 's32[1]{0}', space=sflag, size = 0x4, scoped, tag = 'scoped memory for mac_forward.14']
    #allocation5 [shape = 's32[1]{0}', space=sflag, size = 0x4, scoped, tag = 'scoped memory for mac_forward.14']
    #allocation6 [shape = 'u8[24576]{0}', space=vmem, size = 0x6000, scoped, tag = 'input window, operand 1, single buffered']
    #allocation7 [shape = 's32[1]{0}', space=sflag, size = 0x4, scoped, tag = 'scoped memory for mac_forward.14']
    #allocation8 [shape = 'u8[512]{0}', space=vmem, size = 0x400, scoped, tag = 'input window, operand 2, single buffered']
    #allocation9 [shape = 'u8[8192]{0}', space=vmem, size = 0x2000, scoped, tag = 'output window, operand 0, single buffered']
    %8 = vsyncpa [#allocation4], 0
    %9 = vsyncpa [#allocation7], 0
    %10 = vsyncpa [#allocation5], 0
    // Predicated region
    $region2: #{mac_forward.14} parent=1 // pred_check
      _
    $region3: #{mac_forward.14} parent=1 // pred_check_branch
      %12 = sbr.rel (0) target = $region5
    $region4: #{mac_forward.14} parent=1 // pred_region
      %s14 = ssub.s32 256, 256
      %15 = vsyncadd [#allocation4], %s14
      %s16 = sshll.u32 [#allocation3], 4
      %s17 = int_to_ptr.vmem [resolvable:$true] %s16
      %22 = dma.hbm_to_vmem [thread:$0]  %s0, 256, %s17, [#allocation4], 128, 128, 8
    $region5: #{mac_forward.14} parent=1 // pred_fallthru
      _
    // Predicated region
    $region6: #{mac_forward.14} parent=1 // pred_check
      _
    $region7: #{mac_forward.14} parent=1 // pred_check_branch
      %24 = sbr.rel (0) target = $region9
    $region8: #{mac_forward.14} parent=1 // pred_region
      %s26 = ssub.s32 768, 768
      %27 = vsyncadd [#allocation7], %s26
      %s28 = sshll.u32 [#allocation6], 4
      %s29 = int_to_ptr.vmem [resolvable:$true] %s28
      %34 = dma.hbm_to_vmem [thread:$0]  %s1, 768, %s29, [#allocation7], 128, 128, 8
    $region9: #{mac_forward.14} parent=1 // pred_fallthru
      _
    // Predicated region
    $region10: #{mac_forward.14} parent=1 // pred_check
      _
    $region11: #{mac_forward.14} parent=1 // pred_check_branch
      %36 = sbr.rel (0) target = $region13
    $region12: #{mac_forward.14} parent=1 // pred_region
      %s38 = ssub.s32 16, 16
      %39 = vsyncadd [#allocation7], %s38
      %s41 = sshll.u32 [#allocation8], 4
      %s42 = int_to_ptr.vmem [resolvable:$true] %s41
      %44 = dma.hbm_to_vmem [thread:$0]  %s2, 16, %s42, [#allocation7]
    $region13: #{mac_forward.14} parent=1 // pred_fallthru
      _
    // Predicated region
    $region14: #{mac_forward.14} parent=1 // pred_check
      _
    $region15: #{mac_forward.14} parent=1 // pred_check_branch
      %46 = sbr.rel (0) target = $region17
    $region16: #{mac_forward.14} parent=1 // pred_region
      %47 = dma.done [#allocation4], 256
    $region17: #{mac_forward.14} parent=1 // pred_fallthru
      _
    // Predicated region
    $region18: #{mac_forward.14} parent=1 // pred_check
      _
    $region19: #{mac_forward.14} parent=1 // pred_check_branch
      %49 = sbr.rel (0) target = $region21
    $region20: #{mac_forward.14} parent=1 // pred_region
      %50 = dma.done [#allocation7], 768
    $region21: #{mac_forward.14} parent=1 // pred_fallthru
      _
    // Predicated region
    $region22: #{mac_forward.14} parent=1 // pred_check
      _
    $region23: #{mac_forward.14} parent=1 // pred_check_branch
      %52 = sbr.rel (0) target = $region25
    $region24: #{mac_forward.14} parent=1 // pred_region
      %53 = dma.done [#allocation7], 16
    $region25: #{mac_forward.14} parent=1 // pred_fallthru
      _
    %p54 = scmp.eq.s32.totalorder 0, 0
    // Predicated region
    $region26: #{mac_forward.14} parent=1 // pred_check
      %p55 = pneg %p54
    $region27: #{mac_forward.14} parent=1 // pred_check_branch
      %57 = sbr.rel (%p55) target = $region29
    $region28: #{mac_forward.14} parent=1 // pred_region
      %vm58 = vcmask 523264
      %59 = vst.msk [vmem:[#allocation2] sm:$0xff] %vm58, 0.0
      %60 = vst.msk [vmem:[#allocation2 + $0x8] sm:$0xff] %vm58, 0.0
    $region29: #{mac_forward.14} parent=1 // pred_fallthru
      _
    %v61 = vld [vmem:[#allocation2] sm:$0xff]
    %v62 = vld [vmem:[#allocation2 + $0x8] sm:$0xff]
    %v63 = vld [vmem:[#allocation3] sm:$0xff]
    %v64 = vld [vmem:[#allocation3 + $0x8] sm:$0xff]
    %v65 = vld [vmem:[#allocation6] sm:$0xff]
    %v66 = vld [vmem:[#allocation6 + $0x8] sm:$0xff]
    %v67 = vld [vmem:[#allocation6 + $0x10] sm:$0xff]
    %v68 = vld [vmem:[#allocation6 + $0x18] sm:$0xff]
    %v69 = vld [vmem:[#allocation6 + $0x20] sm:$0xff]
    %v70 = vld [vmem:[#allocation6 + $0x28] sm:$0xff]
    %vm71 = vcmask 392192
    %v73 = vsel %vm71, %v63, 0
    %v76 = vsel %vm71, %v64, 0
    %78 = vmatprep.subr.mxu0 0.0
    %79 = vmatpush1.msra.mxu0 %v65
    %80 = vmatprep.subr.mxu0 0.0
    %81 = vmatpush1.msra.mxu0 %v66
    %82 = vmatprep.subr.mxu0 0.0
    %83 = vmatpush1.msra.mxu0 %v67
    %84 = vmatprep.subr.mxu0 0.0
    %85 = vmatpush1.msra.mxu0 %v68
    %86 = vmatprep.subr.mxu0 0.0
    %87 = vmatpush1.msra.mxu0 %v69
    %88 = vmatprep.subr.mxu0 0.0
    %89 = vmatpush1.msra.mxu0 %v70
    %90 = vmatprep.subr.mxu0 0.0
    %91 = vmatpush1.msra.mxu0 0.0
    %92 = vmatprep.subr.mxu0 0.0
    %93 = vmatpush1.msra.mxu0 0.0
    %94 = vmatprep.subr.mxu0 0.0
    %95 = vmatpush1.msra.mxu0 0.0
    %96 = vmatprep.subr.mxu0 0.0
    %97 = vmatpush1.msra.mxu0 0.0
    %98 = vmatprep.subr.mxu0 0.0
    %99 = vmatpush1.msra.mxu0 0.0
    %100 = vmatprep.subr.mxu0 0.0
    %101 = vmatpush1.msra.mxu0 0.0
    %102 = vmatprep.subr.mxu0 0.0
    %103 = vmatpush1.msra.mxu0 0.0
    %104 = vmatprep.subr.mxu0 0.0
    %105 = vmatpush1.msra.mxu0 0.0
    %106 = vmatprep.subr.mxu0 0.0
    %107 = vmatpush1.msra.mxu0 0.0
    %108 = vmatprep.subr.mxu0 0.0
    %109 = vmatpush1.msra.mxu0 0.0
    %110 = vmatprep.subr.mxu0 0.0
    %111 = vmatpush1.msra.mxu0 0.0
    %112 = vmatprep.subr.mxu0 0.0
    %113 = vmatpush1.msra.mxu0 0.0
    %114 = vmatprep.subr.mxu0 0.0
    %115 = vmatpush1.msra.mxu0 0.0
    %116 = vmatprep.subr.mxu0 0.0
    %117 = vmatpush1.msra.mxu0 0.0
    %118 = vmatprep.subr.mxu0 0.0
    %119 = vmatpush1.msra.mxu0 0.0
    %120 = vmatprep.subr.mxu0 0.0
    %121 = vmatpush1.msra.mxu0 0.0
    %122 = vmatprep.subr.mxu0 0.0
    %123 = vmatpush1.msra.mxu0 0.0
    %124 = vmatprep.subr.mxu0 0.0
    %125 = vmatpush1.msra.mxu0 0.0
    %126 = vmatprep.subr.mxu0 0.0
    %127 = vmatpush1.msra.mxu0 0.0
    %128 = vmatprep.subr.mxu0 0.0
    %129 = vmatpush1.msra.mxu0 0.0
    %130 = vmatprep.subr.mxu0 0.0
    %131 = vmatpush1.msra.mxu0 0.0
    %132 = vmatprep.subr.mxu0 0.0
    %133 = vmatpush1.msra.mxu0 0.0
    %134 = vmatprep.subr.mxu0 0.0
    %135 = vmatpush1.msra.mxu0 0.0
    %136 = vmatprep.subr.mxu0 0.0
    %137 = vmatpush1.msra.mxu0 0.0
    %138 = vmatprep.subr.mxu0 0.0
    %139 = vmatpush1.msra.mxu0 0.0
    %140 = vmatprep.subr.mxu0 0.0
    %141 = vmatpush1.msra.mxu0 0.0
    %142 = vmatprep.mubr.f32.mxu0 0.0
    %143 = vmatmul.mubr.f32.gmra.mrb[0].mxu0 %v73
    %v144 = vpop.f32.mrb[0].mxu0
    %v145 = vadd.f32 0.0, %v144
    %v146 = vpop.f32.mrb[0].mxu0
    %147 = vmatprep.mubr.f32.mxu0 0.0
    %148 = vmatmul.mubr.f32.gmra.mrb[0].mxu0 %v76
    %v149 = vpop.f32.mrb[0].mxu0
    %v150 = vadd.f32 0.0, %v149
    %v151 = vpop.f32.mrb[0].mxu0
    %152 = vdwg.mxu0
    %v153 = vadd.f32 %v61, %v145
    %v154 = vadd.f32 %v62, %v150
    %vm155 = vcmask 523264
    %156 = vst.msk [vmem:[#allocation2] sm:$0xff] %vm155, %v153
    %157 = vst.msk [vmem:[#allocation2 + $0x8] sm:$0xff] %vm155, %v154
    // Predicated region
    $region30: #{mac_forward.14} parent=1 // pred_check
      %p158 = pneg %p54
    $region31: #{mac_forward.14} parent=1 // pred_check_branch
      %160 = sbr.rel (%p158) target = $region33
    $region32: #{mac_forward.14} parent=1 // pred_region
      %v161 = vld [vmem:[#allocation2] sm:$0xff]
      %v162 = vld [vmem:[#allocation2 + $0x8] sm:$0xff]
      %v163 = vld [vmem:[#allocation8] sm:$0x1]
      %v165 = vlaneseq
      %v166 = vshrl.u32 %v165, 7
      %v167 = vsub.s32 0, %v166
      %v168 = vrot.slane %v163, %v167
      %v170 = vadd.f32 %v161, %v168
      %v171 = vadd.f32 %v162, %v168
      %172 = vst.msk [vmem:[#allocation9] sm:$0xff] %vm155, %v170
      %173 = vst.msk [vmem:[#allocation9 + $0x8] sm:$0xff] %vm155, %v171
    $region33: #{mac_forward.14} parent=1 // pred_fallthru
      _
    // Predicated region
    $region34: #{mac_forward.14} parent=1 // pred_check
      _
    $region35: #{mac_forward.14} parent=1 // pred_check_branch
      %175 = sbr.rel (0) target = $region37
    $region36: #{mac_forward.14} parent=1 // pred_region
      %s177 = ssub.s32 256, 256
      %178 = vsyncadd [#allocation5], %s177
      %s179 = sshll.u32 [#allocation9], 4
      %s180 = int_to_ptr.vmem [resolvable:$true] %s179
      %185 = dma.vmem_to_hbm [thread:$0]  %s180, 256, %s3, [#allocation5], 128, 128, 8
    $region37: #{mac_forward.14} parent=1 // pred_fallthru
      _
    // Predicated region
    $region38: #{mac_forward.14} parent=1 // pred_check
      _
    $region39: #{mac_forward.14} parent=1 // pred_check_branch
      %187 = sbr.rel (0) target = $region41
    $region40: #{mac_forward.14} parent=1 // pred_region
      %188 = dma.done [#allocation5], 256
    $region41: #{mac_forward.14} parent=1 // pred_fallthru
      _
    %189 = vsyncpa [#allocation4], 1
    %190 = vsyncpa [#allocation7], 1
    %191 = vsyncpa [#allocation5], 1

// kernel: mac_forward.15
$region0: #{mac_forward.15}
  #allocation0 [shape = 'u32[]', space=smem, size = 0x4, offset = 0x4, fixed_abs, tag = 'smem constant byte address 0x4 - core index']
  #allocation1 [shape = 'u32[144,128]{1,0:T(1,128)}', space=vmem, size = 0x12000, scoped, tag = 'internal scratch']
  #allocation2 [shape = 'f32[2,32]{1,0:T(2,128)}', space=vmem, size = 0x400, scoped, tag = 'scratch operand']
  %s0 = inlined_call_operand.hbm [shape: f32[2,32], index: 0, kind: input, shape index: {}]
  %s1 = inlined_call_operand.hbm [shape: f32[32,32], index: 1, kind: input, shape index: {}]
  %s2 = inlined_call_operand.hbm [shape: f32[1,32], index: 2, kind: input, shape index: {}]
  %s3 = inlined_call_operand.hbm [shape: f32[2,32], index: 3, kind: output, shape index: {}]
  %s4 = sld [smem:[#allocation0]]
  $region42: #{mac_forward.15} parent=0
    _
  %s6 = ssub.s32 1, %s4
  %s7 = scalar_select 0, %s6, %s4
  $region1: #{mac_forward.15} parent=0
    #allocation3 [shape = 'u8[1024]{0}', space=vmem, size = 0x400, scoped, tag = 'input window, operand 0, single buffered']
    #allocation4 [shape = 's32[1]{0}', space=sflag, size = 0x4, scoped, tag = 'scoped memory for mac_forward.15']
    #allocation5 [shape = 's32[1]{0}', space=sflag, size = 0x4, scoped, tag = 'scoped memory for mac_forward.15']
    #allocation6 [shape = 'u8[16384]{0}', space=vmem, size = 0x4000, scoped, tag = 'input window, operand 1, single buffered']
    #allocation7 [shape = 's32[1]{0}', space=sflag, size = 0x4, scoped, tag = 'scoped memory for mac_forward.15']
    #allocation8 [shape = 'u8[512]{0}', space=vmem, size = 0x400, scoped, tag = 'input window, operand 2, single buffered']
    #allocation9 [shape = 'u8[1024]{0}', space=vmem, size = 0x400, scoped, tag = 'output window, operand 0, single buffered']
    %8 = vsyncpa [#allocation4], 0
    %9 = vsyncpa [#allocation7], 0
    %10 = vsyncpa [#allocation5], 0
    // Predicated region
    $region2: #{mac_forward.15} parent=1 // pred_check
      _
    $region3: #{mac_forward.15} parent=1 // pred_check_branch
      %12 = sbr.rel (0) target = $region5
    $region4: #{mac_forward.15} parent=1 // pred_region
      %s14 = ssub.s32 32, 32
      %15 = vsyncadd [#allocation4], %s14
      %s17 = sshll.u32 [#allocation3], 4
      %s18 = int_to_ptr.vmem [resolvable:$true] %s17
      %20 = dma.hbm_to_vmem [thread:$0]  %s0, 32, %s18, [#allocation4]
    $region5: #{mac_forward.15} parent=1 // pred_fallthru
      _
    // Predicated region
    $region6: #{mac_forward.15} parent=1 // pred_check
      _
    $region7: #{mac_forward.15} parent=1 // pred_check_branch
      %22 = sbr.rel (0) target = $region9
    $region8: #{mac_forward.15} parent=1 // pred_region
      %s24 = ssub.s32 512, 512
      %25 = vsyncadd [#allocation7], %s24
      %s26 = sshll.u32 [#allocation6], 4
      %s27 = int_to_ptr.vmem [resolvable:$true] %s26
      %32 = dma.hbm_to_vmem [thread:$0]  %s1, 512, %s27, [#allocation7], 128, 128, 8
    $region9: #{mac_forward.15} parent=1 // pred_fallthru
      _
    // Predicated region
    $region10: #{mac_forward.15} parent=1 // pred_check
      _
    $region11: #{mac_forward.15} parent=1 // pred_check_branch
      %34 = sbr.rel (0) target = $region13
    $region12: #{mac_forward.15} parent=1 // pred_region
      %s36 = ssub.s32 16, 16
      %37 = vsyncadd [#allocation7], %s36
      %s39 = sshll.u32 [#allocation8], 4
      %s40 = int_to_ptr.vmem [resolvable:$true] %s39
      %42 = dma.hbm_to_vmem [thread:$0]  %s2, 16, %s40, [#allocation7]
    $region13: #{mac_forward.15} parent=1 // pred_fallthru
      _
    // Predicated region
    $region14: #{mac_forward.15} parent=1 // pred_check
      _
    $region15: #{mac_forward.15} parent=1 // pred_check_branch
      %44 = sbr.rel (0) target = $region17
    $region16: #{mac_forward.15} parent=1 // pred_region
      %45 = dma.done [#allocation4], 32
    $region17: #{mac_forward.15} parent=1 // pred_fallthru
      _
    // Predicated region
    $region18: #{mac_forward.15} parent=1 // pred_check
      _
    $region19: #{mac_forward.15} parent=1 // pred_check_branch
      %47 = sbr.rel (0) target = $region21
    $region20: #{mac_forward.15} parent=1 // pred_region
      %48 = dma.done [#allocation7], 512
    $region21: #{mac_forward.15} parent=1 // pred_fallthru
      _
    // Predicated region
    $region22: #{mac_forward.15} parent=1 // pred_check
      _
    $region23: #{mac_forward.15} parent=1 // pred_check_branch
      %50 = sbr.rel (0) target = $region25
    $region24: #{mac_forward.15} parent=1 // pred_region
      %51 = dma.done [#allocation7], 16
    $region25: #{mac_forward.15} parent=1 // pred_fallthru
      _
    %p52 = scmp.eq.s32.totalorder 0, 0
    // Predicated region
    $region26: #{mac_forward.15} parent=1 // pred_check
      %p53 = pneg %p52
    $region27: #{mac_forward.15} parent=1 // pred_check_branch
      %55 = sbr.rel (%p53) target = $region29
    $region28: #{mac_forward.15} parent=1 // pred_region
      %vm56 = vcmask 254976
      %57 = vst.msk [vmem:[#allocation2] sm:$0x3] %vm56, 0.0
    $region29: #{mac_forward.15} parent=1 // pred_fallthru
      _
    %v58 = vld [vmem:[#allocation2] sm:$0x3]
    %v59 = vld [vmem:[#allocation3] sm:$0x3]
    %v60 = vld [vmem:[#allocation6] sm:$0xff]
    %v61 = vld [vmem:[#allocation6 + $0x8] sm:$0xff]
    %v62 = vld [vmem:[#allocation6 + $0x10] sm:$0xff]
    %v63 = vld [vmem:[#allocation6 + $0x18] sm:$0xff]
    %vm64 = vcmask 261120
    %v66 = vsel %vm64, %v59, 0
    %68 = vmatprep.subr.mxu0 0.0
    %69 = vmatpush1.msra.mxu0 %v60
    %70 = vmatprep.subr.mxu0 0.0
    %71 = vmatpush1.msra.mxu0 %v61
    %72 = vmatprep.subr.mxu0 0.0
    %73 = vmatpush1.msra.mxu0 %v62
    %74 = vmatprep.subr.mxu0 0.0
    %75 = vmatpush1.msra.mxu0 %v63
    %76 = vmatprep.subr.mxu0 0.0
    %77 = vmatpush1.msra.mxu0 0.0
    %78 = vmatprep.subr.mxu0 0.0
    %79 = vmatpush1.msra.mxu0 0.0
    %80 = vmatprep.subr.mxu0 0.0
    %81 = vmatpush1.msra.mxu0 0.0
    %82 = vmatprep.subr.mxu0 0.0
    %83 = vmatpush1.msra.mxu0 0.0
    %84 = vmatprep.subr.mxu0 0.0
    %85 = vmatpush1.msra.mxu0 0.0
    %86 = vmatprep.subr.mxu0 0.0
    %87 = vmatpush1.msra.mxu0 0.0
    %88 = vmatprep.subr.mxu0 0.0
    %89 = vmatpush1.msra.mxu0 0.0
    %90 = vmatprep.subr.mxu0 0.0
    %91 = vmatpush1.msra.mxu0 0.0
    %92 = vmatprep.subr.mxu0 0.0
    %93 = vmatpush1.msra.mxu0 0.0
    %94 = vmatprep.subr.mxu0 0.0
    %95 = vmatpush1.msra.mxu0 0.0
    %96 = vmatprep.subr.mxu0 0.0
    %97 = vmatpush1.msra.mxu0 0.0
    %98 = vmatprep.subr.mxu0 0.0
    %99 = vmatpush1.msra.mxu0 0.0
    %100 = vmatprep.subr.mxu0 0.0
    %101 = vmatpush1.msra.mxu0 0.0
    %102 = vmatprep.subr.mxu0 0.0
    %103 = vmatpush1.msra.mxu0 0.0
    %104 = vmatprep.subr.mxu0 0.0
    %105 = vmatpush1.msra.mxu0 0.0
    %106 = vmatprep.subr.mxu0 0.0
    %107 = vmatpush1.msra.mxu0 0.0
    %108 = vmatprep.subr.mxu0 0.0
    %109 = vmatpush1.msra.mxu0 0.0
    %110 = vmatprep.subr.mxu0 0.0
    %111 = vmatpush1.msra.mxu0 0.0
    %112 = vmatprep.subr.mxu0 0.0
    %113 = vmatpush1.msra.mxu0 0.0
    %114 = vmatprep.subr.mxu0 0.0
    %115 = vmatpush1.msra.mxu0 0.0
    %116 = vmatprep.subr.mxu0 0.0
    %117 = vmatpush1.msra.mxu0 0.0
    %118 = vmatprep.subr.mxu0 0.0
    %119 = vmatpush1.msra.mxu0 0.0
    %120 = vmatprep.subr.mxu0 0.0
    %121 = vmatpush1.msra.mxu0 0.0
    %122 = vmatprep.subr.mxu0 0.0
    %123 = vmatpush1.msra.mxu0 0.0
    %124 = vmatprep.subr.mxu0 0.0
    %125 = vmatpush1.msra.mxu0 0.0
    %126 = vmatprep.subr.mxu0 0.0
    %127 = vmatpush1.msra.mxu0 0.0
    %128 = vmatprep.subr.mxu0 0.0
    %129 = vmatpush1.msra.mxu0 0.0
    %130 = vmatprep.subr.mxu0 0.0
    %131 = vmatpush1.msra.mxu0 0.0
    %132 = vmatprep.mubr.f32.mxu0 0.0
    %133 = vmatmul.mubr.f32.gmra.mrb[0].mxu0 %v66
    %v134 = vpop.f32.mrb[0].mxu0
    %v135 = vadd.f32 0.0, %v134
    %v136 = vpop.f32.mrb[0].mxu0
    %137 = vdwg.mxu0
    %v138 = vadd.f32 %v58, %v135
    %vm139 = vcmask 254976
    %140 = vst.msk [vmem:[#allocation2] sm:$0x3] %vm139, %v138
    // Predicated region
    $region30: #{mac_forward.15} parent=1 // pred_check
      %p141 = pneg %p52
    $region31: #{mac_forward.15} parent=1 // pred_check_branch
      %143 = sbr.rel (%p141) target = $region33
    $region32: #{mac_forward.15} parent=1 // pred_region
      %v144 = vld [vmem:[#allocation2] sm:$0x3]
      %v145 = vld [vmem:[#allocation8] sm:$0x1]
      %v147 = vlaneseq
      %v148 = vshrl.u32 %v147, 7
      %v149 = vsub.s32 0, %v148
      %v150 = vrot.slane %v145, %v149
      %v152 = vadd.f32 %v144, %v150
      %v153 = vtanh.pop %v152
      %154 = vst.msk [vmem:[#allocation9] sm:$0x3] %vm139, %v153
    $region33: #{mac_forward.15} parent=1 // pred_fallthru
      _
    // Predicated region
    $region34: #{mac_forward.15} parent=1 // pred_check
      _
    $region35: #{mac_forward.15} parent=1 // pred_check_branch
      %156 = sbr.rel (0) target = $region37
    $region36: #{mac_forward.15} parent=1 // pred_region
      %s158 = ssub.s32 32, 32
      %159 = vsyncadd [#allocation5], %s158
      %s161 = sshll.u32 [#allocation9], 4
      %s162 = int_to_ptr.vmem [resolvable:$true] %s161
      %164 = dma.vmem_to_hbm [thread:$0]  %s162, 32, %s3, [#allocation5]
    $region37: #{mac_forward.15} parent=1 // pred_fallthru
      _
    // Predicated region
    $region38: #{mac_forward.15} parent=1 // pred_check
      _
    $region39: #{mac_forward.15} parent=1 // pred_check_branch
      %166 = sbr.rel (0) target = $region41
    $region40: #{mac_forward.15} parent=1 // pred_region
      %167 = dma.done [#allocation5], 32
    $region41: #{mac_forward.15} parent=1 // pred_fallthru
      _
    %168 = vsyncpa [#allocation4], 1
    %169 = vsyncpa [#allocation7], 1
    %170 = vsyncpa [#allocation5], 1

// kernel: mac_forward.19
$region0: #{mac_forward.19}
  #allocation0 [shape = 'u32[]', space=smem, size = 0x4, offset = 0x4, fixed_abs, tag = 'smem constant byte address 0x4 - core index']
  #allocation1 [shape = 'u32[144,128]{1,0:T(1,128)}', space=vmem, size = 0x12000, scoped, tag = 'internal scratch']
  #allocation2 [shape = 'f32[2,32]{1,0:T(2,128)}', space=vmem, size = 0x400, scoped, tag = 'scratch operand']
  %s0 = inlined_call_operand.hbm [shape: f32[2,32], index: 0, kind: input, shape index: {}]
  %s1 = inlined_call_operand.hbm [shape: f32[32,32], index: 1, kind: input, shape index: {}]
  %s2 = inlined_call_operand.hbm [shape: f32[1,32], index: 2, kind: input, shape index: {}]
  %s3 = inlined_call_operand.hbm [shape: f32[2,32], index: 3, kind: output, shape index: {}]
  %s4 = sld [smem:[#allocation0]]
  $region42: #{mac_forward.19} parent=0
    _
  %s6 = ssub.s32 1, %s4
  %s7 = scalar_select 0, %s6, %s4
  $region1: #{mac_forward.19} parent=0
    #allocation3 [shape = 'u8[1024]{0}', space=vmem, size = 0x400, scoped, tag = 'input window, operand 0, single buffered']
    #allocation4 [shape = 's32[1]{0}', space=sflag, size = 0x4, scoped, tag = 'scoped memory for mac_forward.19']
    #allocation5 [shape = 's32[1]{0}', space=sflag, size = 0x4, scoped, tag = 'scoped memory for mac_forward.19']
    #allocation6 [shape = 'u8[16384]{0}', space=vmem, size = 0x4000, scoped, tag = 'input window, operand 1, single buffered']
    #allocation7 [shape = 's32[1]{0}', space=sflag, size = 0x4, scoped, tag = 'scoped memory for mac_forward.19']
    #allocation8 [shape = 'u8[512]{0}', space=vmem, size = 0x400, scoped, tag = 'input window, operand 2, single buffered']
    #allocation9 [shape = 'u8[1024]{0}', space=vmem, size = 0x400, scoped, tag = 'output window, operand 0, single buffered']
    %8 = vsyncpa [#allocation4], 0
    %9 = vsyncpa [#allocation7], 0
    %10 = vsyncpa [#allocation5], 0
    // Predicated region
    $region2: #{mac_forward.19} parent=1 // pred_check
      _
    $region3: #{mac_forward.19} parent=1 // pred_check_branch
      %12 = sbr.rel (0) target = $region5
    $region4: #{mac_forward.19} parent=1 // pred_region
      %s14 = ssub.s32 32, 32
      %15 = vsyncadd [#allocation4], %s14
      %s17 = sshll.u32 [#allocation3], 4
      %s18 = int_to_ptr.vmem [resolvable:$true] %s17
      %20 = dma.hbm_to_vmem [thread:$0]  %s0, 32, %s18, [#allocation4]
    $region5: #{mac_forward.19} parent=1 // pred_fallthru
      _
    // Predicated region
    $region6: #{mac_forward.19} parent=1 // pred_check
      _
    $region7: #{mac_forward.19} parent=1 // pred_check_branch
      %22 = sbr.rel (0) target = $region9
    $region8: #{mac_forward.19} parent=1 // pred_region
      %s24 = ssub.s32 512, 512
      %25 = vsyncadd [#allocation7], %s24
      %s26 = sshll.u32 [#allocation6], 4
      %s27 = int_to_ptr.vmem [resolvable:$true] %s26
      %32 = dma.hbm_to_vmem [thread:$0]  %s1, 512, %s27, [#allocation7], 128, 128, 8
    $region9: #{mac_forward.19} parent=1 // pred_fallthru
      _
    // Predicated region
    $region10: #{mac_forward.19} parent=1 // pred_check
      _
    $region11: #{mac_forward.19} parent=1 // pred_check_branch
      %34 = sbr.rel (0) target = $region13
    $region12: #{mac_forward.19} parent=1 // pred_region
      %s36 = ssub.s32 16, 16
      %37 = vsyncadd [#allocation7], %s36
      %s39 = sshll.u32 [#allocation8], 4
      %s40 = int_to_ptr.vmem [resolvable:$true] %s39
      %42 = dma.hbm_to_vmem [thread:$0]  %s2, 16, %s40, [#allocation7]
    $region13: #{mac_forward.19} parent=1 // pred_fallthru
      _
    // Predicated region
    $region14: #{mac_forward.19} parent=1 // pred_check
      _
    $region15: #{mac_forward.19} parent=1 // pred_check_branch
      %44 = sbr.rel (0) target = $region17
    $region16: #{mac_forward.19} parent=1 // pred_region
      %45 = dma.done [#allocation4], 32
    $region17: #{mac_forward.19} parent=1 // pred_fallthru
      _
    // Predicated region
    $region18: #{mac_forward.19} parent=1 // pred_check
      _
    $region19: #{mac_forward.19} parent=1 // pred_check_branch
      %47 = sbr.rel (0) target = $region21
    $region20: #{mac_forward.19} parent=1 // pred_region
      %48 = dma.done [#allocation7], 512
    $region21: #{mac_forward.19} parent=1 // pred_fallthru
      _
    // Predicated region
    $region22: #{mac_forward.19} parent=1 // pred_check
      _
    $region23: #{mac_forward.19} parent=1 // pred_check_branch
      %50 = sbr.rel (0) target = $region25
    $region24: #{mac_forward.19} parent=1 // pred_region
      %51 = dma.done [#allocation7], 16
    $region25: #{mac_forward.19} parent=1 // pred_fallthru
      _
    %p52 = scmp.eq.s32.totalorder 0, 0
    // Predicated region
    $region26: #{mac_forward.19} parent=1 // pred_check
      %p53 = pneg %p52
    $region27: #{mac_forward.19} parent=1 // pred_check_branch
      %55 = sbr.rel (%p53) target = $region29
    $region28: #{mac_forward.19} parent=1 // pred_region
      %vm56 = vcmask 254976
      %57 = vst.msk [vmem:[#allocation2] sm:$0x3] %vm56, 0.0
    $region29: #{mac_forward.19} parent=1 // pred_fallthru
      _
    %v58 = vld [vmem:[#allocation2] sm:$0x3]
    %v59 = vld [vmem:[#allocation3] sm:$0x3]
    %v60 = vld [vmem:[#allocation6] sm:$0xff]
    %v61 = vld [vmem:[#allocation6 + $0x8] sm:$0xff]
    %v62 = vld [vmem:[#allocation6 + $0x10] sm:$0xff]
    %v63 = vld [vmem:[#allocation6 + $0x18] sm:$0xff]
    %vm64 = vcmask 261120
    %v66 = vsel %vm64, %v59, 0
    %68 = vmatprep.subr.mxu0 0.0
    %69 = vmatpush1.msra.mxu0 %v60
    %70 = vmatprep.subr.mxu0 0.0
    %71 = vmatpush1.msra.mxu0 %v61
    %72 = vmatprep.subr.mxu0 0.0
    %73 = vmatpush1.msra.mxu0 %v62
    %74 = vmatprep.subr.mxu0 0.0
    %75 = vmatpush1.msra.mxu0 %v63
    %76 = vmatprep.subr.mxu0 0.0
    %77 = vmatpush1.msra.mxu0 0.0
    %78 = vmatprep.subr.mxu0 0.0
    %79 = vmatpush1.msra.mxu0 0.0
    %80 = vmatprep.subr.mxu0 0.0
    %81 = vmatpush1.msra.mxu0 0.0
    %82 = vmatprep.subr.mxu0 0.0
    %83 = vmatpush1.msra.mxu0 0.0
    %84 = vmatprep.subr.mxu0 0.0
    %85 = vmatpush1.msra.mxu0 0.0
    %86 = vmatprep.subr.mxu0 0.0
    %87 = vmatpush1.msra.mxu0 0.0
    %88 = vmatprep.subr.mxu0 0.0
    %89 = vmatpush1.msra.mxu0 0.0
    %90 = vmatprep.subr.mxu0 0.0
    %91 = vmatpush1.msra.mxu0 0.0
    %92 = vmatprep.subr.mxu0 0.0
    %93 = vmatpush1.msra.mxu0 0.0
    %94 = vmatprep.subr.mxu0 0.0
    %95 = vmatpush1.msra.mxu0 0.0
    %96 = vmatprep.subr.mxu0 0.0
    %97 = vmatpush1.msra.mxu0 0.0
    %98 = vmatprep.subr.mxu0 0.0
    %99 = vmatpush1.msra.mxu0 0.0
    %100 = vmatprep.subr.mxu0 0.0
    %101 = vmatpush1.msra.mxu0 0.0
    %102 = vmatprep.subr.mxu0 0.0
    %103 = vmatpush1.msra.mxu0 0.0
    %104 = vmatprep.subr.mxu0 0.0
    %105 = vmatpush1.msra.mxu0 0.0
    %106 = vmatprep.subr.mxu0 0.0
    %107 = vmatpush1.msra.mxu0 0.0
    %108 = vmatprep.subr.mxu0 0.0
    %109 = vmatpush1.msra.mxu0 0.0
    %110 = vmatprep.subr.mxu0 0.0
    %111 = vmatpush1.msra.mxu0 0.0
    %112 = vmatprep.subr.mxu0 0.0
    %113 = vmatpush1.msra.mxu0 0.0
    %114 = vmatprep.subr.mxu0 0.0
    %115 = vmatpush1.msra.mxu0 0.0
    %116 = vmatprep.subr.mxu0 0.0
    %117 = vmatpush1.msra.mxu0 0.0
    %118 = vmatprep.subr.mxu0 0.0
    %119 = vmatpush1.msra.mxu0 0.0
    %120 = vmatprep.subr.mxu0 0.0
    %121 = vmatpush1.msra.mxu0 0.0
    %122 = vmatprep.subr.mxu0 0.0
    %123 = vmatpush1.msra.mxu0 0.0
    %124 = vmatprep.subr.mxu0 0.0
    %125 = vmatpush1.msra.mxu0 0.0
    %126 = vmatprep.subr.mxu0 0.0
    %127 = vmatpush1.msra.mxu0 0.0
    %128 = vmatprep.subr.mxu0 0.0
    %129 = vmatpush1.msra.mxu0 0.0
    %130 = vmatprep.subr.mxu0 0.0
    %131 = vmatpush1.msra.mxu0 0.0
    %132 = vmatprep.mubr.f32.mxu0 0.0
    %133 = vmatmul.mubr.f32.gmra.mrb[0].mxu0 %v66
    %v134 = vpop.f32.mrb[0].mxu0
    %v135 = vadd.f32 0.0, %v134
    %v136 = vpop.f32.mrb[0].mxu0
    %137 = vdwg.mxu0
    %v138 = vadd.f32 %v58, %v135
    %vm139 = vcmask 254976
    %140 = vst.msk [vmem:[#allocation2] sm:$0x3] %vm139, %v138
    // Predicated region
    $region30: #{mac_forward.19} parent=1 // pred_check
      %p141 = pneg %p52
    $region31: #{mac_forward.19} parent=1 // pred_check_branch
      %143 = sbr.rel (%p141) target = $region33
    $region32: #{mac_forward.19} parent=1 // pred_region
      %v144 = vld [vmem:[#allocation2] sm:$0x3]
      %v145 = vld [vmem:[#allocation8] sm:$0x1]
      %v147 = vlaneseq
      %v148 = vshrl.u32 %v147, 7
      %v149 = vsub.s32 0, %v148
      %v150 = vrot.slane %v145, %v149
      %v152 = vadd.f32 %v144, %v150
      %153 = vst.msk [vmem:[#allocation9] sm:$0x3] %vm139, %v152
    $region33: #{mac_forward.19} parent=1 // pred_fallthru
      _
    // Predicated region
    $region34: #{mac_forward.19} parent=1 // pred_check
      _
    $region35: #{mac_forward.19} parent=1 // pred_check_branch
      %155 = sbr.rel (0) target = $region37
    $region36: #{mac_forward.19} parent=1 // pred_region
      %s157 = ssub.s32 32, 32
      %158 = vsyncadd [#allocation5], %s157
      %s160 = sshll.u32 [#allocation9], 4
      %s161 = int_to_ptr.vmem [resolvable:$true] %s160
      %163 = dma.vmem_to_hbm [thread:$0]  %s161, 32, %s3, [#allocation5]
    $region37: #{mac_forward.19} parent=1 // pred_fallthru
      _
    // Predicated region
    $region38: #{mac_forward.19} parent=1 // pred_check
      _
    $region39: #{mac_forward.19} parent=1 // pred_check_branch
      %165 = sbr.rel (0) target = $region41
    $region40: #{mac_forward.19} parent=1 // pred_region
      %166 = dma.done [#allocation5], 32
    $region41: #{mac_forward.19} parent=1 // pred_fallthru
      _
    %167 = vsyncpa [#allocation4], 1
    %168 = vsyncpa [#allocation7], 1
    %169 = vsyncpa [#allocation5], 1

// kernel: mac_forward.20
$region0: #{mac_forward.20}
  #allocation0 [shape = 'u32[]', space=smem, size = 0x4, offset = 0x4, fixed_abs, tag = 'smem constant byte address 0x4 - core index']
  #allocation1 [shape = 'u32[144,128]{1,0:T(1,128)}', space=vmem, size = 0x12000, scoped, tag = 'internal scratch']
  #allocation2 [shape = 'f32[2,32]{1,0:T(2,128)}', space=vmem, size = 0x400, scoped, tag = 'scratch operand']
  %s0 = inlined_call_operand.hbm [shape: f32[2,64], index: 0, kind: input, shape index: {}]
  %s1 = inlined_call_operand.hbm [shape: f32[64,32], index: 1, kind: input, shape index: {}]
  %s2 = inlined_call_operand.hbm [shape: f32[1,32], index: 2, kind: input, shape index: {}]
  %s3 = inlined_call_operand.hbm [shape: f32[2,32], index: 3, kind: output, shape index: {}]
  %s4 = sld [smem:[#allocation0]]
  $region42: #{mac_forward.20} parent=0
    _
  %s6 = ssub.s32 1, %s4
  %s7 = scalar_select 0, %s6, %s4
  $region1: #{mac_forward.20} parent=0
    #allocation3 [shape = 'u8[1024]{0}', space=vmem, size = 0x400, scoped, tag = 'input window, operand 0, single buffered']
    #allocation4 [shape = 's32[1]{0}', space=sflag, size = 0x4, scoped, tag = 'scoped memory for mac_forward.20']
    #allocation5 [shape = 's32[1]{0}', space=sflag, size = 0x4, scoped, tag = 'scoped memory for mac_forward.20']
    #allocation6 [shape = 'u8[32768]{0}', space=vmem, size = 0x8000, scoped, tag = 'input window, operand 1, single buffered']
    #allocation7 [shape = 's32[1]{0}', space=sflag, size = 0x4, scoped, tag = 'scoped memory for mac_forward.20']
    #allocation8 [shape = 'u8[512]{0}', space=vmem, size = 0x400, scoped, tag = 'input window, operand 2, single buffered']
    #allocation9 [shape = 'u8[1024]{0}', space=vmem, size = 0x400, scoped, tag = 'output window, operand 0, single buffered']
    %8 = vsyncpa [#allocation4], 0
    %9 = vsyncpa [#allocation7], 0
    %10 = vsyncpa [#allocation5], 0
    // Predicated region
    $region2: #{mac_forward.20} parent=1 // pred_check
      _
    $region3: #{mac_forward.20} parent=1 // pred_check_branch
      %12 = sbr.rel (0) target = $region5
    $region4: #{mac_forward.20} parent=1 // pred_region
      %s14 = ssub.s32 32, 32
      %15 = vsyncadd [#allocation4], %s14
      %s17 = sshll.u32 [#allocation3], 4
      %s18 = int_to_ptr.vmem [resolvable:$true] %s17
      %20 = dma.hbm_to_vmem [thread:$0]  %s0, 32, %s18, [#allocation4]
    $region5: #{mac_forward.20} parent=1 // pred_fallthru
      _
    // Predicated region
    $region6: #{mac_forward.20} parent=1 // pred_check
      _
    $region7: #{mac_forward.20} parent=1 // pred_check_branch
      %22 = sbr.rel (0) target = $region9
    $region8: #{mac_forward.20} parent=1 // pred_region
      %s24 = ssub.s32 1024, 1024
      %25 = vsyncadd [#allocation7], %s24
      %s26 = sshll.u32 [#allocation6], 4
      %s27 = int_to_ptr.vmem [resolvable:$true] %s26
      %32 = dma.hbm_to_vmem [thread:$0]  %s1, 1024, %s27, [#allocation7], 128, 128, 8
    $region9: #{mac_forward.20} parent=1 // pred_fallthru
      _
    // Predicated region
    $region10: #{mac_forward.20} parent=1 // pred_check
      _
    $region11: #{mac_forward.20} parent=1 // pred_check_branch
      %34 = sbr.rel (0) target = $region13
    $region12: #{mac_forward.20} parent=1 // pred_region
      %s36 = ssub.s32 16, 16
      %37 = vsyncadd [#allocation7], %s36
      %s39 = sshll.u32 [#allocation8], 4
      %s40 = int_to_ptr.vmem [resolvable:$true] %s39
      %42 = dma.hbm_to_vmem [thread:$0]  %s2, 16, %s40, [#allocation7]
    $region13: #{mac_forward.20} parent=1 // pred_fallthru
      _
    // Predicated region
    $region14: #{mac_forward.20} parent=1 // pred_check
      _
    $region15: #{mac_forward.20} parent=1 // pred_check_branch
      %44 = sbr.rel (0) target = $region17
    $region16: #{mac_forward.20} parent=1 // pred_region
      %45 = dma.done [#allocation4], 32
    $region17: #{mac_forward.20} parent=1 // pred_fallthru
      _
    // Predicated region
    $region18: #{mac_forward.20} parent=1 // pred_check
      _
    $region19: #{mac_forward.20} parent=1 // pred_check_branch
      %47 = sbr.rel (0) target = $region21
    $region20: #{mac_forward.20} parent=1 // pred_region
      %48 = dma.done [#allocation7], 1024
    $region21: #{mac_forward.20} parent=1 // pred_fallthru
      _
    // Predicated region
    $region22: #{mac_forward.20} parent=1 // pred_check
      _
    $region23: #{mac_forward.20} parent=1 // pred_check_branch
      %50 = sbr.rel (0) target = $region25
    $region24: #{mac_forward.20} parent=1 // pred_region
      %51 = dma.done [#allocation7], 16
    $region25: #{mac_forward.20} parent=1 // pred_fallthru
      _
    %p52 = scmp.eq.s32.totalorder 0, 0
    // Predicated region
    $region26: #{mac_forward.20} parent=1 // pred_check
      %p53 = pneg %p52
    $region27: #{mac_forward.20} parent=1 // pred_check_branch
      %55 = sbr.rel (%p53) target = $region29
    $region28: #{mac_forward.20} parent=1 // pred_region
      %vm56 = vcmask 254976
      %57 = vst.msk [vmem:[#allocation2] sm:$0x3] %vm56, 0.0
    $region29: #{mac_forward.20} parent=1 // pred_fallthru
      _
    %v58 = vld [vmem:[#allocation2] sm:$0x3]
    %v59 = vld [vmem:[#allocation3] sm:$0x3]
    %v60 = vld [vmem:[#allocation6] sm:$0xff]
    %v61 = vld [vmem:[#allocation6 + $0x8] sm:$0xff]
    %v62 = vld [vmem:[#allocation6 + $0x10] sm:$0xff]
    %v63 = vld [vmem:[#allocation6 + $0x18] sm:$0xff]
    %v64 = vld [vmem:[#allocation6 + $0x20] sm:$0xff]
    %v65 = vld [vmem:[#allocation6 + $0x28] sm:$0xff]
    %v66 = vld [vmem:[#allocation6 + $0x30] sm:$0xff]
    %v67 = vld [vmem:[#allocation6 + $0x38] sm:$0xff]
    %vm68 = vcmask 523264
    %v70 = vsel %vm68, %v59, 0
    %72 = vmatprep.subr.mxu0 0.0
    %73 = vmatpush1.msra.mxu0 %v60
    %74 = vmatprep.subr.mxu0 0.0
    %75 = vmatpush1.msra.mxu0 %v61
    %76 = vmatprep.subr.mxu0 0.0
    %77 = vmatpush1.msra.mxu0 %v62
    %78 = vmatprep.subr.mxu0 0.0
    %79 = vmatpush1.msra.mxu0 %v63
    %80 = vmatprep.subr.mxu0 0.0
    %81 = vmatpush1.msra.mxu0 %v64
    %82 = vmatprep.subr.mxu0 0.0
    %83 = vmatpush1.msra.mxu0 %v65
    %84 = vmatprep.subr.mxu0 0.0
    %85 = vmatpush1.msra.mxu0 %v66
    %86 = vmatprep.subr.mxu0 0.0
    %87 = vmatpush1.msra.mxu0 %v67
    %88 = vmatprep.subr.mxu0 0.0
    %89 = vmatpush1.msra.mxu0 0.0
    %90 = vmatprep.subr.mxu0 0.0
    %91 = vmatpush1.msra.mxu0 0.0
    %92 = vmatprep.subr.mxu0 0.0
    %93 = vmatpush1.msra.mxu0 0.0
    %94 = vmatprep.subr.mxu0 0.0
    %95 = vmatpush1.msra.mxu0 0.0
    %96 = vmatprep.subr.mxu0 0.0
    %97 = vmatpush1.msra.mxu0 0.0
    %98 = vmatprep.subr.mxu0 0.0
    %99 = vmatpush1.msra.mxu0 0.0
    %100 = vmatprep.subr.mxu0 0.0
    %101 = vmatpush1.msra.mxu0 0.0
    %102 = vmatprep.subr.mxu0 0.0
    %103 = vmatpush1.msra.mxu0 0.0
    %104 = vmatprep.subr.mxu0 0.0
    %105 = vmatpush1.msra.mxu0 0.0
    %106 = vmatprep.subr.mxu0 0.0
    %107 = vmatpush1.msra.mxu0 0.0
    %108 = vmatprep.subr.mxu0 0.0
    %109 = vmatpush1.msra.mxu0 0.0
    %110 = vmatprep.subr.mxu0 0.0
    %111 = vmatpush1.msra.mxu0 0.0
    %112 = vmatprep.subr.mxu0 0.0
    %113 = vmatpush1.msra.mxu0 0.0
    %114 = vmatprep.subr.mxu0 0.0
    %115 = vmatpush1.msra.mxu0 0.0
    %116 = vmatprep.subr.mxu0 0.0
    %117 = vmatpush1.msra.mxu0 0.0
    %118 = vmatprep.subr.mxu0 0.0
    %119 = vmatpush1.msra.mxu0 0.0
    %120 = vmatprep.subr.mxu0 0.0
    %121 = vmatpush1.msra.mxu0 0.0
    %122 = vmatprep.subr.mxu0 0.0
    %123 = vmatpush1.msra.mxu0 0.0
    %124 = vmatprep.subr.mxu0 0.0
    %125 = vmatpush1.msra.mxu0 0.0
    %126 = vmatprep.subr.mxu0 0.0
    %127 = vmatpush1.msra.mxu0 0.0
    %128 = vmatprep.subr.mxu0 0.0
    %129 = vmatpush1.msra.mxu0 0.0
    %130 = vmatprep.subr.mxu0 0.0
    %131 = vmatpush1.msra.mxu0 0.0
    %132 = vmatprep.subr.mxu0 0.0
    %133 = vmatpush1.msra.mxu0 0.0
    %134 = vmatprep.subr.mxu0 0.0
    %135 = vmatpush1.msra.mxu0 0.0
    %136 = vmatprep.mubr.f32.mxu0 0.0
    %137 = vmatmul.mubr.f32.gmra.mrb[0].mxu0 %v70
    %v138 = vpop.f32.mrb[0].mxu0
    %v139 = vadd.f32 0.0, %v138
    %v140 = vpop.f32.mrb[0].mxu0
    %141 = vdwg.mxu0
    %v142 = vadd.f32 %v58, %v139
    %vm143 = vcmask 254976
    %144 = vst.msk [vmem:[#allocation2] sm:$0x3] %vm143, %v142
    // Predicated region
    $region30: #{mac_forward.20} parent=1 // pred_check
      %p145 = pneg %p52
    $region31: #{mac_forward.20} parent=1 // pred_check_branch
      %147 = sbr.rel (%p145) target = $region33
    $region32: #{mac_forward.20} parent=1 // pred_region
      %v148 = vld [vmem:[#allocation2] sm:$0x3]
      %v149 = vld [vmem:[#allocation8] sm:$0x1]
      %v151 = vlaneseq
      %v152 = vshrl.u32 %v151, 7
      %v153 = vsub.s32 0, %v152
      %v154 = vrot.slane %v149, %v153
      %v156 = vadd.f32 %v148, %v154
      %vm157 = vcmp.gt.f32.partialorder %v156, 0.0
      %v158 = vmin.f32 %v156, 0.0
      %v159 = vmul.f32 %v158, 1.442695
      %v160 = vpow.pop %v159
      %v161 = vsub.f32 %v160, 1.0
      %v162 = vsel %vm157, %v156, %v161
      %163 = vst.msk [vmem:[#allocation9] sm:$0x3] %vm143, %v162
    $region33: #{mac_forward.20} parent=1 // pred_fallthru
      _
    // Predicated region
    $region34: #{mac_forward.20} parent=1 // pred_check
      _
    $region35: #{mac_forward.20} parent=1 // pred_check_branch
      %165 = sbr.rel (0) target = $region37
    $region36: #{mac_forward.20} parent=1 // pred_region
      %s167 = ssub.s32 32, 32
      %168 = vsyncadd [#allocation5], %s167
      %s170 = sshll.u32 [#allocation9], 4
      %s171 = int_to_ptr.vmem [resolvable:$true] %s170
      %173 = dma.vmem_to_hbm [thread:$0]  %s171, 32, %s3, [#allocation5]
    $region37: #{mac_forward.20} parent=1 // pred_fallthru
      _
    // Predicated region
    $region38: #{mac_forward.20} parent=1 // pred_check
      _
    $region39: #{mac_forward.20} parent=1 // pred_check_branch
      %175 = sbr.rel (0) target = $region41
    $region40: #{mac_forward.20} parent=1 // pred_region
      %176 = dma.done [#allocation5], 32
    $region41: #{mac_forward.20} parent=1 // pred_fallthru
      _
    %177 = vsyncpa [#allocation4], 1
    %178 = vsyncpa [#allocation7], 1
    %179 = vsyncpa [#allocation5], 1

// kernel: mac_forward.21
$region0: #{mac_forward.21}
  #allocation0 [shape = 'u32[]', space=smem, size = 0x4, offset = 0x4, fixed_abs, tag = 'smem constant byte address 0x4 - core index']
  #allocation1 [shape = 'u32[144,128]{1,0:T(1,128)}', space=vmem, size = 0x12000, scoped, tag = 'internal scratch']
  #allocation2 [shape = 'f32[2,8]{1,0:T(2,128)}', space=vmem, size = 0x400, scoped, tag = 'scratch operand']
  %s0 = inlined_call_operand.hbm [shape: f32[2,32], index: 0, kind: input, shape index: {}]
  %s1 = inlined_call_operand.hbm [shape: f32[32,8], index: 1, kind: input, shape index: {}]
  %s2 = inlined_call_operand.hbm [shape: f32[1,8], index: 2, kind: input, shape index: {}]
  %s3 = inlined_call_operand.hbm [shape: f32[2,8], index: 3, kind: output, shape index: {}]
  %s4 = sld [smem:[#allocation0]]
  $region42: #{mac_forward.21} parent=0
    _
  %s6 = ssub.s32 1, %s4
  %s7 = scalar_select 0, %s6, %s4
  $region1: #{mac_forward.21} parent=0
    #allocation3 [shape = 'u8[1024]{0}', space=vmem, size = 0x400, scoped, tag = 'input window, operand 0, single buffered']
    #allocation4 [shape = 's32[1]{0}', space=sflag, size = 0x4, scoped, tag = 'scoped memory for mac_forward.21']
    #allocation5 [shape = 's32[1]{0}', space=sflag, size = 0x4, scoped, tag = 'scoped memory for mac_forward.21']
    #allocation6 [shape = 'u8[16384]{0}', space=vmem, size = 0x4000, scoped, tag = 'input window, operand 1, single buffered']
    #allocation7 [shape = 's32[1]{0}', space=sflag, size = 0x4, scoped, tag = 'scoped memory for mac_forward.21']
    #allocation8 [shape = 'u8[512]{0}', space=vmem, size = 0x400, scoped, tag = 'input window, operand 2, single buffered']
    #allocation9 [shape = 'u8[1024]{0}', space=vmem, size = 0x400, scoped, tag = 'output window, operand 0, single buffered']
    %8 = vsyncpa [#allocation4], 0
    %9 = vsyncpa [#allocation7], 0
    %10 = vsyncpa [#allocation5], 0
    // Predicated region
    $region2: #{mac_forward.21} parent=1 // pred_check
      _
    $region3: #{mac_forward.21} parent=1 // pred_check_branch
      %12 = sbr.rel (0) target = $region5
    $region4: #{mac_forward.21} parent=1 // pred_region
      %s14 = ssub.s32 32, 32
      %15 = vsyncadd [#allocation4], %s14
      %s17 = sshll.u32 [#allocation3], 4
      %s18 = int_to_ptr.vmem [resolvable:$true] %s17
      %20 = dma.hbm_to_vmem [thread:$0]  %s0, 32, %s18, [#allocation4]
    $region5: #{mac_forward.21} parent=1 // pred_fallthru
      _
    // Predicated region
    $region6: #{mac_forward.21} parent=1 // pred_check
      _
    $region7: #{mac_forward.21} parent=1 // pred_check_branch
      %22 = sbr.rel (0) target = $region9
    $region8: #{mac_forward.21} parent=1 // pred_region
      %s24 = ssub.s32 512, 512
      %25 = vsyncadd [#allocation7], %s24
      %s26 = sshll.u32 [#allocation6], 4
      %s27 = int_to_ptr.vmem [resolvable:$true] %s26
      %32 = dma.hbm_to_vmem [thread:$0]  %s1, 512, %s27, [#allocation7], 128, 128, 8
    $region9: #{mac_forward.21} parent=1 // pred_fallthru
      _
    // Predicated region
    $region10: #{mac_forward.21} parent=1 // pred_check
      _
    $region11: #{mac_forward.21} parent=1 // pred_check_branch
      %34 = sbr.rel (0) target = $region13
    $region12: #{mac_forward.21} parent=1 // pred_region
      %s36 = ssub.s32 16, 16
      %37 = vsyncadd [#allocation7], %s36
      %s39 = sshll.u32 [#allocation8], 4
      %s40 = int_to_ptr.vmem [resolvable:$true] %s39
      %42 = dma.hbm_to_vmem [thread:$0]  %s2, 16, %s40, [#allocation7]
    $region13: #{mac_forward.21} parent=1 // pred_fallthru
      _
    // Predicated region
    $region14: #{mac_forward.21} parent=1 // pred_check
      _
    $region15: #{mac_forward.21} parent=1 // pred_check_branch
      %44 = sbr.rel (0) target = $region17
    $region16: #{mac_forward.21} parent=1 // pred_region
      %45 = dma.done [#allocation4], 32
    $region17: #{mac_forward.21} parent=1 // pred_fallthru
      _
    // Predicated region
    $region18: #{mac_forward.21} parent=1 // pred_check
      _
    $region19: #{mac_forward.21} parent=1 // pred_check_branch
      %47 = sbr.rel (0) target = $region21
    $region20: #{mac_forward.21} parent=1 // pred_region
      %48 = dma.done [#allocation7], 512
    $region21: #{mac_forward.21} parent=1 // pred_fallthru
      _
    // Predicated region
    $region22: #{mac_forward.21} parent=1 // pred_check
      _
    $region23: #{mac_forward.21} parent=1 // pred_check_branch
      %50 = sbr.rel (0) target = $region25
    $region24: #{mac_forward.21} parent=1 // pred_region
      %51 = dma.done [#allocation7], 16
    $region25: #{mac_forward.21} parent=1 // pred_fallthru
      _
    %p52 = scmp.eq.s32.totalorder 0, 0
    // Predicated region
    $region26: #{mac_forward.21} parent=1 // pred_check
      %p53 = pneg %p52
    $region27: #{mac_forward.21} parent=1 // pred_check_branch
      %55 = sbr.rel (%p53) target = $region29
    $region28: #{mac_forward.21} parent=1 // pred_region
      %vm56 = vcmask 58368
      %57 = vst.msk [vmem:[#allocation2] sm:$0x3] %vm56, 0.0
    $region29: #{mac_forward.21} parent=1 // pred_fallthru
      _
    %v58 = vld [vmem:[#allocation2] sm:$0x3]
    %v59 = vld [vmem:[#allocation3] sm:$0x3]
    %v60 = vld [vmem:[#allocation6] sm:$0xff]
    %v61 = vld [vmem:[#allocation6 + $0x8] sm:$0xff]
    %v62 = vld [vmem:[#allocation6 + $0x10] sm:$0xff]
    %v63 = vld [vmem:[#allocation6 + $0x18] sm:$0xff]
    %vm64 = vcmask 261120
    %v66 = vsel %vm64, %v59, 0
    %68 = vmatprep.subr.mxu0 0.0
    %69 = vmatpush1.msra.mxu0 %v60
    %70 = vmatprep.subr.mxu0 0.0
    %71 = vmatpush1.msra.mxu0 %v61
    %72 = vmatprep.subr.mxu0 0.0
    %73 = vmatpush1.msra.mxu0 %v62
    %74 = vmatprep.subr.mxu0 0.0
    %75 = vmatpush1.msra.mxu0 %v63
    %76 = vmatprep.subr.mxu0 0.0
    %77 = vmatpush1.msra.mxu0 0.0
    %78 = vmatprep.subr.mxu0 0.0
    %79 = vmatpush1.msra.mxu0 0.0
    %80 = vmatprep.subr.mxu0 0.0
    %81 = vmatpush1.msra.mxu0 0.0
    %82 = vmatprep.subr.mxu0 0.0
    %83 = vmatpush1.msra.mxu0 0.0
    %84 = vmatprep.subr.mxu0 0.0
    %85 = vmatpush1.msra.mxu0 0.0
    %86 = vmatprep.subr.mxu0 0.0
    %87 = vmatpush1.msra.mxu0 0.0
    %88 = vmatprep.subr.mxu0 0.0
    %89 = vmatpush1.msra.mxu0 0.0
    %90 = vmatprep.subr.mxu0 0.0
    %91 = vmatpush1.msra.mxu0 0.0
    %92 = vmatprep.subr.mxu0 0.0
    %93 = vmatpush1.msra.mxu0 0.0
    %94 = vmatprep.subr.mxu0 0.0
    %95 = vmatpush1.msra.mxu0 0.0
    %96 = vmatprep.subr.mxu0 0.0
    %97 = vmatpush1.msra.mxu0 0.0
    %98 = vmatprep.subr.mxu0 0.0
    %99 = vmatpush1.msra.mxu0 0.0
    %100 = vmatprep.subr.mxu0 0.0
    %101 = vmatpush1.msra.mxu0 0.0
    %102 = vmatprep.subr.mxu0 0.0
    %103 = vmatpush1.msra.mxu0 0.0
    %104 = vmatprep.subr.mxu0 0.0
    %105 = vmatpush1.msra.mxu0 0.0
    %106 = vmatprep.subr.mxu0 0.0
    %107 = vmatpush1.msra.mxu0 0.0
    %108 = vmatprep.subr.mxu0 0.0
    %109 = vmatpush1.msra.mxu0 0.0
    %110 = vmatprep.subr.mxu0 0.0
    %111 = vmatpush1.msra.mxu0 0.0
    %112 = vmatprep.subr.mxu0 0.0
    %113 = vmatpush1.msra.mxu0 0.0
    %114 = vmatprep.subr.mxu0 0.0
    %115 = vmatpush1.msra.mxu0 0.0
    %116 = vmatprep.subr.mxu0 0.0
    %117 = vmatpush1.msra.mxu0 0.0
    %118 = vmatprep.subr.mxu0 0.0
    %119 = vmatpush1.msra.mxu0 0.0
    %120 = vmatprep.subr.mxu0 0.0
    %121 = vmatpush1.msra.mxu0 0.0
    %122 = vmatprep.subr.mxu0 0.0
    %123 = vmatpush1.msra.mxu0 0.0
    %124 = vmatprep.subr.mxu0 0.0
    %125 = vmatpush1.msra.mxu0 0.0
    %126 = vmatprep.subr.mxu0 0.0
    %127 = vmatpush1.msra.mxu0 0.0
    %128 = vmatprep.subr.mxu0 0.0
    %129 = vmatpush1.msra.mxu0 0.0
    %130 = vmatprep.subr.mxu0 0.0
    %131 = vmatpush1.msra.mxu0 0.0
    %132 = vmatprep.mubr.f32.mxu0 0.0
    %133 = vmatmul.mubr.f32.gmra.mrb[0].mxu0 %v66
    %v134 = vpop.f32.mrb[0].mxu0
    %v135 = vadd.f32 0.0, %v134
    %v136 = vpop.f32.mrb[0].mxu0
    %137 = vdwg.mxu0
    %v138 = vadd.f32 %v58, %v135
    %vm139 = vcmask 58368
    %140 = vst.msk [vmem:[#allocation2] sm:$0x3] %vm139, %v138
    // Predicated region
    $region30: #{mac_forward.21} parent=1 // pred_check
      %p141 = pneg %p52
    $region31: #{mac_forward.21} parent=1 // pred_check_branch
      %143 = sbr.rel (%p141) target = $region33
    $region32: #{mac_forward.21} parent=1 // pred_region
      %v144 = vld [vmem:[#allocation2] sm:$0x3]
      %v145 = vld [vmem:[#allocation8] sm:$0x1]
      %v147 = vlaneseq
      %v148 = vshrl.u32 %v147, 7
      %v149 = vsub.s32 0, %v148
      %v150 = vrot.slane %v145, %v149
      %v152 = vadd.f32 %v144, %v150
      %153 = vst.msk [vmem:[#allocation9] sm:$0x3] %vm139, %v152
    $region33: #{mac_forward.21} parent=1 // pred_fallthru
      _
    // Predicated region
    $region34: #{mac_forward.21} parent=1 // pred_check
      _
    $region35: #{mac_forward.21} parent=1 // pred_check_branch
      %155 = sbr.rel (0) target = $region37
    $region36: #{mac_forward.21} parent=1 // pred_region
      %s157 = ssub.s32 32, 32
      %158 = vsyncadd [#allocation5], %s157
      %s160 = sshll.u32 [#allocation9], 4
      %s161 = int_to_ptr.vmem [resolvable:$true] %s160
      %163 = dma.vmem_to_hbm [thread:$0]  %s161, 32, %s3, [#allocation5]
    $region37: #{mac_forward.21} parent=1 // pred_fallthru
      _
    // Predicated region
    $region38: #{mac_forward.21} parent=1 // pred_check
      _
    $region39: #{mac_forward.21} parent=1 // pred_check_branch
      %165 = sbr.rel (0) target = $region41
    $region40: #{mac_forward.21} parent=1 // pred_region
      %166 = dma.done [#allocation5], 32
    $region41: #{mac_forward.21} parent=1 // pred_fallthru
      _
    %167 = vsyncpa [#allocation4], 1
    %168 = vsyncpa [#allocation7], 1
    %169 = vsyncpa [#allocation5], 1

// kernel: mac_forward.18
$region0: #{mac_forward.18}
  #allocation0 [shape = 'u32[]', space=smem, size = 0x4, offset = 0x4, fixed_abs, tag = 'smem constant byte address 0x4 - core index']
  #allocation1 [shape = 'u32[144,128]{1,0:T(1,128)}', space=vmem, size = 0x12000, scoped, tag = 'internal scratch']
  #allocation2 [shape = 'f32[2,32]{1,0:T(2,128)}', space=vmem, size = 0x400, scoped, tag = 'scratch operand']
  %s0 = inlined_call_operand.hbm [shape: f32[2,32], index: 0, kind: input, shape index: {}]
  %s1 = inlined_call_operand.hbm [shape: f32[2,8,32], index: 1, kind: input, shape index: {}]
  %s2 = inlined_call_operand.hbm [shape: f32[2,8,1], index: 2, kind: input, shape index: {}]
  %s3 = inlined_call_operand.hbm [shape: f32[2,64,32], index: 3, kind: input, shape index: {}]
  %s4 = inlined_call_operand.hbm [shape: f32[2,64,32], index: 4, kind: input, shape index: {}]
  %s5 = inlined_call_operand.hbm [shape: f32[1,32], index: 5, kind: input, shape index: {}]
  %s6 = inlined_call_operand.hbm [shape: f32[3,32,32], index: 6, kind: input, shape index: {}]
  %s7 = inlined_call_operand.hbm [shape: f32[3,1,32], index: 7, kind: input, shape index: {}]
  %s8 = inlined_call_operand.hbm [shape: f32[1,32], index: 8, kind: input, shape index: {}]
  %s9 = inlined_call_operand.hbm [shape: f32[32,32], index: 9, kind: input, shape index: {}]
  %s10 = inlined_call_operand.hbm [shape: f32[1,32], index: 10, kind: input, shape index: {}]
  %s11 = inlined_call_operand.hbm [shape: f32[32,32], index: 11, kind: input, shape index: {}]
  %s12 = inlined_call_operand.hbm [shape: f32[32,32], index: 12, kind: input, shape index: {}]
  %s13 = inlined_call_operand.hbm [shape: f32[1,32], index: 13, kind: input, shape index: {}]
  %s14 = inlined_call_operand.hbm [shape: f32[1,32], index: 14, kind: input, shape index: {}]
  %s15 = inlined_call_operand.hbm [shape: f32[32,32], index: 15, kind: input, shape index: {}]
  %s16 = inlined_call_operand.hbm [shape: f32[32,32], index: 16, kind: input, shape index: {}]
  %s17 = inlined_call_operand.hbm [shape: f32[1,32], index: 17, kind: input, shape index: {}]
  %s18 = inlined_call_operand.hbm [shape: f32[2,32], index: 18, kind: output, shape index: {}]
  %s19 = sld [smem:[#allocation0]]
  $region185: #{mac_forward.18} parent=0
    _
  %s21 = ssub.s32 1, %s19
  %s22 = scalar_select 0, %s21, %s19
  $region1: #{mac_forward.18} parent=0
    #allocation3 [shape = 'u8[1024]{0}', space=vmem, size = 0x400, scoped, tag = 'input window, operand 0, single buffered']
    #allocation4 [shape = 's32[2]{0}', space=sflag, size = 0x8, scoped, tag = 'scoped memory for mac_forward.18']
    #allocation5 [shape = 's32[2]{0}', space=sflag, size = 0x8, scoped, tag = 'scoped memory for mac_forward.18']
    #allocation6 [shape = 'u8[8192]{0}', space=vmem, size = 0x2000, scoped, tag = 'input window, operand 1, single buffered']
    #allocation7 [shape = 's32[1]{0}', space=sflag, size = 0x4, scoped, tag = 'scoped memory for mac_forward.18']
    #allocation8 [shape = 'u8[8192]{0}', space=vmem, size = 0x2000, scoped, tag = 'input window, operand 2, single buffered']
    #allocation9 [shape = 'u8[65536]{0}', space=vmem, size = 0x10000, scoped, tag = 'input window, operand 3, single buffered']
    #allocation10 [shape = 's32[1]{0}', space=sflag, size = 0x4, scoped, tag = 'scoped memory for mac_forward.18']
    #allocation11 [shape = 'u8[65536]{0}', space=vmem, size = 0x10000, scoped, tag = 'input window, operand 4, single buffered']
    #allocation12 [shape = 'u8[512]{0}', space=vmem, size = 0x400, scoped, tag = 'input window, operand 5, single buffered']
    #allocation13 [shape = 's32[1]{0}', space=sflag, size = 0x4, scoped, tag = 'scoped memory for mac_forward.18']
    #allocation14 [shape = 'u8[32768]{0}', space=vmem, size = 0x8000, scoped, tag = 'input window, operand 6']
    #allocation15 [shape = 'u8[1024]{0}', space=vmem, size = 0x400, scoped, tag = 'input window, operand 7']
    #allocation16 [shape = 'u8[512]{0}', space=vmem, size = 0x400, scoped, tag = 'input window, operand 8, single buffered']
    #allocation17 [shape = 'u8[16384]{0}', space=vmem, size = 0x4000, scoped, tag = 'input window, operand 9, single buffered']
    #allocation18 [shape = 'u8[512]{0}', space=vmem, size = 0x400, scoped, tag = 'input window, operand 10, single buffered']
    #allocation19 [shape = 'u8[16384]{0}', space=vmem, size = 0x4000, scoped, tag = 'input window, operand 11, single buffered']
    #allocation20 [shape = 's32[1]{0}', space=sflag, size = 0x4, scoped, tag = 'scoped memory for mac_forward.18']
    #allocation21 [shape = 'u8[16384]{0}', space=vmem, size = 0x4000, scoped, tag = 'input window, operand 12, single buffered']
    #allocation22 [shape = 'u8[512]{0}', space=vmem, size = 0x400, scoped, tag = 'input window, operand 13, single buffered']
    #allocation23 [shape = 's32[1]{0}', space=sflag, size = 0x4, scoped, tag = 'scoped memory for mac_forward.18']
    #allocation24 [shape = 'u8[512]{0}', space=vmem, size = 0x400, scoped, tag = 'input window, operand 14, single buffered']
    #allocation25 [shape = 'u8[16384]{0}', space=vmem, size = 0x4000, scoped, tag = 'input window, operand 15, single buffered']
    #allocation26 [shape = 's32[1]{0}', space=sflag, size = 0x4, scoped, tag = 'scoped memory for mac_forward.18']
    #allocation27 [shape = 'u8[16384]{0}', space=vmem, size = 0x4000, scoped, tag = 'input window, operand 16, single buffered']
    #allocation28 [shape = 'u8[512]{0}', space=vmem, size = 0x400, scoped, tag = 'input window, operand 17, single buffered']
    #allocation29 [shape = 's32[1]{0}', space=sflag, size = 0x4, scoped, tag = 'scoped memory for mac_forward.18']
    #allocation30 [shape = 'u8[1024]{0}', space=vmem, size = 0x400, scoped, tag = 'output window, operand 0, single buffered']
    %23 = vsyncpa [#allocation4], 0
    %24 = vsyncpa [#allocation7], 0
    %25 = vsyncpa [#allocation10], 0
    %26 = vsyncpa [#allocation13], 0
    %27 = vsyncpa [#allocation20], 0
    %28 = vsyncpa [#allocation23], 0
    %29 = vsyncpa [#allocation26], 0
    %30 = vsyncpa [#allocation29], 0
    %31 = vsyncpa [#allocation5], 0
    loop: start=0, step=1, limit=5
    $region2: #{mac_forward.18} parent=1 // loop_pre_header
      _
    $region3: #{mac_forward.18} parent=1 // loop_header
      %s33 = sphi 0, %s37
      %p34 = scmp.ge.s32.totalorder %s33, 5
      %s40 = sphi 0, %s52
      %s41 = sphi 0, %s48
      %s42 = sphi 0, %s40
      %s43 = sphi 0, %s41
      %s44 = sphi 0, %s42
      %s45 = sphi 0, %s43
      %s55 = sphi 0, %s57
      %s58 = sphi 0, %s55
      %s59 = sphi 0, %s58
      %s75 = sphi 0, %s59
      %s81 = sphi 0, %s83
      %s84 = sphi 0, %s81
      %s85 = sphi 0, %s84
      %s101 = sphi 0, %s85
      %s107 = sphi 0, %s109
      %s110 = sphi 0, %s107
      %s111 = sphi 0, %s110
      %s127 = sphi 0, %s111
      %s133 = sphi 0, %s135
      %s136 = sphi 0, %s133
      %s137 = sphi 0, %s136
      %s153 = sphi 0, %s137
      %s159 = sphi 0, %s161
      %s162 = sphi 0, %s159
      %s163 = sphi 0, %s162
      %s179 = sphi 0, %s163
      %s183 = sphi 0, %s183
      %s185 = sphi 0, %s183
      %s186 = sphi 0, %s185
      %s200 = sphi 0, %s186
      %s206 = sphi 0, %s208
      %s209 = sphi 0, %s206
      %s210 = sphi 0, %s209
      %s226 = sphi 0, %s210
      %s232 = sphi 0, %s234
      %s235 = sphi 0, %s232
      %s236 = sphi 0, %s235
      %s252 = sphi 0, %s236
      %s256 = sphi 0, %s256
      %s258 = sphi 0, %s256
      %s259 = sphi 0, %s258
      %s273 = sphi 0, %s259
      %s277 = sphi 0, %s277
      %s279 = sphi 0, %s277
      %s280 = sphi 0, %s279
      %s294 = sphi 0, %s280
      %s298 = sphi 0, %s298
      %s300 = sphi 0, %s298
      %s301 = sphi 0, %s300
      %s315 = sphi 0, %s301
      %s319 = sphi 0, %s319
      %s321 = sphi 0, %s319
      %s322 = sphi 0, %s321
      %s336 = sphi 0, %s322
      %s340 = sphi 0, %s340
      %s342 = sphi 0, %s340
      %s343 = sphi 0, %s342
      %s357 = sphi 0, %s343
      %s361 = sphi 0, %s361
      %s363 = sphi 0, %s361
      %s364 = sphi 0, %s363
      %s378 = sphi 0, %s364
      %s382 = sphi 0, %s382
      %s384 = sphi 0, %s382
      %s385 = sphi 0, %s384
      %s399 = sphi 0, %s385
      %s403 = sphi 0, %s403
      %s405 = sphi 0, %s403
      %s406 = sphi 0, %s405
      %s420 = sphi 0, %s406
      %s424 = sphi 0, %s424
      %s426 = sphi 0, %s424
      %s427 = sphi 0, %s426
      %s441 = sphi 0, %s427
      %s445 = sphi 0, %s445
      %s447 = sphi 0, %s445
      %s448 = sphi 0, %s447
      %s462 = sphi 0, %s448
      %s468 = sphi 0, %s470
      %s471 = sphi 0, %s468
      %s472 = sphi 0, %s471
      %s488 = sphi 0, %s472
    $region4: #{mac_forward.18} parent=1 // loop_header_branch
      %36 = sbr.rel (%p34) target = $region8
    $region5: #{mac_forward.18} parent=1 // loop_body
      %s38 = ssub.s32 %s33, 1
      %s39 = ssub.s32 %s33, 2
      %s46 = sadd.s32 1, %s41
      %p47 = scmp.ge.s32.totalorder %s46, 3
      %s48 = scalar_select %p47, 0, %s46
      %s49 = sadd.s32 1, %s40
      %s50 = scalar_select %p47, %s49, %s40
      %p51 = scmp.ge.s32.totalorder %s50, 1
      %s52 = scalar_select %p51, 0, %s50
      %s53 = ssub.s32 %s40, %s52
      %p54 = scmp.eq.s32.totalorder %s53, 0
      %s56 = sadd.s32 %s55, 1
      %s57 = scalar_select %p54, %s55, %s56
      %p60 = pneg %p54
      %p61 = scmp.eq.s32.totalorder %s33, 2
      %p62 = por %p60, %p61
      %p63 = scmp.ne.s32.totalorder %s55, %s58
      %p64 = scmp.eq.s32.totalorder %s33, 0
      %p65 = por %p63, %p64
      %p66 = scmp.ne.s32.totalorder %s55, %s58
      %p67 = scmp.eq.s32.totalorder %s38, 2
      %p68 = por %p66, %p67
      %p69 = scmp.ne.s32.totalorder %s58, %s59
      %p70 = scmp.eq.s32.totalorder %s38, 0
      %p71 = por %p69, %p70
      %p72 = scmp.ne.s32.totalorder %s58, %s59
      %p73 = scmp.eq.s32.totalorder %s39, 2
      %p74 = por %p72, %p73
      %p76 = scmp.ne.s32.totalorder %s59, %s75
      %p77 = scmp.eq.s32.totalorder %s39, 0
      %p78 = por %p76, %p77
      %s79 = ssub.s32 %s40, %s52
      %p80 = scmp.eq.s32.totalorder %s79, 0
      %s82 = sadd.s32 %s81, 1
      %s83 = scalar_select %p80, %s81, %s82
      %p86 = pneg %p80
      %p87 = scmp.eq.s32.totalorder %s33, 2
      %p88 = por %p86, %p87
      %p89 = scmp.ne.s32.totalorder %s81, %s84
      %p90 = scmp.eq.s32.totalorder %s33, 0
      %p91 = por %p89, %p90
      %p92 = scmp.ne.s32.totalorder %s81, %s84
      %p93 = scmp.eq.s32.totalorder %s38, 2
      %p94 = por %p92, %p93
      %p95 = scmp.ne.s32.totalorder %s84, %s85
      %p96 = scmp.eq.s32.totalorder %s38, 0
      %p97 = por %p95, %p96
      %p98 = scmp.ne.s32.totalorder %s84, %s85
      %p99 = scmp.eq.s32.totalorder %s39, 2
      %p100 = por %p98, %p99
      %p102 = scmp.ne.s32.totalorder %s85, %s101
      %p103 = scmp.eq.s32.totalorder %s39, 0
      %p104 = por %p102, %p103
      %s105 = ssub.s32 %s40, %s52
      %p106 = scmp.eq.s32.totalorder %s105, 0
      %s108 = sadd.s32 %s107, 1
      %s109 = scalar_select %p106, %s107, %s108
      %p112 = pneg %p106
      %p113 = scmp.eq.s32.totalorder %s33, 2
      %p114 = por %p112, %p113
      %p115 = scmp.ne.s32.totalorder %s107, %s110
      %p116 = scmp.eq.s32.totalorder %s33, 0
      %p117 = por %p115, %p116
      %p118 = scmp.ne.s32.totalorder %s107, %s110
      %p119 = scmp.eq.s32.totalorder %s38, 2
      %p120 = por %p118, %p119
      %p121 = scmp.ne.s32.totalorder %s110, %s111
      %p122 = scmp.eq.s32.totalorder %s38, 0
      %p123 = por %p121, %p122
      %p124 = scmp.ne.s32.totalorder %s110, %s111
      %p125 = scmp.eq.s32.totalorder %s39, 2
      %p126 = por %p124, %p125
      %p128 = scmp.ne.s32.totalorder %s111, %s127
      %p129 = scmp.eq.s32.totalorder %s39, 0
      %p130 = por %p128, %p129
      %s131 = ssub.s32 %s40, %s52
      %p132 = scmp.eq.s32.totalorder %s131, 0
      %s134 = sadd.s32 %s133, 1
      %s135 = scalar_select %p132, %s133, %s134
      %p138 = pneg %p132
      %p139 = scmp.eq.s32.totalorder %s33, 2
      %p140 = por %p138, %p139
      %p141 = scmp.ne.s32.totalorder %s133, %s136
      %p142 = scmp.eq.s32.totalorder %s33, 0
      %p143 = por %p141, %p142
      %p144 = scmp.ne.s32.totalorder %s133, %s136
      %p145 = scmp.eq.s32.totalorder %s38, 2
      %p146 = por %p144, %p145
      %p147 = scmp.ne.s32.totalorder %s136, %s137
      %p148 = scmp.eq.s32.totalorder %s38, 0
      %p149 = por %p147, %p148
      %p150 = scmp.ne.s32.totalorder %s136, %s137
      %p151 = scmp.eq.s32.totalorder %s39, 2
      %p152 = por %p150, %p151
      %p154 = scmp.ne.s32.totalorder %s137, %s153
      %p155 = scmp.eq.s32.totalorder %s39, 0
      %p156 = por %p154, %p155
      %s157 = ssub.s32 %s40, %s52
      %p158 = scmp.eq.s32.totalorder %s157, 0
      %s160 = sadd.s32 %s159, 1
      %s161 = scalar_select %p158, %s159, %s160
      %p164 = pneg %p158
      %p165 = scmp.eq.s32.totalorder %s33, 2
      %p166 = por %p164, %p165
      %p167 = scmp.ne.s32.totalorder %s159, %s162
      %p168 = scmp.eq.s32.totalorder %s33, 0
      %p169 = por %p167, %p168
      %p170 = scmp.ne.s32.totalorder %s159, %s162
      %p171 = scmp.eq.s32.totalorder %s38, 2
      %p172 = por %p170, %p171
      %p173 = scmp.ne.s32.totalorder %s162, %s163
      %p174 = scmp.eq.s32.totalorder %s38, 0
      %p175 = por %p173, %p174
      %p176 = scmp.ne.s32.totalorder %s162, %s163
      %p177 = scmp.eq.s32.totalorder %s39, 2
      %p178 = por %p176, %p177
      %p180 = scmp.ne.s32.totalorder %s163, %s179
      %p181 = scmp.eq.s32.totalorder %s39, 0
      %p182 = por %p180, %p181
      %s184 = sadd.s32 %s183, 1
      %p187 = scmp.eq.s32.totalorder %s33, 2
      %p188 = scmp.ne.s32.totalorder %s183, %s185
      %p189 = scmp.eq.s32.totalorder %s33, 0
      %p190 = por %p188, %p189
      %p191 = scmp.ne.s32.totalorder %s183, %s185
      %p192 = scmp.eq.s32.totalorder %s38, 2
      %p193 = por %p191, %p192
      %p194 = scmp.ne.s32.totalorder %s185, %s186
      %p195 = scmp.eq.s32.totalorder %s38, 0
      %p196 = por %p194, %p195
      %p197 = scmp.ne.s32.totalorder %s185, %s186
      %p198 = scmp.eq.s32.totalorder %s39, 2
      %p199 = por %p197, %p198
      %p201 = scmp.ne.s32.totalorder %s186, %s200
      %p202 = scmp.eq.s32.totalorder %s39, 0
      %p203 = por %p201, %p202
      %s204 = ssub.s32 %s41, %s48
      %p205 = scmp.eq.s32.totalorder %s204, 0
      %s207 = sadd.s32 %s206, 1
      %s208 = scalar_select %p205, %s206, %s207
      %p211 = pneg %p205
      %p212 = scmp.eq.s32.totalorder %s33, 2
      %p213 = por %p211, %p212
      %p214 = scmp.ne.s32.totalorder %s206, %s209
      %p215 = scmp.eq.s32.totalorder %s33, 0
      %p216 = por %p214, %p215
      %p217 = scmp.ne.s32.totalorder %s206, %s209
      %p218 = scmp.eq.s32.totalorder %s38, 2
      %p219 = por %p217, %p218
      %p220 = scmp.ne.s32.totalorder %s209, %s210
      %p221 = scmp.eq.s32.totalorder %s38, 0
      %p222 = por %p220, %p221
      %p223 = scmp.ne.s32.totalorder %s209, %s210
      %p224 = scmp.eq.s32.totalorder %s39, 2
      %p225 = por %p223, %p224
      %p227 = scmp.ne.s32.totalorder %s210, %s226
      %p228 = scmp.eq.s32.totalorder %s39, 0
      %p229 = por %p227, %p228
      %s230 = ssub.s32 %s41, %s48
      %p231 = scmp.eq.s32.totalorder %s230, 0
      %s233 = sadd.s32 %s232, 1
      %s234 = scalar_select %p231, %s232, %s233
      %p237 = pneg %p231
      %p238 = scmp.eq.s32.totalorder %s33, 2
      %p239 = por %p237, %p238
      %p240 = scmp.ne.s32.totalorder %s232, %s235
      %p241 = scmp.eq.s32.totalorder %s33, 0
      %p242 = por %p240, %p241
      %p243 = scmp.ne.s32.totalorder %s232, %s235
      %p244 = scmp.eq.s32.totalorder %s38, 2
      %p245 = por %p243, %p244
      %p246 = scmp.ne.s32.totalorder %s235, %s236
      %p247 = scmp.eq.s32.totalorder %s38, 0
      %p248 = por %p246, %p247
      %p249 = scmp.ne.s32.totalorder %s235, %s236
      %p250 = scmp.eq.s32.totalorder %s39, 2
      %p251 = por %p249, %p250
      %p253 = scmp.ne.s32.totalorder %s236, %s252
      %p254 = scmp.eq.s32.totalorder %s39, 0
      %p255 = por %p253, %p254
      %s257 = sadd.s32 %s256, 1
      %p260 = scmp.eq.s32.totalorder %s33, 2
      %p261 = scmp.ne.s32.totalorder %s256, %s258
      %p262 = scmp.eq.s32.totalorder %s33, 0
      %p263 = por %p261, %p262
      %p264 = scmp.ne.s32.totalorder %s256, %s258
      %p265 = scmp.eq.s32.totalorder %s38, 2
      %p266 = por %p264, %p265
      %p267 = scmp.ne.s32.totalorder %s258, %s259
      %p268 = scmp.eq.s32.totalorder %s38, 0
      %p269 = por %p267, %p268
      %p270 = scmp.ne.s32.totalorder %s258, %s259
      %p271 = scmp.eq.s32.totalorder %s39, 2
      %p272 = por %p270, %p271
      %p274 = scmp.ne.s32.totalorder %s259, %s273
      %p275 = scmp.eq.s32.totalorder %s39, 0
      %p276 = por %p274, %p275
      %s278 = sadd.s32 %s277, 1
      %p281 = scmp.eq.s32.totalorder %s33, 2
      %p282 = scmp.ne.s32.totalorder %s277, %s279
      %p283 = scmp.eq.s32.totalorder %s33, 0
      %p284 = por %p282, %p283
      %p285 = scmp.ne.s32.totalorder %s277, %s279
      %p286 = scmp.eq.s32.totalorder %s38, 2
      %p287 = por %p285, %p286
      %p288 = scmp.ne.s32.totalorder %s279, %s280
      %p289 = scmp.eq.s32.totalorder %s38, 0
      %p290 = por %p288, %p289
      %p291 = scmp.ne.s32.totalorder %s279, %s280
      %p292 = scmp.eq.s32.totalorder %s39, 2
      %p293 = por %p291, %p292
      %p295 = scmp.ne.s32.totalorder %s280, %s294
      %p296 = scmp.eq.s32.totalorder %s39, 0
      %p297 = por %p295, %p296
      %s299 = sadd.s32 %s298, 1
      %p302 = scmp.eq.s32.totalorder %s33, 2
      %p303 = scmp.ne.s32.totalorder %s298, %s300
      %p304 = scmp.eq.s32.totalorder %s33, 0
      %p305 = por %p303, %p304
      %p306 = scmp.ne.s32.totalorder %s298, %s300
      %p307 = scmp.eq.s32.totalorder %s38, 2
      %p308 = por %p306, %p307
      %p309 = scmp.ne.s32.totalorder %s300, %s301
      %p310 = scmp.eq.s32.totalorder %s38, 0
      %p311 = por %p309, %p310
      %p312 = scmp.ne.s32.totalorder %s300, %s301
      %p313 = scmp.eq.s32.totalorder %s39, 2
      %p314 = por %p312, %p313
      %p316 = scmp.ne.s32.totalorder %s301, %s315
      %p317 = scmp.eq.s32.totalorder %s39, 0
      %p318 = por %p316, %p317
      %s320 = sadd.s32 %s319, 1
      %p323 = scmp.eq.s32.totalorder %s33, 2
      %p324 = scmp.ne.s32.totalorder %s319, %s321
      %p325 = scmp.eq.s32.totalorder %s33, 0
      %p326 = por %p324, %p325
      %p327 = scmp.ne.s32.totalorder %s319, %s321
      %p328 = scmp.eq.s32.totalorder %s38, 2
      %p329 = por %p327, %p328
      %p330 = scmp.ne.s32.totalorder %s321, %s322
      %p331 = scmp.eq.s32.totalorder %s38, 0
      %p332 = por %p330, %p331
      %p333 = scmp.ne.s32.totalorder %s321, %s322
      %p334 = scmp.eq.s32.totalorder %s39, 2
      %p335 = por %p333, %p334
      %p337 = scmp.ne.s32.totalorder %s322, %s336
      %p338 = scmp.eq.s32.totalorder %s39, 0
      %p339 = por %p337, %p338
      %s341 = sadd.s32 %s340, 1
      %p344 = scmp.eq.s32.totalorder %s33, 2
      %p345 = scmp.ne.s32.totalorder %s340, %s342
      %p346 = scmp.eq.s32.totalorder %s33, 0
      %p347 = por %p345, %p346
      %p348 = scmp.ne.s32.totalorder %s340, %s342
      %p349 = scmp.eq.s32.totalorder %s38, 2
      %p350 = por %p348, %p349
      %p351 = scmp.ne.s32.totalorder %s342, %s343
      %p352 = scmp.eq.s32.totalorder %s38, 0
      %p353 = por %p351, %p352
      %p354 = scmp.ne.s32.totalorder %s342, %s343
      %p355 = scmp.eq.s32.totalorder %s39, 2
      %p356 = por %p354, %p355
      %p358 = scmp.ne.s32.totalorder %s343, %s357
      %p359 = scmp.eq.s32.totalorder %s39, 0
      %p360 = por %p358, %p359
      %s362 = sadd.s32 %s361, 1
      %p365 = scmp.eq.s32.totalorder %s33, 2
      %p366 = scmp.ne.s32.totalorder %s361, %s363
      %p367 = scmp.eq.s32.totalorder %s33, 0
      %p368 = por %p366, %p367
      %p369 = scmp.ne.s32.totalorder %s361, %s363
      %p370 = scmp.eq.s32.totalorder %s38, 2
      %p371 = por %p369, %p370
      %p372 = scmp.ne.s32.totalorder %s363, %s364
      %p373 = scmp.eq.s32.totalorder %s38, 0
      %p374 = por %p372, %p373
      %p375 = scmp.ne.s32.totalorder %s363, %s364
      %p376 = scmp.eq.s32.totalorder %s39, 2
      %p377 = por %p375, %p376
      %p379 = scmp.ne.s32.totalorder %s364, %s378
      %p380 = scmp.eq.s32.totalorder %s39, 0
      %p381 = por %p379, %p380
      %s383 = sadd.s32 %s382, 1
      %p386 = scmp.eq.s32.totalorder %s33, 2
      %p387 = scmp.ne.s32.totalorder %s382, %s384
      %p388 = scmp.eq.s32.totalorder %s33, 0
      %p389 = por %p387, %p388
      %p390 = scmp.ne.s32.totalorder %s382, %s384
      %p391 = scmp.eq.s32.totalorder %s38, 2
      %p392 = por %p390, %p391
      %p393 = scmp.ne.s32.totalorder %s384, %s385
      %p394 = scmp.eq.s32.totalorder %s38, 0
      %p395 = por %p393, %p394
      %p396 = scmp.ne.s32.totalorder %s384, %s385
      %p397 = scmp.eq.s32.totalorder %s39, 2
      %p398 = por %p396, %p397
      %p400 = scmp.ne.s32.totalorder %s385, %s399
      %p401 = scmp.eq.s32.totalorder %s39, 0
      %p402 = por %p400, %p401
      %s404 = sadd.s32 %s403, 1
      %p407 = scmp.eq.s32.totalorder %s33, 2
      %p408 = scmp.ne.s32.totalorder %s403, %s405
      %p409 = scmp.eq.s32.totalorder %s33, 0
      %p410 = por %p408, %p409
      %p411 = scmp.ne.s32.totalorder %s403, %s405
      %p412 = scmp.eq.s32.totalorder %s38, 2
      %p413 = por %p411, %p412
      %p414 = scmp.ne.s32.totalorder %s405, %s406
      %p415 = scmp.eq.s32.totalorder %s38, 0
      %p416 = por %p414, %p415
      %p417 = scmp.ne.s32.totalorder %s405, %s406
      %p418 = scmp.eq.s32.totalorder %s39, 2
      %p419 = por %p417, %p418
      %p421 = scmp.ne.s32.totalorder %s406, %s420
      %p422 = scmp.eq.s32.totalorder %s39, 0
      %p423 = por %p421, %p422
      %s425 = sadd.s32 %s424, 1
      %p428 = scmp.eq.s32.totalorder %s33, 2
      %p429 = scmp.ne.s32.totalorder %s424, %s426
      %p430 = scmp.eq.s32.totalorder %s33, 0
      %p431 = por %p429, %p430
      %p432 = scmp.ne.s32.totalorder %s424, %s426
      %p433 = scmp.eq.s32.totalorder %s38, 2
      %p434 = por %p432, %p433
      %p435 = scmp.ne.s32.totalorder %s426, %s427
      %p436 = scmp.eq.s32.totalorder %s38, 0
      %p437 = por %p435, %p436
      %p438 = scmp.ne.s32.totalorder %s426, %s427
      %p439 = scmp.eq.s32.totalorder %s39, 2
      %p440 = por %p438, %p439
      %p442 = scmp.ne.s32.totalorder %s427, %s441
      %p443 = scmp.eq.s32.totalorder %s39, 0
      %p444 = por %p442, %p443
      %s446 = sadd.s32 %s445, 1
      %p449 = scmp.eq.s32.totalorder %s33, 2
      %p450 = scmp.ne.s32.totalorder %s445, %s447
      %p451 = scmp.eq.s32.totalorder %s33, 0
      %p452 = por %p450, %p451
      %p453 = scmp.ne.s32.totalorder %s445, %s447
      %p454 = scmp.eq.s32.totalorder %s38, 2
      %p455 = por %p453, %p454
      %p456 = scmp.ne.s32.totalorder %s447, %s448
      %p457 = scmp.eq.s32.totalorder %s38, 0
      %p458 = por %p456, %p457
      %p459 = scmp.ne.s32.totalorder %s447, %s448
      %p460 = scmp.eq.s32.totalorder %s39, 2
      %p461 = por %p459, %p460
      %p463 = scmp.ne.s32.totalorder %s448, %s462
      %p464 = scmp.eq.s32.totalorder %s39, 0
      %p465 = por %p463, %p464
      %s466 = ssub.s32 %s40, %s52
      %p467 = scmp.eq.s32.totalorder %s466, 0
      %s469 = sadd.s32 %s468, 1
      %s470 = scalar_select %p467, %s468, %s469
      %p473 = pneg %p467
      %p474 = scmp.eq.s32.totalorder %s33, 2
      %p475 = por %p473, %p474
      %p476 = scmp.ne.s32.totalorder %s468, %s471
      %p477 = scmp.eq.s32.totalorder %s33, 0
      %p478 = por %p476, %p477
      %p479 = scmp.ne.s32.totalorder %s468, %s471
      %p480 = scmp.eq.s32.totalorder %s38, 2
      %p481 = por %p479, %p480
      %p482 = scmp.ne.s32.totalorder %s471, %s472
      %p483 = scmp.eq.s32.totalorder %s38, 0
      %p484 = por %p482, %p483
      %p485 = scmp.ne.s32.totalorder %s471, %s472
      %p486 = scmp.eq.s32.totalorder %s39, 2
      %p487 = por %p485, %p486
      %p489 = scmp.ne.s32.totalorder %s472, %s488
      %p490 = scmp.eq.s32.totalorder %s39, 0
      %p491 = por %p489, %p490
      %p492 = scmp.le.s32.totalorder 1, %s33
      %p493 = scmp.lt.s32.totalorder %s33, 4
      %p494 = pnand %p492, %p493
      %p495 = pneg %p494
      // Predicated region
      $region9: #{mac_forward.18} parent=5 // pred_check
        _
      $region10: #{mac_forward.18} parent=5 // pred_check_branch
        %497 = sbr.rel (%p494) target = $region12
      $region11: #{mac_forward.18} parent=5 // pred_region
        %s498 = ssub.s32 %s33, 1
        // Predicated region
        $region13: #{mac_forward.18} parent=11 // pred_check
          %p499 = pneg %p71
        $region14: #{mac_forward.18} parent=11 // pred_check_branch
          %501 = sbr.rel (%p499) target = $region16
        $region15: #{mac_forward.18} parent=11 // pred_region
          %s503 = ssub.s32 32, 32
          %504 = vsyncadd [#allocation4], %s503
          %s505 = smul.addr %s42, 32
          %s506 = scalar_lea.hbm %s0, %s505
          %s508 = sshll.u32 [#allocation3], 4
          %s509 = int_to_ptr.vmem [resolvable:$true] %s508
          %511 = dma.hbm_to_vmem [thread:$0]  %s506, 32, %s509, [#allocation4]
        $region16: #{mac_forward.18} parent=11 // pred_fallthru
          _
        // Predicated region
        $region17: #{mac_forward.18} parent=11 // pred_check
          %p512 = pneg %p97
        $region18: #{mac_forward.18} parent=11 // pred_check_branch
          %514 = sbr.rel (%p512) target = $region20
        $region19: #{mac_forward.18} parent=11 // pred_region
          %s515 = smul.u32 2, %s42
          %s517 = ssub.s32 256, 256
          %518 = vsyncadd [#allocation7], %s517
          %s519 = smul.addr %s515, 128
          %s520 = scalar_lea.hbm %s1, %s519
          %s521 = sshll.u32 [#allocation6], 4
          %s522 = int_to_ptr.vmem [resolvable:$true] %s521
          %527 = dma.hbm_to_vmem [thread:$0]  %s520, 256, %s522, [#allocation7], 128, 128, 8
        $region20: #{mac_forward.18} parent=11 // pred_fallthru
          _
        // Predicated region
        $region21: #{mac_forward.18} parent=11 // pred_check
          %p528 = pneg %p123
        $region22: #{mac_forward.18} parent=11 // pred_check_branch
          %530 = sbr.rel (%p528) target = $region24
        $region23: #{mac_forward.18} parent=11 // pred_region
          %s531 = smul.u32 2, %s42
          %s533 = ssub.s32 256, 256
          %534 = vsyncadd [#allocation7], %s533
          %s535 = smul.addr %s531, 128
          %s536 = scalar_lea.hbm %s2, %s535
          %s537 = sshll.u32 [#allocation8], 4
          %s538 = int_to_ptr.vmem [resolvable:$true] %s537
          %543 = dma.hbm_to_vmem [thread:$0]  %s536, 256, %s538, [#allocation7], 128, 128, 8
        $region24: #{mac_forward.18} parent=11 // pred_fallthru
          _
        // Predicated region
        $region25: #{mac_forward.18} parent=11 // pred_check
          %p544 = pneg %p149
        $region26: #{mac_forward.18} parent=11 // pred_check_branch
          %546 = sbr.rel (%p544) target = $region28
        $region27: #{mac_forward.18} parent=11 // pred_region
          %s547 = smul.u32 2, %s42
          %s549 = ssub.s32 2048, 2048
          %550 = vsyncadd [#allocation10], %s549
          %s551 = smul.addr %s547, 8
          %s552 = smul.addr %s551, 128
          %s553 = scalar_lea.hbm %s3, %s552
          %s554 = sshll.u32 [#allocation9], 4
          %s555 = int_to_ptr.vmem [resolvable:$true] %s554
          %560 = dma.hbm_to_vmem [thread:$0]  %s553, 2048, %s555, [#allocation10], 128, 128, 8
        $region28: #{mac_forward.18} parent=11 // pred_fallthru
          _
        // Predicated region
        $region29: #{mac_forward.18} parent=11 // pred_check
          %p561 = pneg %p175
        $region30: #{mac_forward.18} parent=11 // pred_check_branch
          %563 = sbr.rel (%p561) target = $region32
        $region31: #{mac_forward.18} parent=11 // pred_region
          %s564 = smul.u32 2, %s42
          %s566 = ssub.s32 2048, 2048
          %567 = vsyncadd [#allocation10], %s566
          %s568 = smul.addr %s564, 8
          %s569 = smul.addr %s568, 128
          %s570 = scalar_lea.hbm %s4, %s569
          %s571 = sshll.u32 [#allocation11], 4
          %s572 = int_to_ptr.vmem [resolvable:$true] %s571
          %577 = dma.hbm_to_vmem [thread:$0]  %s570, 2048, %s572, [#allocation10], 128, 128, 8
        $region32: #{mac_forward.18} parent=11 // pred_fallthru
          _
        // Predicated region
        $region33: #{mac_forward.18} parent=11 // pred_check
          %p578 = pneg %p196
        $region34: #{mac_forward.18} parent=11 // pred_check_branch
          %580 = sbr.rel (%p578) target = $region36
        $region35: #{mac_forward.18} parent=11 // pred_region
          %s582 = ssub.s32 16, 16
          %583 = vsyncadd [#allocation13], %s582
          %s585 = sshll.u32 [#allocation12], 4
          %s586 = int_to_ptr.vmem [resolvable:$true] %s585
          %588 = dma.hbm_to_vmem [thread:$0]  %s5, 16, %s586, [#allocation13]
        $region36: #{mac_forward.18} parent=11 // pred_fallthru
          _
        // Predicated region
        $region37: #{mac_forward.18} parent=11 // pred_check
          %p589 = pneg %p269
        $region38: #{mac_forward.18} parent=11 // pred_check_branch
          %591 = sbr.rel (%p589) target = $region40
        $region39: #{mac_forward.18} parent=11 // pred_region
          %s593 = ssub.s32 16, 16
          %594 = vsyncadd [#allocation7], %s593
          %s596 = sshll.u32 [#allocation16], 4
          %s597 = int_to_ptr.vmem [resolvable:$true] %s596
          %599 = dma.hbm_to_vmem [thread:$0]  %s8, 16, %s597, [#allocation7]
        $region40: #{mac_forward.18} parent=11 // pred_fallthru
          _
        // Predicated region
        $region41: #{mac_forward.18} parent=11 // pred_check
          %p600 = pneg %p290
        $region42: #{mac_forward.18} parent=11 // pred_check_branch
          %602 = sbr.rel (%p600) target = $region44
        $region43: #{mac_forward.18} parent=11 // pred_region
          %s604 = ssub.s32 512, 512
          %605 = vsyncadd [#allocation10], %s604
          %s606 = sshll.u32 [#allocation17], 4
          %s607 = int_to_ptr.vmem [resolvable:$true] %s606
          %612 = dma.hbm_to_vmem [thread:$0]  %s9, 512, %s607, [#allocation10], 128, 128, 8
        $region44: #{mac_forward.18} parent=11 // pred_fallthru
          _
        // Predicated region
        $region45: #{mac_forward.18} parent=11 // pred_check
          %p613 = pneg %p311
        $region46: #{mac_forward.18} parent=11 // pred_check_branch
          %615 = sbr.rel (%p613) target = $region48
        $region47: #{mac_forward.18} parent=11 // pred_region
          %s617 = ssub.s32 16, 16
          %618 = vsyncadd [#allocation13], %s617
          %s620 = sshll.u32 [#allocation18], 4
          %s621 = int_to_ptr.vmem [resolvable:$true] %s620
          %623 = dma.hbm_to_vmem [thread:$0]  %s10, 16, %s621, [#allocation13]
        $region48: #{mac_forward.18} parent=11 // pred_fallthru
          _
        // Predicated region
        $region49: #{mac_forward.18} parent=11 // pred_check
          %p624 = pneg %p332
        $region50: #{mac_forward.18} parent=11 // pred_check_branch
          %626 = sbr.rel (%p624) target = $region52
        $region51: #{mac_forward.18} parent=11 // pred_region
          %s628 = ssub.s32 512, 512
          %629 = vsyncadd [#allocation20], %s628
          %s630 = sshll.u32 [#allocation19], 4
          %s631 = int_to_ptr.vmem [resolvable:$true] %s630
          %636 = dma.hbm_to_vmem [thread:$0]  %s11, 512, %s631, [#allocation20], 128, 128, 8
        $region52: #{mac_forward.18} parent=11 // pred_fallthru
          _
        // Predicated region
        $region53: #{mac_forward.18} parent=11 // pred_check
          %p637 = pneg %p353
        $region54: #{mac_forward.18} parent=11 // pred_check_branch
          %639 = sbr.rel (%p637) target = $region56
        $region55: #{mac_forward.18} parent=11 // pred_region
          %s641 = ssub.s32 512, 512
          %642 = vsyncadd [#allocation20], %s641
          %s643 = sshll.u32 [#allocation21], 4
          %s644 = int_to_ptr.vmem [resolvable:$true] %s643
          %649 = dma.hbm_to_vmem [thread:$0]  %s12, 512, %s644, [#allocation20], 128, 128, 8
        $region56: #{mac_forward.18} parent=11 // pred_fallthru
          _
        // Predicated region
        $region57: #{mac_forward.18} parent=11 // pred_check
          %p650 = pneg %p374
        $region58: #{mac_forward.18} parent=11 // pred_check_branch
          %652 = sbr.rel (%p650) target = $region60
        $region59: #{mac_forward.18} parent=11 // pred_region
          %s654 = ssub.s32 16, 16
          %655 = vsyncadd [#allocation23], %s654
          %s657 = sshll.u32 [#allocation22], 4
          %s658 = int_to_ptr.vmem [resolvable:$true] %s657
          %660 = dma.hbm_to_vmem [thread:$0]  %s13, 16, %s658, [#allocation23]
        $region60: #{mac_forward.18} parent=11 // pred_fallthru
          _
        // Predicated region
        $region61: #{mac_forward.18} parent=11 // pred_check
          %p661 = pneg %p395
        $region62: #{mac_forward.18} parent=11 // pred_check_branch
          %663 = sbr.rel (%p661) target = $region64
        $region63: #{mac_forward.18} parent=11 // pred_region
          %s665 = ssub.s32 16, 16
          %666 = vsyncadd [#allocation23], %s665
          %s668 = sshll.u32 [#allocation24], 4
          %s669 = int_to_ptr.vmem [resolvable:$true] %s668
          %671 = dma.hbm_to_vmem [thread:$0]  %s14, 16, %s669, [#allocation23]
        $region64: #{mac_forward.18} parent=11 // pred_fallthru
          _
        // Predicated region
        $region65: #{mac_forward.18} parent=11 // pred_check
          %p672 = pneg %p416
        $region66: #{mac_forward.18} parent=11 // pred_check_branch
          %674 = sbr.rel (%p672) target = $region68
        $region67: #{mac_forward.18} parent=11 // pred_region
          %s676 = ssub.s32 512, 512
          %677 = vsyncadd [#allocation26], %s676
          %s678 = sshll.u32 [#allocation25], 4
          %s679 = int_to_ptr.vmem [resolvable:$true] %s678
          %684 = dma.hbm_to_vmem [thread:$0]  %s15, 512, %s679, [#allocation26], 128, 128, 8
        $region68: #{mac_forward.18} parent=11 // pred_fallthru
          _
        // Predicated region
        $region69: #{mac_forward.18} parent=11 // pred_check
          %p685 = pneg %p437
        $region70: #{mac_forward.18} parent=11 // pred_check_branch
          %687 = sbr.rel (%p685) target = $region72
        $region71: #{mac_forward.18} parent=11 // pred_region
          %s689 = ssub.s32 512, 512
          %690 = vsyncadd [#allocation26], %s689
          %s691 = sshll.u32 [#allocation27], 4
          %s692 = int_to_ptr.vmem [resolvable:$true] %s691
          %697 = dma.hbm_to_vmem [thread:$0]  %s16, 512, %s692, [#allocation26], 128, 128, 8
        $region72: #{mac_forward.18} parent=11 // pred_fallthru
          _
        // Predicated region
        $region73: #{mac_forward.18} parent=11 // pred_check
          %p698 = pneg %p458
        $region74: #{mac_forward.18} parent=11 // pred_check_branch
          %700 = sbr.rel (%p698) target = $region76
        $region75: #{mac_forward.18} parent=11 // pred_region
          %s702 = ssub.s32 16, 16
          %703 = vsyncadd [#allocation29], %s702
          %s705 = sshll.u32 [#allocation28], 4
          %s706 = int_to_ptr.vmem [resolvable:$true] %s705
          %708 = dma.hbm_to_vmem [thread:$0]  %s17, 16, %s706, [#allocation29]
        $region76: #{mac_forward.18} parent=11 // pred_fallthru
          _
      $region12: #{mac_forward.18} parent=5 // pred_fallthru
        _
      %p709 = scmp.lt.s32.totalorder %s33, 3
      // Predicated region
      $region77: #{mac_forward.18} parent=5 // pred_check
        %p710 = pneg %p709
      $region78: #{mac_forward.18} parent=5 // pred_check_branch
        %712 = sbr.rel (%p710) target = $region80
      $region79: #{mac_forward.18} parent=5 // pred_region
        // Predicated region
        $region81: #{mac_forward.18} parent=79 // pred_check
          %p713 = pneg %p216
        $region82: #{mac_forward.18} parent=79 // pred_check_branch
          %715 = sbr.rel (%p713) target = $region84
        $region83: #{mac_forward.18} parent=79 // pred_region
          %s716 = sand.u32 %s33, 1
          %s717 = scalar_lea.sflag [#allocation4], %s716
          %s718 = sand.u32 %s206, 1
          %s719 = smul.addr %s718, 32
          %s720 = scalar_lea.vmem [#allocation14], %s719
          %s722 = ssub.s32 512, 512
          %723 = vsyncadd %s717, %s722
          %s724 = smul.addr %s41, 4
          %s725 = smul.addr %s724, 128
          %s726 = scalar_lea.hbm %s6, %s725
          %s727 = sshll.u32 %s720, 4
          %s728 = int_to_ptr.vmem [resolvable:$true] %s727
          %733 = dma.hbm_to_vmem [thread:$0]  %s726, 512, %s728, %s717, 128, 128, 8
        $region84: #{mac_forward.18} parent=79 // pred_fallthru
          _
        // Predicated region
        $region85: #{mac_forward.18} parent=79 // pred_check
          %p734 = pneg %p242
        $region86: #{mac_forward.18} parent=79 // pred_check_branch
          %736 = sbr.rel (%p734) target = $region88
        $region87: #{mac_forward.18} parent=79 // pred_region
          %s737 = sand.u32 %s33, 1
          %s738 = scalar_lea.sflag [#allocation4], %s737
          %s739 = sand.u32 %s232, 1
          %s740 = scalar_lea.vmem [#allocation15], %s739
          %s742 = ssub.s32 16, 16
          %743 = vsyncadd %s738, %s742
          %s744 = smul.addr %s41, 16
          %s745 = scalar_lea.hbm %s7, %s744
          %s747 = sshll.u32 %s740, 4
          %s748 = int_to_ptr.vmem [resolvable:$true] %s747
          %750 = dma.hbm_to_vmem [thread:$0]  %s745, 16, %s748, %s738
        $region88: #{mac_forward.18} parent=79 // pred_fallthru
          _
      $region80: #{mac_forward.18} parent=5 // pred_fallthru
        _
      %p751 = scmp.le.s32.totalorder 1, %s33
      %p752 = scmp.lt.s32.totalorder %s33, 4
      %p753 = pnand %p751, %p752
      %p754 = pneg %p753
      // Predicated region
      $region89: #{mac_forward.18} parent=5 // pred_check
        _
      $region90: #{mac_forward.18} parent=5 // pred_check_branch
        %756 = sbr.rel (%p753) target = $region92
      $region91: #{mac_forward.18} parent=5 // pred_region
        %s757 = ssub.s32 %s33, 1
        // Predicated region
        $region93: #{mac_forward.18} parent=91 // pred_check
          %p758 = pneg %p71
        $region94: #{mac_forward.18} parent=91 // pred_check_branch
          %760 = sbr.rel (%p758) target = $region96
        $region95: #{mac_forward.18} parent=91 // pred_region
          %761 = dma.done [#allocation4], 32
        $region96: #{mac_forward.18} parent=91 // pred_fallthru
          _
        // Predicated region
        $region97: #{mac_forward.18} parent=91 // pred_check
          %p762 = pneg %p97
        $region98: #{mac_forward.18} parent=91 // pred_check_branch
          %764 = sbr.rel (%p762) target = $region100
        $region99: #{mac_forward.18} parent=91 // pred_region
          %765 = dma.done [#allocation7], 256
        $region100: #{mac_forward.18} parent=91 // pred_fallthru
          _
        // Predicated region
        $region101: #{mac_forward.18} parent=91 // pred_check
          %p766 = pneg %p123
        $region102: #{mac_forward.18} parent=91 // pred_check_branch
          %768 = sbr.rel (%p766) target = $region104
        $region103: #{mac_forward.18} parent=91 // pred_region
          %769 = dma.done [#allocation7], 256
        $region104: #{mac_forward.18} parent=91 // pred_fallthru
          _
        // Predicated region
        $region105: #{mac_forward.18} parent=91 // pred_check
          %p770 = pneg %p149
        $region106: #{mac_forward.18} parent=91 // pred_check_branch
          %772 = sbr.rel (%p770) target = $region108
        $region107: #{mac_forward.18} parent=91 // pred_region
          %773 = dma.done [#allocation10], 2048
        $region108: #{mac_forward.18} parent=91 // pred_fallthru
          _
        // Predicated region
        $region109: #{mac_forward.18} parent=91 // pred_check
          %p774 = pneg %p175
        $region110: #{mac_forward.18} parent=91 // pred_check_branch
          %776 = sbr.rel (%p774) target = $region112
        $region111: #{mac_forward.18} parent=91 // pred_region
          %777 = dma.done [#allocation10], 2048
        $region112: #{mac_forward.18} parent=91 // pred_fallthru
          _
        // Predicated region
        $region113: #{mac_forward.18} parent=91 // pred_check
          %p778 = pneg %p196
        $region114: #{mac_forward.18} parent=91 // pred_check_branch
          %780 = sbr.rel (%p778) target = $region116
        $region115: #{mac_forward.18} parent=91 // pred_region
          %781 = dma.done [#allocation13], 16
        $region116: #{mac_forward.18} parent=91 // pred_fallthru
          _
        %s782 = sand.u32 %s38, 1
        %s783 = scalar_lea.sflag [#allocation4], %s782
        %s784 = sand.u32 %s209, 1
        %s785 = smul.addr %s784, 32
        %s786 = scalar_lea.vmem [#allocation14], %s785
        // Predicated region
        $region117: #{mac_forward.18} parent=91 // pred_check
          %p787 = pneg %p222
        $region118: #{mac_forward.18} parent=91 // pred_check_branch
          %789 = sbr.rel (%p787) target = $region120
        $region119: #{mac_forward.18} parent=91 // pred_region
          %790 = dma.done %s783, 512
        $region120: #{mac_forward.18} parent=91 // pred_fallthru
          _
        %s791 = sand.u32 %s38, 1
        %s792 = scalar_lea.sflag [#allocation4], %s791
        %s793 = sand.u32 %s235, 1
        %s794 = scalar_lea.vmem [#allocation15], %s793
        // Predicated region
        $region121: #{mac_forward.18} parent=91 // pred_check
          %p795 = pneg %p248
        $region122: #{mac_forward.18} parent=91 // pred_check_branch
          %797 = sbr.rel (%p795) target = $region124
        $region123: #{mac_forward.18} parent=91 // pred_region
          %798 = dma.done %s792, 16
        $region124: #{mac_forward.18} parent=91 // pred_fallthru
          _
        // Predicated region
        $region125: #{mac_forward.18} parent=91 // pred_check
          %p799 = pneg %p269
        $region126: #{mac_forward.18} parent=91 // pred_check_branch
          %801 = sbr.rel (%p799) target = $region128
        $region127: #{mac_forward.18} parent=91 // pred_region
          %802 = dma.done [#allocation7], 16
        $region128: #{mac_forward.18} parent=91 // pred_fallthru
          _
        // Predicated region
        $region129: #{mac_forward.18} parent=91 // pred_check
          %p803 = pneg %p290
        $region130: #{mac_forward.18} parent=91 // pred_check_branch
          %805 = sbr.rel (%p803) target = $region132
        $region131: #{mac_forward.18} parent=91 // pred_region
          %806 = dma.done [#allocation10], 512
        $region132: #{mac_forward.18} parent=91 // pred_fallthru
          _
        // Predicated region
        $region133: #{mac_forward.18} parent=91 // pred_check
          %p807 = pneg %p311
        $region134: #{mac_forward.18} parent=91 // pred_check_branch
          %809 = sbr.rel (%p807) target = $region136
        $region135: #{mac_forward.18} parent=91 // pred_region
          %810 = dma.done [#allocation13], 16
        $region136: #{mac_forward.18} parent=91 // pred_fallthru
          _
        // Predicated region
        $region137: #{mac_forward.18} parent=91 // pred_check
          %p811 = pneg %p332
        $region138: #{mac_forward.18} parent=91 // pred_check_branch
          %813 = sbr.rel (%p811) target = $region140
        $region139: #{mac_forward.18} parent=91 // pred_region
          %814 = dma.done [#allocation20], 512
        $region140: #{mac_forward.18} parent=91 // pred_fallthru
          _
        // Predicated region
        $region141: #{mac_forward.18} parent=91 // pred_check
          %p815 = pneg %p353
        $region142: #{mac_forward.18} parent=91 // pred_check_branch
          %817 = sbr.rel (%p815) target = $region144
        $region143: #{mac_forward.18} parent=91 // pred_region
          %818 = dma.done [#allocation20], 512
        $region144: #{mac_forward.18} parent=91 // pred_fallthru
          _
        // Predicated region
        $region145: #{mac_forward.18} parent=91 // pred_check
          %p819 = pneg %p374
        $region146: #{mac_forward.18} parent=91 // pred_check_branch
          %821 = sbr.rel (%p819) target = $region148
        $region147: #{mac_forward.18} parent=91 // pred_region
          %822 = dma.done [#allocation23], 16
        $region148: #{mac_forward.18} parent=91 // pred_fallthru
          _
        // Predicated region
        $region149: #{mac_forward.18} parent=91 // pred_check
          %p823 = pneg %p395
        $region150: #{mac_forward.18} parent=91 // pred_check_branch
          %825 = sbr.rel (%p823) target = $region152
        $region151: #{mac_forward.18} parent=91 // pred_region
          %826 = dma.done [#allocation23], 16
        $region152: #{mac_forward.18} parent=91 // pred_fallthru
          _
        // Predicated region
        $region153: #{mac_forward.18} parent=91 // pred_check
          %p827 = pneg %p416
        $region154: #{mac_forward.18} parent=91 // pred_check_branch
          %829 = sbr.rel (%p827) target = $region156
        $region155: #{mac_forward.18} parent=91 // pred_region
          %830 = dma.done [#allocation26], 512
        $region156: #{mac_forward.18} parent=91 // pred_fallthru
          _
        // Predicated region
        $region157: #{mac_forward.18} parent=91 // pred_check
          %p831 = pneg %p437
        $region158: #{mac_forward.18} parent=91 // pred_check_branch
          %833 = sbr.rel (%p831) target = $region160
        $region159: #{mac_forward.18} parent=91 // pred_region
          %834 = dma.done [#allocation26], 512
        $region160: #{mac_forward.18} parent=91 // pred_fallthru
          _
        // Predicated region
        $region161: #{mac_forward.18} parent=91 // pred_check
          %p835 = pneg %p458
        $region162: #{mac_forward.18} parent=91 // pred_check_branch
          %837 = sbr.rel (%p835) target = $region164
        $region163: #{mac_forward.18} parent=91 // pred_region
          %838 = dma.done [#allocation29], 16
        $region164: #{mac_forward.18} parent=91 // pred_fallthru
          _
        %p839 = pneg %p71
        %p840 = pneg %p68
        %p841 = pneg %p97
        %p842 = pneg %p94
        %p843 = pneg %p123
        %p844 = pneg %p120
        %p845 = pneg %p149
        %p846 = pneg %p146
        %p847 = pneg %p175
        %p848 = pneg %p172
        %p849 = pneg %p196
        %p850 = pneg %p193
        %s851 = sand.u32 %s38, 1
        %s852 = scalar_lea.sflag [#allocation4], %s851
        %s853 = sand.u32 %s209, 1
        %s854 = smul.addr %s853, 32
        %s855 = scalar_lea.vmem [#allocation14], %s854
        %p856 = pneg %p222
        %p857 = pneg %p219
        %s858 = sand.u32 %s38, 1
        %s859 = scalar_lea.sflag [#allocation4], %s858
        %s860 = sand.u32 %s235, 1
        %s861 = scalar_lea.vmem [#allocation15], %s860
        %p862 = pneg %p248
        %p863 = pneg %p245
        %p864 = pneg %p269
        %p865 = pneg %p266
        %p866 = pneg %p290
        %p867 = pneg %p287
        %p868 = pneg %p311
        %p869 = pneg %p308
        %p870 = pneg %p332
        %p871 = pneg %p329
        %p872 = pneg %p353
        %p873 = pneg %p350
        %p874 = pneg %p374
        %p875 = pneg %p371
        %p876 = pneg %p395
        %p877 = pneg %p392
        %p878 = pneg %p416
        %p879 = pneg %p413
        %p880 = pneg %p437
        %p881 = pneg %p434
        %p882 = pneg %p458
        %p883 = pneg %p455
        %p884 = pneg %p484
        %p885 = pneg %p481
        %s886 = smul.u32 2, %s42
        %s887 = smul.u32 2, %s42
        %s888 = smul.u32 2, %s42
        %s889 = smul.u32 2, %s42
        %p890 = scmp.eq.s32.totalorder %s43, 0
        // Predicated region
        $region165: #{mac_forward.18} parent=91 // pred_check
          %p891 = pneg %p890
        $region166: #{mac_forward.18} parent=91 // pred_check_branch
          %893 = sbr.rel (%p891) target = $region168
        $region167: #{mac_forward.18} parent=91 // pred_region
          %v894 = vld [vmem:[#allocation12] sm:$0x1]
          %v896 = vlaneseq
          %v897 = vshrl.u32 %v896, 7
          %v898 = vsub.s32 0, %v897
          %v899 = vrot.slane %v894, %v898
          %vm901 = vcmask 254976
          %902 = vst.msk [vmem:[#allocation2] sm:$0x3] %vm901, %v899
        $region168: #{mac_forward.18} parent=91 // pred_fallthru
          _
        %v903 = vld [vmem:[#allocation2] sm:$0x3]
        %v904 = vld [vmem:[#allocation3] sm:$0x3]
        %v905 = vld [vmem:[%s786] sm:$0xff]
        %v906 = vld [vmem:[%s786 + $0x8] sm:$0xff]
        %v907 = vld [vmem:[%s786 + $0x10] sm:$0xff]
        %v908 = vld [vmem:[%s786 + $0x18] sm:$0xff]
        %v909 = vld [vmem:[%s794] sm:$0x1]
        %v911 = vlaneseq
        %v912 = vshrl.u32 %v911, 7
        %v913 = vsub.s32 0, %v912
        %v914 = vrot.slane %v909, %v913
        %vm916 = vcmask 261120
        %v918 = vsel %vm916, %v904, 0
        %920 = vmatprep.subr.mxu0 0.0
        %921 = vmatpush1.msra.mxu0 %v905
        %922 = vmatprep.subr.mxu0 0.0
        %923 = vmatpush1.msra.mxu0 %v906
        %924 = vmatprep.subr.mxu0 0.0
        %925 = vmatpush1.msra.mxu0 %v907
        %926 = vmatprep.subr.mxu0 0.0
        %927 = vmatpush1.msra.mxu0 %v908
        %928 = vmatprep.subr.mxu0 0.0
        %929 = vmatpush1.msra.mxu0 0.0
        %930 = vmatprep.subr.mxu0 0.0
        %931 = vmatpush1.msra.mxu0 0.0
        %932 = vmatprep.subr.mxu0 0.0
        %933 = vmatpush1.msra.mxu0 0.0
        %934 = vmatprep.subr.mxu0 0.0
        %935 = vmatpush1.msra.mxu0 0.0
        %936 = vmatprep.subr.mxu0 0.0
        %937 = vmatpush1.msra.mxu0 0.0
        %938 = vmatprep.subr.mxu0 0.0
        %939 = vmatpush1.msra.mxu0 0.0
        %940 = vmatprep.subr.mxu0 0.0
        %941 = vmatpush1.msra.mxu0 0.0
        %942 = vmatprep.subr.mxu0 0.0
        %943 = vmatpush1.msra.mxu0 0.0
        %944 = vmatprep.subr.mxu0 0.0
        %945 = vmatpush1.msra.mxu0 0.0
        %946 = vmatprep.subr.mxu0 0.0
        %947 = vmatpush1.msra.mxu0 0.0
        %948 = vmatprep.subr.mxu0 0.0
        %949 = vmatpush1.msra.mxu0 0.0
        %950 = vmatprep.subr.mxu0 0.0
        %951 = vmatpush1.msra.mxu0 0.0
        %952 = vmatprep.subr.mxu0 0.0
        %953 = vmatpush1.msra.mxu0 0.0
        %954 = vmatprep.subr.mxu0 0.0
        %955 = vmatpush1.msra.mxu0 0.0
        %956 = vmatprep.subr.mxu0 0.0
        %957 = vmatpush1.msra.mxu0 0.0
        %958 = vmatprep.subr.mxu0 0.0
        %959 = vmatpush1.msra.mxu0 0.0
        %960 = vmatprep.subr.mxu0 0.0
        %961 = vmatpush1.msra.mxu0 0.0
        %962 = vmatprep.subr.mxu0 0.0
        %963 = vmatpush1.msra.mxu0 0.0
        %964 = vmatprep.subr.mxu0 0.0
        %965 = vmatpush1.msra.mxu0 0.0
        %966 = vmatprep.subr.mxu0 0.0
        %967 = vmatpush1.msra.mxu0 0.0
        %968 = vmatprep.subr.mxu0 0.0
        %969 = vmatpush1.msra.mxu0 0.0
        %970 = vmatprep.subr.mxu0 0.0
        %971 = vmatpush1.msra.mxu0 0.0
        %972 = vmatprep.subr.mxu0 0.0
        %973 = vmatpush1.msra.mxu0 0.0
        %974 = vmatprep.subr.mxu0 0.0
        %975 = vmatpush1.msra.mxu0 0.0
        %976 = vmatprep.subr.mxu0 0.0
        %977 = vmatpush1.msra.mxu0 0.0
        %978 = vmatprep.subr.mxu0 0.0
        %979 = vmatpush1.msra.mxu0 0.0
        %980 = vmatprep.subr.mxu0 0.0
        %981 = vmatpush1.msra.mxu0 0.0
        %982 = vmatprep.subr.mxu0 0.0
        %983 = vmatpush1.msra.mxu0 0.0
        %984 = vmatprep.mubr.f32.mxu0 0.0
        %985 = vmatmul.mubr.f32.gmra.mrb[0].mxu0 %v918
        %v986 = vpop.f32.mrb[0].mxu0
        %v987 = vadd.f32 %v914, %v986
        %v988 = vpop.f32.mrb[0].mxu0
        %989 = vdwg.mxu0
        %v990 = vld [vmem:[#allocation16] sm:$0x1]
        %v992 = vlaneseq
        %v993 = vshrl.u32 %v992, 7
        %v994 = vsub.s32 0, %v993
        %v995 = vrot.slane %v990, %v994
        %v997 = vmul.f32 %v987, %v995
        %v998 = vld [vmem:[#allocation17] sm:$0xff]
        %v999 = vld [vmem:[#allocation17 + $0x8] sm:$0xff]
        %v1000 = vld [vmem:[#allocation17 + $0x10] sm:$0xff]
        %v1001 = vld [vmem:[#allocation17 + $0x18] sm:$0xff]
        %v1002 = vld [vmem:[#allocation18] sm:$0x1]
        %v1004 = vlaneseq
        %v1005 = vshrl.u32 %v1004, 7
        %v1006 = vsub.s32 0, %v1005
        %v1007 = vrot.slane %v1002, %v1006
        %v1010 = vsel %vm916, %v903, 0
        %1012 = vmatprep.subr.mxu0 0.0
        %1013 = vmatpush1.msra.mxu0 %v998
        %1014 = vmatprep.subr.mxu0 0.0
        %1015 = vmatpush1.msra.mxu0 %v999
        %1016 = vmatprep.subr.mxu0 0.0
        %1017 = vmatpush1.msra.mxu0 %v1000
        %1018 = vmatprep.subr.mxu0 0.0
        %1019 = vmatpush1.msra.mxu0 %v1001
        %1020 = vmatprep.subr.mxu0 0.0
        %1021 = vmatpush1.msra.mxu0 0.0
        %1022 = vmatprep.subr.mxu0 0.0
        %1023 = vmatpush1.msra.mxu0 0.0
        %1024 = vmatprep.subr.mxu0 0.0
        %1025 = vmatpush1.msra.mxu0 0.0
        %1026 = vmatprep.subr.mxu0 0.0
        %1027 = vmatpush1.msra.mxu0 0.0
        %1028 = vmatprep.subr.mxu0 0.0
        %1029 = vmatpush1.msra.mxu0 0.0
        %1030 = vmatprep.subr.mxu0 0.0
        %1031 = vmatpush1.msra.mxu0 0.0
        %1032 = vmatprep.subr.mxu0 0.0
        %1033 = vmatpush1.msra.mxu0 0.0
        %1034 = vmatprep.subr.mxu0 0.0
        %1035 = vmatpush1.msra.mxu0 0.0
        %1036 = vmatprep.subr.mxu0 0.0
        %1037 = vmatpush1.msra.mxu0 0.0
        %1038 = vmatprep.subr.mxu0 0.0
        %1039 = vmatpush1.msra.mxu0 0.0
        %1040 = vmatprep.subr.mxu0 0.0
        %1041 = vmatpush1.msra.mxu0 0.0
        %1042 = vmatprep.subr.mxu0 0.0
        %1043 = vmatpush1.msra.mxu0 0.0
        %1044 = vmatprep.subr.mxu0 0.0
        %1045 = vmatpush1.msra.mxu0 0.0
        %1046 = vmatprep.subr.mxu0 0.0
        %1047 = vmatpush1.msra.mxu0 0.0
        %1048 = vmatprep.subr.mxu0 0.0
        %1049 = vmatpush1.msra.mxu0 0.0
        %1050 = vmatprep.subr.mxu0 0.0
        %1051 = vmatpush1.msra.mxu0 0.0
        %1052 = vmatprep.subr.mxu0 0.0
        %1053 = vmatpush1.msra.mxu0 0.0
        %1054 = vmatprep.subr.mxu0 0.0
        %1055 = vmatpush1.msra.mxu0 0.0
        %1056 = vmatprep.subr.mxu0 0.0
        %1057 = vmatpush1.msra.mxu0 0.0
        %1058 = vmatprep.subr.mxu0 0.0
        %1059 = vmatpush1.msra.mxu0 0.0
        %1060 = vmatprep.subr.mxu0 0.0
        %1061 = vmatpush1.msra.mxu0 0.0
        %1062 = vmatprep.subr.mxu0 0.0
        %1063 = vmatpush1.msra.mxu0 0.0
        %1064 = vmatprep.subr.mxu0 0.0
        %1065 = vmatpush1.msra.mxu0 0.0
        %1066 = vmatprep.subr.mxu0 0.0
        %1067 = vmatpush1.msra.mxu0 0.0
        %1068 = vmatprep.subr.mxu0 0.0
        %1069 = vmatpush1.msra.mxu0 0.0
        %1070 = vmatprep.subr.mxu0 0.0
        %1071 = vmatpush1.msra.mxu0 0.0
        %1072 = vmatprep.subr.mxu0 0.0
        %1073 = vmatpush1.msra.mxu0 0.0
        %1074 = vmatprep.subr.mxu0 0.0
        %1075 = vmatpush1.msra.mxu0 0.0
        %1076 = vmatprep.mubr.f32.mxu0 0.0
        %1077 = vmatmul.mubr.f32.gmra.mrb[0].mxu0 %v1010
        %v1078 = vpop.f32.mrb[0].mxu0
        %v1079 = vadd.f32 %v1007, %v1078
        %v1080 = vpop.f32.mrb[0].mxu0
        %1081 = vdwg.mxu0
        %v1082 = vld [vmem:[#allocation6] sm:$0xff]
        %v1083 = vlaneseq
        %v1084 = vshrl.u32 %v1083, 7
        %v1085 = vsub.s32 0, %v1084
        %v1086 = vrot.slane %v997, %v1085
        %v1087 = vmul.f32 %v1086, %v1082
        %v1088 = vsel %vm916, %v1087, 0.0
        %1089 = vadd.xlane.f32.xlu0 %v1088
        %v1090 = vpop.xlane.xlu0 %1089
        %v1091 = vld [vmem:[#allocation8] sm:$0xff]
        %v1092 = vadd.f32 %v1090, %v1091
        %vm1093 = vcmask 7168
        %v1094 = vsel %vm1093, %v1092, -inf
        %v1095 = vrot.slane %v1094, 4
        %v1096 = vmax.f32 %v1094, %v1095
        %v1097 = vrot.slane %v1096, 2
        %v1098 = vmax.f32 %v1096, %v1097
        %v1099 = vrot.slane %v1098, 1
        %v1100 = vmax.f32 %v1098, %v1099
        %v1101 = vsub.f32 %v1092, %v1100
        %v1102 = vmul.f32 %v1101, 1.442695
        %v1103 = vpow.pop %v1102
        %v1104 = vsel %vm1093, %v1103, 0.0
        %v1105 = vrot.slane %v1104, 4
        %v1106 = vadd.f32 %v1104, %v1105
        %v1107 = vrot.slane %v1106, 2
        %v1108 = vadd.f32 %v1106, %v1107
        %v1109 = vrot.slane %v1108, 1
        %v1110 = vadd.f32 %v1108, %v1109
        %v1111 = vrcp.pop %v1110
        %v1112 = vmul.f32 %v1103, %v1111
        %1114 = vset.pattern.permute.xlu0 0
        %1115 = vperm.xlu0 %1114, %v1112
        %v1116 = vpop.permute.xlu0 %1115
        %v1118 = vmul.f32 %v1116, %v1082
        %v1119 = vsel %vm916, %v1118, 0.0
        %v1120 = vrot.slane %v1119, 4
        %v1121 = vadd.f32 %v1119, %v1120
        %v1122 = vrot.slane %v1121, 2
        %v1123 = vadd.f32 %v1121, %v1122
        %v1124 = vrot.slane %v1123, 1
        %v1125 = vadd.f32 %v1123, %v1124
        %v1126 = vld [vmem:[#allocation9] sm:$0xff]
        %v1127 = vld [vmem:[#allocation9 + $0x8] sm:$0xff]
        %v1128 = vld [vmem:[#allocation9 + $0x10] sm:$0xff]
        %v1129 = vld [vmem:[#allocation9 + $0x18] sm:$0xff]
        %v1130 = vld [vmem:[#allocation9 + $0x20] sm:$0xff]
        %v1131 = vld [vmem:[#allocation9 + $0x28] sm:$0xff]
        %v1132 = vld [vmem:[#allocation9 + $0x30] sm:$0xff]
        %v1133 = vld [vmem:[#allocation9 + $0x38] sm:$0xff]
        %v1134 = vlaneseq
        %v1135 = vshrl.u32 %v1134, 7
        %v1136 = vsub.s32 0, %v1135
        %v1137 = vrot.slane %v1079, %v1136
        %v1138 = vmul.f32 %v1137, %v1126
        %v1139 = vmul.f32 %v1137, %v1127
        %v1140 = vmul.f32 %v1137, %v1128
        %v1141 = vmul.f32 %v1137, %v1129
        %v1142 = vmul.f32 %v1137, %v1130
        %v1143 = vmul.f32 %v1137, %v1131
        %v1144 = vmul.f32 %v1137, %v1132
        %v1145 = vmul.f32 %v1137, %v1133
        %v1146 = vld [vmem:[#allocation19] sm:$0xff]
        %v1147 = vld [vmem:[#allocation19 + $0x8] sm:$0xff]
        %v1148 = vld [vmem:[#allocation19 + $0x10] sm:$0xff]
        %v1149 = vld [vmem:[#allocation19 + $0x18] sm:$0xff]
        %v1150 = vld [vmem:[#allocation11] sm:$0xff]
        %v1151 = vld [vmem:[#allocation11 + $0x8] sm:$0xff]
        %v1152 = vld [vmem:[#allocation11 + $0x10] sm:$0xff]
        %v1153 = vld [vmem:[#allocation11 + $0x18] sm:$0xff]
        %v1154 = vld [vmem:[#allocation11 + $0x20] sm:$0xff]
        %v1155 = vld [vmem:[#allocation11 + $0x28] sm:$0xff]
        %v1156 = vld [vmem:[#allocation11 + $0x30] sm:$0xff]
        %v1157 = vld [vmem:[#allocation11 + $0x38] sm:$0xff]
        %v1159 = vsel %vm916, %v1138, 0
        %v1162 = vsel %vm916, %v1139, 0
        %v1165 = vsel %vm916, %v1140, 0
        %v1168 = vsel %vm916, %v1141, 0
        %v1171 = vsel %vm916, %v1142, 0
        %v1174 = vsel %vm916, %v1143, 0
        %v1177 = vsel %vm916, %v1144, 0
        %v1180 = vsel %vm916, %v1145, 0
        %1182 = vmatprep.subr.mxu0 0.0
        %1183 = vmatpush1.msra.mxu0 %v1146
        %1184 = vmatprep.subr.mxu0 0.0
        %1185 = vmatpush1.msra.mxu0 %v1147
        %1186 = vmatprep.subr.mxu0 0.0
        %1187 = vmatpush1.msra.mxu0 %v1148
        %1188 = vmatprep.subr.mxu0 0.0
        %1189 = vmatpush1.msra.mxu0 %v1149
        %1190 = vmatprep.subr.mxu0 0.0
        %1191 = vmatpush1.msra.mxu0 0.0
        %1192 = vmatprep.subr.mxu0 0.0
        %1193 = vmatpush1.msra.mxu0 0.0
        %1194 = vmatprep.subr.mxu0 0.0
        %1195 = vmatpush1.msra.mxu0 0.0
        %1196 = vmatprep.subr.mxu0 0.0
        %1197 = vmatpush1.msra.mxu0 0.0
        %1198 = vmatprep.subr.mxu0 0.0
        %1199 = vmatpush1.msra.mxu0 0.0
        %1200 = vmatprep.subr.mxu0 0.0
        %1201 = vmatpush1.msra.mxu0 0.0
        %1202 = vmatprep.subr.mxu0 0.0
        %1203 = vmatpush1.msra.mxu0 0.0
        %1204 = vmatprep.subr.mxu0 0.0
        %1205 = vmatpush1.msra.mxu0 0.0
        %1206 = vmatprep.subr.mxu0 0.0
        %1207 = vmatpush1.msra.mxu0 0.0
        %1208 = vmatprep.subr.mxu0 0.0
        %1209 = vmatpush1.msra.mxu0 0.0
        %1210 = vmatprep.subr.mxu0 0.0
        %1211 = vmatpush1.msra.mxu0 0.0
        %1212 = vmatprep.subr.mxu0 0.0
        %1213 = vmatpush1.msra.mxu0 0.0
        %1214 = vmatprep.subr.mxu0 0.0
        %1215 = vmatpush1.msra.mxu0 0.0
        %1216 = vmatprep.subr.mxu0 0.0
        %1217 = vmatpush1.msra.mxu0 0.0
        %1218 = vmatprep.subr.mxu0 0.0
        %1219 = vmatpush1.msra.mxu0 0.0
        %1220 = vmatprep.subr.mxu0 0.0
        %1221 = vmatpush1.msra.mxu0 0.0
        %1222 = vmatprep.subr.mxu0 0.0
        %1223 = vmatpush1.msra.mxu0 0.0
        %1224 = vmatprep.subr.mxu0 0.0
        %1225 = vmatpush1.msra.mxu0 0.0
        %1226 = vmatprep.subr.mxu0 0.0
        %1227 = vmatpush1.msra.mxu0 0.0
        %1228 = vmatprep.subr.mxu0 0.0
        %1229 = vmatpush1.msra.mxu0 0.0
        %1230 = vmatprep.subr.mxu0 0.0
        %1231 = vmatpush1.msra.mxu0 0.0
        %1232 = vmatprep.subr.mxu0 0.0
        %1233 = vmatpush1.msra.mxu0 0.0
        %1234 = vmatprep.subr.mxu0 0.0
        %1235 = vmatpush1.msra.mxu0 0.0
        %1236 = vmatprep.subr.mxu0 0.0
        %1237 = vmatpush1.msra.mxu0 0.0
        %1238 = vmatprep.subr.mxu0 0.0
        %1239 = vmatpush1.msra.mxu0 0.0
        %1240 = vmatprep.subr.mxu0 0.0
        %1241 = vmatpush1.msra.mxu0 0.0
        %1242 = vmatprep.subr.mxu0 0.0
        %1243 = vmatpush1.msra.mxu0 0.0
        %1244 = vmatprep.subr.mxu0 0.0
        %1245 = vmatpush1.msra.mxu0 0.0
        %1246 = vmatprep.mubr.f32.mxu0 0.0
        %1247 = vmatmul.mubr.f32.gmra.mrb[0].mxu0 %v1159
        %v1248 = vpop.f32.mrb[0].mxu0
        %v1249 = vadd.f32 %v1150, %v1248
        %v1250 = vpop.f32.mrb[0].mxu0
        %1251 = vmatprep.mubr.f32.mxu0 0.0
        %1252 = vmatmul.mubr.f32.gmra.mrb[0].mxu0 %v1162
        %v1253 = vpop.f32.mrb[0].mxu0
        %v1254 = vadd.f32 %v1151, %v1253
        %v1255 = vpop.f32.mrb[0].mxu0
        %1256 = vmatprep.mubr.f32.mxu0 0.0
        %1257 = vmatmul.mubr.f32.gmra.mrb[0].mxu0 %v1165
        %v1258 = vpop.f32.mrb[0].mxu0
        %v1259 = vadd.f32 %v1152, %v1258
        %v1260 = vpop.f32.mrb[0].mxu0
        %1261 = vmatprep.mubr.f32.mxu0 0.0
        %1262 = vmatmul.mubr.f32.gmra.mrb[0].mxu0 %v1168
        %v1263 = vpop.f32.mrb[0].mxu0
        %v1264 = vadd.f32 %v1153, %v1263
        %v1265 = vpop.f32.mrb[0].mxu0
        %1266 = vmatprep.mubr.f32.mxu0 0.0
        %1267 = vmatmul.mubr.f32.gmra.mrb[0].mxu0 %v1171
        %v1268 = vpop.f32.mrb[0].mxu0
        %v1269 = vadd.f32 %v1154, %v1268
        %v1270 = vpop.f32.mrb[0].mxu0
        %1271 = vmatprep.mubr.f32.mxu0 0.0
        %1272 = vmatmul.mubr.f32.gmra.mrb[0].mxu0 %v1174
        %v1273 = vpop.f32.mrb[0].mxu0
        %v1274 = vadd.f32 %v1155, %v1273
        %v1275 = vpop.f32.mrb[0].mxu0
        %1276 = vmatprep.mubr.f32.mxu0 0.0
        %1277 = vmatmul.mubr.f32.gmra.mrb[0].mxu0 %v1177
        %v1278 = vpop.f32.mrb[0].mxu0
        %v1279 = vadd.f32 %v1156, %v1278
        %v1280 = vpop.f32.mrb[0].mxu0
        %1281 = vmatprep.mubr.f32.mxu0 0.0
        %1282 = vmatmul.mubr.f32.gmra.mrb[0].mxu0 %v1180
        %v1283 = vpop.f32.mrb[0].mxu0
        %v1284 = vadd.f32 %v1157, %v1283
        %v1285 = vpop.f32.mrb[0].mxu0
        %1286 = vdwg.mxu0
        %vm1287 = vcmp.gt.f32.partialorder %v1249, 0.0
        %vm1288 = vcmp.gt.f32.partialorder %v1254, 0.0
        %vm1289 = vcmp.gt.f32.partialorder %v1259, 0.0
        %vm1290 = vcmp.gt.f32.partialorder %v1264, 0.0
        %vm1291 = vcmp.gt.f32.partialorder %v1269, 0.0
        %vm1292 = vcmp.gt.f32.partialorder %v1274, 0.0
        %vm1293 = vcmp.gt.f32.partialorder %v1279, 0.0
        %vm1294 = vcmp.gt.f32.partialorder %v1284, 0.0
        %v1295 = vmin.f32 %v1249, 0.0
        %v1296 = vmin.f32 %v1254, 0.0
        %v1297 = vmin.f32 %v1259, 0.0
        %v1298 = vmin.f32 %v1264, 0.0
        %v1299 = vmin.f32 %v1269, 0.0
        %v1300 = vmin.f32 %v1274, 0.0
        %v1301 = vmin.f32 %v1279, 0.0
        %v1302 = vmin.f32 %v1284, 0.0
        %v1303 = vmul.f32 %v1295, 1.442695
        %v1304 = vpow.pop %v1303
        %v1305 = vmul.f32 %v1296, 1.442695
        %v1306 = vpow.pop %v1305
        %v1307 = vmul.f32 %v1297, 1.442695
        %v1308 = vpow.pop %v1307
        %v1309 = vmul.f32 %v1298, 1.442695
        %v1310 = vpow.pop %v1309
        %v1311 = vmul.f32 %v1299, 1.442695
        %v1312 = vpow.pop %v1311
        %v1313 = vmul.f32 %v1300, 1.442695
        %v1314 = vpow.pop %v1313
        %v1315 = vmul.f32 %v1301, 1.442695
        %v1316 = vpow.pop %v1315
        %v1317 = vmul.f32 %v1302, 1.442695
        %v1318 = vpow.pop %v1317
        %v1319 = vsub.f32 %v1304, 1.0
        %v1320 = vsub.f32 %v1306, 1.0
        %v1321 = vsub.f32 %v1308, 1.0
        %v1322 = vsub.f32 %v1310, 1.0
        %v1323 = vsub.f32 %v1312, 1.0
        %v1324 = vsub.f32 %v1314, 1.0
        %v1325 = vsub.f32 %v1316, 1.0
        %v1326 = vsub.f32 %v1318, 1.0
        %v1327 = vsel %vm1287, %v1249, %v1319
        %v1328 = vsel %vm1288, %v1254, %v1320
        %v1329 = vsel %vm1289, %v1259, %v1321
        %v1330 = vsel %vm1290, %v1264, %v1322
        %v1331 = vsel %vm1291, %v1269, %v1323
        %v1332 = vsel %vm1292, %v1274, %v1324
        %v1333 = vsel %vm1293, %v1279, %v1325
        %v1334 = vsel %vm1294, %v1284, %v1326
        %v1335 = vld [vmem:[#allocation21] sm:$0xff]
        %v1336 = vld [vmem:[#allocation21 + $0x8] sm:$0xff]
        %v1337 = vld [vmem:[#allocation21 + $0x10] sm:$0xff]
        %v1338 = vld [vmem:[#allocation21 + $0x18] sm:$0xff]
        %v1339 = vld [vmem:[#allocation22] sm:$0x1]
        %v1341 = vlaneseq
        %v1342 = vshrl.u32 %v1341, 7
        %v1343 = vsub.s32 0, %v1342
        %v1344 = vrot.slane %v1339, %v1343
        %v1347 = vsel %vm916, %v1327, 0
        %v1350 = vsel %vm916, %v1328, 0
        %v1353 = vsel %vm916, %v1329, 0
        %v1356 = vsel %vm916, %v1330, 0
        %v1359 = vsel %vm916, %v1331, 0
        %v1362 = vsel %vm916, %v1332, 0
        %v1365 = vsel %vm916, %v1333, 0
        %v1368 = vsel %vm916, %v1334, 0
        %1370 = vmatprep.subr.mxu0 0.0
        %1371 = vmatpush1.msra.mxu0 %v1335
        %1372 = vmatprep.subr.mxu0 0.0
        %1373 = vmatpush1.msra.mxu0 %v1336
        %1374 = vmatprep.subr.mxu0 0.0
        %1375 = vmatpush1.msra.mxu0 %v1337
        %1376 = vmatprep.subr.mxu0 0.0
        %1377 = vmatpush1.msra.mxu0 %v1338
        %1378 = vmatprep.subr.mxu0 0.0
        %1379 = vmatpush1.msra.mxu0 0.0
        %1380 = vmatprep.subr.mxu0 0.0
        %1381 = vmatpush1.msra.mxu0 0.0
        %1382 = vmatprep.subr.mxu0 0.0
        %1383 = vmatpush1.msra.mxu0 0.0
        %1384 = vmatprep.subr.mxu0 0.0
        %1385 = vmatpush1.msra.mxu0 0.0
        %1386 = vmatprep.subr.mxu0 0.0
        %1387 = vmatpush1.msra.mxu0 0.0
        %1388 = vmatprep.subr.mxu0 0.0
        %1389 = vmatpush1.msra.mxu0 0.0
        %1390 = vmatprep.subr.mxu0 0.0
        %1391 = vmatpush1.msra.mxu0 0.0
        %1392 = vmatprep.subr.mxu0 0.0
        %1393 = vmatpush1.msra.mxu0 0.0
        %1394 = vmatprep.subr.mxu0 0.0
        %1395 = vmatpush1.msra.mxu0 0.0
        %1396 = vmatprep.subr.mxu0 0.0
        %1397 = vmatpush1.msra.mxu0 0.0
        %1398 = vmatprep.subr.mxu0 0.0
        %1399 = vmatpush1.msra.mxu0 0.0
        %1400 = vmatprep.subr.mxu0 0.0
        %1401 = vmatpush1.msra.mxu0 0.0
        %1402 = vmatprep.subr.mxu0 0.0
        %1403 = vmatpush1.msra.mxu0 0.0
        %1404 = vmatprep.subr.mxu0 0.0
        %1405 = vmatpush1.msra.mxu0 0.0
        %1406 = vmatprep.subr.mxu0 0.0
        %1407 = vmatpush1.msra.mxu0 0.0
        %1408 = vmatprep.subr.mxu0 0.0
        %1409 = vmatpush1.msra.mxu0 0.0
        %1410 = vmatprep.subr.mxu0 0.0
        %1411 = vmatpush1.msra.mxu0 0.0
        %1412 = vmatprep.subr.mxu0 0.0
        %1413 = vmatpush1.msra.mxu0 0.0
        %1414 = vmatprep.subr.mxu0 0.0
        %1415 = vmatpush1.msra.mxu0 0.0
        %1416 = vmatprep.subr.mxu0 0.0
        %1417 = vmatpush1.msra.mxu0 0.0
        %1418 = vmatprep.subr.mxu0 0.0
        %1419 = vmatpush1.msra.mxu0 0.0
        %1420 = vmatprep.subr.mxu0 0.0
        %1421 = vmatpush1.msra.mxu0 0.0
        %1422 = vmatprep.subr.mxu0 0.0
        %1423 = vmatpush1.msra.mxu0 0.0
        %1424 = vmatprep.subr.mxu0 0.0
        %1425 = vmatpush1.msra.mxu0 0.0
        %1426 = vmatprep.subr.mxu0 0.0
        %1427 = vmatpush1.msra.mxu0 0.0
        %1428 = vmatprep.subr.mxu0 0.0
        %1429 = vmatpush1.msra.mxu0 0.0
        %1430 = vmatprep.subr.mxu0 0.0
        %1431 = vmatpush1.msra.mxu0 0.0
        %1432 = vmatprep.subr.mxu0 0.0
        %1433 = vmatpush1.msra.mxu0 0.0
        %1434 = vmatprep.mubr.f32.mxu0 0.0
        %1435 = vmatmul.mubr.f32.gmra.mrb[0].mxu0 %v1347
        %v1436 = vpop.f32.mrb[0].mxu0
        %v1437 = vadd.f32 %v1344, %v1436
        %v1438 = vpop.f32.mrb[0].mxu0
        %1439 = vmatprep.mubr.f32.mxu0 0.0
        %1440 = vmatmul.mubr.f32.gmra.mrb[0].mxu0 %v1350
        %v1441 = vpop.f32.mrb[0].mxu0
        %v1442 = vadd.f32 %v1344, %v1441
        %v1443 = vpop.f32.mrb[0].mxu0
        %1444 = vmatprep.mubr.f32.mxu0 0.0
        %1445 = vmatmul.mubr.f32.gmra.mrb[0].mxu0 %v1353
        %v1446 = vpop.f32.mrb[0].mxu0
        %v1447 = vadd.f32 %v1344, %v1446
        %v1448 = vpop.f32.mrb[0].mxu0
        %1449 = vmatprep.mubr.f32.mxu0 0.0
        %1450 = vmatmul.mubr.f32.gmra.mrb[0].mxu0 %v1356
        %v1451 = vpop.f32.mrb[0].mxu0
        %v1452 = vadd.f32 %v1344, %v1451
        %v1453 = vpop.f32.mrb[0].mxu0
        %1454 = vmatprep.mubr.f32.mxu0 0.0
        %1455 = vmatmul.mubr.f32.gmra.mrb[0].mxu0 %v1359
        %v1456 = vpop.f32.mrb[0].mxu0
        %v1457 = vadd.f32 %v1344, %v1456
        %v1458 = vpop.f32.mrb[0].mxu0
        %1459 = vmatprep.mubr.f32.mxu0 0.0
        %1460 = vmatmul.mubr.f32.gmra.mrb[0].mxu0 %v1362
        %v1461 = vpop.f32.mrb[0].mxu0
        %v1462 = vadd.f32 %v1344, %v1461
        %v1463 = vpop.f32.mrb[0].mxu0
        %1464 = vmatprep.mubr.f32.mxu0 0.0
        %1465 = vmatmul.mubr.f32.gmra.mrb[0].mxu0 %v1365
        %v1466 = vpop.f32.mrb[0].mxu0
        %v1467 = vadd.f32 %v1344, %v1466
        %v1468 = vpop.f32.mrb[0].mxu0
        %1469 = vmatprep.mubr.f32.mxu0 0.0
        %1470 = vmatmul.mubr.f32.gmra.mrb[0].mxu0 %v1368
        %v1471 = vpop.f32.mrb[0].mxu0
        %v1472 = vadd.f32 %v1344, %v1471
        %v1473 = vpop.f32.mrb[0].mxu0
        %1474 = vdwg.mxu0
        %v1475 = vmul.f32 %v1437, %v1125
        %v1476 = vmul.f32 %v1442, %v1125
        %v1477 = vmul.f32 %v1447, %v1125
        %v1478 = vmul.f32 %v1452, %v1125
        %v1479 = vmul.f32 %v1457, %v1125
        %v1480 = vmul.f32 %v1462, %v1125
        %v1481 = vmul.f32 %v1467, %v1125
        %v1482 = vmul.f32 %v1472, %v1125
        %vm1483 = vcmp.gt.f32.partialorder %v1475, 0.0
        %vm1484 = vcmp.gt.f32.partialorder %v1476, 0.0
        %vm1485 = vcmp.gt.f32.partialorder %v1477, 0.0
        %vm1486 = vcmp.gt.f32.partialorder %v1478, 0.0
        %vm1487 = vcmp.gt.f32.partialorder %v1479, 0.0
        %vm1488 = vcmp.gt.f32.partialorder %v1480, 0.0
        %vm1489 = vcmp.gt.f32.partialorder %v1481, 0.0
        %vm1490 = vcmp.gt.f32.partialorder %v1482, 0.0
        %v1491 = vmin.f32 %v1475, 0.0
        %v1492 = vmin.f32 %v1476, 0.0
        %v1493 = vmin.f32 %v1477, 0.0
        %v1494 = vmin.f32 %v1478, 0.0
        %v1495 = vmin.f32 %v1479, 0.0
        %v1496 = vmin.f32 %v1480, 0.0
        %v1497 = vmin.f32 %v1481, 0.0
        %v1498 = vmin.f32 %v1482, 0.0
        %v1499 = vmul.f32 %v1491, 1.442695
        %v1500 = vpow.pop %v1499
        %v1501 = vmul.f32 %v1492, 1.442695
        %v1502 = vpow.pop %v1501
        %v1503 = vmul.f32 %v1493, 1.442695
        %v1504 = vpow.pop %v1503
        %v1505 = vmul.f32 %v1494, 1.442695
        %v1506 = vpow.pop %v1505
        %v1507 = vmul.f32 %v1495, 1.442695
        %v1508 = vpow.pop %v1507
        %v1509 = vmul.f32 %v1496, 1.442695
        %v1510 = vpow.pop %v1509
        %v1511 = vmul.f32 %v1497, 1.442695
        %v1512 = vpow.pop %v1511
        %v1513 = vmul.f32 %v1498, 1.442695
        %v1514 = vpow.pop %v1513
        %v1515 = vsub.f32 %v1500, 1.0
        %v1516 = vsub.f32 %v1502, 1.0
        %v1517 = vsub.f32 %v1504, 1.0
        %v1518 = vsub.f32 %v1506, 1.0
        %v1519 = vsub.f32 %v1508, 1.0
        %v1520 = vsub.f32 %v1510, 1.0
        %v1521 = vsub.f32 %v1512, 1.0
        %v1522 = vsub.f32 %v1514, 1.0
        %v1523 = vsel %vm1483, %v1475, %v1515
        %v1524 = vsel %vm1484, %v1476, %v1516
        %v1525 = vsel %vm1485, %v1477, %v1517
        %v1526 = vsel %vm1486, %v1478, %v1518
        %v1527 = vsel %vm1487, %v1479, %v1519
        %v1528 = vsel %vm1488, %v1480, %v1520
        %v1529 = vsel %vm1489, %v1481, %v1521
        %v1530 = vsel %vm1490, %v1482, %v1522
        %v1531 = vld [vmem:[#allocation24] sm:$0x1]
        %v1533 = vlaneseq
        %v1534 = vshrl.u32 %v1533, 7
        %v1535 = vsub.s32 0, %v1534
        %v1536 = vrot.slane %v1531, %v1535
        %v1538 = vmul.f32 %v1523, %v1536
        %v1539 = vmul.f32 %v1524, %v1536
        %v1540 = vmul.f32 %v1525, %v1536
        %v1541 = vmul.f32 %v1526, %v1536
        %v1542 = vmul.f32 %v1527, %v1536
        %v1543 = vmul.f32 %v1528, %v1536
        %v1544 = vmul.f32 %v1529, %v1536
        %v1545 = vmul.f32 %v1530, %v1536
        %v1546 = vsel %vm916, %v1538, 0.0
        %1547 = vadd.xlane.f32.xlu0 %v1546
        %v1548 = vpop.xlane.xlu0 %1547
        %v1549 = vsel %vm916, %v1539, 0.0
        %1550 = vadd.xlane.f32.xlu0 %v1549
        %v1551 = vpop.xlane.xlu0 %1550
        %v1552 = vsel %vm916, %v1540, 0.0
        %1553 = vadd.xlane.f32.xlu0 %v1552
        %v1554 = vpop.xlane.xlu0 %1553
        %v1555 = vsel %vm916, %v1541, 0.0
        %1556 = vadd.xlane.f32.xlu0 %v1555
        %v1557 = vpop.xlane.xlu0 %1556
        %v1558 = vsel %vm916, %v1542, 0.0
        %1559 = vadd.xlane.f32.xlu0 %v1558
        %v1560 = vpop.xlane.xlu0 %1559
        %v1561 = vsel %vm916, %v1543, 0.0
        %1562 = vadd.xlane.f32.xlu0 %v1561
        %v1563 = vpop.xlane.xlu0 %1562
        %v1564 = vsel %vm916, %v1544, 0.0
        %1565 = vadd.xlane.f32.xlu0 %v1564
        %v1566 = vpop.xlane.xlu0 %1565
        %v1567 = vsel %vm916, %v1545, 0.0
        %1568 = vadd.xlane.f32.xlu0 %v1567
        %v1569 = vpop.xlane.xlu0 %1568
        %v1570 = vmax.f32 %v1548, %v1560
        %v1571 = vmax.f32 %v1551, %v1563
        %v1572 = vmax.f32 %v1554, %v1566
        %v1573 = vmax.f32 %v1557, %v1569
        %v1574 = vmax.f32 %v1570, %v1571
        %v1575 = vmax.f32 %v1572, %v1573
        %v1576 = vmax.f32 %v1574, %v1575
        %v1577 = vrot.slane %v1576, 4
        %v1578 = vmax.f32 %v1576, %v1577
        %v1579 = vrot.slane %v1578, 2
        %v1580 = vmax.f32 %v1578, %v1579
        %v1581 = vrot.slane %v1580, 1
        %v1582 = vmax.f32 %v1580, %v1581
        %v1583 = vsub.f32 %v1548, %v1582
        %v1584 = vsub.f32 %v1551, %v1582
        %v1585 = vsub.f32 %v1554, %v1582
        %v1586 = vsub.f32 %v1557, %v1582
        %v1587 = vsub.f32 %v1560, %v1582
        %v1588 = vsub.f32 %v1563, %v1582
        %v1589 = vsub.f32 %v1566, %v1582
        %v1590 = vsub.f32 %v1569, %v1582
        %v1591 = vmul.f32 %v1583, 1.442695
        %v1592 = vpow.pop %v1591
        %v1593 = vmul.f32 %v1584, 1.442695
        %v1594 = vpow.pop %v1593
        %v1595 = vmul.f32 %v1585, 1.442695
        %v1596 = vpow.pop %v1595
        %v1597 = vmul.f32 %v1586, 1.442695
        %v1598 = vpow.pop %v1597
        %v1599 = vmul.f32 %v1587, 1.442695
        %v1600 = vpow.pop %v1599
        %v1601 = vmul.f32 %v1588, 1.442695
        %v1602 = vpow.pop %v1601
        %v1603 = vmul.f32 %v1589, 1.442695
        %v1604 = vpow.pop %v1603
        %v1605 = vmul.f32 %v1590, 1.442695
        %v1606 = vpow.pop %v1605
        %v1607 = vadd.f32 %v1592, %v1594
        %v1608 = vadd.f32 %v1607, %v1596
        %v1609 = vadd.f32 %v1608, %v1598
        %v1610 = vadd.f32 %v1609, %v1600
        %v1611 = vadd.f32 %v1610, %v1602
        %v1612 = vadd.f32 %v1611, %v1604
        %v1613 = vadd.f32 %v1612, %v1606
        %v1614 = vrot.slane %v1613, 4
        %v1615 = vadd.f32 %v1613, %v1614
        %v1616 = vrot.slane %v1615, 2
        %v1617 = vadd.f32 %v1615, %v1616
        %v1618 = vrot.slane %v1617, 1
        %v1619 = vadd.f32 %v1617, %v1618
        %v1620 = vrcp.pop %v1619
        %v1621 = vmul.f32 %v1592, %v1620
        %v1622 = vmul.f32 %v1594, %v1620
        %v1623 = vmul.f32 %v1596, %v1620
        %v1624 = vmul.f32 %v1598, %v1620
        %v1625 = vmul.f32 %v1600, %v1620
        %v1626 = vmul.f32 %v1602, %v1620
        %v1627 = vmul.f32 %v1604, %v1620
        %v1628 = vmul.f32 %v1606, %v1620
        %v1629 = vmul.f32 %v1621, %v1126
        %v1630 = vmul.f32 %v1622, %v1127
        %v1631 = vmul.f32 %v1623, %v1128
        %v1632 = vmul.f32 %v1624, %v1129
        %v1633 = vmul.f32 %v1625, %v1130
        %v1634 = vmul.f32 %v1626, %v1131
        %v1635 = vmul.f32 %v1627, %v1132
        %v1636 = vmul.f32 %v1628, %v1133
        %v1637 = vsel %vm916, %v1629, 0.0
        %v1638 = vsel %vm916, %v1630, 0.0
        %v1639 = vadd.f32 %v1637, %v1638
        %v1640 = vsel %vm916, %v1631, 0.0
        %v1641 = vadd.f32 %v1639, %v1640
        %v1642 = vsel %vm916, %v1632, 0.0
        %v1643 = vadd.f32 %v1641, %v1642
        %v1644 = vsel %vm916, %v1633, 0.0
        %v1645 = vadd.f32 %v1643, %v1644
        %v1646 = vsel %vm916, %v1634, 0.0
        %v1647 = vadd.f32 %v1645, %v1646
        %v1648 = vsel %vm916, %v1635, 0.0
        %v1649 = vadd.f32 %v1647, %v1648
        %v1650 = vsel %vm916, %v1636, 0.0
        %v1651 = vadd.f32 %v1649, %v1650
        %v1652 = vrot.slane %v1651, 4
        %v1653 = vadd.f32 %v1651, %v1652
        %v1654 = vrot.slane %v1653, 2
        %v1655 = vadd.f32 %v1653, %v1654
        %v1656 = vrot.slane %v1655, 1
        %v1657 = vadd.f32 %v1655, %v1656
        %s1658 = scalar_lea.vmem [#allocation6], 8
        %v1659 = vld [vmem:[%s1658] sm:$0xff]
        %v1660 = vlaneseq
        %v1661 = vshrl.u32 %v1660, 7
        %v1662 = vsub.s32 1, %v1661
        %v1663 = vrot.slane %v997, %v1662
        %v1664 = vmul.f32 %v1663, %v1659
        %v1665 = vsel %vm916, %v1664, 0.0
        %1666 = vadd.xlane.f32.xlu0 %v1665
        %v1667 = vpop.xlane.xlu0 %1666
        %s1668 = scalar_lea.vmem [#allocation8], 8
        %v1669 = vld [vmem:[%s1668] sm:$0xff]
        %v1670 = vadd.f32 %v1667, %v1669
        %v1671 = vsel %vm1093, %v1670, -inf
        %v1672 = vrot.slane %v1671, 4
        %v1673 = vmax.f32 %v1671, %v1672
        %v1674 = vrot.slane %v1673, 2
        %v1675 = vmax.f32 %v1673, %v1674
        %v1676 = vrot.slane %v1675, 1
        %v1677 = vmax.f32 %v1675, %v1676
        %v1678 = vsub.f32 %v1670, %v1677
        %v1679 = vmul.f32 %v1678, 1.442695
        %v1680 = vpow.pop %v1679
        %v1681 = vsel %vm1093, %v1680, 0.0
        %v1682 = vrot.slane %v1681, 4
        %v1683 = vadd.f32 %v1681, %v1682
        %v1684 = vrot.slane %v1683, 2
        %v1685 = vadd.f32 %v1683, %v1684
        %v1686 = vrot.slane %v1685, 1
        %v1687 = vadd.f32 %v1685, %v1686
        %v1688 = vrcp.pop %v1687
        %v1689 = vmul.f32 %v1680, %v1688
        %1691 = vset.pattern.permute.xlu0 0
        %1692 = vperm.xlu0 %1691, %v1689
        %v1693 = vpop.permute.xlu0 %1692
        %v1695 = vmul.f32 %v1693, %v1659
        %v1696 = vsel %vm916, %v1695, 0.0
        %v1697 = vrot.slane %v1696, 4
        %v1698 = vadd.f32 %v1696, %v1697
        %v1699 = vrot.slane %v1698, 2
        %v1700 = vadd.f32 %v1698, %v1699
        %v1701 = vrot.slane %v1700, 1
        %v1702 = vadd.f32 %v1700, %v1701
        %s1703 = scalar_lea.vmem [#allocation9], 64
        %v1704 = vld [vmem:[%s1703] sm:$0xff]
        %v1705 = vld [vmem:[%s1703 + $0x8] sm:$0xff]
        %v1706 = vld [vmem:[%s1703 + $0x10] sm:$0xff]
        %v1707 = vld [vmem:[%s1703 + $0x18] sm:$0xff]
        %v1708 = vld [vmem:[%s1703 + $0x20] sm:$0xff]
        %v1709 = vld [vmem:[%s1703 + $0x28] sm:$0xff]
        %v1710 = vld [vmem:[%s1703 + $0x30] sm:$0xff]
        %v1711 = vld [vmem:[%s1703 + $0x38] sm:$0xff]
        %v1712 = vlaneseq
        %v1713 = vshrl.u32 %v1712, 7
        %v1714 = vsub.s32 1, %v1713
        %v1715 = vrot.slane %v1079, %v1714
        %v1716 = vmul.f32 %v1715, %v1704
        %v1717 = vmul.f32 %v1715, %v1705
        %v1718 = vmul.f32 %v1715, %v1706
        %v1719 = vmul.f32 %v1715, %v1707
        %v1720 = vmul.f32 %v1715, %v1708
        %v1721 = vmul.f32 %v1715, %v1709
        %v1722 = vmul.f32 %v1715, %v1710
        %v1723 = vmul.f32 %v1715, %v1711
        %s1724 = scalar_lea.vmem [#allocation11], 64
        %v1725 = vld [vmem:[%s1724] sm:$0xff]
        %v1726 = vld [vmem:[%s1724 + $0x8] sm:$0xff]
        %v1727 = vld [vmem:[%s1724 + $0x10] sm:$0xff]
        %v1728 = vld [vmem:[%s1724 + $0x18] sm:$0xff]
        %v1729 = vld [vmem:[%s1724 + $0x20] sm:$0xff]
        %v1730 = vld [vmem:[%s1724 + $0x28] sm:$0xff]
        %v1731 = vld [vmem:[%s1724 + $0x30] sm:$0xff]
        %v1732 = vld [vmem:[%s1724 + $0x38] sm:$0xff]
        %v1734 = vsel %vm916, %v1716, 0
        %v1737 = vsel %vm916, %v1717, 0
        %v1740 = vsel %vm916, %v1718, 0
        %v1743 = vsel %vm916, %v1719, 0
        %v1746 = vsel %vm916, %v1720, 0
        %v1749 = vsel %vm916, %v1721, 0
        %v1752 = vsel %vm916, %v1722, 0
        %v1755 = vsel %vm916, %v1723, 0
        %1757 = vmatprep.subr.mxu0 0.0
        %1758 = vmatpush1.msra.mxu0 %v1146
        %1759 = vmatprep.subr.mxu0 0.0
        %1760 = vmatpush1.msra.mxu0 %v1147
        %1761 = vmatprep.subr.mxu0 0.0
        %1762 = vmatpush1.msra.mxu0 %v1148
        %1763 = vmatprep.subr.mxu0 0.0
        %1764 = vmatpush1.msra.mxu0 %v1149
        %1765 = vmatprep.subr.mxu0 0.0
        %1766 = vmatpush1.msra.mxu0 0.0
        %1767 = vmatprep.subr.mxu0 0.0
        %1768 = vmatpush1.msra.mxu0 0.0
        %1769 = vmatprep.subr.mxu0 0.0
        %1770 = vmatpush1.msra.mxu0 0.0
        %1771 = vmatprep.subr.mxu0 0.0
        %1772 = vmatpush1.msra.mxu0 0.0
        %1773 = vmatprep.subr.mxu0 0.0
        %1774 = vmatpush1.msra.mxu0 0.0
        %1775 = vmatprep.subr.mxu0 0.0
        %1776 = vmatpush1.msra.mxu0 0.0
        %1777 = vmatprep.subr.mxu0 0.0
        %1778 = vmatpush1.msra.mxu0 0.0
        %1779 = vmatprep.subr.mxu0 0.0
        %1780 = vmatpush1.msra.mxu0 0.0
        %1781 = vmatprep.subr.mxu0 0.0
        %1782 = vmatpush1.msra.mxu0 0.0
        %1783 = vmatprep.subr.mxu0 0.0
        %1784 = vmatpush1.msra.mxu0 0.0
        %1785 = vmatprep.subr.mxu0 0.0
        %1786 = vmatpush1.msra.mxu0 0.0
        %1787 = vmatprep.subr.mxu0 0.0
        %1788 = vmatpush1.msra.mxu0 0.0
        %1789 = vmatprep.subr.mxu0 0.0
        %1790 = vmatpush1.msra.mxu0 0.0
        %1791 = vmatprep.subr.mxu0 0.0
        %1792 = vmatpush1.msra.mxu0 0.0
        %1793 = vmatprep.subr.mxu0 0.0
        %1794 = vmatpush1.msra.mxu0 0.0
        %1795 = vmatprep.subr.mxu0 0.0
        %1796 = vmatpush1.msra.mxu0 0.0
        %1797 = vmatprep.subr.mxu0 0.0
        %1798 = vmatpush1.msra.mxu0 0.0
        %1799 = vmatprep.subr.mxu0 0.0
        %1800 = vmatpush1.msra.mxu0 0.0
        %1801 = vmatprep.subr.mxu0 0.0
        %1802 = vmatpush1.msra.mxu0 0.0
        %1803 = vmatprep.subr.mxu0 0.0
        %1804 = vmatpush1.msra.mxu0 0.0
        %1805 = vmatprep.subr.mxu0 0.0
        %1806 = vmatpush1.msra.mxu0 0.0
        %1807 = vmatprep.subr.mxu0 0.0
        %1808 = vmatpush1.msra.mxu0 0.0
        %1809 = vmatprep.subr.mxu0 0.0
        %1810 = vmatpush1.msra.mxu0 0.0
        %1811 = vmatprep.subr.mxu0 0.0
        %1812 = vmatpush1.msra.mxu0 0.0
        %1813 = vmatprep.subr.mxu0 0.0
        %1814 = vmatpush1.msra.mxu0 0.0
        %1815 = vmatprep.subr.mxu0 0.0
        %1816 = vmatpush1.msra.mxu0 0.0
        %1817 = vmatprep.subr.mxu0 0.0
        %1818 = vmatpush1.msra.mxu0 0.0
        %1819 = vmatprep.subr.mxu0 0.0
        %1820 = vmatpush1.msra.mxu0 0.0
        %1821 = vmatprep.mubr.f32.mxu0 0.0
        %1822 = vmatmul.mubr.f32.gmra.mrb[0].mxu0 %v1734
        %v1823 = vpop.f32.mrb[0].mxu0
        %v1824 = vadd.f32 %v1725, %v1823
        %v1825 = vpop.f32.mrb[0].mxu0
        %1826 = vmatprep.mubr.f32.mxu0 0.0
        %1827 = vmatmul.mubr.f32.gmra.mrb[0].mxu0 %v1737
        %v1828 = vpop.f32.mrb[0].mxu0
        %v1829 = vadd.f32 %v1726, %v1828
        %v1830 = vpop.f32.mrb[0].mxu0
        %1831 = vmatprep.mubr.f32.mxu0 0.0
        %1832 = vmatmul.mubr.f32.gmra.mrb[0].mxu0 %v1740
        %v1833 = vpop.f32.mrb[0].mxu0
        %v1834 = vadd.f32 %v1727, %v1833
        %v1835 = vpop.f32.mrb[0].mxu0
        %1836 = vmatprep.mubr.f32.mxu0 0.0
        %1837 = vmatmul.mubr.f32.gmra.mrb[0].mxu0 %v1743
        %v1838 = vpop.f32.mrb[0].mxu0
        %v1839 = vadd.f32 %v1728, %v1838
        %v1840 = vpop.f32.mrb[0].mxu0
        %1841 = vmatprep.mubr.f32.mxu0 0.0
        %1842 = vmatmul.mubr.f32.gmra.mrb[0].mxu0 %v1746
        %v1843 = vpop.f32.mrb[0].mxu0
        %v1844 = vadd.f32 %v1729, %v1843
        %v1845 = vpop.f32.mrb[0].mxu0
        %1846 = vmatprep.mubr.f32.mxu0 0.0
        %1847 = vmatmul.mubr.f32.gmra.mrb[0].mxu0 %v1749
        %v1848 = vpop.f32.mrb[0].mxu0
        %v1849 = vadd.f32 %v1730, %v1848
        %v1850 = vpop.f32.mrb[0].mxu0
        %1851 = vmatprep.mubr.f32.mxu0 0.0
        %1852 = vmatmul.mubr.f32.gmra.mrb[0].mxu0 %v1752
        %v1853 = vpop.f32.mrb[0].mxu0
        %v1854 = vadd.f32 %v1731, %v1853
        %v1855 = vpop.f32.mrb[0].mxu0
        %1856 = vmatprep.mubr.f32.mxu0 0.0
        %1857 = vmatmul.mubr.f32.gmra.mrb[0].mxu0 %v1755
        %v1858 = vpop.f32.mrb[0].mxu0
        %v1859 = vadd.f32 %v1732, %v1858
        %v1860 = vpop.f32.mrb[0].mxu0
        %1861 = vdwg.mxu0
        %vm1862 = vcmp.gt.f32.partialorder %v1824, 0.0
        %vm1863 = vcmp.gt.f32.partialorder %v1829, 0.0
        %vm1864 = vcmp.gt.f32.partialorder %v1834, 0.0
        %vm1865 = vcmp.gt.f32.partialorder %v1839, 0.0
        %vm1866 = vcmp.gt.f32.partialorder %v1844, 0.0
        %vm1867 = vcmp.gt.f32.partialorder %v1849, 0.0
        %vm1868 = vcmp.gt.f32.partialorder %v1854, 0.0
        %vm1869 = vcmp.gt.f32.partialorder %v1859, 0.0
        %v1870 = vmin.f32 %v1824, 0.0
        %v1871 = vmin.f32 %v1829, 0.0
        %v1872 = vmin.f32 %v1834, 0.0
        %v1873 = vmin.f32 %v1839, 0.0
        %v1874 = vmin.f32 %v1844, 0.0
        %v1875 = vmin.f32 %v1849, 0.0
        %v1876 = vmin.f32 %v1854, 0.0
        %v1877 = vmin.f32 %v1859, 0.0
        %v1878 = vmul.f32 %v1870, 1.442695
        %v1879 = vpow.pop %v1878
        %v1880 = vmul.f32 %v1871, 1.442695
        %v1881 = vpow.pop %v1880
        %v1882 = vmul.f32 %v1872, 1.442695
        %v1883 = vpow.pop %v1882
        %v1884 = vmul.f32 %v1873, 1.442695
        %v1885 = vpow.pop %v1884
        %v1886 = vmul.f32 %v1874, 1.442695
        %v1887 = vpow.pop %v1886
        %v1888 = vmul.f32 %v1875, 1.442695
        %v1889 = vpow.pop %v1888
        %v1890 = vmul.f32 %v1876, 1.442695
        %v1891 = vpow.pop %v1890
        %v1892 = vmul.f32 %v1877, 1.442695
        %v1893 = vpow.pop %v1892
        %v1894 = vsub.f32 %v1879, 1.0
        %v1895 = vsub.f32 %v1881, 1.0
        %v1896 = vsub.f32 %v1883, 1.0
        %v1897 = vsub.f32 %v1885, 1.0
        %v1898 = vsub.f32 %v1887, 1.0
        %v1899 = vsub.f32 %v1889, 1.0
        %v1900 = vsub.f32 %v1891, 1.0
        %v1901 = vsub.f32 %v1893, 1.0
        %v1902 = vsel %vm1862, %v1824, %v1894
        %v1903 = vsel %vm1863, %v1829, %v1895
        %v1904 = vsel %vm1864, %v1834, %v1896
        %v1905 = vsel %vm1865, %v1839, %v1897
        %v1906 = vsel %vm1866, %v1844, %v1898
        %v1907 = vsel %vm1867, %v1849, %v1899
        %v1908 = vsel %vm1868, %v1854, %v1900
        %v1909 = vsel %vm1869, %v1859, %v1901
        %v1911 = vsel %vm916, %v1902, 0
        %v1914 = vsel %vm916, %v1903, 0
        %v1917 = vsel %vm916, %v1904, 0
        %v1920 = vsel %vm916, %v1905, 0
        %v1923 = vsel %vm916, %v1906, 0
        %v1926 = vsel %vm916, %v1907, 0
        %v1929 = vsel %vm916, %v1908, 0
        %v1932 = vsel %vm916, %v1909, 0
        %1934 = vmatprep.subr.mxu0 0.0
        %1935 = vmatpush1.msra.mxu0 %v1335
        %1936 = vmatprep.subr.mxu0 0.0
        %1937 = vmatpush1.msra.mxu0 %v1336
        %1938 = vmatprep.subr.mxu0 0.0
        %1939 = vmatpush1.msra.mxu0 %v1337
        %1940 = vmatprep.subr.mxu0 0.0
        %1941 = vmatpush1.msra.mxu0 %v1338
        %1942 = vmatprep.subr.mxu0 0.0
        %1943 = vmatpush1.msra.mxu0 0.0
        %1944 = vmatprep.subr.mxu0 0.0
        %1945 = vmatpush1.msra.mxu0 0.0
        %1946 = vmatprep.subr.mxu0 0.0
        %1947 = vmatpush1.msra.mxu0 0.0
        %1948 = vmatprep.subr.mxu0 0.0
        %1949 = vmatpush1.msra.mxu0 0.0
        %1950 = vmatprep.subr.mxu0 0.0
        %1951 = vmatpush1.msra.mxu0 0.0
        %1952 = vmatprep.subr.mxu0 0.0
        %1953 = vmatpush1.msra.mxu0 0.0
        %1954 = vmatprep.subr.mxu0 0.0
        %1955 = vmatpush1.msra.mxu0 0.0
        %1956 = vmatprep.subr.mxu0 0.0
        %1957 = vmatpush1.msra.mxu0 0.0
        %1958 = vmatprep.subr.mxu0 0.0
        %1959 = vmatpush1.msra.mxu0 0.0
        %1960 = vmatprep.subr.mxu0 0.0
        %1961 = vmatpush1.msra.mxu0 0.0
        %1962 = vmatprep.subr.mxu0 0.0
        %1963 = vmatpush1.msra.mxu0 0.0
        %1964 = vmatprep.subr.mxu0 0.0
        %1965 = vmatpush1.msra.mxu0 0.0
        %1966 = vmatprep.subr.mxu0 0.0
        %1967 = vmatpush1.msra.mxu0 0.0
        %1968 = vmatprep.subr.mxu0 0.0
        %1969 = vmatpush1.msra.mxu0 0.0
        %1970 = vmatprep.subr.mxu0 0.0
        %1971 = vmatpush1.msra.mxu0 0.0
        %1972 = vmatprep.subr.mxu0 0.0
        %1973 = vmatpush1.msra.mxu0 0.0
        %1974 = vmatprep.subr.mxu0 0.0
        %1975 = vmatpush1.msra.mxu0 0.0
        %1976 = vmatprep.subr.mxu0 0.0
        %1977 = vmatpush1.msra.mxu0 0.0
        %1978 = vmatprep.subr.mxu0 0.0
        %1979 = vmatpush1.msra.mxu0 0.0
        %1980 = vmatprep.subr.mxu0 0.0
        %1981 = vmatpush1.msra.mxu0 0.0
        %1982 = vmatprep.subr.mxu0 0.0
        %1983 = vmatpush1.msra.mxu0 0.0
        %1984 = vmatprep.subr.mxu0 0.0
        %1985 = vmatpush1.msra.mxu0 0.0
        %1986 = vmatprep.subr.mxu0 0.0
        %1987 = vmatpush1.msra.mxu0 0.0
        %1988 = vmatprep.subr.mxu0 0.0
        %1989 = vmatpush1.msra.mxu0 0.0
        %1990 = vmatprep.subr.mxu0 0.0
        %1991 = vmatpush1.msra.mxu0 0.0
        %1992 = vmatprep.subr.mxu0 0.0
        %1993 = vmatpush1.msra.mxu0 0.0
        %1994 = vmatprep.subr.mxu0 0.0
        %1995 = vmatpush1.msra.mxu0 0.0
        %1996 = vmatprep.subr.mxu0 0.0
        %1997 = vmatpush1.msra.mxu0 0.0
        %1998 = vmatprep.mubr.f32.mxu0 0.0
        %1999 = vmatmul.mubr.f32.gmra.mrb[0].mxu0 %v1911
        %v2000 = vpop.f32.mrb[0].mxu0
        %v2001 = vadd.f32 %v1344, %v2000
        %v2002 = vpop.f32.mrb[0].mxu0
        %2003 = vmatprep.mubr.f32.mxu0 0.0
        %2004 = vmatmul.mubr.f32.gmra.mrb[0].mxu0 %v1914
        %v2005 = vpop.f32.mrb[0].mxu0
        %v2006 = vadd.f32 %v1344, %v2005
        %v2007 = vpop.f32.mrb[0].mxu0
        %2008 = vmatprep.mubr.f32.mxu0 0.0
        %2009 = vmatmul.mubr.f32.gmra.mrb[0].mxu0 %v1917
        %v2010 = vpop.f32.mrb[0].mxu0
        %v2011 = vadd.f32 %v1344, %v2010
        %v2012 = vpop.f32.mrb[0].mxu0
        %2013 = vmatprep.mubr.f32.mxu0 0.0
        %2014 = vmatmul.mubr.f32.gmra.mrb[0].mxu0 %v1920
        %v2015 = vpop.f32.mrb[0].mxu0
        %v2016 = vadd.f32 %v1344, %v2015
        %v2017 = vpop.f32.mrb[0].mxu0
        %2018 = vmatprep.mubr.f32.mxu0 0.0
        %2019 = vmatmul.mubr.f32.gmra.mrb[0].mxu0 %v1923
        %v2020 = vpop.f32.mrb[0].mxu0
        %v2021 = vadd.f32 %v1344, %v2020
        %v2022 = vpop.f32.mrb[0].mxu0
        %2023 = vmatprep.mubr.f32.mxu0 0.0
        %2024 = vmatmul.mubr.f32.gmra.mrb[0].mxu0 %v1926
        %v2025 = vpop.f32.mrb[0].mxu0
        %v2026 = vadd.f32 %v1344, %v2025
        %v2027 = vpop.f32.mrb[0].mxu0
        %2028 = vmatprep.mubr.f32.mxu0 0.0
        %2029 = vmatmul.mubr.f32.gmra.mrb[0].mxu0 %v1929
        %v2030 = vpop.f32.mrb[0].mxu0
        %v2031 = vadd.f32 %v1344, %v2030
        %v2032 = vpop.f32.mrb[0].mxu0
        %2033 = vmatprep.mubr.f32.mxu0 0.0
        %2034 = vmatmul.mubr.f32.gmra.mrb[0].mxu0 %v1932
        %v2035 = vpop.f32.mrb[0].mxu0
        %v2036 = vadd.f32 %v1344, %v2035
        %v2037 = vpop.f32.mrb[0].mxu0
        %2038 = vdwg.mxu0
        %v2039 = vmul.f32 %v2001, %v1702
        %v2040 = vmul.f32 %v2006, %v1702
        %v2041 = vmul.f32 %v2011, %v1702
        %v2042 = vmul.f32 %v2016, %v1702
        %v2043 = vmul.f32 %v2021, %v1702
        %v2044 = vmul.f32 %v2026, %v1702
        %v2045 = vmul.f32 %v2031, %v1702
        %v2046 = vmul.f32 %v2036, %v1702
        %vm2047 = vcmp.gt.f32.partialorder %v2039, 0.0
        %vm2048 = vcmp.gt.f32.partialorder %v2040, 0.0
        %vm2049 = vcmp.gt.f32.partialorder %v2041, 0.0
        %vm2050 = vcmp.gt.f32.partialorder %v2042, 0.0
        %vm2051 = vcmp.gt.f32.partialorder %v2043, 0.0
        %vm2052 = vcmp.gt.f32.partialorder %v2044, 0.0
        %vm2053 = vcmp.gt.f32.partialorder %v2045, 0.0
        %vm2054 = vcmp.gt.f32.partialorder %v2046, 0.0
        %v2055 = vmin.f32 %v2039, 0.0
        %v2056 = vmin.f32 %v2040, 0.0
        %v2057 = vmin.f32 %v2041, 0.0
        %v2058 = vmin.f32 %v2042, 0.0
        %v2059 = vmin.f32 %v2043, 0.0
        %v2060 = vmin.f32 %v2044, 0.0
        %v2061 = vmin.f32 %v2045, 0.0
        %v2062 = vmin.f32 %v2046, 0.0
        %v2063 = vmul.f32 %v2055, 1.442695
        %v2064 = vpow.pop %v2063
        %v2065 = vmul.f32 %v2056, 1.442695
        %v2066 = vpow.pop %v2065
        %v2067 = vmul.f32 %v2057, 1.442695
        %v2068 = vpow.pop %v2067
        %v2069 = vmul.f32 %v2058, 1.442695
        %v2070 = vpow.pop %v2069
        %v2071 = vmul.f32 %v2059, 1.442695
        %v2072 = vpow.pop %v2071
        %v2073 = vmul.f32 %v2060, 1.442695
        %v2074 = vpow.pop %v2073
        %v2075 = vmul.f32 %v2061, 1.442695
        %v2076 = vpow.pop %v2075
        %v2077 = vmul.f32 %v2062, 1.442695
        %v2078 = vpow.pop %v2077
        %v2079 = vsub.f32 %v2064, 1.0
        %v2080 = vsub.f32 %v2066, 1.0
        %v2081 = vsub.f32 %v2068, 1.0
        %v2082 = vsub.f32 %v2070, 1.0
        %v2083 = vsub.f32 %v2072, 1.0
        %v2084 = vsub.f32 %v2074, 1.0
        %v2085 = vsub.f32 %v2076, 1.0
        %v2086 = vsub.f32 %v2078, 1.0
        %v2087 = vsel %vm2047, %v2039, %v2079
        %v2088 = vsel %vm2048, %v2040, %v2080
        %v2089 = vsel %vm2049, %v2041, %v2081
        %v2090 = vsel %vm2050, %v2042, %v2082
        %v2091 = vsel %vm2051, %v2043, %v2083
        %v2092 = vsel %vm2052, %v2044, %v2084
        %v2093 = vsel %vm2053, %v2045, %v2085
        %v2094 = vsel %vm2054, %v2046, %v2086
        %v2095 = vmul.f32 %v2087, %v1536
        %v2096 = vmul.f32 %v2088, %v1536
        %v2097 = vmul.f32 %v2089, %v1536
        %v2098 = vmul.f32 %v2090, %v1536
        %v2099 = vmul.f32 %v2091, %v1536
        %v2100 = vmul.f32 %v2092, %v1536
        %v2101 = vmul.f32 %v2093, %v1536
        %v2102 = vmul.f32 %v2094, %v1536
        %v2103 = vsel %vm916, %v2095, 0.0
        %2104 = vadd.xlane.f32.xlu0 %v2103
        %v2105 = vpop.xlane.xlu0 %2104
        %v2106 = vsel %vm916, %v2096, 0.0
        %2107 = vadd.xlane.f32.xlu0 %v2106
        %v2108 = vpop.xlane.xlu0 %2107
        %v2109 = vsel %vm916, %v2097, 0.0
        %2110 = vadd.xlane.f32.xlu0 %v2109
        %v2111 = vpop.xlane.xlu0 %2110
        %v2112 = vsel %vm916, %v2098, 0.0
        %2113 = vadd.xlane.f32.xlu0 %v2112
        %v2114 = vpop.xlane.xlu0 %2113
        %v2115 = vsel %vm916, %v2099, 0.0
        %2116 = vadd.xlane.f32.xlu0 %v2115
        %v2117 = vpop.xlane.xlu0 %2116
        %v2118 = vsel %vm916, %v2100, 0.0
        %2119 = vadd.xlane.f32.xlu0 %v2118
        %v2120 = vpop.xlane.xlu0 %2119
        %v2121 = vsel %vm916, %v2101, 0.0
        %2122 = vadd.xlane.f32.xlu0 %v2121
        %v2123 = vpop.xlane.xlu0 %2122
        %v2124 = vsel %vm916, %v2102, 0.0
        %2125 = vadd.xlane.f32.xlu0 %v2124
        %v2126 = vpop.xlane.xlu0 %2125
        %v2127 = vmax.f32 %v2105, %v2117
        %v2128 = vmax.f32 %v2108, %v2120
        %v2129 = vmax.f32 %v2111, %v2123
        %v2130 = vmax.f32 %v2114, %v2126
        %v2131 = vmax.f32 %v2127, %v2128
        %v2132 = vmax.f32 %v2129, %v2130
        %v2133 = vmax.f32 %v2131, %v2132
        %v2134 = vrot.slane %v2133, 4
        %v2135 = vmax.f32 %v2133, %v2134
        %v2136 = vrot.slane %v2135, 2
        %v2137 = vmax.f32 %v2135, %v2136
        %v2138 = vrot.slane %v2137, 1
        %v2139 = vmax.f32 %v2137, %v2138
        %v2140 = vsub.f32 %v2105, %v2139
        %v2141 = vsub.f32 %v2108, %v2139
        %v2142 = vsub.f32 %v2111, %v2139
        %v2143 = vsub.f32 %v2114, %v2139
        %v2144 = vsub.f32 %v2117, %v2139
        %v2145 = vsub.f32 %v2120, %v2139
        %v2146 = vsub.f32 %v2123, %v2139
        %v2147 = vsub.f32 %v2126, %v2139
        %v2148 = vmul.f32 %v2140, 1.442695
        %v2149 = vpow.pop %v2148
        %v2150 = vmul.f32 %v2141, 1.442695
        %v2151 = vpow.pop %v2150
        %v2152 = vmul.f32 %v2142, 1.442695
        %v2153 = vpow.pop %v2152
        %v2154 = vmul.f32 %v2143, 1.442695
        %v2155 = vpow.pop %v2154
        %v2156 = vmul.f32 %v2144, 1.442695
        %v2157 = vpow.pop %v2156
        %v2158 = vmul.f32 %v2145, 1.442695
        %v2159 = vpow.pop %v2158
        %v2160 = vmul.f32 %v2146, 1.442695
        %v2161 = vpow.pop %v2160
        %v2162 = vmul.f32 %v2147, 1.442695
        %v2163 = vpow.pop %v2162
        %v2164 = vadd.f32 %v2149, %v2151
        %v2165 = vadd.f32 %v2164, %v2153
        %v2166 = vadd.f32 %v2165, %v2155
        %v2167 = vadd.f32 %v2166, %v2157
        %v2168 = vadd.f32 %v2167, %v2159
        %v2169 = vadd.f32 %v2168, %v2161
        %v2170 = vadd.f32 %v2169, %v2163
        %v2171 = vrot.slane %v2170, 4
        %v2172 = vadd.f32 %v2170, %v2171
        %v2173 = vrot.slane %v2172, 2
        %v2174 = vadd.f32 %v2172, %v2173
        %v2175 = vrot.slane %v2174, 1
        %v2176 = vadd.f32 %v2174, %v2175
        %v2177 = vrcp.pop %v2176
        %v2178 = vmul.f32 %v2149, %v2177
        %v2179 = vmul.f32 %v2151, %v2177
        %v2180 = vmul.f32 %v2153, %v2177
        %v2181 = vmul.f32 %v2155, %v2177
        %v2182 = vmul.f32 %v2157, %v2177
        %v2183 = vmul.f32 %v2159, %v2177
        %v2184 = vmul.f32 %v2161, %v2177
        %v2185 = vmul.f32 %v2163, %v2177
        %v2186 = vmul.f32 %v2178, %v1704
        %v2187 = vmul.f32 %v2179, %v1705
        %v2188 = vmul.f32 %v2180, %v1706
        %v2189 = vmul.f32 %v2181, %v1707
        %v2190 = vmul.f32 %v2182, %v1708
        %v2191 = vmul.f32 %v2183, %v1709
        %v2192 = vmul.f32 %v2184, %v1710
        %v2193 = vmul.f32 %v2185, %v1711
        %v2194 = vsel %vm916, %v2186, 0.0
        %v2195 = vsel %vm916, %v2187, 0.0
        %v2196 = vadd.f32 %v2194, %v2195
        %v2197 = vsel %vm916, %v2188, 0.0
        %v2198 = vadd.f32 %v2196, %v2197
        %v2199 = vsel %vm916, %v2189, 0.0
        %v2200 = vadd.f32 %v2198, %v2199
        %v2201 = vsel %vm916, %v2190, 0.0
        %v2202 = vadd.f32 %v2200, %v2201
        %v2203 = vsel %vm916, %v2191, 0.0
        %v2204 = vadd.f32 %v2202, %v2203
        %v2205 = vsel %vm916, %v2192, 0.0
        %v2206 = vadd.f32 %v2204, %v2205
        %v2207 = vsel %vm916, %v2193, 0.0
        %v2208 = vadd.f32 %v2206, %v2207
        %v2209 = vrot.slane %v2208, 4
        %v2210 = vadd.f32 %v2208, %v2209
        %v2211 = vrot.slane %v2210, 2
        %v2212 = vadd.f32 %v2210, %v2211
        %v2213 = vrot.slane %v2212, 1
        %v2214 = vadd.f32 %v2212, %v2213
        %vm2215 = vcmask 1040384
        %v2216 = vsel %vm2215, %v1657, %v2214
        %v2217 = vld [vmem:[#allocation25] sm:$0xff]
        %v2218 = vld [vmem:[#allocation25 + $0x8] sm:$0xff]
        %v2219 = vld [vmem:[#allocation25 + $0x10] sm:$0xff]
        %v2220 = vld [vmem:[#allocation25 + $0x18] sm:$0xff]
        %v2221 = vld [vmem:[#allocation27] sm:$0xff]
        %v2222 = vld [vmem:[#allocation27 + $0x8] sm:$0xff]
        %v2223 = vld [vmem:[#allocation27 + $0x10] sm:$0xff]
        %v2224 = vld [vmem:[#allocation27 + $0x18] sm:$0xff]
        %v2226 = vsel %vm916, %v2216, 0
        %2228 = vmatprep.subr.mxu0 0.0
        %2229 = vmatpush1.msra.mxu0 %v2221
        %2230 = vmatprep.subr.mxu0 0.0
        %2231 = vmatpush1.msra.mxu0 %v2222
        %2232 = vmatprep.subr.mxu0 0.0
        %2233 = vmatpush1.msra.mxu0 %v2223
        %2234 = vmatprep.subr.mxu0 0.0
        %2235 = vmatpush1.msra.mxu0 %v2224
        %2236 = vmatprep.subr.mxu0 0.0
        %2237 = vmatpush1.msra.mxu0 0.0
        %2238 = vmatprep.subr.mxu0 0.0
        %2239 = vmatpush1.msra.mxu0 0.0
        %2240 = vmatprep.subr.mxu0 0.0
        %2241 = vmatpush1.msra.mxu0 0.0
        %2242 = vmatprep.subr.mxu0 0.0
        %2243 = vmatpush1.msra.mxu0 0.0
        %2244 = vmatprep.subr.mxu0 0.0
        %2245 = vmatpush1.msra.mxu0 0.0
        %2246 = vmatprep.subr.mxu0 0.0
        %2247 = vmatpush1.msra.mxu0 0.0
        %2248 = vmatprep.subr.mxu0 0.0
        %2249 = vmatpush1.msra.mxu0 0.0
        %2250 = vmatprep.subr.mxu0 0.0
        %2251 = vmatpush1.msra.mxu0 0.0
        %2252 = vmatprep.subr.mxu0 0.0
        %2253 = vmatpush1.msra.mxu0 0.0
        %2254 = vmatprep.subr.mxu0 0.0
        %2255 = vmatpush1.msra.mxu0 0.0
        %2256 = vmatprep.subr.mxu0 0.0
        %2257 = vmatpush1.msra.mxu0 0.0
        %2258 = vmatprep.subr.mxu0 0.0
        %2259 = vmatpush1.msra.mxu0 0.0
        %2260 = vmatprep.subr.mxu0 0.0
        %2261 = vmatpush1.msra.mxu0 0.0
        %2262 = vmatprep.subr.mxu0 0.0
        %2263 = vmatpush1.msra.mxu0 0.0
        %2264 = vmatprep.subr.mxu0 0.0
        %2265 = vmatpush1.msra.mxu0 0.0
        %2266 = vmatprep.subr.mxu0 0.0
        %2267 = vmatpush1.msra.mxu0 0.0
        %2268 = vmatprep.subr.mxu0 0.0
        %2269 = vmatpush1.msra.mxu0 0.0
        %2270 = vmatprep.subr.mxu0 0.0
        %2271 = vmatpush1.msra.mxu0 0.0
        %2272 = vmatprep.subr.mxu0 0.0
        %2273 = vmatpush1.msra.mxu0 0.0
        %2274 = vmatprep.subr.mxu0 0.0
        %2275 = vmatpush1.msra.mxu0 0.0
        %2276 = vmatprep.subr.mxu0 0.0
        %2277 = vmatpush1.msra.mxu0 0.0
        %2278 = vmatprep.subr.mxu0 0.0
        %2279 = vmatpush1.msra.mxu0 0.0
        %2280 = vmatprep.subr.mxu0 0.0
        %2281 = vmatpush1.msra.mxu0 0.0
        %2282 = vmatprep.subr.mxu0 0.0
        %2283 = vmatpush1.msra.mxu0 0.0
        %2284 = vmatprep.subr.mxu0 0.0
        %2285 = vmatpush1.msra.mxu0 0.0
        %2286 = vmatprep.subr.mxu0 0.0
        %2287 = vmatpush1.msra.mxu0 0.0
        %2288 = vmatprep.subr.mxu0 0.0
        %2289 = vmatpush1.msra.mxu0 0.0
        %2290 = vmatprep.subr.mxu0 0.0
        %2291 = vmatpush1.msra.mxu0 0.0
        %2292 = vmatprep.mubr.f32.mxu0 0.0
        %2293 = vmatmul.mubr.f32.gmra.mrb[0].mxu0 %v2226
        %v2294 = vpop.f32.mrb[0].mxu0
        %v2295 = vadd.f32 0.0, %v2294
        %v2296 = vpop.f32.mrb[0].mxu0
        %2297 = vdwg.mxu0
        %2298 = vmatprep.subr.mxu0 0.0
        %2299 = vmatpush1.msra.mxu0 %v2217
        %2300 = vmatprep.subr.mxu0 0.0
        %2301 = vmatpush1.msra.mxu0 %v2218
        %2302 = vmatprep.subr.mxu0 0.0
        %2303 = vmatpush1.msra.mxu0 %v2219
        %2304 = vmatprep.subr.mxu0 0.0
        %2305 = vmatpush1.msra.mxu0 %v2220
        %2306 = vmatprep.subr.mxu0 0.0
        %2307 = vmatpush1.msra.mxu0 0.0
        %2308 = vmatprep.subr.mxu0 0.0
        %2309 = vmatpush1.msra.mxu0 0.0
        %2310 = vmatprep.subr.mxu0 0.0
        %2311 = vmatpush1.msra.mxu0 0.0
        %2312 = vmatprep.subr.mxu0 0.0
        %2313 = vmatpush1.msra.mxu0 0.0
        %2314 = vmatprep.subr.mxu0 0.0
        %2315 = vmatpush1.msra.mxu0 0.0
        %2316 = vmatprep.subr.mxu0 0.0
        %2317 = vmatpush1.msra.mxu0 0.0
        %2318 = vmatprep.subr.mxu0 0.0
        %2319 = vmatpush1.msra.mxu0 0.0
        %2320 = vmatprep.subr.mxu0 0.0
        %2321 = vmatpush1.msra.mxu0 0.0
        %2322 = vmatprep.subr.mxu0 0.0
        %2323 = vmatpush1.msra.mxu0 0.0
        %2324 = vmatprep.subr.mxu0 0.0
        %2325 = vmatpush1.msra.mxu0 0.0
        %2326 = vmatprep.subr.mxu0 0.0
        %2327 = vmatpush1.msra.mxu0 0.0
        %2328 = vmatprep.subr.mxu0 0.0
        %2329 = vmatpush1.msra.mxu0 0.0
        %2330 = vmatprep.subr.mxu0 0.0
        %2331 = vmatpush1.msra.mxu0 0.0
        %2332 = vmatprep.subr.mxu0 0.0
        %2333 = vmatpush1.msra.mxu0 0.0
        %2334 = vmatprep.subr.mxu0 0.0
        %2335 = vmatpush1.msra.mxu0 0.0
        %2336 = vmatprep.subr.mxu0 0.0
        %2337 = vmatpush1.msra.mxu0 0.0
        %2338 = vmatprep.subr.mxu0 0.0
        %2339 = vmatpush1.msra.mxu0 0.0
        %2340 = vmatprep.subr.mxu0 0.0
        %2341 = vmatpush1.msra.mxu0 0.0
        %2342 = vmatprep.subr.mxu0 0.0
        %2343 = vmatpush1.msra.mxu0 0.0
        %2344 = vmatprep.subr.mxu0 0.0
        %2345 = vmatpush1.msra.mxu0 0.0
        %2346 = vmatprep.subr.mxu0 0.0
        %2347 = vmatpush1.msra.mxu0 0.0
        %2348 = vmatprep.subr.mxu0 0.0
        %2349 = vmatpush1.msra.mxu0 0.0
        %2350 = vmatprep.subr.mxu0 0.0
        %2351 = vmatpush1.msra.mxu0 0.0
        %2352 = vmatprep.subr.mxu0 0.0
        %2353 = vmatpush1.msra.mxu0 0.0
        %2354 = vmatprep.subr.mxu0 0.0
        %2355 = vmatpush1.msra.mxu0 0.0
        %2356 = vmatprep.subr.mxu0 0.0
        %2357 = vmatpush1.msra.mxu0 0.0
        %2358 = vmatprep.subr.mxu0 0.0
        %2359 = vmatpush1.msra.mxu0 0.0
        %2360 = vmatprep.subr.mxu0 0.0
        %2361 = vmatpush1.msra.mxu0 0.0
        %2362 = vmatprep.mubr.f32.mxu0 0.0
        %2363 = vmatmul.mubr.f32.gmra.mrb[0].mxu0 %v1010
        %v2364 = vpop.f32.mrb[0].mxu0
        %v2365 = vadd.f32 %v2295, %v2364
        %v2366 = vpop.f32.mrb[0].mxu0
        %2367 = vdwg.mxu0
        %v2368 = vld [vmem:[#allocation28] sm:$0x1]
        %v2370 = vlaneseq
        %v2371 = vshrl.u32 %v2370, 7
        %v2372 = vsub.s32 0, %v2371
        %v2373 = vrot.slane %v2368, %v2372
        %v2375 = vadd.f32 %v2365, %v2373
        %vm2376 = vcmask 254976
        %2377 = vst.msk [vmem:[#allocation2] sm:$0x3] %vm2376, %v2375
        %p2378 = scmp.eq.s32.totalorder %s43, 2
        // Predicated region
        $region169: #{mac_forward.18} parent=91 // pred_check
          %p2379 = pneg %p2378
        $region170: #{mac_forward.18} parent=91 // pred_check_branch
          %2381 = sbr.rel (%p2379) target = $region172
        $region171: #{mac_forward.18} parent=91 // pred_region
          %2382 = vst.msk [vmem:[#allocation30] sm:$0x3] %vm2376, %v2375
        $region172: #{mac_forward.18} parent=91 // pred_fallthru
          _
        // Predicated region
        $region173: #{mac_forward.18} parent=91 // pred_check
          %p2383 = pneg %p481
        $region174: #{mac_forward.18} parent=91 // pred_check_branch
          %2385 = sbr.rel (%p2383) target = $region176
        $region175: #{mac_forward.18} parent=91 // pred_region
          %s2387 = ssub.s32 32, 32
          %2388 = vsyncadd [#allocation5], %s2387
          %s2389 = smul.addr %s42, 32
          %s2390 = scalar_lea.hbm %s18, %s2389
          %s2392 = sshll.u32 [#allocation30], 4
          %s2393 = int_to_ptr.vmem [resolvable:$true] %s2392
          %2395 = dma.vmem_to_hbm [thread:$0]  %s2393, 32, %s2390, [#allocation5]
        $region176: #{mac_forward.18} parent=91 // pred_fallthru
          _
        // Predicated region
        $region177: #{mac_forward.18} parent=91 // pred_check
          %p2396 = pneg %p481
        $region178: #{mac_forward.18} parent=91 // pred_check_branch
          %2398 = sbr.rel (%p2396) target = $region180
        $region179: #{mac_forward.18} parent=91 // pred_region
          %2399 = dma.done [#allocation5], 32
        $region180: #{mac_forward.18} parent=91 // pred_fallthru
          _
      $region92: #{mac_forward.18} parent=5 // pred_fallthru
        _
      %p2400 = scmp.le.s32.totalorder 2, %s33
      // Predicated region
      $region181: #{mac_forward.18} parent=5 // pred_check
        %p2401 = pneg %p2400
      $region182: #{mac_forward.18} parent=5 // pred_check_branch
        %2403 = sbr.rel (%p2401) target = $region184
      $region183: #{mac_forward.18} parent=5 // pred_region
        %s2404 = ssub.s32 %s33, 2
      $region184: #{mac_forward.18} parent=5 // pred_fallthru
        _
    $region6: #{mac_forward.18} parent=1 // loop_footer
      %s37 = sadd.s32 1, %s33
    $region7: #{mac_forward.18} parent=1 // loop_footer_branch
      %32 = sbr.rel target = $region3
    $region8: #{mac_forward.18} parent=1 // loop_exit
      _
    %2405 = vsyncpa [#allocation4], 1
    %s2406 = scalar_lea.sflag [#allocation4], 1
    %2407 = vsyncpa %s2406, 1
    %2408 = vsyncpa [#allocation7], 1
    %2409 = vsyncpa [#allocation10], 1
    %2410 = vsyncpa [#allocation13], 1
    %2411 = vsyncpa [#allocation20], 1
    %2412 = vsyncpa [#allocation23], 1
    %2413 = vsyncpa [#allocation26], 1
    %2414 = vsyncpa [#allocation29], 1
    %2415 = vsyncpa [#allocation5], 1
    %s2416 = scalar_lea.sflag [#allocation5], 1
    %2417 = vsyncpa %s2416, 1

</llo_original>
